<compile_context>
chip_gen: v7x
topology: tpu7x:2x2x1
jax: 0.10.0
libtpu: 0.0.40
codegen_flags: <defaults>
</compile_context>

<pallas_src>
import numpy as np
import jax
import jax.numpy as jnp
from jax import lax
from jax.experimental import pallas as pl
from jax.experimental.pallas import tpu as pltpu


# --------------------------------------------------------------------------
# Kernel 1: fused conv1 + ReLU + conv2 + ReLU (VMEM resident, Toeplitz GEMMs)
# --------------------------------------------------------------------------
def conv_stack_kernel(x_ref, w1t_ref, w2t_ref, o_ref,
                      xpad_ref, y1p_ref, ptmp_ref):
    # x_ref:   (N, 16, 16) f32       input (C=1 dropped)
    # w1t_ref: (4, 16, 304) f32      conv1 Toeplitz taps, one block per kh
    # w2t_ref: (4, 304, 256) bf16    conv2 Toeplitz taps, one block per kh
    # o_ref:   (N*16, 256) bf16      conv2 activation, row=(n,h), lane=w*16+c
    # xpad_ref:(N, 24, 20->16) f32   row-padded conv1 input (cols unpadded)
    # y1p_ref: (N, 19, 304) f32      padded conv1 activation, lane = wp*16+c
    # ptmp_ref:(N, 24, 304) f32      per-kh conv1 GEMM partial
    n = x_ref.shape[0]

    # ---- conv1 (1 -> 16 ch, k=4, pad=2) as 4 accumulated Toeplitz GEMMs.
    # Row padding lives in xpad (rows 2..17 hold the image); column padding is
    # baked into w1t.  kh partials are accumulated in values (no per-tap RMW).
    xpad_ref[...] = jnp.zeros_like(xpad_ref)
    xpad_ref[:, 2:18, :] = x_ref[...]
    xflat = xpad_ref[...].reshape(n * 24, 16)          # 24 = 3 sublane tiles -> free

    acc1 = jnp.zeros((n, 17, 304), jnp.float32)
    for kh in range(4):
        ptmp_ref[...] = jnp.dot(
            xflat, w1t_ref[kh],
            preferred_element_type=jnp.float32).reshape(n, 24, 304)
        acc1 = acc1 + ptmp_ref[:, kh:kh + 17, :]

    # ReLU + write into the padded conv2 input.  Border rows (hp=0,18) and the
    # zero columns at wp=0/18 stay zero (zero-fill + zero Toeplitz columns).
    y1p_ref[...] = jnp.zeros_like(y1p_ref)
    y1p_ref[:, 1:18, :] = jnp.maximum(acc1, 0.0)

    # ---- conv2 (16 -> 16 ch, k=4, pad=1): 4 accumulated (n*16,304)@(304,256)
    # bf16 GEMMs; output already lane-dense in (w*16+c) order.
    acc2 = jnp.zeros((n * 16, 256), jnp.float32)
    for kh in range(4):
        lhs = y1p_ref[:, kh:kh + 16, :].reshape(n * 16, 304).astype(jnp.bfloat16)
        acc2 = acc2 + jnp.dot(lhs, w2t_ref[kh],
                              preferred_element_type=jnp.float32)
    o_ref[...] = jnp.maximum(acc2, 0.0).astype(jnp.bfloat16)


def conv_stack(x3d, w1t, w2t):
    n = x3d.shape[0]
    vmem = pl.BlockSpec(memory_space=pltpu.MemorySpace.VMEM)   # whole array, VMEM
    return pl.pallas_call(
        conv_stack_kernel,
        in_specs=[vmem, vmem, vmem],
        out_specs=vmem,
        out_shape=jax.ShapeDtypeStruct((n * 16, 256), jnp.bfloat16),
        scratch_shapes=[pltpu.VMEM((n, 24, 16), jnp.float32),    # padded conv1 in
                        pltpu.VMEM((n, 19, 304), jnp.float32),   # padded conv1 act
                        pltpu.VMEM((n, 24, 304), jnp.float32)],  # conv1 kh partial
    )(x3d, w1t, w2t)


# --------------------------------------------------------------------------
# Kernel 2: fused Linear(4096->512) + ReLU + Linear(512->16)
#           (bf16 activation/weight streamed over a K grid, f32 accumulate)
# --------------------------------------------------------------------------
def mlp_kernel(x_ref, w1_ref, b1_ref, w2_ref, b2_ref, o_ref, acc_ref):
    k = pl.program_id(0)

    @pl.when(k == 0)
    def _():
        acc_ref[...] = jnp.zeros_like(acc_ref)

    # bf16 x bf16 -> f32 accumulate (activation already bf16, no per-step cast).
    acc_ref[...] += jnp.dot(x_ref[...], w1_ref[...],
                            preferred_element_type=jnp.float32)

    @pl.when(k == pl.num_programs(0) - 1)
    def _():
        h = jnp.maximum(acc_ref[...] + b1_ref[...], 0.0)
        o_ref[...] = (jnp.dot(h, w2_ref[...],
                              preferred_element_type=jnp.float32)
                      + b2_ref[...])


def mlp(flat, w1_bf16, b1, w2, b2, *, block_k=2048):
    n, kdim = flat.shape
    hdim = w1_bf16.shape[1]
    odim = w2.shape[1]
    assert kdim % block_k == 0
    return pl.pallas_call(
        mlp_kernel,
        grid=(kdim // block_k,),
        in_specs=[pl.BlockSpec((n, block_k), lambda k: (0, k)),
                  pl.BlockSpec((block_k, hdim), lambda k: (k, 0)),
                  pl.BlockSpec((1, hdim), lambda k: (0, 0)),
                  pl.BlockSpec((hdim, odim), lambda k: (0, 0)),
                  pl.BlockSpec((1, odim), lambda k: (0, 0))],
        out_specs=pl.BlockSpec((n, odim), lambda k: (0, 0)),
        out_shape=jax.ShapeDtypeStruct((n, odim), jnp.float32),
        scratch_shapes=[pltpu.VMEM((n, hdim), jnp.float32)],
        compiler_params=pltpu.CompilerParams(
            dimension_semantics=("arbitrary",)),
    )(flat, w1_bf16, b1, w2, b2)


# --------------------------------------------------------------------------
# Full forward pass
# --------------------------------------------------------------------------
@jax.jit
def convnet_forward(x_nchw, prep):
    # NOTE: the PyTorch forward builds a 0/1 mask `m` from x but never uses it
    # (dead code), so it is omitted here.
    n = x_nchw.shape[0]
    x3d = x_nchw.reshape(n, 16, 16)                    # C == 1: zero-copy
    conv_out = conv_stack(x3d, prep['conv1_wt'], prep['conv2_wt'])  # (n*16,256) bf16
    flat = conv_out.reshape(n, 4096)                   # zero-copy, (h,w,c) order
    # TODO(synk): dropout1 (p=0.5) / dropout2 (p=0.3) applied as eval-mode identity.
    return mlp(flat, prep['lin1_w_bf16'], prep['lin1_b'],
               prep['lin2_w'], prep['lin2_b'])         # (n, 16) f32


# --------------------------------------------------------------------------
# Parameters: deterministic init (module shapes) + one-time kernel-side prep
# --------------------------------------------------------------------------
def init_params(key):
    ks = jax.random.split(key, 6)

    def nrm(k, shape, fan_in):
        return jax.random.normal(k, shape, jnp.float32) / jnp.sqrt(fan_in)

    return {
        'conv1_w': nrm(ks[0], (4, 4, 1, 16), 4 * 4 * 1),     # HWIO
        'conv2_w': nrm(ks[1], (4, 4, 16, 16), 4 * 4 * 16),   # HWIO
        'lin1_w': nrm(ks[2], (4096, 512), 4096),             # (in, out), NCHW-flat rows
        'lin1_b': nrm(ks[3], (512,), 4096),
        'lin2_w': nrm(ks[4], (512, 16), 512),
        'lin2_b': nrm(ks[5], (16,), 512),
    }


def _conv1_toeplitz(w1_hwio):
    """(4,4,1,16) HWIO -> (4, 16, 304): per-kh Toeplitz over the W axis.
    W1T[kh, wi, wp*16+c] = W1[kh, wi-wp+3, 0, c] (column padding baked in)."""
    w = np.asarray(w1_hwio, np.float32)
    t = np.zeros((4, 16, 19, 16), np.float32)           # [kh, wi, wp, c]
    for kh in range(4):
        for kw in range(4):
            for wp in range(1, 18):
                wi = wp - 3 + kw
                if 0 <= wi < 16:
                    t[kh, wi, wp, :] = w[kh, kw, 0, :]
    return jnp.asarray(t.reshape(4, 16, 304))


def _conv2_toeplitz(w2_hwio):
    """(4,4,16,16) HWIO -> (4, 304, 256) bf16: per-kh Toeplitz over the W axis.
    W2T[kh, wp*16+cin, w*16+c] = W2[kh, wp-w, cin, c]."""
    w = np.asarray(w2_hwio, np.float32)
    t = np.zeros((4, 19, 16, 16, 16), np.float32)        # [kh, wp, cin, w, c]
    for kh in range(4):
        for kw in range(4):
            for wo in range(16):
                t[kh, wo + kw, :, wo, :] = w[kh, kw, :, :]
    return jnp.asarray(t.reshape(4, 304, 256), dtype=jnp.bfloat16)


def prepare_params(p):
    """One-time prep (hoisted out of the hot path): per-kh Toeplitz conv taps,
    lin1 rows permuted from NCHW-flatten to (h,w,c)-flatten order and cast bf16,
    biases reshaped to (1, N)."""
    w1_lin = (p['lin1_w'].reshape(16, 16, 16, 512)     # rows as (c, h, w, out)
              .transpose(1, 2, 0, 3)                   # (h, w, c, out)
              .reshape(4096, 512)
              .astype(jnp.bfloat16))
    return {
        'conv1_wt': _conv1_toeplitz(p['conv1_w']),
        'conv2_wt': _conv2_toeplitz(p['conv2_w']),
        'lin1_w_bf16': w1_lin,
        'lin1_b': p['lin1_b'].reshape(1, 512),
        'lin2_w': p['lin2_w'],
        'lin2_b': p['lin2_b'].reshape(1, 16),
    }


# --------------------------------------------------------------------------
# Pure-JAX f32 reference (ground truth for the correctness check)
# --------------------------------------------------------------------------
def reference_forward(x_nchw, p):
    x = jnp.transpose(x_nchw, (0, 2, 3, 1))
    y = lax.conv_general_dilated(x, p['conv1_w'], (1, 1), [(2, 2), (2, 2)],
                                 dimension_numbers=('NHWC', 'HWIO', 'NHWC'),
                                 precision=lax.Precision.HIGHEST)
    y = jnp.maximum(y, 0.0)
    y = lax.conv_general_dilated(y, p['conv2_w'], (1, 1), [(1, 1), (1, 1)],
                                 dimension_numbers=('NHWC', 'HWIO', 'NHWC'),
                                 precision=lax.Precision.HIGHEST)
    y = jnp.maximum(y, 0.0)
    n = y.shape[0]
    flat = jnp.transpose(y, (0, 3, 1, 2)).reshape(n, -1)   # PyTorch NCHW flatten
    h = jnp.maximum(jnp.dot(flat, p['lin1_w'],
                            precision=lax.Precision.HIGHEST) + p['lin1_b'], 0.0)
    return jnp.dot(h, p['lin2_w'], precision=lax.Precision.HIGHEST) + p['lin2_b']


if __name__ == "__main__":
    key = jax.random.PRNGKey(0)
    pkey, xkey = jax.random.split(key)
    params = init_params(pkey)
    prep = prepare_params(params)

    # Input implied by the module: Linear(4096,...) after the two convs
    # => 16x16 spatial, 1 input channel (NCHW like PyTorch).
    x = jax.random.normal(xkey, (2, 1, 16, 16), jnp.float32)

    out = jax.block_until_ready(convnet_forward(x, prep))
    ref = jax.block_until_ready(reference_forward(x, params))

    assert out.shape == (2, 16), out.shape
    max_err = float(jnp.max(jnp.abs(out - ref)))
    assert jnp.allclose(out, ref, rtol=2e-2, atol=2e-2), f"max abs err {max_err}"
    print("KERNEL_OK")
</pallas_src>

<mosaic_0001>
module attributes {stable_mosaic.version = 11 : i64} {
  func.func @mlp_kernel(%arg0: i32, %arg1: memref<2x2048xbf16, #tpu.memory_space<vmem>>, %arg2: memref<2048x512xbf16, #tpu.memory_space<vmem>>, %arg3: memref<1x512xf32, #tpu.memory_space<vmem>>, %arg4: memref<512x16xf32, #tpu.memory_space<vmem>>, %arg5: memref<1x16xf32, #tpu.memory_space<vmem>>, %arg6: memref<2x16xf32, #tpu.memory_space<vmem>>, %arg7: memref<2x512xf32, #tpu.memory_space<vmem>>) attributes {dimension_semantics = [#tpu.dimension_semantics<arbitrary>], iteration_bounds = array<i64: 2>, scalar_prefetch = 0 : i64, scratch_operands = 1 : i64, tpu.core_type = #tpu.core_type<tc>, window_params = [{transform_indices = @transform_0, window_bounds = array<i64: 2, 2048>}, {transform_indices = @transform_1, window_bounds = array<i64: 2048, 512>}, {pipeline_mode = #tpu.pipeline_mode<synchronous>, transform_indices = @transform_2, window_bounds = array<i64: 1, 512>}, {pipeline_mode = #tpu.pipeline_mode<synchronous>, transform_indices = @transform_3, window_bounds = array<i64: 512, 16>}, {pipeline_mode = #tpu.pipeline_mode<synchronous>, transform_indices = @transform_4, window_bounds = array<i64: 1, 16>}, {pipeline_mode = #tpu.pipeline_mode<synchronous>, transform_indices = @transform_5, window_bounds = array<i64: 2, 16>}]} {
    %c0_i32 = arith.constant 0 : i32
    %0 = arith.cmpi eq, %arg0, %c0_i32 : i32
    %1 = arith.extui %0 : i1 to i32
    %c0_i32_0 = arith.constant 0 : i32
    %2 = arith.cmpi ne, %1, %c0_i32_0 : i32
    scf.if %2 {
      %cst_9 = arith.constant 0.000000e+00 : f32
      %12 = vector.broadcast %cst_9 : f32 to vector<2x512xf32>
      %c0_10 = arith.constant 0 : index
      %c0_11 = arith.constant 0 : index
      %13 = vector.load %arg7[%c0_10, %c0_11] : memref<2x512xf32, #tpu.memory_space<vmem>>, vector<2x512xf32>
      tpu.vector_store %arg7[%c0_10, %c0_11], %12 {strides = array<i32>} : memref<2x512xf32, #tpu.memory_space<vmem>>, vector<2x512xf32>,
    } else {
    }
    %c0 = arith.constant 0 : index
    %c0_1 = arith.constant 0 : index
    %3 = vector.load %arg7[%c0, %c0_1] : memref<2x512xf32, #tpu.memory_space<vmem>>, vector<2x512xf32>
    %c0_2 = arith.constant 0 : index
    %c0_3 = arith.constant 0 : index
    %4 = vector.load %arg1[%c0_2, %c0_3] : memref<2x2048xbf16, #tpu.memory_space<vmem>>, vector<2x2048xbf16>
    %c0_4 = arith.constant 0 : index
    %c0_5 = arith.constant 0 : index
    %5 = vector.load %arg2[%c0_4, %c0_5] : memref<2048x512xbf16, #tpu.memory_space<vmem>>, vector<2048x512xbf16>
    %cst = arith.constant dense<0.000000e+00> : vector<2x512xf32>
    %6 = tpu.matmul %4, %5, %cst {dimension_numbers = #tpu.dot_dimension_numbers<[1], [0], [0], [1], [0, 0, 1, 1], [], []>} : vector<2x2048xbf16>, vector<2048x512xbf16>, vector<2x512xf32> -> vector<2x512xf32>
    %7 = arith.addf %3, %6 : vector<2x512xf32>
    %c0_6 = arith.constant 0 : index
    %c0_7 = arith.constant 0 : index
    %8 = vector.load %arg7[%c0_6, %c0_7] : memref<2x512xf32, #tpu.memory_space<vmem>>, vector<2x512xf32>
    tpu.vector_store %arg7[%c0_6, %c0_7], %7 {strides = array<i32>} : memref<2x512xf32, #tpu.memory_space<vmem>>, vector<2x512xf32>,
    %c1_i32 = arith.constant 1 : i32
    %9 = arith.cmpi eq, %arg0, %c1_i32 : i32
    %10 = arith.extui %9 : i1 to i32
    %c0_i32_8 = arith.constant 0 : i32
    %11 = arith.cmpi ne, %10, %c0_i32_8 : i32
    scf.if %11 {
      %c0_9 = arith.constant 0 : index
      %c0_10 = arith.constant 0 : index
      %12 = vector.load %arg7[%c0_9, %c0_10] : memref<2x512xf32, #tpu.memory_space<vmem>>, vector<2x512xf32>
      %c0_11 = arith.constant 0 : index
      %c0_12 = arith.constant 0 : index
      %13 = vector.load %arg3[%c0_11, %c0_12] : memref<1x512xf32, #tpu.memory_space<vmem>>, vector<1x512xf32>
      %14 = vector.broadcast %13 : vector<1x512xf32> to vector<2x512xf32>
      %15 = arith.addf %12, %14 : vector<2x512xf32>
      %cst_13 = arith.constant 0.000000e+00 : f32
      %16 = vector.broadcast %cst_13 : f32 to vector<2x512xf32>
      %17 = arith.maximumf %15, %16 : vector<2x512xf32>
      %c0_14 = arith.constant 0 : index
      %c0_15 = arith.constant 0 : index
      %18 = vector.load %arg4[%c0_14, %c0_15] : memref<512x16xf32, #tpu.memory_space<vmem>>, vector<512x16xf32>
      %cst_16 = arith.constant dense<0.000000e+00> : vector<2x16xf32>
      %19 = tpu.matmul %17, %18, %cst_16 {dimension_numbers = #tpu.dot_dimension_numbers<[1], [0], [0], [1], [0, 0, 1, 1], [], []>} : vector<2x512xf32>, vector<512x16xf32>, vector<2x16xf32> -> vector<2x16xf32>
      %c0_17 = arith.constant 0 : index
      %c0_18 = arith.constant 0 : index
      %20 = vector.load %arg5[%c0_17, %c0_18] : memref<1x16xf32, #tpu.memory_space<vmem>>, vector<1x16xf32>
      %21 = vector.broadcast %20 : vector<1x16xf32> to vector<2x16xf32>
      %22 = arith.addf %19, %21 : vector<2x16xf32>
      %c0_19 = arith.constant 0 : index
      %c0_20 = arith.constant 0 : index
      %23 = vector.load %arg6[%c0_19, %c0_20] : memref<2x16xf32, #tpu.memory_space<vmem>>, vector<2x16xf32>
      tpu.vector_store %arg6[%c0_19, %c0_20], %22 {strides = array<i32>} : memref<2x16xf32, #tpu.memory_space<vmem>>, vector<2x16xf32>,
    } else {
    }
    return
  }
  func.func @transform_0(%arg0: i32) -> (i32, i32) {
    %c0_i32 = arith.constant 0 : i32
    %c0_i32_0 = arith.constant 0 : i32
    return %c0_i32, %arg0 : i32, i32
  }
  func.func @transform_1(%arg0: i32) -> (i32, i32) {
    %c0_i32 = arith.constant 0 : i32
    %c0_i32_0 = arith.constant 0 : i32
    return %arg0, %c0_i32 : i32, i32
  }
  func.func @transform_2(%arg0: i32) -> (i32, i32) {
    %c0_i32 = arith.constant 0 : i32
    %c0_i32_0 = arith.constant 0 : i32
    %c0_i32_1 = arith.constant 0 : i32
    return %c0_i32, %c0_i32_0 : i32, i32
  }
  func.func @transform_3(%arg0: i32) -> (i32, i32) {
    %c0_i32 = arith.constant 0 : i32
    %c0_i32_0 = arith.constant 0 : i32
    %c0_i32_1 = arith.constant 0 : i32
    return %c0_i32, %c0_i32_0 : i32, i32
  }
  func.func @transform_4(%arg0: i32) -> (i32, i32) {
    %c0_i32 = arith.constant 0 : i32
    %c0_i32_0 = arith.constant 0 : i32
    %c0_i32_1 = arith.constant 0 : i32
    return %c0_i32, %c0_i32_0 : i32, i32
  }
  func.func @transform_5(%arg0: i32) -> (i32, i32) {
    %c0_i32 = arith.constant 0 : i32
    %c0_i32_0 = arith.constant 0 : i32
    %c0_i32_1 = arith.constant 0 : i32
    return %c0_i32, %c0_i32_0 : i32, i32
  }
}

module attributes {stable_mosaic.version = 11 : i64} {
  func.func @conv_stack_kernel(%arg0: memref<2x16x16xf32, #tpu.memory_space<vmem>>, %arg1: memref<4x16x304xf32, #tpu.memory_space<vmem>>, %arg2: memref<4x304x256xbf16, #tpu.memory_space<vmem>>, %arg3: memref<32x256xbf16, #tpu.memory_space<vmem>>, %arg4: memref<2x24x16xf32, #tpu.memory_space<vmem>>, %arg5: memref<2x19x304xf32, #tpu.memory_space<vmem>>, %arg6: memref<2x24x304xf32, #tpu.memory_space<vmem>>) attributes {dimension_semantics = [], scalar_prefetch = 0 : i64, scratch_operands = 3 : i64, tpu.core_type = #tpu.core_type<tc>} {
    %cst = arith.constant 0.000000e+00 : f32
    %0 = vector.broadcast %cst : f32 to vector<2x24x16xf32>
    %c0 = arith.constant 0 : index
    %c0_0 = arith.constant 0 : index
    %c0_1 = arith.constant 0 : index
    %1 = vector.load %arg4[%c0, %c0_0, %c0_1] : memref<2x24x16xf32, #tpu.memory_space<vmem>>, vector<2x24x16xf32>
    tpu.vector_store %arg4[%c0, %c0_0, %c0_1], %0 {strides = array<i32>} : memref<2x24x16xf32, #tpu.memory_space<vmem>>, vector<2x24x16xf32>,
    %c0_2 = arith.constant 0 : index
    %c0_3 = arith.constant 0 : index
    %c0_4 = arith.constant 0 : index
    %2 = vector.load %arg0[%c0_2, %c0_3, %c0_4] : memref<2x16x16xf32, #tpu.memory_space<vmem>>, vector<2x16x16xf32>
    %c0_5 = arith.constant 0 : index
    %c2 = arith.constant 2 : index
    %c0_6 = arith.constant 0 : index
    %3 = vector.load %arg4[%c0_5, %c2, %c0_6] : memref<2x24x16xf32, #tpu.memory_space<vmem>>, vector<2x16x16xf32>
    tpu.vector_store %arg4[%c0_5, %c2, %c0_6], %2 {strides = array<i32>} : memref<2x24x16xf32, #tpu.memory_space<vmem>>, vector<2x16x16xf32>,
    %c0_7 = arith.constant 0 : index
    %c0_8 = arith.constant 0 : index
    %c0_9 = arith.constant 0 : index
    %4 = vector.load %arg4[%c0_7, %c0_8, %c0_9] : memref<2x24x16xf32, #tpu.memory_space<vmem>>, vector<2x24x16xf32>
    %5 = vector.shape_cast %4 : vector<2x24x16xf32> to vector<48x16xf32>
    %cst_10 = arith.constant 0.000000e+00 : f32
    %6 = vector.broadcast %cst_10 : f32 to vector<2x17x304xf32>
    %c0_11 = arith.constant 0 : index
    %c0_12 = arith.constant 0 : index
    %c0_13 = arith.constant 0 : index
    %7 = vector.load %arg1[%c0_11, %c0_12, %c0_13] : memref<4x16x304xf32, #tpu.memory_space<vmem>>, vector<1x16x304xf32>
    %8 = vector.shape_cast %7 : vector<1x16x304xf32> to vector<16x304xf32>
    %cst_14 = arith.constant dense<0.000000e+00> : vector<48x304xf32>
    %9 = tpu.matmul %5, %8, %cst_14 {dimension_numbers = #tpu.dot_dimension_numbers<[1], [0], [0], [1], [0, 0, 1, 1], [], []>} : vector<48x16xf32>, vector<16x304xf32>, vector<48x304xf32> -> vector<48x304xf32>
    %10 = vector.shape_cast %9 : vector<48x304xf32> to vector<2x24x304xf32>
    %c0_15 = arith.constant 0 : index
    %c0_16 = arith.constant 0 : index
    %c0_17 = arith.constant 0 : index
    %11 = vector.load %arg6[%c0_15, %c0_16, %c0_17] : memref<2x24x304xf32, #tpu.memory_space<vmem>>, vector<2x24x304xf32>
    tpu.vector_store %arg6[%c0_15, %c0_16, %c0_17], %10 {strides = array<i32>} : memref<2x24x304xf32, #tpu.memory_space<vmem>>, vector<2x24x304xf32>,
    %c0_18 = arith.constant 0 : index
    %c0_19 = arith.constant 0 : index
    %c0_20 = arith.constant 0 : index
    %12 = vector.load %arg6[%c0_18, %c0_19, %c0_20] : memref<2x24x304xf32, #tpu.memory_space<vmem>>, vector<2x17x304xf32>
    %13 = arith.addf %6, %12 : vector<2x17x304xf32>
    %c1 = arith.constant 1 : index
    %c0_21 = arith.constant 0 : index
    %c0_22 = arith.constant 0 : index
    %14 = vector.load %arg1[%c1, %c0_21, %c0_22] : memref<4x16x304xf32, #tpu.memory_space<vmem>>, vector<1x16x304xf32>
    %15 = vector.shape_cast %14 : vector<1x16x304xf32> to vector<16x304xf32>
    %cst_23 = arith.constant dense<0.000000e+00> : vector<48x304xf32>
    %16 = tpu.matmul %5, %15, %cst_23 {dimension_numbers = #tpu.dot_dimension_numbers<[1], [0], [0], [1], [0, 0, 1, 1], [], []>} : vector<48x16xf32>, vector<16x304xf32>, vector<48x304xf32> -> vector<48x304xf32>
    %17 = vector.shape_cast %16 : vector<48x304xf32> to vector<2x24x304xf32>
    %c0_24 = arith.constant 0 : index
    %c0_25 = arith.constant 0 : index
    %c0_26 = arith.constant 0 : index
    %18 = vector.load %arg6[%c0_24, %c0_25, %c0_26] : memref<2x24x304xf32, #tpu.memory_space<vmem>>, vector<2x24x304xf32>
    tpu.vector_store %arg6[%c0_24, %c0_25, %c0_26], %17 {strides = array<i32>} : memref<2x24x304xf32, #tpu.memory_space<vmem>>, vector<2x24x304xf32>,
    %c0_27 = arith.constant 0 : index
    %c1_28 = arith.constant 1 : index
    %c0_29 = arith.constant 0 : index
    %19 = vector.load %arg6[%c0_27, %c1_28, %c0_29] : memref<2x24x304xf32, #tpu.memory_space<vmem>>, vector<2x17x304xf32>
    %20 = arith.addf %13, %19 : vector<2x17x304xf32>
    %c2_30 = arith.constant 2 : index
    %c0_31 = arith.constant 0 : index
    %c0_32 = arith.constant 0 : index
    %21 = vector.load %arg1[%c2_30, %c0_31, %c0_32] : memref<4x16x304xf32, #tpu.memory_space<vmem>>, vector<1x16x304xf32>
    %22 = vector.shape_cast %21 : vector<1x16x304xf32> to vector<16x304xf32>
    %cst_33 = arith.constant dense<0.000000e+00> : vector<48x304xf32>
    %23 = tpu.matmul %5, %22, %cst_33 {dimension_numbers = #tpu.dot_dimension_numbers<[1], [0], [0], [1], [0, 0, 1, 1], [], []>} : vector<48x16xf32>, vector<16x304xf32>, vector<48x304xf32> -> vector<48x304xf32>
    %24 = vector.shape_cast %23 : vector<48x304xf32> to vector<2x24x304xf32>
    %c0_34 = arith.constant 0 : index
    %c0_35 = arith.constant 0 : index
    %c0_36 = arith.constant 0 : index
    %25 = vector.load %arg6[%c0_34, %c0_35, %c0_36] : memref<2x24x304xf32, #tpu.memory_space<vmem>>, vector<2x24x304xf32>
    tpu.vector_store %arg6[%c0_34, %c0_35, %c0_36], %24 {strides = array<i32>} : memref<2x24x304xf32, #tpu.memory_space<vmem>>, vector<2x24x304xf32>,
    %c0_37 = arith.constant 0 : index
    %c2_38 = arith.constant 2 : index
    %c0_39 = arith.constant 0 : index
    %26 = vector.load %arg6[%c0_37, %c2_38, %c0_39] : memref<2x24x304xf32, #tpu.memory_space<vmem>>, vector<2x17x304xf32>
    %27 = arith.addf %20, %26 : vector<2x17x304xf32>
    %c3 = arith.constant 3 : index
    %c0_40 = arith.constant 0 : index
    %c0_41 = arith.constant 0 : index
    %28 = vector.load %arg1[%c3, %c0_40, %c0_41] : memref<4x16x304xf32, #tpu.memory_space<vmem>>, vector<1x16x304xf32>
    %29 = vector.shape_cast %28 : vector<1x16x304xf32> to vector<16x304xf32>
    %cst_42 = arith.constant dense<0.000000e+00> : vector<48x304xf32>
    %30 = tpu.matmul %5, %29, %cst_42 {dimension_numbers = #tpu.dot_dimension_numbers<[1], [0], [0], [1], [0, 0, 1, 1], [], []>} : vector<48x16xf32>, vector<16x304xf32>, vector<48x304xf32> -> vector<48x304xf32>
    %31 = vector.shape_cast %30 : vector<48x304xf32> to vector<2x24x304xf32>
    %c0_43 = arith.constant 0 : index
    %c0_44 = arith.constant 0 : index
    %c0_45 = arith.constant 0 : index
    %32 = vector.load %arg6[%c0_43, %c0_44, %c0_45] : memref<2x24x304xf32, #tpu.memory_space<vmem>>, vector<2x24x304xf32>
    tpu.vector_store %arg6[%c0_43, %c0_44, %c0_45], %31 {strides = array<i32>} : memref<2x24x304xf32, #tpu.memory_space<vmem>>, vector<2x24x304xf32>,
    %c0_46 = arith.constant 0 : index
    %c3_47 = arith.constant 3 : index
    %c0_48 = arith.constant 0 : index
    %33 = vector.load %arg6[%c0_46, %c3_47, %c0_48] : memref<2x24x304xf32, #tpu.memory_space<vmem>>, vector<2x17x304xf32>
    %34 = arith.addf %27, %33 : vector<2x17x304xf32>
    %cst_49 = arith.constant 0.000000e+00 : f32
    %35 = vector.broadcast %cst_49 : f32 to vector<2x19x304xf32>
    %c0_50 = arith.constant 0 : index
    %c0_51 = arith.constant 0 : index
    %c0_52 = arith.constant 0 : index
    %36 = vector.load %arg5[%c0_50, %c0_51, %c0_52] : memref<2x19x304xf32, #tpu.memory_space<vmem>>, vector<2x19x304xf32>
    tpu.vector_store %arg5[%c0_50, %c0_51, %c0_52], %35 {strides = array<i32>} : memref<2x19x304xf32, #tpu.memory_space<vmem>>, vector<2x19x304xf32>,
    %cst_53 = arith.constant 0.000000e+00 : f32
    %37 = vector.broadcast %cst_53 : f32 to vector<2x17x304xf32>
    %38 = arith.maximumf %34, %37 : vector<2x17x304xf32>
    %c0_54 = arith.constant 0 : index
    %c1_55 = arith.constant 1 : index
    %c0_56 = arith.constant 0 : index
    %39 = vector.load %arg5[%c0_54, %c1_55, %c0_56] : memref<2x19x304xf32, #tpu.memory_space<vmem>>, vector<2x17x304xf32>
    tpu.vector_store %arg5[%c0_54, %c1_55, %c0_56], %38 {strides = array<i32>} : memref<2x19x304xf32, #tpu.memory_space<vmem>>, vector<2x17x304xf32>,
    %cst_57 = arith.constant 0.000000e+00 : f32
    %40 = vector.broadcast %cst_57 : f32 to vector<32x256xf32>
    %c0_58 = arith.constant 0 : index
    %c0_59 = arith.constant 0 : index
    %c0_60 = arith.constant 0 : index
    %41 = vector.load %arg5[%c0_58, %c0_59, %c0_60] : memref<2x19x304xf32, #tpu.memory_space<vmem>>, vector<2x16x304xf32>
    %42 = vector.shape_cast %41 : vector<2x16x304xf32> to vector<32x304xf32>
    %43 = arith.truncf %42 : vector<32x304xf32> to vector<32x304xbf16>
    %c0_61 = arith.constant 0 : index
    %c0_62 = arith.constant 0 : index
    %c0_63 = arith.constant 0 : index
    %44 = vector.load %arg2[%c0_61, %c0_62, %c0_63] : memref<4x304x256xbf16, #tpu.memory_space<vmem>>, vector<1x304x256xbf16>
    %45 = vector.shape_cast %44 : vector<1x304x256xbf16> to vector<304x256xbf16>
    %cst_64 = arith.constant dense<0.000000e+00> : vector<32x256xf32>
    %46 = tpu.matmul %43, %45, %cst_64 {dimension_numbers = #tpu.dot_dimension_numbers<[1], [0], [0], [1], [0, 0, 1, 1], [], []>} : vector<32x304xbf16>, vector<304x256xbf16>, vector<32x256xf32> -> vector<32x256xf32>
    %47 = arith.addf %40, %46 : vector<32x256xf32>
    %c0_65 = arith.constant 0 : index
    %c1_66 = arith.constant 1 : index
    %c0_67 = arith.constant 0 : index
    %48 = vector.load %arg5[%c0_65, %c1_66, %c0_67] : memref<2x19x304xf32, #tpu.memory_space<vmem>>, vector<2x16x304xf32>
    %49 = vector.shape_cast %48 : vector<2x16x304xf32> to vector<32x304xf32>
    %50 = arith.truncf %49 : vector<32x304xf32> to vector<32x304xbf16>
    %c1_68 = arith.constant 1 : index
    %c0_69 = arith.constant 0 : index
    %c0_70 = arith.constant 0 : index
    %51 = vector.load %arg2[%c1_68, %c0_69, %c0_70] : memref<4x304x256xbf16, #tpu.memory_space<vmem>>, vector<1x304x256xbf16>
    %52 = vector.shape_cast %51 : vector<1x304x256xbf16> to vector<304x256xbf16>
    %cst_71 = arith.constant dense<0.000000e+00> : vector<32x256xf32>
    %53 = tpu.matmul %50, %52, %cst_71 {dimension_numbers = #tpu.dot_dimension_numbers<[1], [0], [0], [1], [0, 0, 1, 1], [], []>} : vector<32x304xbf16>, vector<304x256xbf16>, vector<32x256xf32> -> vector<32x256xf32>
    %54 = arith.addf %47, %53 : vector<32x256xf32>
    %c0_72 = arith.constant 0 : index
    %c2_73 = arith.constant 2 : index
    %c0_74 = arith.constant 0 : index
    %55 = vector.load %arg5[%c0_72, %c2_73, %c0_74] : memref<2x19x304xf32, #tpu.memory_space<vmem>>, vector<2x16x304xf32>
    %56 = vector.shape_cast %55 : vector<2x16x304xf32> to vector<32x304xf32>
    %57 = arith.truncf %56 : vector<32x304xf32> to vector<32x304xbf16>
    %c2_75 = arith.constant 2 : index
    %c0_76 = arith.constant 0 : index
    %c0_77 = arith.constant 0 : index
    %58 = vector.load %arg2[%c2_75, %c0_76, %c0_77] : memref<4x304x256xbf16, #tpu.memory_space<vmem>>, vector<1x304x256xbf16>
    %59 = vector.shape_cast %58 : vector<1x304x256xbf16> to vector<304x256xbf16>
    %cst_78 = arith.constant dense<0.000000e+00> : vector<32x256xf32>
    %60 = tpu.matmul %57, %59, %cst_78 {dimension_numbers = #tpu.dot_dimension_numbers<[1], [0], [0], [1], [0, 0, 1, 1], [], []>} : vector<32x304xbf16>, vector<304x256xbf16>, vector<32x256xf32> -> vector<32x256xf32>
    %61 = arith.addf %54, %60 : vector<32x256xf32>
    %c0_79 = arith.constant 0 : index
    %c3_80 = arith.constant 3 : index
    %c0_81 = arith.constant 0 : index
    %62 = vector.load %arg5[%c0_79, %c3_80, %c0_81] : memref<2x19x304xf32, #tpu.memory_space<vmem>>, vector<2x16x304xf32>
    %63 = vector.shape_cast %62 : vector<2x16x304xf32> to vector<32x304xf32>
    %64 = arith.truncf %63 : vector<32x304xf32> to vector<32x304xbf16>
    %c3_82 = arith.constant 3 : index
    %c0_83 = arith.constant 0 : index
    %c0_84 = arith.constant 0 : index
    %65 = vector.load %arg2[%c3_82, %c0_83, %c0_84] : memref<4x304x256xbf16, #tpu.memory_space<vmem>>, vector<1x304x256xbf16>
    %66 = vector.shape_cast %65 : vector<1x304x256xbf16> to vector<304x256xbf16>
    %cst_85 = arith.constant dense<0.000000e+00> : vector<32x256xf32>
    %67 = tpu.matmul %64, %66, %cst_85 {dimension_numbers = #tpu.dot_dimension_numbers<[1], [0], [0], [1], [0, 0, 1, 1], [], []>} : vector<32x304xbf16>, vector<304x256xbf16>, vector<32x256xf32> -> vector<32x256xf32>
    %68 = arith.addf %61, %67 : vector<32x256xf32>
    %cst_86 = arith.constant 0.000000e+00 : f32
    %69 = vector.broadcast %cst_86 : f32 to vector<32x256xf32>
    %70 = arith.maximumf %68, %69 : vector<32x256xf32>
    %71 = arith.truncf %70 : vector<32x256xf32> to vector<32x256xbf16>
    %c0_87 = arith.constant 0 : index
    %c0_88 = arith.constant 0 : index
    %72 = vector.load %arg3[%c0_87, %c0_88] : memref<32x256xbf16, #tpu.memory_space<vmem>>, vector<32x256xbf16>
    tpu.vector_store %arg3[%c0_87, %c0_88], %71 {strides = array<i32>} : memref<32x256xbf16, #tpu.memory_space<vmem>>, vector<32x256xbf16>,
    return
  }
}

</mosaic_0001>

<llo_original>
// kernel: convnet_forward.2
$region0: #{convnet_forward.2}
  #allocation0 [shape = 'u32[]', space=smem, size = 0x4, offset = 0x4, fixed_abs, tag = 'smem constant byte address 0x4 - core index']
  #allocation1 [shape = 'u32[144,128]{1,0:T(1,128)}', space=vmem, size = 0x12000, scoped, tag = 'internal scratch']
  #allocation2 [shape = 'f32[2,24,16]{2,1,0:T(8,128)}', space=vmem, size = 0x6000, scoped, tag = 'scratch operand']
  #allocation3 [shape = 'f32[2,19,304]{2,1,0:T(8,128)}', space=vmem, size = 0x12000, scoped, tag = 'scratch operand']
  #allocation4 [shape = 'f32[2,24,304]{2,1,0:T(8,128)}', space=vmem, size = 0x12000, scoped, tag = 'scratch operand']
  %s0 = inlined_call_operand.hbm [shape: f32[2,16,16], index: 0, kind: input, shape index: {}]
  %s1 = inlined_call_operand.hbm [shape: f32[4,16,304], index: 1, kind: input, shape index: {}]
  %s2 = inlined_call_operand.hbm [shape: bf16[4,304,256], index: 2, kind: input, shape index: {}]
  %s3 = inlined_call_operand.vmem [shape: bf16[32,256], index: 3, kind: output, shape index: {}]
  %s4 = sld [smem:[#allocation0]]
  $region34: #{convnet_forward.2} parent=0
    _
  %s6 = ssub.s32 1, %s4
  %s7 = scalar_select 0, %s6, %s4
  $region1: #{convnet_forward.2} parent=0
    #allocation5 [shape = 'u8[16384]{0}', space=vmem, size = 0x4000, scoped, tag = 'input window, operand 0, single buffered']
    #allocation6 [shape = 's32[1]{0}', space=sflag, size = 0x4, scoped, tag = 'scoped memory for convnet_forward.2']
    #allocation7 [shape = 'u8[98304]{0}', space=vmem, size = 0x18000, scoped, tag = 'input window, operand 1, single buffered']
    #allocation8 [shape = 's32[1]{0}', space=sflag, size = 0x4, scoped, tag = 'scoped memory for convnet_forward.2']
    #allocation9 [shape = 'u8[622592]{0}', space=vmem, size = 0x98000, scoped, tag = 'input window, operand 2, single buffered']
    %8 = vsyncpa [#allocation6], 0
    %9 = vsyncpa [#allocation8], 0
    // Predicated region
    $region2: #{convnet_forward.2} parent=1 // pred_check
      _
    $region3: #{convnet_forward.2} parent=1 // pred_check_branch
      %11 = sbr.rel (0) target = $region5
    $region4: #{convnet_forward.2} parent=1 // pred_region
      %s13 = ssub.s32 512, 512
      %14 = vsyncadd [#allocation6], %s13
      %s15 = sshll.u32 [#allocation5], 4
      %s16 = int_to_ptr.vmem [resolvable:$true] %s15
      %21 = dma.hbm_to_vmem [thread:$0]  %s0, 512, %s16, [#allocation6], 128, 128, 8
    $region5: #{convnet_forward.2} parent=1 // pred_fallthru
      _
    // Predicated region
    $region6: #{convnet_forward.2} parent=1 // pred_check
      _
    $region7: #{convnet_forward.2} parent=1 // pred_check_branch
      %23 = sbr.rel (0) target = $region9
    $region8: #{convnet_forward.2} parent=1 // pred_region
      %s25 = ssub.s32 3072, 3072
      %26 = vsyncadd [#allocation8], %s25
      %s27 = sshll.u32 [#allocation7], 4
      %s28 = int_to_ptr.vmem [resolvable:$true] %s27
      %33 = dma.hbm_to_vmem [thread:$0]  %s1, 3072, %s28, [#allocation8], 384, 384, 24
    $region9: #{convnet_forward.2} parent=1 // pred_fallthru
      _
    // Predicated region
    $region10: #{convnet_forward.2} parent=1 // pred_check
      _
    $region11: #{convnet_forward.2} parent=1 // pred_check_branch
      %35 = sbr.rel (0) target = $region13
    $region12: #{convnet_forward.2} parent=1 // pred_region
      %s37 = ssub.s32 19456, 19456
      %38 = vsyncadd [#allocation8], %s37
      %s39 = sshll.u32 [#allocation9], 4
      %s40 = int_to_ptr.vmem [resolvable:$true] %s39
      %45 = dma.hbm_to_vmem [thread:$0]  %s2, 19456, %s40, [#allocation8], 128, 128, 8
    $region13: #{convnet_forward.2} parent=1 // pred_fallthru
      _
    // Predicated region
    $region14: #{convnet_forward.2} parent=1 // pred_check
      _
    $region15: #{convnet_forward.2} parent=1 // pred_check_branch
      %47 = sbr.rel (0) target = $region17
    $region16: #{convnet_forward.2} parent=1 // pred_region
      %48 = dma.done [#allocation6], 512
    $region17: #{convnet_forward.2} parent=1 // pred_fallthru
      _
    // Predicated region
    $region18: #{convnet_forward.2} parent=1 // pred_check
      _
    $region19: #{convnet_forward.2} parent=1 // pred_check_branch
      %50 = sbr.rel (0) target = $region21
    $region20: #{convnet_forward.2} parent=1 // pred_region
      %51 = dma.done [#allocation8], 3072
    $region21: #{convnet_forward.2} parent=1 // pred_fallthru
      _
    // Predicated region
    $region22: #{convnet_forward.2} parent=1 // pred_check
      _
    $region23: #{convnet_forward.2} parent=1 // pred_check_branch
      %53 = sbr.rel (0) target = $region25
    $region24: #{convnet_forward.2} parent=1 // pred_region
      %54 = dma.done [#allocation8], 19456
    $region25: #{convnet_forward.2} parent=1 // pred_fallthru
      _
    %vm56 = vcmask 130048
    %57 = vst.msk [vmem:[#allocation2] sm:$0xff] %vm56, 0.0
    %58 = vst.msk [vmem:[#allocation2 + $0x8] sm:$0xff] %vm56, 0.0
    %59 = vst.msk [vmem:[#allocation2 + $0x10] sm:$0xff] %vm56, 0.0
    %60 = vst.msk [vmem:[#allocation2 + $0x18] sm:$0xff] %vm56, 0.0
    %61 = vst.msk [vmem:[#allocation2 + $0x20] sm:$0xff] %vm56, 0.0
    %62 = vst.msk [vmem:[#allocation2 + $0x28] sm:$0xff] %vm56, 0.0
    %v63 = vld [vmem:[#allocation5] sm:$0xff]
    %v64 = vld [vmem:[#allocation5 + $0x8] sm:$0xff]
    %v65 = vld [vmem:[#allocation5 + $0x10] sm:$0xff]
    %v66 = vld [vmem:[#allocation5 + $0x18] sm:$0xff]
    %67 = vst.msk [vmem:[#allocation2 + $0x2] sm:$0xff] %vm56, %v63
    %68 = vst.msk [vmem:[#allocation2 + $0xa] sm:$0xff] %vm56, %v64
    %69 = vst.msk [vmem:[#allocation2 + $0x1a] sm:$0xff] %vm56, %v65
    %70 = vst.msk [vmem:[#allocation2 + $0x22] sm:$0xff] %vm56, %v66
    %v71 = vld [vmem:[#allocation2] sm:$0xff]
    %v72 = vld [vmem:[#allocation2 + $0x8] sm:$0xff]
    %v73 = vld [vmem:[#allocation2 + $0x10] sm:$0xff]
    %v74 = vld [vmem:[#allocation2 + $0x18] sm:$0xff]
    %v75 = vld [vmem:[#allocation2 + $0x20] sm:$0xff]
    %v76 = vld [vmem:[#allocation2 + $0x28] sm:$0xff]
    %v77 = vld [vmem:[#allocation7] sm:$0xff]
    %v78 = vld [vmem:[#allocation7 + $0x8] sm:$0xff]
    %v79 = vld [vmem:[#allocation7 + $0x10] sm:$0xff]
    %v80 = vld [vmem:[#allocation7 + $0x18] sm:$0xff]
    %v81 = vld [vmem:[#allocation7 + $0x20] sm:$0xff]
    %v82 = vld [vmem:[#allocation7 + $0x28] sm:$0xff]
    %v84 = vsel %vm56, %v71, 0
    %v87 = vsel %vm56, %v72, 0
    %v90 = vsel %vm56, %v73, 0
    %v93 = vsel %vm56, %v74, 0
    %v96 = vsel %vm56, %v75, 0
    %v99 = vsel %vm56, %v76, 0
    %101 = vmatprep.subr.mxu0 %v78
    %102 = vmatpush1.msra.mxu0 %v77
    %103 = vmatprep.subr.mxu0 %v81
    %104 = vmatpush1.msra.mxu0 %v80
    %105 = vmatprep.subr.mxu0 0.0
    %106 = vmatpush1.msra.mxu0 0.0
    %107 = vmatprep.subr.mxu0 0.0
    %108 = vmatpush1.msra.mxu0 0.0
    %109 = vmatprep.subr.mxu0 0.0
    %110 = vmatpush1.msra.mxu0 0.0
    %111 = vmatprep.subr.mxu0 0.0
    %112 = vmatpush1.msra.mxu0 0.0
    %113 = vmatprep.subr.mxu0 0.0
    %114 = vmatpush1.msra.mxu0 0.0
    %115 = vmatprep.subr.mxu0 0.0
    %116 = vmatpush1.msra.mxu0 0.0
    %117 = vmatprep.subr.mxu0 0.0
    %118 = vmatpush1.msra.mxu0 0.0
    %119 = vmatprep.subr.mxu0 0.0
    %120 = vmatpush1.msra.mxu0 0.0
    %121 = vmatprep.subr.mxu0 0.0
    %122 = vmatpush1.msra.mxu0 0.0
    %123 = vmatprep.subr.mxu0 0.0
    %124 = vmatpush1.msra.mxu0 0.0
    %125 = vmatprep.subr.mxu0 0.0
    %126 = vmatpush1.msra.mxu0 0.0
    %127 = vmatprep.subr.mxu0 0.0
    %128 = vmatpush1.msra.mxu0 0.0
    %129 = vmatprep.subr.mxu0 0.0
    %130 = vmatpush1.msra.mxu0 0.0
    %131 = vmatprep.subr.mxu0 0.0
    %132 = vmatpush1.msra.mxu0 0.0
    %133 = vmatprep.subr.mxu0 0.0
    %134 = vmatpush1.msra.mxu0 0.0
    %135 = vmatprep.subr.mxu0 0.0
    %136 = vmatpush1.msra.mxu0 0.0
    %137 = vmatprep.subr.mxu0 0.0
    %138 = vmatpush1.msra.mxu0 0.0
    %139 = vmatprep.subr.mxu0 0.0
    %140 = vmatpush1.msra.mxu0 0.0
    %141 = vmatprep.subr.mxu0 0.0
    %142 = vmatpush1.msra.mxu0 0.0
    %143 = vmatprep.subr.mxu0 0.0
    %144 = vmatpush1.msra.mxu0 0.0
    %145 = vmatprep.subr.mxu0 0.0
    %146 = vmatpush1.msra.mxu0 0.0
    %147 = vmatprep.subr.mxu0 0.0
    %148 = vmatpush1.msra.mxu0 0.0
    %149 = vmatprep.subr.mxu0 0.0
    %150 = vmatpush1.msra.mxu0 0.0
    %151 = vmatprep.subr.mxu0 0.0
    %152 = vmatpush1.msra.mxu0 0.0
    %153 = vmatprep.subr.mxu0 0.0
    %154 = vmatpush1.msra.mxu0 0.0
    %155 = vmatprep.subr.mxu0 0.0
    %156 = vmatpush1.msra.mxu0 0.0
    %157 = vmatprep.subr.mxu0 0.0
    %158 = vmatpush1.msra.mxu0 0.0
    %159 = vmatprep.subr.mxu0 0.0
    %160 = vmatpush1.msra.mxu0 0.0
    %161 = vmatprep.subr.mxu0 0.0
    %162 = vmatpush1.msra.mxu0 0.0
    %163 = vmatprep.subr.mxu0 0.0
    %164 = vmatpush1.msra.mxu0 0.0
    %165 = vmatprep.mubr.f32.mxu0 0.0
    %166 = vmatmul.mubr.f32.gmra.mrb[0].mxu0 %v84
    %v167 = vpop.f32.mrb[0].mxu0
    %v168 = vadd.f32 0.0, %v167
    %v169 = vpop.f32.mrb[0].mxu0
    %v170 = vadd.f32 0.0, %v169
    %171 = vmatprep.mubr.f32.mxu0 0.0
    %172 = vmatmul.mubr.f32.gmra.mrb[0].mxu0 %v87
    %v173 = vpop.f32.mrb[0].mxu0
    %v174 = vadd.f32 0.0, %v173
    %v175 = vpop.f32.mrb[0].mxu0
    %v176 = vadd.f32 0.0, %v175
    %177 = vmatprep.mubr.f32.mxu0 0.0
    %178 = vmatmul.mubr.f32.gmra.mrb[0].mxu0 %v90
    %v179 = vpop.f32.mrb[0].mxu0
    %v180 = vadd.f32 0.0, %v179
    %v181 = vpop.f32.mrb[0].mxu0
    %v182 = vadd.f32 0.0, %v181
    %183 = vmatprep.mubr.f32.mxu0 0.0
    %184 = vmatmul.mubr.f32.gmra.mrb[0].mxu0 %v93
    %v185 = vpop.f32.mrb[0].mxu0
    %v186 = vadd.f32 0.0, %v185
    %v187 = vpop.f32.mrb[0].mxu0
    %v188 = vadd.f32 0.0, %v187
    %189 = vmatprep.mubr.f32.mxu0 0.0
    %190 = vmatmul.mubr.f32.gmra.mrb[0].mxu0 %v96
    %v191 = vpop.f32.mrb[0].mxu0
    %v192 = vadd.f32 0.0, %v191
    %v193 = vpop.f32.mrb[0].mxu0
    %v194 = vadd.f32 0.0, %v193
    %195 = vmatprep.mubr.f32.mxu0 0.0
    %196 = vmatmul.mubr.f32.gmra.mrb[0].mxu0 %v99
    %v197 = vpop.f32.mrb[0].mxu0
    %v198 = vadd.f32 0.0, %v197
    %v199 = vpop.f32.mrb[0].mxu0
    %v200 = vadd.f32 0.0, %v199
    %201 = vdwg.mxu0
    %202 = vmatprep.subr.mxu0 0.0
    %203 = vmatpush1.msra.mxu0 %v79
    %204 = vmatprep.subr.mxu0 0.0
    %205 = vmatpush1.msra.mxu0 %v82
    %206 = vmatprep.subr.mxu0 0.0
    %207 = vmatpush1.msra.mxu0 0.0
    %208 = vmatprep.subr.mxu0 0.0
    %209 = vmatpush1.msra.mxu0 0.0
    %210 = vmatprep.subr.mxu0 0.0
    %211 = vmatpush1.msra.mxu0 0.0
    %212 = vmatprep.subr.mxu0 0.0
    %213 = vmatpush1.msra.mxu0 0.0
    %214 = vmatprep.subr.mxu0 0.0
    %215 = vmatpush1.msra.mxu0 0.0
    %216 = vmatprep.subr.mxu0 0.0
    %217 = vmatpush1.msra.mxu0 0.0
    %218 = vmatprep.subr.mxu0 0.0
    %219 = vmatpush1.msra.mxu0 0.0
    %220 = vmatprep.subr.mxu0 0.0
    %221 = vmatpush1.msra.mxu0 0.0
    %222 = vmatprep.subr.mxu0 0.0
    %223 = vmatpush1.msra.mxu0 0.0
    %224 = vmatprep.subr.mxu0 0.0
    %225 = vmatpush1.msra.mxu0 0.0
    %226 = vmatprep.subr.mxu0 0.0
    %227 = vmatpush1.msra.mxu0 0.0
    %228 = vmatprep.subr.mxu0 0.0
    %229 = vmatpush1.msra.mxu0 0.0
    %230 = vmatprep.subr.mxu0 0.0
    %231 = vmatpush1.msra.mxu0 0.0
    %232 = vmatprep.subr.mxu0 0.0
    %233 = vmatpush1.msra.mxu0 0.0
    %234 = vmatprep.subr.mxu0 0.0
    %235 = vmatpush1.msra.mxu0 0.0
    %236 = vmatprep.subr.mxu0 0.0
    %237 = vmatpush1.msra.mxu0 0.0
    %238 = vmatprep.subr.mxu0 0.0
    %239 = vmatpush1.msra.mxu0 0.0
    %240 = vmatprep.subr.mxu0 0.0
    %241 = vmatpush1.msra.mxu0 0.0
    %242 = vmatprep.subr.mxu0 0.0
    %243 = vmatpush1.msra.mxu0 0.0
    %244 = vmatprep.subr.mxu0 0.0
    %245 = vmatpush1.msra.mxu0 0.0
    %246 = vmatprep.subr.mxu0 0.0
    %247 = vmatpush1.msra.mxu0 0.0
    %248 = vmatprep.subr.mxu0 0.0
    %249 = vmatpush1.msra.mxu0 0.0
    %250 = vmatprep.subr.mxu0 0.0
    %251 = vmatpush1.msra.mxu0 0.0
    %252 = vmatprep.subr.mxu0 0.0
    %253 = vmatpush1.msra.mxu0 0.0
    %254 = vmatprep.subr.mxu0 0.0
    %255 = vmatpush1.msra.mxu0 0.0
    %256 = vmatprep.subr.mxu0 0.0
    %257 = vmatpush1.msra.mxu0 0.0
    %258 = vmatprep.subr.mxu0 0.0
    %259 = vmatpush1.msra.mxu0 0.0
    %260 = vmatprep.subr.mxu0 0.0
    %261 = vmatpush1.msra.mxu0 0.0
    %262 = vmatprep.subr.mxu0 0.0
    %263 = vmatpush1.msra.mxu0 0.0
    %264 = vmatprep.subr.mxu0 0.0
    %265 = vmatpush1.msra.mxu0 0.0
    %266 = vmatprep.mubr.f32.mxu0 0.0
    %267 = vmatmul.mubr.f32.gmra.mrb[0].mxu0 %v84
    %v268 = vpop.f32.mrb[0].mxu0
    %v269 = vadd.f32 0.0, %v268
    %v270 = vpop.f32.mrb[0].mxu0
    %271 = vmatprep.mubr.f32.mxu0 0.0
    %272 = vmatmul.mubr.f32.gmra.mrb[0].mxu0 %v87
    %v273 = vpop.f32.mrb[0].mxu0
    %v274 = vadd.f32 0.0, %v273
    %v275 = vpop.f32.mrb[0].mxu0
    %276 = vmatprep.mubr.f32.mxu0 0.0
    %277 = vmatmul.mubr.f32.gmra.mrb[0].mxu0 %v90
    %v278 = vpop.f32.mrb[0].mxu0
    %v279 = vadd.f32 0.0, %v278
    %v280 = vpop.f32.mrb[0].mxu0
    %281 = vmatprep.mubr.f32.mxu0 0.0
    %282 = vmatmul.mubr.f32.gmra.mrb[0].mxu0 %v93
    %v283 = vpop.f32.mrb[0].mxu0
    %v284 = vadd.f32 0.0, %v283
    %v285 = vpop.f32.mrb[0].mxu0
    %286 = vmatprep.mubr.f32.mxu0 0.0
    %287 = vmatmul.mubr.f32.gmra.mrb[0].mxu0 %v96
    %v288 = vpop.f32.mrb[0].mxu0
    %v289 = vadd.f32 0.0, %v288
    %v290 = vpop.f32.mrb[0].mxu0
    %291 = vmatprep.mubr.f32.mxu0 0.0
    %292 = vmatmul.mubr.f32.gmra.mrb[0].mxu0 %v99
    %v293 = vpop.f32.mrb[0].mxu0
    %v294 = vadd.f32 0.0, %v293
    %v295 = vpop.f32.mrb[0].mxu0
    %296 = vdwg.mxu0
    %297 = vst [vmem:[#allocation4] sm:$0xff] %v168
    %298 = vst [vmem:[#allocation4 + $0x8] sm:$0xff] %v170
    %vm299 = vcmask 392192
    %300 = vst.msk [vmem:[#allocation4 + $0x10] sm:$0xff] %vm299, %v269
    %301 = vst [vmem:[#allocation4 + $0x18] sm:$0xff] %v174
    %302 = vst [vmem:[#allocation4 + $0x20] sm:$0xff] %v176
    %303 = vst.msk [vmem:[#allocation4 + $0x28] sm:$0xff] %vm299, %v274
    %304 = vst [vmem:[#allocation4 + $0x30] sm:$0xff] %v180
    %305 = vst [vmem:[#allocation4 + $0x38] sm:$0xff] %v182
    %306 = vst.msk [vmem:[#allocation4 + $0x40] sm:$0xff] %vm299, %v279
    %307 = vst [vmem:[#allocation4 + $0x48] sm:$0xff] %v186
    %308 = vst [vmem:[#allocation4 + $0x50] sm:$0xff] %v188
    %309 = vst.msk [vmem:[#allocation4 + $0x58] sm:$0xff] %vm299, %v284
    %310 = vst [vmem:[#allocation4 + $0x60] sm:$0xff] %v192
    %311 = vst [vmem:[#allocation4 + $0x68] sm:$0xff] %v194
    %312 = vst.msk [vmem:[#allocation4 + $0x70] sm:$0xff] %vm299, %v289
    %313 = vst [vmem:[#allocation4 + $0x78] sm:$0xff] %v198
    %314 = vst [vmem:[#allocation4 + $0x80] sm:$0xff] %v200
    %315 = vst.msk [vmem:[#allocation4 + $0x88] sm:$0xff] %vm299, %v294
    %v316 = vld [vmem:[#allocation4] sm:$0xff]
    %v317 = vld [vmem:[#allocation4 + $0x8] sm:$0xff]
    %v318 = vld [vmem:[#allocation4 + $0x10] sm:$0xff]
    %v319 = vld [vmem:[#allocation4 + $0x18] sm:$0xff]
    %v320 = vld [vmem:[#allocation4 + $0x20] sm:$0xff]
    %v321 = vld [vmem:[#allocation4 + $0x28] sm:$0xff]
    %v322 = vld [vmem:[#allocation4 + $0x30] sm:$0x1]
    %v323 = vld [vmem:[#allocation4 + $0x38] sm:$0x1]
    %v324 = vld [vmem:[#allocation4 + $0x40] sm:$0x1]
    %v325 = vld [vmem:[#allocation4 + $0x48] sm:$0xff]
    %v326 = vld [vmem:[#allocation4 + $0x50] sm:$0xff]
    %v327 = vld [vmem:[#allocation4 + $0x58] sm:$0xff]
    %v328 = vld [vmem:[#allocation4 + $0x60] sm:$0xff]
    %v329 = vld [vmem:[#allocation4 + $0x68] sm:$0xff]
    %v330 = vld [vmem:[#allocation4 + $0x70] sm:$0xff]
    %v331 = vld [vmem:[#allocation4 + $0x78] sm:$0x1]
    %v332 = vld [vmem:[#allocation4 + $0x80] sm:$0x1]
    %v333 = vld [vmem:[#allocation4 + $0x88] sm:$0x1]
    %v334 = vadd.f32 %v316, 0.0
    %v335 = vadd.f32 %v317, 0.0
    %v336 = vadd.f32 %v318, 0.0
    %v337 = vadd.f32 %v319, 0.0
    %v338 = vadd.f32 %v320, 0.0
    %v339 = vadd.f32 %v321, 0.0
    %v340 = vadd.f32 %v322, 0.0
    %v341 = vadd.f32 %v323, 0.0
    %v342 = vadd.f32 %v324, 0.0
    %v343 = vadd.f32 %v325, 0.0
    %v344 = vadd.f32 %v326, 0.0
    %v345 = vadd.f32 %v327, 0.0
    %v346 = vadd.f32 %v328, 0.0
    %v347 = vadd.f32 %v329, 0.0
    %v348 = vadd.f32 %v330, 0.0
    %v349 = vadd.f32 %v331, 0.0
    %v350 = vadd.f32 %v332, 0.0
    %v351 = vadd.f32 %v333, 0.0
    %s352 = scalar_lea.vmem [#allocation7], 48
    %v353 = vld [vmem:[%s352] sm:$0xff]
    %v354 = vld [vmem:[%s352 + $0x8] sm:$0xff]
    %v355 = vld [vmem:[%s352 + $0x10] sm:$0xff]
    %v356 = vld [vmem:[%s352 + $0x18] sm:$0xff]
    %v357 = vld [vmem:[%s352 + $0x20] sm:$0xff]
    %v358 = vld [vmem:[%s352 + $0x28] sm:$0xff]
    %359 = vmatprep.subr.mxu0 %v354
    %360 = vmatpush1.msra.mxu0 %v353
    %361 = vmatprep.subr.mxu0 %v357
    %362 = vmatpush1.msra.mxu0 %v356
    %363 = vmatprep.subr.mxu0 0.0
    %364 = vmatpush1.msra.mxu0 0.0
    %365 = vmatprep.subr.mxu0 0.0
    %366 = vmatpush1.msra.mxu0 0.0
    %367 = vmatprep.subr.mxu0 0.0
    %368 = vmatpush1.msra.mxu0 0.0
    %369 = vmatprep.subr.mxu0 0.0
    %370 = vmatpush1.msra.mxu0 0.0
    %371 = vmatprep.subr.mxu0 0.0
    %372 = vmatpush1.msra.mxu0 0.0
    %373 = vmatprep.subr.mxu0 0.0
    %374 = vmatpush1.msra.mxu0 0.0
    %375 = vmatprep.subr.mxu0 0.0
    %376 = vmatpush1.msra.mxu0 0.0
    %377 = vmatprep.subr.mxu0 0.0
    %378 = vmatpush1.msra.mxu0 0.0
    %379 = vmatprep.subr.mxu0 0.0
    %380 = vmatpush1.msra.mxu0 0.0
    %381 = vmatprep.subr.mxu0 0.0
    %382 = vmatpush1.msra.mxu0 0.0
    %383 = vmatprep.subr.mxu0 0.0
    %384 = vmatpush1.msra.mxu0 0.0
    %385 = vmatprep.subr.mxu0 0.0
    %386 = vmatpush1.msra.mxu0 0.0
    %387 = vmatprep.subr.mxu0 0.0
    %388 = vmatpush1.msra.mxu0 0.0
    %389 = vmatprep.subr.mxu0 0.0
    %390 = vmatpush1.msra.mxu0 0.0
    %391 = vmatprep.subr.mxu0 0.0
    %392 = vmatpush1.msra.mxu0 0.0
    %393 = vmatprep.subr.mxu0 0.0
    %394 = vmatpush1.msra.mxu0 0.0
    %395 = vmatprep.subr.mxu0 0.0
    %396 = vmatpush1.msra.mxu0 0.0
    %397 = vmatprep.subr.mxu0 0.0
    %398 = vmatpush1.msra.mxu0 0.0
    %399 = vmatprep.subr.mxu0 0.0
    %400 = vmatpush1.msra.mxu0 0.0
    %401 = vmatprep.subr.mxu0 0.0
    %402 = vmatpush1.msra.mxu0 0.0
    %403 = vmatprep.subr.mxu0 0.0
    %404 = vmatpush1.msra.mxu0 0.0
    %405 = vmatprep.subr.mxu0 0.0
    %406 = vmatpush1.msra.mxu0 0.0
    %407 = vmatprep.subr.mxu0 0.0
    %408 = vmatpush1.msra.mxu0 0.0
    %409 = vmatprep.subr.mxu0 0.0
    %410 = vmatpush1.msra.mxu0 0.0
    %411 = vmatprep.subr.mxu0 0.0
    %412 = vmatpush1.msra.mxu0 0.0
    %413 = vmatprep.subr.mxu0 0.0
    %414 = vmatpush1.msra.mxu0 0.0
    %415 = vmatprep.subr.mxu0 0.0
    %416 = vmatpush1.msra.mxu0 0.0
    %417 = vmatprep.subr.mxu0 0.0
    %418 = vmatpush1.msra.mxu0 0.0
    %419 = vmatprep.subr.mxu0 0.0
    %420 = vmatpush1.msra.mxu0 0.0
    %421 = vmatprep.subr.mxu0 0.0
    %422 = vmatpush1.msra.mxu0 0.0
    %423 = vmatprep.mubr.f32.mxu0 0.0
    %424 = vmatmul.mubr.f32.gmra.mrb[0].mxu0 %v84
    %v425 = vpop.f32.mrb[0].mxu0
    %v426 = vadd.f32 0.0, %v425
    %v427 = vpop.f32.mrb[0].mxu0
    %v428 = vadd.f32 0.0, %v427
    %429 = vmatprep.mubr.f32.mxu0 0.0
    %430 = vmatmul.mubr.f32.gmra.mrb[0].mxu0 %v87
    %v431 = vpop.f32.mrb[0].mxu0
    %v432 = vadd.f32 0.0, %v431
    %v433 = vpop.f32.mrb[0].mxu0
    %v434 = vadd.f32 0.0, %v433
    %435 = vmatprep.mubr.f32.mxu0 0.0
    %436 = vmatmul.mubr.f32.gmra.mrb[0].mxu0 %v90
    %v437 = vpop.f32.mrb[0].mxu0
    %v438 = vadd.f32 0.0, %v437
    %v439 = vpop.f32.mrb[0].mxu0
    %v440 = vadd.f32 0.0, %v439
    %441 = vmatprep.mubr.f32.mxu0 0.0
    %442 = vmatmul.mubr.f32.gmra.mrb[0].mxu0 %v93
    %v443 = vpop.f32.mrb[0].mxu0
    %v444 = vadd.f32 0.0, %v443
    %v445 = vpop.f32.mrb[0].mxu0
    %v446 = vadd.f32 0.0, %v445
    %447 = vmatprep.mubr.f32.mxu0 0.0
    %448 = vmatmul.mubr.f32.gmra.mrb[0].mxu0 %v96
    %v449 = vpop.f32.mrb[0].mxu0
    %v450 = vadd.f32 0.0, %v449
    %v451 = vpop.f32.mrb[0].mxu0
    %v452 = vadd.f32 0.0, %v451
    %453 = vmatprep.mubr.f32.mxu0 0.0
    %454 = vmatmul.mubr.f32.gmra.mrb[0].mxu0 %v99
    %v455 = vpop.f32.mrb[0].mxu0
    %v456 = vadd.f32 0.0, %v455
    %v457 = vpop.f32.mrb[0].mxu0
    %v458 = vadd.f32 0.0, %v457
    %459 = vdwg.mxu0
    %460 = vmatprep.subr.mxu0 0.0
    %461 = vmatpush1.msra.mxu0 %v355
    %462 = vmatprep.subr.mxu0 0.0
    %463 = vmatpush1.msra.mxu0 %v358
    %464 = vmatprep.subr.mxu0 0.0
    %465 = vmatpush1.msra.mxu0 0.0
    %466 = vmatprep.subr.mxu0 0.0
    %467 = vmatpush1.msra.mxu0 0.0
    %468 = vmatprep.subr.mxu0 0.0
    %469 = vmatpush1.msra.mxu0 0.0
    %470 = vmatprep.subr.mxu0 0.0
    %471 = vmatpush1.msra.mxu0 0.0
    %472 = vmatprep.subr.mxu0 0.0
    %473 = vmatpush1.msra.mxu0 0.0
    %474 = vmatprep.subr.mxu0 0.0
    %475 = vmatpush1.msra.mxu0 0.0
    %476 = vmatprep.subr.mxu0 0.0
    %477 = vmatpush1.msra.mxu0 0.0
    %478 = vmatprep.subr.mxu0 0.0
    %479 = vmatpush1.msra.mxu0 0.0
    %480 = vmatprep.subr.mxu0 0.0
    %481 = vmatpush1.msra.mxu0 0.0
    %482 = vmatprep.subr.mxu0 0.0
    %483 = vmatpush1.msra.mxu0 0.0
    %484 = vmatprep.subr.mxu0 0.0
    %485 = vmatpush1.msra.mxu0 0.0
    %486 = vmatprep.subr.mxu0 0.0
    %487 = vmatpush1.msra.mxu0 0.0
    %488 = vmatprep.subr.mxu0 0.0
    %489 = vmatpush1.msra.mxu0 0.0
    %490 = vmatprep.subr.mxu0 0.0
    %491 = vmatpush1.msra.mxu0 0.0
    %492 = vmatprep.subr.mxu0 0.0
    %493 = vmatpush1.msra.mxu0 0.0
    %494 = vmatprep.subr.mxu0 0.0
    %495 = vmatpush1.msra.mxu0 0.0
    %496 = vmatprep.subr.mxu0 0.0
    %497 = vmatpush1.msra.mxu0 0.0
    %498 = vmatprep.subr.mxu0 0.0
    %499 = vmatpush1.msra.mxu0 0.0
    %500 = vmatprep.subr.mxu0 0.0
    %501 = vmatpush1.msra.mxu0 0.0
    %502 = vmatprep.subr.mxu0 0.0
    %503 = vmatpush1.msra.mxu0 0.0
    %504 = vmatprep.subr.mxu0 0.0
    %505 = vmatpush1.msra.mxu0 0.0
    %506 = vmatprep.subr.mxu0 0.0
    %507 = vmatpush1.msra.mxu0 0.0
    %508 = vmatprep.subr.mxu0 0.0
    %509 = vmatpush1.msra.mxu0 0.0
    %510 = vmatprep.subr.mxu0 0.0
    %511 = vmatpush1.msra.mxu0 0.0
    %512 = vmatprep.subr.mxu0 0.0
    %513 = vmatpush1.msra.mxu0 0.0
    %514 = vmatprep.subr.mxu0 0.0
    %515 = vmatpush1.msra.mxu0 0.0
    %516 = vmatprep.subr.mxu0 0.0
    %517 = vmatpush1.msra.mxu0 0.0
    %518 = vmatprep.subr.mxu0 0.0
    %519 = vmatpush1.msra.mxu0 0.0
    %520 = vmatprep.subr.mxu0 0.0
    %521 = vmatpush1.msra.mxu0 0.0
    %522 = vmatprep.subr.mxu0 0.0
    %523 = vmatpush1.msra.mxu0 0.0
    %524 = vmatprep.mubr.f32.mxu0 0.0
    %525 = vmatmul.mubr.f32.gmra.mrb[0].mxu0 %v84
    %v526 = vpop.f32.mrb[0].mxu0
    %v527 = vadd.f32 0.0, %v526
    %v528 = vpop.f32.mrb[0].mxu0
    %529 = vmatprep.mubr.f32.mxu0 0.0
    %530 = vmatmul.mubr.f32.gmra.mrb[0].mxu0 %v87
    %v531 = vpop.f32.mrb[0].mxu0
    %v532 = vadd.f32 0.0, %v531
    %v533 = vpop.f32.mrb[0].mxu0
    %534 = vmatprep.mubr.f32.mxu0 0.0
    %535 = vmatmul.mubr.f32.gmra.mrb[0].mxu0 %v90
    %v536 = vpop.f32.mrb[0].mxu0
    %v537 = vadd.f32 0.0, %v536
    %v538 = vpop.f32.mrb[0].mxu0
    %539 = vmatprep.mubr.f32.mxu0 0.0
    %540 = vmatmul.mubr.f32.gmra.mrb[0].mxu0 %v93
    %v541 = vpop.f32.mrb[0].mxu0
    %v542 = vadd.f32 0.0, %v541
    %v543 = vpop.f32.mrb[0].mxu0
    %544 = vmatprep.mubr.f32.mxu0 0.0
    %545 = vmatmul.mubr.f32.gmra.mrb[0].mxu0 %v96
    %v546 = vpop.f32.mrb[0].mxu0
    %v547 = vadd.f32 0.0, %v546
    %v548 = vpop.f32.mrb[0].mxu0
    %549 = vmatprep.mubr.f32.mxu0 0.0
    %550 = vmatmul.mubr.f32.gmra.mrb[0].mxu0 %v99
    %v551 = vpop.f32.mrb[0].mxu0
    %v552 = vadd.f32 0.0, %v551
    %v553 = vpop.f32.mrb[0].mxu0
    %554 = vdwg.mxu0
    %555 = vst [vmem:[#allocation4] sm:$0xff] %v426
    %556 = vst [vmem:[#allocation4 + $0x8] sm:$0xff] %v428
    %557 = vst.msk [vmem:[#allocation4 + $0x10] sm:$0xff] %vm299, %v527
    %558 = vst [vmem:[#allocation4 + $0x18] sm:$0xff] %v432
    %559 = vst [vmem:[#allocation4 + $0x20] sm:$0xff] %v434
    %560 = vst.msk [vmem:[#allocation4 + $0x28] sm:$0xff] %vm299, %v532
    %561 = vst [vmem:[#allocation4 + $0x30] sm:$0xff] %v438
    %562 = vst [vmem:[#allocation4 + $0x38] sm:$0xff] %v440
    %563 = vst.msk [vmem:[#allocation4 + $0x40] sm:$0xff] %vm299, %v537
    %564 = vst [vmem:[#allocation4 + $0x48] sm:$0xff] %v444
    %565 = vst [vmem:[#allocation4 + $0x50] sm:$0xff] %v446
    %566 = vst.msk [vmem:[#allocation4 + $0x58] sm:$0xff] %vm299, %v542
    %567 = vst [vmem:[#allocation4 + $0x60] sm:$0xff] %v450
    %568 = vst [vmem:[#allocation4 + $0x68] sm:$0xff] %v452
    %569 = vst.msk [vmem:[#allocation4 + $0x70] sm:$0xff] %vm299, %v547
    %570 = vst [vmem:[#allocation4 + $0x78] sm:$0xff] %v456
    %571 = vst [vmem:[#allocation4 + $0x80] sm:$0xff] %v458
    %572 = vst.msk [vmem:[#allocation4 + $0x88] sm:$0xff] %vm299, %v552
    %v573 = vld [vmem:[#allocation4] sm:$0xfe]
    %v574 = vld [vmem:[#allocation4 + $0x8] sm:$0xfe]
    %v575 = vld [vmem:[#allocation4 + $0x10] sm:$0xfe]
    %v576 = vld [vmem:[#allocation4 + $0x18] sm:$0xff]
    %v577 = vld [vmem:[#allocation4 + $0x20] sm:$0xff]
    %v578 = vld [vmem:[#allocation4 + $0x28] sm:$0xff]
    %v579 = vld [vmem:[#allocation4 + $0x30] sm:$0x3]
    %v580 = vld [vmem:[#allocation4 + $0x38] sm:$0x3]
    %v581 = vld [vmem:[#allocation4 + $0x40] sm:$0x3]
    %v582 = vld [vmem:[#allocation4 + $0x48] sm:$0xfe]
    %v583 = vld [vmem:[#allocation4 + $0x50] sm:$0xfe]
    %v584 = vld [vmem:[#allocation4 + $0x58] sm:$0xfe]
    %v585 = vld [vmem:[#allocation4 + $0x60] sm:$0xff]
    %v586 = vld [vmem:[#allocation4 + $0x68] sm:$0xff]
    %v587 = vld [vmem:[#allocation4 + $0x70] sm:$0xff]
    %v588 = vld [vmem:[#allocation4 + $0x78] sm:$0x3]
    %v589 = vld [vmem:[#allocation4 + $0x80] sm:$0x3]
    %v590 = vld [vmem:[#allocation4 + $0x88] sm:$0x3]
    %vm609 = vcmask 1046528
    %v610 = vrot.slane %v573, 1
    %v611 = vrot.slane %v576, 1
    %v612 = vsel %vm609, %v610, %v611
    %v613 = vrot.slane %v574, 1
    %v614 = vrot.slane %v577, 1
    %v615 = vsel %vm609, %v613, %v614
    %v616 = vrot.slane %v575, 1
    %v617 = vrot.slane %v578, 1
    %v618 = vsel %vm609, %v616, %v617
    %v619 = vrot.slane %v579, 1
    %v620 = vsel %vm609, %v611, %v619
    %v621 = vrot.slane %v580, 1
    %v622 = vsel %vm609, %v614, %v621
    %v623 = vrot.slane %v581, 1
    %v624 = vsel %vm609, %v617, %v623
    %v625 = vrot.slane %v582, 1
    %v626 = vrot.slane %v585, 1
    %v627 = vsel %vm609, %v625, %v626
    %v628 = vrot.slane %v583, 1
    %v629 = vrot.slane %v586, 1
    %v630 = vsel %vm609, %v628, %v629
    %v631 = vrot.slane %v584, 1
    %v632 = vrot.slane %v587, 1
    %v633 = vsel %vm609, %v631, %v632
    %v634 = vrot.slane %v588, 1
    %v635 = vsel %vm609, %v626, %v634
    %v636 = vrot.slane %v589, 1
    %v637 = vsel %vm609, %v629, %v636
    %v638 = vrot.slane %v590, 1
    %v639 = vsel %vm609, %v632, %v638
    %v658 = vadd.f32 %v334, %v612
    %v659 = vadd.f32 %v335, %v615
    %v660 = vadd.f32 %v336, %v618
    %v661 = vadd.f32 %v337, %v620
    %v662 = vadd.f32 %v338, %v622
    %v663 = vadd.f32 %v339, %v624
    %v664 = vadd.f32 %v340, %v619
    %v665 = vadd.f32 %v341, %v621
    %v666 = vadd.f32 %v342, %v623
    %v667 = vadd.f32 %v343, %v627
    %v668 = vadd.f32 %v344, %v630
    %v669 = vadd.f32 %v345, %v633
    %v670 = vadd.f32 %v346, %v635
    %v671 = vadd.f32 %v347, %v637
    %v672 = vadd.f32 %v348, %v639
    %v673 = vadd.f32 %v349, %v634
    %v674 = vadd.f32 %v350, %v636
    %v675 = vadd.f32 %v351, %v638
    %s676 = scalar_lea.vmem [#allocation7], 96
    %v677 = vld [vmem:[%s676] sm:$0xff]
    %v678 = vld [vmem:[%s676 + $0x8] sm:$0xff]
    %v679 = vld [vmem:[%s676 + $0x10] sm:$0xff]
    %v680 = vld [vmem:[%s676 + $0x18] sm:$0xff]
    %v681 = vld [vmem:[%s676 + $0x20] sm:$0xff]
    %v682 = vld [vmem:[%s676 + $0x28] sm:$0xff]
    %683 = vmatprep.subr.mxu0 %v678
    %684 = vmatpush1.msra.mxu0 %v677
    %685 = vmatprep.subr.mxu0 %v681
    %686 = vmatpush1.msra.mxu0 %v680
    %687 = vmatprep.subr.mxu0 0.0
    %688 = vmatpush1.msra.mxu0 0.0
    %689 = vmatprep.subr.mxu0 0.0
    %690 = vmatpush1.msra.mxu0 0.0
    %691 = vmatprep.subr.mxu0 0.0
    %692 = vmatpush1.msra.mxu0 0.0
    %693 = vmatprep.subr.mxu0 0.0
    %694 = vmatpush1.msra.mxu0 0.0
    %695 = vmatprep.subr.mxu0 0.0
    %696 = vmatpush1.msra.mxu0 0.0
    %697 = vmatprep.subr.mxu0 0.0
    %698 = vmatpush1.msra.mxu0 0.0
    %699 = vmatprep.subr.mxu0 0.0
    %700 = vmatpush1.msra.mxu0 0.0
    %701 = vmatprep.subr.mxu0 0.0
    %702 = vmatpush1.msra.mxu0 0.0
    %703 = vmatprep.subr.mxu0 0.0
    %704 = vmatpush1.msra.mxu0 0.0
    %705 = vmatprep.subr.mxu0 0.0
    %706 = vmatpush1.msra.mxu0 0.0
    %707 = vmatprep.subr.mxu0 0.0
    %708 = vmatpush1.msra.mxu0 0.0
    %709 = vmatprep.subr.mxu0 0.0
    %710 = vmatpush1.msra.mxu0 0.0
    %711 = vmatprep.subr.mxu0 0.0
    %712 = vmatpush1.msra.mxu0 0.0
    %713 = vmatprep.subr.mxu0 0.0
    %714 = vmatpush1.msra.mxu0 0.0
    %715 = vmatprep.subr.mxu0 0.0
    %716 = vmatpush1.msra.mxu0 0.0
    %717 = vmatprep.subr.mxu0 0.0
    %718 = vmatpush1.msra.mxu0 0.0
    %719 = vmatprep.subr.mxu0 0.0
    %720 = vmatpush1.msra.mxu0 0.0
    %721 = vmatprep.subr.mxu0 0.0
    %722 = vmatpush1.msra.mxu0 0.0
    %723 = vmatprep.subr.mxu0 0.0
    %724 = vmatpush1.msra.mxu0 0.0
    %725 = vmatprep.subr.mxu0 0.0
    %726 = vmatpush1.msra.mxu0 0.0
    %727 = vmatprep.subr.mxu0 0.0
    %728 = vmatpush1.msra.mxu0 0.0
    %729 = vmatprep.subr.mxu0 0.0
    %730 = vmatpush1.msra.mxu0 0.0
    %731 = vmatprep.subr.mxu0 0.0
    %732 = vmatpush1.msra.mxu0 0.0
    %733 = vmatprep.subr.mxu0 0.0
    %734 = vmatpush1.msra.mxu0 0.0
    %735 = vmatprep.subr.mxu0 0.0
    %736 = vmatpush1.msra.mxu0 0.0
    %737 = vmatprep.subr.mxu0 0.0
    %738 = vmatpush1.msra.mxu0 0.0
    %739 = vmatprep.subr.mxu0 0.0
    %740 = vmatpush1.msra.mxu0 0.0
    %741 = vmatprep.subr.mxu0 0.0
    %742 = vmatpush1.msra.mxu0 0.0
    %743 = vmatprep.subr.mxu0 0.0
    %744 = vmatpush1.msra.mxu0 0.0
    %745 = vmatprep.subr.mxu0 0.0
    %746 = vmatpush1.msra.mxu0 0.0
    %747 = vmatprep.mubr.f32.mxu0 0.0
    %748 = vmatmul.mubr.f32.gmra.mrb[0].mxu0 %v84
    %v749 = vpop.f32.mrb[0].mxu0
    %v750 = vadd.f32 0.0, %v749
    %v751 = vpop.f32.mrb[0].mxu0
    %v752 = vadd.f32 0.0, %v751
    %753 = vmatprep.mubr.f32.mxu0 0.0
    %754 = vmatmul.mubr.f32.gmra.mrb[0].mxu0 %v87
    %v755 = vpop.f32.mrb[0].mxu0
    %v756 = vadd.f32 0.0, %v755
    %v757 = vpop.f32.mrb[0].mxu0
    %v758 = vadd.f32 0.0, %v757
    %759 = vmatprep.mubr.f32.mxu0 0.0
    %760 = vmatmul.mubr.f32.gmra.mrb[0].mxu0 %v90
    %v761 = vpop.f32.mrb[0].mxu0
    %v762 = vadd.f32 0.0, %v761
    %v763 = vpop.f32.mrb[0].mxu0
    %v764 = vadd.f32 0.0, %v763
    %765 = vmatprep.mubr.f32.mxu0 0.0
    %766 = vmatmul.mubr.f32.gmra.mrb[0].mxu0 %v93
    %v767 = vpop.f32.mrb[0].mxu0
    %v768 = vadd.f32 0.0, %v767
    %v769 = vpop.f32.mrb[0].mxu0
    %v770 = vadd.f32 0.0, %v769
    %771 = vmatprep.mubr.f32.mxu0 0.0
    %772 = vmatmul.mubr.f32.gmra.mrb[0].mxu0 %v96
    %v773 = vpop.f32.mrb[0].mxu0
    %v774 = vadd.f32 0.0, %v773
    %v775 = vpop.f32.mrb[0].mxu0
    %v776 = vadd.f32 0.0, %v775
    %777 = vmatprep.mubr.f32.mxu0 0.0
    %778 = vmatmul.mubr.f32.gmra.mrb[0].mxu0 %v99
    %v779 = vpop.f32.mrb[0].mxu0
    %v780 = vadd.f32 0.0, %v779
    %v781 = vpop.f32.mrb[0].mxu0
    %v782 = vadd.f32 0.0, %v781
    %783 = vdwg.mxu0
    %784 = vmatprep.subr.mxu0 0.0
    %785 = vmatpush1.msra.mxu0 %v679
    %786 = vmatprep.subr.mxu0 0.0
    %787 = vmatpush1.msra.mxu0 %v682
    %788 = vmatprep.subr.mxu0 0.0
    %789 = vmatpush1.msra.mxu0 0.0
    %790 = vmatprep.subr.mxu0 0.0
    %791 = vmatpush1.msra.mxu0 0.0
    %792 = vmatprep.subr.mxu0 0.0
    %793 = vmatpush1.msra.mxu0 0.0
    %794 = vmatprep.subr.mxu0 0.0
    %795 = vmatpush1.msra.mxu0 0.0
    %796 = vmatprep.subr.mxu0 0.0
    %797 = vmatpush1.msra.mxu0 0.0
    %798 = vmatprep.subr.mxu0 0.0
    %799 = vmatpush1.msra.mxu0 0.0
    %800 = vmatprep.subr.mxu0 0.0
    %801 = vmatpush1.msra.mxu0 0.0
    %802 = vmatprep.subr.mxu0 0.0
    %803 = vmatpush1.msra.mxu0 0.0
    %804 = vmatprep.subr.mxu0 0.0
    %805 = vmatpush1.msra.mxu0 0.0
    %806 = vmatprep.subr.mxu0 0.0
    %807 = vmatpush1.msra.mxu0 0.0
    %808 = vmatprep.subr.mxu0 0.0
    %809 = vmatpush1.msra.mxu0 0.0
    %810 = vmatprep.subr.mxu0 0.0
    %811 = vmatpush1.msra.mxu0 0.0
    %812 = vmatprep.subr.mxu0 0.0
    %813 = vmatpush1.msra.mxu0 0.0
    %814 = vmatprep.subr.mxu0 0.0
    %815 = vmatpush1.msra.mxu0 0.0
    %816 = vmatprep.subr.mxu0 0.0
    %817 = vmatpush1.msra.mxu0 0.0
    %818 = vmatprep.subr.mxu0 0.0
    %819 = vmatpush1.msra.mxu0 0.0
    %820 = vmatprep.subr.mxu0 0.0
    %821 = vmatpush1.msra.mxu0 0.0
    %822 = vmatprep.subr.mxu0 0.0
    %823 = vmatpush1.msra.mxu0 0.0
    %824 = vmatprep.subr.mxu0 0.0
    %825 = vmatpush1.msra.mxu0 0.0
    %826 = vmatprep.subr.mxu0 0.0
    %827 = vmatpush1.msra.mxu0 0.0
    %828 = vmatprep.subr.mxu0 0.0
    %829 = vmatpush1.msra.mxu0 0.0
    %830 = vmatprep.subr.mxu0 0.0
    %831 = vmatpush1.msra.mxu0 0.0
    %832 = vmatprep.subr.mxu0 0.0
    %833 = vmatpush1.msra.mxu0 0.0
    %834 = vmatprep.subr.mxu0 0.0
    %835 = vmatpush1.msra.mxu0 0.0
    %836 = vmatprep.subr.mxu0 0.0
    %837 = vmatpush1.msra.mxu0 0.0
    %838 = vmatprep.subr.mxu0 0.0
    %839 = vmatpush1.msra.mxu0 0.0
    %840 = vmatprep.subr.mxu0 0.0
    %841 = vmatpush1.msra.mxu0 0.0
    %842 = vmatprep.subr.mxu0 0.0
    %843 = vmatpush1.msra.mxu0 0.0
    %844 = vmatprep.subr.mxu0 0.0
    %845 = vmatpush1.msra.mxu0 0.0
    %846 = vmatprep.subr.mxu0 0.0
    %847 = vmatpush1.msra.mxu0 0.0
    %848 = vmatprep.mubr.f32.mxu0 0.0
    %849 = vmatmul.mubr.f32.gmra.mrb[0].mxu0 %v84
    %v850 = vpop.f32.mrb[0].mxu0
    %v851 = vadd.f32 0.0, %v850
    %v852 = vpop.f32.mrb[0].mxu0
    %853 = vmatprep.mubr.f32.mxu0 0.0
    %854 = vmatmul.mubr.f32.gmra.mrb[0].mxu0 %v87
    %v855 = vpop.f32.mrb[0].mxu0
    %v856 = vadd.f32 0.0, %v855
    %v857 = vpop.f32.mrb[0].mxu0
    %858 = vmatprep.mubr.f32.mxu0 0.0
    %859 = vmatmul.mubr.f32.gmra.mrb[0].mxu0 %v90
    %v860 = vpop.f32.mrb[0].mxu0
    %v861 = vadd.f32 0.0, %v860
    %v862 = vpop.f32.mrb[0].mxu0
    %863 = vmatprep.mubr.f32.mxu0 0.0
    %864 = vmatmul.mubr.f32.gmra.mrb[0].mxu0 %v93
    %v865 = vpop.f32.mrb[0].mxu0
    %v866 = vadd.f32 0.0, %v865
    %v867 = vpop.f32.mrb[0].mxu0
    %868 = vmatprep.mubr.f32.mxu0 0.0
    %869 = vmatmul.mubr.f32.gmra.mrb[0].mxu0 %v96
    %v870 = vpop.f32.mrb[0].mxu0
    %v871 = vadd.f32 0.0, %v870
    %v872 = vpop.f32.mrb[0].mxu0
    %873 = vmatprep.mubr.f32.mxu0 0.0
    %874 = vmatmul.mubr.f32.gmra.mrb[0].mxu0 %v99
    %v875 = vpop.f32.mrb[0].mxu0
    %v876 = vadd.f32 0.0, %v875
    %v877 = vpop.f32.mrb[0].mxu0
    %878 = vdwg.mxu0
    %879 = vst [vmem:[#allocation4] sm:$0xff] %v750
    %880 = vst [vmem:[#allocation4 + $0x8] sm:$0xff] %v752
    %881 = vst.msk [vmem:[#allocation4 + $0x10] sm:$0xff] %vm299, %v851
    %882 = vst [vmem:[#allocation4 + $0x18] sm:$0xff] %v756
    %883 = vst [vmem:[#allocation4 + $0x20] sm:$0xff] %v758
    %884 = vst.msk [vmem:[#allocation4 + $0x28] sm:$0xff] %vm299, %v856
    %885 = vst [vmem:[#allocation4 + $0x30] sm:$0xff] %v762
    %886 = vst [vmem:[#allocation4 + $0x38] sm:$0xff] %v764
    %887 = vst.msk [vmem:[#allocation4 + $0x40] sm:$0xff] %vm299, %v861
    %888 = vst [vmem:[#allocation4 + $0x48] sm:$0xff] %v768
    %889 = vst [vmem:[#allocation4 + $0x50] sm:$0xff] %v770
    %890 = vst.msk [vmem:[#allocation4 + $0x58] sm:$0xff] %vm299, %v866
    %891 = vst [vmem:[#allocation4 + $0x60] sm:$0xff] %v774
    %892 = vst [vmem:[#allocation4 + $0x68] sm:$0xff] %v776
    %893 = vst.msk [vmem:[#allocation4 + $0x70] sm:$0xff] %vm299, %v871
    %894 = vst [vmem:[#allocation4 + $0x78] sm:$0xff] %v780
    %895 = vst [vmem:[#allocation4 + $0x80] sm:$0xff] %v782
    %896 = vst.msk [vmem:[#allocation4 + $0x88] sm:$0xff] %vm299, %v876
    %v897 = vld [vmem:[#allocation4] sm:$0xfc]
    %v898 = vld [vmem:[#allocation4 + $0x8] sm:$0xfc]
    %v899 = vld [vmem:[#allocation4 + $0x10] sm:$0xfc]
    %v900 = vld [vmem:[#allocation4 + $0x18] sm:$0xff]
    %v901 = vld [vmem:[#allocation4 + $0x20] sm:$0xff]
    %v902 = vld [vmem:[#allocation4 + $0x28] sm:$0xff]
    %v903 = vld [vmem:[#allocation4 + $0x30] sm:$0x7]
    %v904 = vld [vmem:[#allocation4 + $0x38] sm:$0x7]
    %v905 = vld [vmem:[#allocation4 + $0x40] sm:$0x7]
    %v906 = vld [vmem:[#allocation4 + $0x48] sm:$0xfc]
    %v907 = vld [vmem:[#allocation4 + $0x50] sm:$0xfc]
    %v908 = vld [vmem:[#allocation4 + $0x58] sm:$0xfc]
    %v909 = vld [vmem:[#allocation4 + $0x60] sm:$0xff]
    %v910 = vld [vmem:[#allocation4 + $0x68] sm:$0xff]
    %v911 = vld [vmem:[#allocation4 + $0x70] sm:$0xff]
    %v912 = vld [vmem:[#allocation4 + $0x78] sm:$0x7]
    %v913 = vld [vmem:[#allocation4 + $0x80] sm:$0x7]
    %v914 = vld [vmem:[#allocation4 + $0x88] sm:$0x7]
    %vm933 = vcmask 1045504
    %v934 = vrot.slane %v897, 2
    %v935 = vrot.slane %v900, 2
    %v936 = vsel %vm933, %v934, %v935
    %v937 = vrot.slane %v898, 2
    %v938 = vrot.slane %v901, 2
    %v939 = vsel %vm933, %v937, %v938
    %v940 = vrot.slane %v899, 2
    %v941 = vrot.slane %v902, 2
    %v942 = vsel %vm933, %v940, %v941
    %v943 = vrot.slane %v903, 2
    %v944 = vsel %vm933, %v935, %v943
    %v945 = vrot.slane %v904, 2
    %v946 = vsel %vm933, %v938, %v945
    %v947 = vrot.slane %v905, 2
    %v948 = vsel %vm933, %v941, %v947
    %v949 = vrot.slane %v906, 2
    %v950 = vrot.slane %v909, 2
    %v951 = vsel %vm933, %v949, %v950
    %v952 = vrot.slane %v907, 2
    %v953 = vrot.slane %v910, 2
    %v954 = vsel %vm933, %v952, %v953
    %v955 = vrot.slane %v908, 2
    %v956 = vrot.slane %v911, 2
    %v957 = vsel %vm933, %v955, %v956
    %v958 = vrot.slane %v912, 2
    %v959 = vsel %vm933, %v950, %v958
    %v960 = vrot.slane %v913, 2
    %v961 = vsel %vm933, %v953, %v960
    %v962 = vrot.slane %v914, 2
    %v963 = vsel %vm933, %v956, %v962
    %v982 = vadd.f32 %v658, %v936
    %v983 = vadd.f32 %v659, %v939
    %v984 = vadd.f32 %v660, %v942
    %v985 = vadd.f32 %v661, %v944
    %v986 = vadd.f32 %v662, %v946
    %v987 = vadd.f32 %v663, %v948
    %v988 = vadd.f32 %v664, %v943
    %v989 = vadd.f32 %v665, %v945
    %v990 = vadd.f32 %v666, %v947
    %v991 = vadd.f32 %v667, %v951
    %v992 = vadd.f32 %v668, %v954
    %v993 = vadd.f32 %v669, %v957
    %v994 = vadd.f32 %v670, %v959
    %v995 = vadd.f32 %v671, %v961
    %v996 = vadd.f32 %v672, %v963
    %v997 = vadd.f32 %v673, %v958
    %v998 = vadd.f32 %v674, %v960
    %v999 = vadd.f32 %v675, %v962
    %s1000 = scalar_lea.vmem [#allocation7], 144
    %v1001 = vld [vmem:[%s1000] sm:$0xff]
    %v1002 = vld [vmem:[%s1000 + $0x8] sm:$0xff]
    %v1003 = vld [vmem:[%s1000 + $0x10] sm:$0xff]
    %v1004 = vld [vmem:[%s1000 + $0x18] sm:$0xff]
    %v1005 = vld [vmem:[%s1000 + $0x20] sm:$0xff]
    %v1006 = vld [vmem:[%s1000 + $0x28] sm:$0xff]
    %1007 = vmatprep.subr.mxu0 %v1002
    %1008 = vmatpush1.msra.mxu0 %v1001
    %1009 = vmatprep.subr.mxu0 %v1005
    %1010 = vmatpush1.msra.mxu0 %v1004
    %1011 = vmatprep.subr.mxu0 0.0
    %1012 = vmatpush1.msra.mxu0 0.0
    %1013 = vmatprep.subr.mxu0 0.0
    %1014 = vmatpush1.msra.mxu0 0.0
    %1015 = vmatprep.subr.mxu0 0.0
    %1016 = vmatpush1.msra.mxu0 0.0
    %1017 = vmatprep.subr.mxu0 0.0
    %1018 = vmatpush1.msra.mxu0 0.0
    %1019 = vmatprep.subr.mxu0 0.0
    %1020 = vmatpush1.msra.mxu0 0.0
    %1021 = vmatprep.subr.mxu0 0.0
    %1022 = vmatpush1.msra.mxu0 0.0
    %1023 = vmatprep.subr.mxu0 0.0
    %1024 = vmatpush1.msra.mxu0 0.0
    %1025 = vmatprep.subr.mxu0 0.0
    %1026 = vmatpush1.msra.mxu0 0.0
    %1027 = vmatprep.subr.mxu0 0.0
    %1028 = vmatpush1.msra.mxu0 0.0
    %1029 = vmatprep.subr.mxu0 0.0
    %1030 = vmatpush1.msra.mxu0 0.0
    %1031 = vmatprep.subr.mxu0 0.0
    %1032 = vmatpush1.msra.mxu0 0.0
    %1033 = vmatprep.subr.mxu0 0.0
    %1034 = vmatpush1.msra.mxu0 0.0
    %1035 = vmatprep.subr.mxu0 0.0
    %1036 = vmatpush1.msra.mxu0 0.0
    %1037 = vmatprep.subr.mxu0 0.0
    %1038 = vmatpush1.msra.mxu0 0.0
    %1039 = vmatprep.subr.mxu0 0.0
    %1040 = vmatpush1.msra.mxu0 0.0
    %1041 = vmatprep.subr.mxu0 0.0
    %1042 = vmatpush1.msra.mxu0 0.0
    %1043 = vmatprep.subr.mxu0 0.0
    %1044 = vmatpush1.msra.mxu0 0.0
    %1045 = vmatprep.subr.mxu0 0.0
    %1046 = vmatpush1.msra.mxu0 0.0
    %1047 = vmatprep.subr.mxu0 0.0
    %1048 = vmatpush1.msra.mxu0 0.0
    %1049 = vmatprep.subr.mxu0 0.0
    %1050 = vmatpush1.msra.mxu0 0.0
    %1051 = vmatprep.subr.mxu0 0.0
    %1052 = vmatpush1.msra.mxu0 0.0
    %1053 = vmatprep.subr.mxu0 0.0
    %1054 = vmatpush1.msra.mxu0 0.0
    %1055 = vmatprep.subr.mxu0 0.0
    %1056 = vmatpush1.msra.mxu0 0.0
    %1057 = vmatprep.subr.mxu0 0.0
    %1058 = vmatpush1.msra.mxu0 0.0
    %1059 = vmatprep.subr.mxu0 0.0
    %1060 = vmatpush1.msra.mxu0 0.0
    %1061 = vmatprep.subr.mxu0 0.0
    %1062 = vmatpush1.msra.mxu0 0.0
    %1063 = vmatprep.subr.mxu0 0.0
    %1064 = vmatpush1.msra.mxu0 0.0
    %1065 = vmatprep.subr.mxu0 0.0
    %1066 = vmatpush1.msra.mxu0 0.0
    %1067 = vmatprep.subr.mxu0 0.0
    %1068 = vmatpush1.msra.mxu0 0.0
    %1069 = vmatprep.subr.mxu0 0.0
    %1070 = vmatpush1.msra.mxu0 0.0
    %1071 = vmatprep.mubr.f32.mxu0 0.0
    %1072 = vmatmul.mubr.f32.gmra.mrb[0].mxu0 %v84
    %v1073 = vpop.f32.mrb[0].mxu0
    %v1074 = vadd.f32 0.0, %v1073
    %v1075 = vpop.f32.mrb[0].mxu0
    %v1076 = vadd.f32 0.0, %v1075
    %1077 = vmatprep.mubr.f32.mxu0 0.0
    %1078 = vmatmul.mubr.f32.gmra.mrb[0].mxu0 %v87
    %v1079 = vpop.f32.mrb[0].mxu0
    %v1080 = vadd.f32 0.0, %v1079
    %v1081 = vpop.f32.mrb[0].mxu0
    %v1082 = vadd.f32 0.0, %v1081
    %1083 = vmatprep.mubr.f32.mxu0 0.0
    %1084 = vmatmul.mubr.f32.gmra.mrb[0].mxu0 %v90
    %v1085 = vpop.f32.mrb[0].mxu0
    %v1086 = vadd.f32 0.0, %v1085
    %v1087 = vpop.f32.mrb[0].mxu0
    %v1088 = vadd.f32 0.0, %v1087
    %1089 = vmatprep.mubr.f32.mxu0 0.0
    %1090 = vmatmul.mubr.f32.gmra.mrb[0].mxu0 %v93
    %v1091 = vpop.f32.mrb[0].mxu0
    %v1092 = vadd.f32 0.0, %v1091
    %v1093 = vpop.f32.mrb[0].mxu0
    %v1094 = vadd.f32 0.0, %v1093
    %1095 = vmatprep.mubr.f32.mxu0 0.0
    %1096 = vmatmul.mubr.f32.gmra.mrb[0].mxu0 %v96
    %v1097 = vpop.f32.mrb[0].mxu0
    %v1098 = vadd.f32 0.0, %v1097
    %v1099 = vpop.f32.mrb[0].mxu0
    %v1100 = vadd.f32 0.0, %v1099
    %1101 = vmatprep.mubr.f32.mxu0 0.0
    %1102 = vmatmul.mubr.f32.gmra.mrb[0].mxu0 %v99
    %v1103 = vpop.f32.mrb[0].mxu0
    %v1104 = vadd.f32 0.0, %v1103
    %v1105 = vpop.f32.mrb[0].mxu0
    %v1106 = vadd.f32 0.0, %v1105
    %1107 = vdwg.mxu0
    %1108 = vmatprep.subr.mxu0 0.0
    %1109 = vmatpush1.msra.mxu0 %v1003
    %1110 = vmatprep.subr.mxu0 0.0
    %1111 = vmatpush1.msra.mxu0 %v1006
    %1112 = vmatprep.subr.mxu0 0.0
    %1113 = vmatpush1.msra.mxu0 0.0
    %1114 = vmatprep.subr.mxu0 0.0
    %1115 = vmatpush1.msra.mxu0 0.0
    %1116 = vmatprep.subr.mxu0 0.0
    %1117 = vmatpush1.msra.mxu0 0.0
    %1118 = vmatprep.subr.mxu0 0.0
    %1119 = vmatpush1.msra.mxu0 0.0
    %1120 = vmatprep.subr.mxu0 0.0
    %1121 = vmatpush1.msra.mxu0 0.0
    %1122 = vmatprep.subr.mxu0 0.0
    %1123 = vmatpush1.msra.mxu0 0.0
    %1124 = vmatprep.subr.mxu0 0.0
    %1125 = vmatpush1.msra.mxu0 0.0
    %1126 = vmatprep.subr.mxu0 0.0
    %1127 = vmatpush1.msra.mxu0 0.0
    %1128 = vmatprep.subr.mxu0 0.0
    %1129 = vmatpush1.msra.mxu0 0.0
    %1130 = vmatprep.subr.mxu0 0.0
    %1131 = vmatpush1.msra.mxu0 0.0
    %1132 = vmatprep.subr.mxu0 0.0
    %1133 = vmatpush1.msra.mxu0 0.0
    %1134 = vmatprep.subr.mxu0 0.0
    %1135 = vmatpush1.msra.mxu0 0.0
    %1136 = vmatprep.subr.mxu0 0.0
    %1137 = vmatpush1.msra.mxu0 0.0
    %1138 = vmatprep.subr.mxu0 0.0
    %1139 = vmatpush1.msra.mxu0 0.0
    %1140 = vmatprep.subr.mxu0 0.0
    %1141 = vmatpush1.msra.mxu0 0.0
    %1142 = vmatprep.subr.mxu0 0.0
    %1143 = vmatpush1.msra.mxu0 0.0
    %1144 = vmatprep.subr.mxu0 0.0
    %1145 = vmatpush1.msra.mxu0 0.0
    %1146 = vmatprep.subr.mxu0 0.0
    %1147 = vmatpush1.msra.mxu0 0.0
    %1148 = vmatprep.subr.mxu0 0.0
    %1149 = vmatpush1.msra.mxu0 0.0
    %1150 = vmatprep.subr.mxu0 0.0
    %1151 = vmatpush1.msra.mxu0 0.0
    %1152 = vmatprep.subr.mxu0 0.0
    %1153 = vmatpush1.msra.mxu0 0.0
    %1154 = vmatprep.subr.mxu0 0.0
    %1155 = vmatpush1.msra.mxu0 0.0
    %1156 = vmatprep.subr.mxu0 0.0
    %1157 = vmatpush1.msra.mxu0 0.0
    %1158 = vmatprep.subr.mxu0 0.0
    %1159 = vmatpush1.msra.mxu0 0.0
    %1160 = vmatprep.subr.mxu0 0.0
    %1161 = vmatpush1.msra.mxu0 0.0
    %1162 = vmatprep.subr.mxu0 0.0
    %1163 = vmatpush1.msra.mxu0 0.0
    %1164 = vmatprep.subr.mxu0 0.0
    %1165 = vmatpush1.msra.mxu0 0.0
    %1166 = vmatprep.subr.mxu0 0.0
    %1167 = vmatpush1.msra.mxu0 0.0
    %1168 = vmatprep.subr.mxu0 0.0
    %1169 = vmatpush1.msra.mxu0 0.0
    %1170 = vmatprep.subr.mxu0 0.0
    %1171 = vmatpush1.msra.mxu0 0.0
    %1172 = vmatprep.mubr.f32.mxu0 0.0
    %1173 = vmatmul.mubr.f32.gmra.mrb[0].mxu0 %v84
    %v1174 = vpop.f32.mrb[0].mxu0
    %v1175 = vadd.f32 0.0, %v1174
    %v1176 = vpop.f32.mrb[0].mxu0
    %1177 = vmatprep.mubr.f32.mxu0 0.0
    %1178 = vmatmul.mubr.f32.gmra.mrb[0].mxu0 %v87
    %v1179 = vpop.f32.mrb[0].mxu0
    %v1180 = vadd.f32 0.0, %v1179
    %v1181 = vpop.f32.mrb[0].mxu0
    %1182 = vmatprep.mubr.f32.mxu0 0.0
    %1183 = vmatmul.mubr.f32.gmra.mrb[0].mxu0 %v90
    %v1184 = vpop.f32.mrb[0].mxu0
    %v1185 = vadd.f32 0.0, %v1184
    %v1186 = vpop.f32.mrb[0].mxu0
    %1187 = vmatprep.mubr.f32.mxu0 0.0
    %1188 = vmatmul.mubr.f32.gmra.mrb[0].mxu0 %v93
    %v1189 = vpop.f32.mrb[0].mxu0
    %v1190 = vadd.f32 0.0, %v1189
    %v1191 = vpop.f32.mrb[0].mxu0
    %1192 = vmatprep.mubr.f32.mxu0 0.0
    %1193 = vmatmul.mubr.f32.gmra.mrb[0].mxu0 %v96
    %v1194 = vpop.f32.mrb[0].mxu0
    %v1195 = vadd.f32 0.0, %v1194
    %v1196 = vpop.f32.mrb[0].mxu0
    %1197 = vmatprep.mubr.f32.mxu0 0.0
    %1198 = vmatmul.mubr.f32.gmra.mrb[0].mxu0 %v99
    %v1199 = vpop.f32.mrb[0].mxu0
    %v1200 = vadd.f32 0.0, %v1199
    %v1201 = vpop.f32.mrb[0].mxu0
    %1202 = vdwg.mxu0
    %1203 = vst [vmem:[#allocation4] sm:$0xff] %v1074
    %1204 = vst [vmem:[#allocation4 + $0x8] sm:$0xff] %v1076
    %1205 = vst.msk [vmem:[#allocation4 + $0x10] sm:$0xff] %vm299, %v1175
    %1206 = vst [vmem:[#allocation4 + $0x18] sm:$0xff] %v1080
    %1207 = vst [vmem:[#allocation4 + $0x20] sm:$0xff] %v1082
    %1208 = vst.msk [vmem:[#allocation4 + $0x28] sm:$0xff] %vm299, %v1180
    %1209 = vst [vmem:[#allocation4 + $0x30] sm:$0xff] %v1086
    %1210 = vst [vmem:[#allocation4 + $0x38] sm:$0xff] %v1088
    %1211 = vst.msk [vmem:[#allocation4 + $0x40] sm:$0xff] %vm299, %v1185
    %1212 = vst [vmem:[#allocation4 + $0x48] sm:$0xff] %v1092
    %1213 = vst [vmem:[#allocation4 + $0x50] sm:$0xff] %v1094
    %1214 = vst.msk [vmem:[#allocation4 + $0x58] sm:$0xff] %vm299, %v1190
    %1215 = vst [vmem:[#allocation4 + $0x60] sm:$0xff] %v1098
    %1216 = vst [vmem:[#allocation4 + $0x68] sm:$0xff] %v1100
    %1217 = vst.msk [vmem:[#allocation4 + $0x70] sm:$0xff] %vm299, %v1195
    %1218 = vst [vmem:[#allocation4 + $0x78] sm:$0xff] %v1104
    %1219 = vst [vmem:[#allocation4 + $0x80] sm:$0xff] %v1106
    %1220 = vst.msk [vmem:[#allocation4 + $0x88] sm:$0xff] %vm299, %v1200
    %v1221 = vld [vmem:[#allocation4] sm:$0xf8]
    %v1222 = vld [vmem:[#allocation4 + $0x8] sm:$0xf8]
    %v1223 = vld [vmem:[#allocation4 + $0x10] sm:$0xf8]
    %v1224 = vld [vmem:[#allocation4 + $0x18] sm:$0xff]
    %v1225 = vld [vmem:[#allocation4 + $0x20] sm:$0xff]
    %v1226 = vld [vmem:[#allocation4 + $0x28] sm:$0xff]
    %v1227 = vld [vmem:[#allocation4 + $0x30] sm:$0xf]
    %v1228 = vld [vmem:[#allocation4 + $0x38] sm:$0xf]
    %v1229 = vld [vmem:[#allocation4 + $0x40] sm:$0xf]
    %v1230 = vld [vmem:[#allocation4 + $0x48] sm:$0xf8]
    %v1231 = vld [vmem:[#allocation4 + $0x50] sm:$0xf8]
    %v1232 = vld [vmem:[#allocation4 + $0x58] sm:$0xf8]
    %v1233 = vld [vmem:[#allocation4 + $0x60] sm:$0xff]
    %v1234 = vld [vmem:[#allocation4 + $0x68] sm:$0xff]
    %v1235 = vld [vmem:[#allocation4 + $0x70] sm:$0xff]
    %v1236 = vld [vmem:[#allocation4 + $0x78] sm:$0xf]
    %v1237 = vld [vmem:[#allocation4 + $0x80] sm:$0xf]
    %v1238 = vld [vmem:[#allocation4 + $0x88] sm:$0xf]
    %vm1257 = vcmask 1044480
    %v1258 = vrot.slane %v1221, 3
    %v1259 = vrot.slane %v1224, 3
    %v1260 = vsel %vm1257, %v1258, %v1259
    %v1261 = vrot.slane %v1222, 3
    %v1262 = vrot.slane %v1225, 3
    %v1263 = vsel %vm1257, %v1261, %v1262
    %v1264 = vrot.slane %v1223, 3
    %v1265 = vrot.slane %v1226, 3
    %v1266 = vsel %vm1257, %v1264, %v1265
    %v1267 = vrot.slane %v1227, 3
    %v1268 = vsel %vm1257, %v1259, %v1267
    %v1269 = vrot.slane %v1228, 3
    %v1270 = vsel %vm1257, %v1262, %v1269
    %v1271 = vrot.slane %v1229, 3
    %v1272 = vsel %vm1257, %v1265, %v1271
    %v1273 = vrot.slane %v1230, 3
    %v1274 = vrot.slane %v1233, 3
    %v1275 = vsel %vm1257, %v1273, %v1274
    %v1276 = vrot.slane %v1231, 3
    %v1277 = vrot.slane %v1234, 3
    %v1278 = vsel %vm1257, %v1276, %v1277
    %v1279 = vrot.slane %v1232, 3
    %v1280 = vrot.slane %v1235, 3
    %v1281 = vsel %vm1257, %v1279, %v1280
    %v1282 = vrot.slane %v1236, 3
    %v1283 = vsel %vm1257, %v1274, %v1282
    %v1284 = vrot.slane %v1237, 3
    %v1285 = vsel %vm1257, %v1277, %v1284
    %v1286 = vrot.slane %v1238, 3
    %v1287 = vsel %vm1257, %v1280, %v1286
    %v1306 = vadd.f32 %v982, %v1260
    %v1307 = vadd.f32 %v983, %v1263
    %v1308 = vadd.f32 %v984, %v1266
    %v1309 = vadd.f32 %v985, %v1268
    %v1310 = vadd.f32 %v986, %v1270
    %v1311 = vadd.f32 %v987, %v1272
    %v1312 = vadd.f32 %v988, %v1267
    %v1313 = vadd.f32 %v989, %v1269
    %v1314 = vadd.f32 %v990, %v1271
    %v1315 = vadd.f32 %v991, %v1275
    %v1316 = vadd.f32 %v992, %v1278
    %v1317 = vadd.f32 %v993, %v1281
    %v1318 = vadd.f32 %v994, %v1283
    %v1319 = vadd.f32 %v995, %v1285
    %v1320 = vadd.f32 %v996, %v1287
    %v1321 = vadd.f32 %v997, %v1282
    %v1322 = vadd.f32 %v998, %v1284
    %v1323 = vadd.f32 %v999, %v1286
    %1324 = vst [vmem:[#allocation3] sm:$0xff] 0.0
    %1325 = vst [vmem:[#allocation3 + $0x8] sm:$0xff] 0.0
    %1326 = vst.msk [vmem:[#allocation3 + $0x10] sm:$0xff] %vm299, 0.0
    %1327 = vst [vmem:[#allocation3 + $0x18] sm:$0xff] 0.0
    %1328 = vst [vmem:[#allocation3 + $0x20] sm:$0xff] 0.0
    %1329 = vst.msk [vmem:[#allocation3 + $0x28] sm:$0xff] %vm299, 0.0
    %1330 = vst [vmem:[#allocation3 + $0x30] sm:$0x7] 0.0
    %1331 = vst [vmem:[#allocation3 + $0x38] sm:$0x7] 0.0
    %vm1332 = vcmask 387072
    %1333 = vst.msk [vmem:[#allocation3 + $0x40] sm:$0x7] %vm1332, 0.0
    %1334 = vst [vmem:[#allocation3 + $0x48] sm:$0xff] 0.0
    %1335 = vst [vmem:[#allocation3 + $0x50] sm:$0xff] 0.0
    %1336 = vst.msk [vmem:[#allocation3 + $0x58] sm:$0xff] %vm299, 0.0
    %1337 = vst [vmem:[#allocation3 + $0x60] sm:$0xff] 0.0
    %1338 = vst [vmem:[#allocation3 + $0x68] sm:$0xff] 0.0
    %1339 = vst.msk [vmem:[#allocation3 + $0x70] sm:$0xff] %vm299, 0.0
    %1340 = vst [vmem:[#allocation3 + $0x78] sm:$0x7] 0.0
    %1341 = vst [vmem:[#allocation3 + $0x80] sm:$0x7] 0.0
    %1342 = vst.msk [vmem:[#allocation3 + $0x88] sm:$0x7] %vm1332, 0.0
    %v1343 = vmax.f32 %v1306, 0.0
    %v1344 = vmax.f32 %v1307, 0.0
    %v1345 = vmax.f32 %v1308, 0.0
    %v1346 = vmax.f32 %v1309, 0.0
    %v1347 = vmax.f32 %v1310, 0.0
    %v1348 = vmax.f32 %v1311, 0.0
    %v1349 = vmax.f32 %v1312, 0.0
    %v1350 = vmax.f32 %v1313, 0.0
    %v1351 = vmax.f32 %v1314, 0.0
    %v1352 = vmax.f32 %v1315, 0.0
    %v1353 = vmax.f32 %v1316, 0.0
    %v1354 = vmax.f32 %v1317, 0.0
    %v1355 = vmax.f32 %v1318, 0.0
    %v1356 = vmax.f32 %v1319, 0.0
    %v1357 = vmax.f32 %v1320, 0.0
    %v1358 = vmax.f32 %v1321, 0.0
    %v1359 = vmax.f32 %v1322, 0.0
    %v1360 = vmax.f32 %v1323, 0.0
    %vm1379 = vcmask 1040384
    %v1380 = vrot.slane %v1343, 7
    %v1381 = vrot.slane %v1344, 7
    %v1382 = vrot.slane %v1345, 7
    %v1383 = vrot.slane %v1346, 7
    %v1384 = vsel %vm1379, %v1380, %v1383
    %v1385 = vrot.slane %v1347, 7
    %v1386 = vsel %vm1379, %v1381, %v1385
    %v1387 = vrot.slane %v1348, 7
    %v1388 = vsel %vm1379, %v1382, %v1387
    %v1389 = vrot.slane %v1349, 7
    %v1390 = vsel %vm1379, %v1383, %v1389
    %v1391 = vrot.slane %v1350, 7
    %v1392 = vsel %vm1379, %v1385, %v1391
    %v1393 = vrot.slane %v1351, 7
    %v1394 = vsel %vm1379, %v1387, %v1393
    %v1395 = vrot.slane %v1352, 7
    %v1396 = vrot.slane %v1353, 7
    %v1397 = vrot.slane %v1354, 7
    %v1398 = vrot.slane %v1355, 7
    %v1399 = vsel %vm1379, %v1395, %v1398
    %v1400 = vrot.slane %v1356, 7
    %v1401 = vsel %vm1379, %v1396, %v1400
    %v1402 = vrot.slane %v1357, 7
    %v1403 = vsel %vm1379, %v1397, %v1402
    %v1404 = vrot.slane %v1358, 7
    %v1405 = vsel %vm1379, %v1398, %v1404
    %v1406 = vrot.slane %v1359, 7
    %v1407 = vsel %vm1379, %v1400, %v1406
    %v1408 = vrot.slane %v1360, 7
    %v1409 = vsel %vm1379, %v1402, %v1408
    %1428 = vst [vmem:[#allocation3] sm:$0xfe] %v1380
    %1429 = vst [vmem:[#allocation3 + $0x8] sm:$0xfe] %v1381
    %vm1430 = vcmask 392193
    %1431 = vst.msk [vmem:[#allocation3 + $0x10] sm:$0xfe] %vm1430, %v1382
    %1432 = vst [vmem:[#allocation3 + $0x18] sm:$0xff] %v1384
    %1433 = vst [vmem:[#allocation3 + $0x20] sm:$0xff] %v1386
    %1434 = vst.msk [vmem:[#allocation3 + $0x28] sm:$0xff] %vm299, %v1388
    %1435 = vst [vmem:[#allocation3 + $0x30] sm:$0x3] %v1390
    %1436 = vst [vmem:[#allocation3 + $0x38] sm:$0x3] %v1392
    %vm1437 = vcmask 386048
    %1438 = vst.msk [vmem:[#allocation3 + $0x40] sm:$0x3] %vm1437, %v1394
    %1439 = vst [vmem:[#allocation3 + $0x48] sm:$0xfe] %v1395
    %1440 = vst [vmem:[#allocation3 + $0x50] sm:$0xfe] %v1396
    %1441 = vst.msk [vmem:[#allocation3 + $0x58] sm:$0xfe] %vm1430, %v1397
    %1442 = vst [vmem:[#allocation3 + $0x60] sm:$0xff] %v1399
    %1443 = vst [vmem:[#allocation3 + $0x68] sm:$0xff] %v1401
    %1444 = vst.msk [vmem:[#allocation3 + $0x70] sm:$0xff] %vm299, %v1403
    %1445 = vst [vmem:[#allocation3 + $0x78] sm:$0x3] %v1405
    %1446 = vst [vmem:[#allocation3 + $0x80] sm:$0x3] %v1407
    %1447 = vst.msk [vmem:[#allocation3 + $0x88] sm:$0x3] %vm1437, %v1409
    %v1448 = vld [vmem:[#allocation3] sm:$0xff]
    %v1449 = vld [vmem:[#allocation3 + $0x8] sm:$0xff]
    %v1450 = vld [vmem:[#allocation3 + $0x10] sm:$0xff]
    %v1451 = vld [vmem:[#allocation3 + $0x18] sm:$0xff]
    %v1452 = vld [vmem:[#allocation3 + $0x20] sm:$0xff]
    %v1453 = vld [vmem:[#allocation3 + $0x28] sm:$0xff]
    %v1454 = vld [vmem:[#allocation3 + $0x48] sm:$0xff]
    %v1455 = vld [vmem:[#allocation3 + $0x50] sm:$0xff]
    %v1456 = vld [vmem:[#allocation3 + $0x58] sm:$0xff]
    %v1457 = vld [vmem:[#allocation3 + $0x60] sm:$0xff]
    %v1458 = vld [vmem:[#allocation3 + $0x68] sm:$0xff]
    %v1459 = vld [vmem:[#allocation3 + $0x70] sm:$0xff]
    %v1460 = vpack.c.bf16 %v1451, %v1448
    %v1461 = vpack.c.bf16 %v1452, %v1449
    %v1462 = vpack.c.bf16 %v1453, %v1450
    %v1463 = vpack.c.bf16 %v1457, %v1454
    %v1464 = vpack.c.bf16 %v1458, %v1455
    %v1465 = vpack.c.bf16 %v1459, %v1456
    %v1466 = vld [vmem:[#allocation9] sm:$0xff]
    %v1467 = vld [vmem:[#allocation9 + $0x8] sm:$0xff]
    %v1468 = vld [vmem:[#allocation9 + $0x10] sm:$0xff]
    %v1469 = vld [vmem:[#allocation9 + $0x18] sm:$0xff]
    %v1470 = vld [vmem:[#allocation9 + $0x20] sm:$0xff]
    %v1471 = vld [vmem:[#allocation9 + $0x28] sm:$0xff]
    %v1472 = vld [vmem:[#allocation9 + $0x30] sm:$0xff]
    %v1473 = vld [vmem:[#allocation9 + $0x38] sm:$0xff]
    %v1474 = vld [vmem:[#allocation9 + $0x40] sm:$0xff]
    %v1475 = vld [vmem:[#allocation9 + $0x48] sm:$0xff]
    %v1476 = vld [vmem:[#allocation9 + $0x50] sm:$0xff]
    %v1477 = vld [vmem:[#allocation9 + $0x58] sm:$0xff]
    %v1478 = vld [vmem:[#allocation9 + $0x60] sm:$0xff]
    %v1479 = vld [vmem:[#allocation9 + $0x68] sm:$0xff]
    %v1480 = vld [vmem:[#allocation9 + $0x70] sm:$0xff]
    %v1481 = vld [vmem:[#allocation9 + $0x78] sm:$0xff]
    %v1482 = vld [vmem:[#allocation9 + $0x80] sm:$0xff]
    %v1483 = vld [vmem:[#allocation9 + $0x88] sm:$0xff]
    %v1484 = vld [vmem:[#allocation9 + $0x90] sm:$0xff]
    %v1485 = vld [vmem:[#allocation9 + $0x98] sm:$0xff]
    %v1486 = vld [vmem:[#allocation9 + $0xa0] sm:$0xff]
    %v1487 = vld [vmem:[#allocation9 + $0xa8] sm:$0xff]
    %v1488 = vld [vmem:[#allocation9 + $0xb0] sm:$0xff]
    %v1489 = vld [vmem:[#allocation9 + $0xb8] sm:$0xff]
    %v1490 = vld [vmem:[#allocation9 + $0xc0] sm:$0xff]
    %v1491 = vld [vmem:[#allocation9 + $0xc8] sm:$0xff]
    %v1492 = vld [vmem:[#allocation9 + $0xd0] sm:$0xff]
    %v1493 = vld [vmem:[#allocation9 + $0xd8] sm:$0xff]
    %v1494 = vld [vmem:[#allocation9 + $0xe0] sm:$0xff]
    %v1495 = vld [vmem:[#allocation9 + $0xe8] sm:$0xff]
    %v1496 = vld [vmem:[#allocation9 + $0xf0] sm:$0xff]
    %v1497 = vld [vmem:[#allocation9 + $0xf8] sm:$0xff]
    %v1498 = vld [vmem:[#allocation9 + $0x100] sm:$0xff]
    %v1499 = vld [vmem:[#allocation9 + $0x108] sm:$0xff]
    %v1500 = vld [vmem:[#allocation9 + $0x110] sm:$0xff]
    %v1501 = vld [vmem:[#allocation9 + $0x118] sm:$0xff]
    %v1502 = vld [vmem:[#allocation9 + $0x120] sm:$0xff]
    %v1503 = vld [vmem:[#allocation9 + $0x128] sm:$0xff]
    %v1504 = vld [vmem:[#allocation3] sm:$0xfe]
    %v1505 = vld [vmem:[#allocation3 + $0x8] sm:$0xfe]
    %v1506 = vld [vmem:[#allocation3 + $0x10] sm:$0xfe]
    %v1507 = vld [vmem:[#allocation3 + $0x30] sm:$0x1]
    %v1508 = vld [vmem:[#allocation3 + $0x38] sm:$0x1]
    %v1509 = vld [vmem:[#allocation3 + $0x40] sm:$0x1]
    %v1510 = vld [vmem:[#allocation3 + $0x48] sm:$0xfe]
    %v1511 = vld [vmem:[#allocation3 + $0x50] sm:$0xfe]
    %v1512 = vld [vmem:[#allocation3 + $0x58] sm:$0xfe]
    %v1513 = vld [vmem:[#allocation3 + $0x78] sm:$0x1]
    %v1514 = vld [vmem:[#allocation3 + $0x80] sm:$0x1]
    %v1515 = vld [vmem:[#allocation3 + $0x88] sm:$0x1]
    %v1534 = vrot.slane %v1504, 1
    %v1535 = vrot.slane %v1451, 1
    %v1536 = vsel %vm609, %v1534, %v1535
    %v1537 = vrot.slane %v1505, 1
    %v1538 = vrot.slane %v1452, 1
    %v1539 = vsel %vm609, %v1537, %v1538
    %v1540 = vrot.slane %v1506, 1
    %v1541 = vrot.slane %v1453, 1
    %v1542 = vsel %vm609, %v1540, %v1541
    %v1543 = vrot.slane %v1507, 1
    %v1544 = vsel %vm609, %v1535, %v1543
    %v1545 = vrot.slane %v1508, 1
    %v1546 = vsel %vm609, %v1538, %v1545
    %v1547 = vrot.slane %v1509, 1
    %v1548 = vsel %vm609, %v1541, %v1547
    %v1549 = vrot.slane %v1510, 1
    %v1550 = vrot.slane %v1457, 1
    %v1551 = vsel %vm609, %v1549, %v1550
    %v1552 = vrot.slane %v1511, 1
    %v1553 = vrot.slane %v1458, 1
    %v1554 = vsel %vm609, %v1552, %v1553
    %v1555 = vrot.slane %v1512, 1
    %v1556 = vrot.slane %v1459, 1
    %v1557 = vsel %vm609, %v1555, %v1556
    %v1558 = vrot.slane %v1513, 1
    %v1559 = vsel %vm609, %v1550, %v1558
    %v1560 = vrot.slane %v1514, 1
    %v1561 = vsel %vm609, %v1553, %v1560
    %v1562 = vrot.slane %v1515, 1
    %v1563 = vsel %vm609, %v1556, %v1562
    %v1576 = vpack.c.bf16 %v1544, %v1536
    %v1577 = vpack.c.bf16 %v1546, %v1539
    %v1578 = vpack.c.bf16 %v1548, %v1542
    %v1579 = vpack.c.bf16 %v1559, %v1551
    %v1580 = vpack.c.bf16 %v1561, %v1554
    %v1581 = vpack.c.bf16 %v1563, %v1557
    %s1582 = scalar_lea.vmem [#allocation9], 304
    %v1583 = vld [vmem:[%s1582] sm:$0xff]
    %v1584 = vld [vmem:[%s1582 + $0x8] sm:$0xff]
    %v1585 = vld [vmem:[%s1582 + $0x10] sm:$0xff]
    %v1586 = vld [vmem:[%s1582 + $0x18] sm:$0xff]
    %v1587 = vld [vmem:[%s1582 + $0x20] sm:$0xff]
    %v1588 = vld [vmem:[%s1582 + $0x28] sm:$0xff]
    %v1589 = vld [vmem:[%s1582 + $0x30] sm:$0xff]
    %v1590 = vld [vmem:[%s1582 + $0x38] sm:$0xff]
    %v1591 = vld [vmem:[%s1582 + $0x40] sm:$0xff]
    %v1592 = vld [vmem:[%s1582 + $0x48] sm:$0xff]
    %v1593 = vld [vmem:[%s1582 + $0x50] sm:$0xff]
    %v1594 = vld [vmem:[%s1582 + $0x58] sm:$0xff]
    %v1595 = vld [vmem:[%s1582 + $0x60] sm:$0xff]
    %v1596 = vld [vmem:[%s1582 + $0x68] sm:$0xff]
    %v1597 = vld [vmem:[%s1582 + $0x70] sm:$0xff]
    %v1598 = vld [vmem:[%s1582 + $0x78] sm:$0xff]
    %v1599 = vld [vmem:[%s1582 + $0x80] sm:$0xff]
    %v1600 = vld [vmem:[%s1582 + $0x88] sm:$0xff]
    %v1601 = vld [vmem:[%s1582 + $0x90] sm:$0xff]
    %v1602 = vld [vmem:[%s1582 + $0x98] sm:$0xff]
    %v1603 = vld [vmem:[%s1582 + $0xa0] sm:$0xff]
    %v1604 = vld [vmem:[%s1582 + $0xa8] sm:$0xff]
    %v1605 = vld [vmem:[%s1582 + $0xb0] sm:$0xff]
    %v1606 = vld [vmem:[%s1582 + $0xb8] sm:$0xff]
    %v1607 = vld [vmem:[%s1582 + $0xc0] sm:$0xff]
    %v1608 = vld [vmem:[%s1582 + $0xc8] sm:$0xff]
    %v1609 = vld [vmem:[%s1582 + $0xd0] sm:$0xff]
    %v1610 = vld [vmem:[%s1582 + $0xd8] sm:$0xff]
    %v1611 = vld [vmem:[%s1582 + $0xe0] sm:$0xff]
    %v1612 = vld [vmem:[%s1582 + $0xe8] sm:$0xff]
    %v1613 = vld [vmem:[%s1582 + $0xf0] sm:$0xff]
    %v1614 = vld [vmem:[%s1582 + $0xf8] sm:$0xff]
    %v1615 = vld [vmem:[%s1582 + $0x100] sm:$0xff]
    %v1616 = vld [vmem:[%s1582 + $0x108] sm:$0xff]
    %v1617 = vld [vmem:[%s1582 + $0x110] sm:$0xff]
    %v1618 = vld [vmem:[%s1582 + $0x118] sm:$0xff]
    %v1619 = vld [vmem:[%s1582 + $0x120] sm:$0xff]
    %v1620 = vld [vmem:[%s1582 + $0x128] sm:$0xff]
    %v1659 = vunpack.c.l.b16 %v1583
    %v1660 = vunpack.c.h.b16 %v1583
    %v1661 = vunpack.c.l.b16 %v1584
    %v1662 = vunpack.c.h.b16 %v1584
    %v1663 = vunpack.c.l.b16 %v1585
    %v1664 = vunpack.c.h.b16 %v1585
    %v1665 = vunpack.c.l.b16 %v1586
    %v1666 = vunpack.c.h.b16 %v1586
    %v1667 = vunpack.c.l.b16 %v1587
    %v1668 = vunpack.c.h.b16 %v1587
    %v1669 = vunpack.c.l.b16 %v1588
    %v1670 = vunpack.c.h.b16 %v1588
    %v1671 = vunpack.c.l.b16 %v1589
    %v1672 = vunpack.c.h.b16 %v1589
    %v1673 = vunpack.c.l.b16 %v1590
    %v1674 = vunpack.c.h.b16 %v1590
    %v1675 = vunpack.c.l.b16 %v1591
    %v1676 = vunpack.c.h.b16 %v1591
    %v1677 = vunpack.c.l.b16 %v1592
    %v1678 = vunpack.c.h.b16 %v1592
    %v1679 = vunpack.c.l.b16 %v1593
    %v1680 = vunpack.c.h.b16 %v1593
    %v1681 = vunpack.c.l.b16 %v1594
    %v1682 = vunpack.c.h.b16 %v1594
    %v1683 = vunpack.c.l.b16 %v1595
    %v1684 = vunpack.c.h.b16 %v1595
    %v1685 = vunpack.c.l.b16 %v1596
    %v1686 = vunpack.c.h.b16 %v1596
    %v1687 = vunpack.c.l.b16 %v1597
    %v1688 = vunpack.c.h.b16 %v1597
    %v1689 = vunpack.c.l.b16 %v1598
    %v1690 = vunpack.c.h.b16 %v1598
    %v1691 = vunpack.c.l.b16 %v1599
    %v1692 = vunpack.c.h.b16 %v1599
    %v1693 = vunpack.c.l.b16 %v1600
    %v1694 = vunpack.c.h.b16 %v1600
    %v1695 = vunpack.c.l.b16 %v1601
    %v1696 = vunpack.c.h.b16 %v1601
    %v1697 = vunpack.c.l.b16 %v1602
    %v1698 = vunpack.c.h.b16 %v1602
    %v1699 = vunpack.c.l.b16 %v1603
    %v1700 = vunpack.c.h.b16 %v1603
    %v1701 = vunpack.c.l.b16 %v1604
    %v1702 = vunpack.c.h.b16 %v1604
    %v1703 = vunpack.c.l.b16 %v1605
    %v1704 = vunpack.c.h.b16 %v1605
    %v1705 = vunpack.c.l.b16 %v1606
    %v1706 = vunpack.c.h.b16 %v1606
    %v1707 = vunpack.c.l.b16 %v1607
    %v1708 = vunpack.c.h.b16 %v1607
    %v1709 = vunpack.c.l.b16 %v1608
    %v1710 = vunpack.c.h.b16 %v1608
    %v1711 = vunpack.c.l.b16 %v1609
    %v1712 = vunpack.c.h.b16 %v1609
    %v1713 = vunpack.c.l.b16 %v1610
    %v1714 = vunpack.c.h.b16 %v1610
    %v1715 = vunpack.c.l.b16 %v1611
    %v1716 = vunpack.c.h.b16 %v1611
    %v1717 = vunpack.c.l.b16 %v1612
    %v1718 = vunpack.c.h.b16 %v1612
    %v1719 = vunpack.c.l.b16 %v1613
    %v1720 = vunpack.c.h.b16 %v1613
    %v1721 = vunpack.c.l.b16 %v1614
    %v1722 = vunpack.c.h.b16 %v1614
    %v1723 = vunpack.c.l.b16 %v1615
    %v1724 = vunpack.c.h.b16 %v1615
    %v1725 = vunpack.c.l.b16 %v1616
    %v1726 = vunpack.c.h.b16 %v1616
    %v1727 = vunpack.c.l.b16 %v1617
    %v1728 = vunpack.c.h.b16 %v1617
    %v1729 = vunpack.c.l.b16 %v1618
    %v1730 = vunpack.c.h.b16 %v1618
    %v1731 = vunpack.c.l.b16 %v1619
    %v1732 = vunpack.c.h.b16 %v1619
    %v1733 = vunpack.c.l.b16 %v1620
    %v1734 = vunpack.c.h.b16 %v1620
    %v1735 = vpack.c.b16 %v1661, %v1659
    %v1736 = vpack.c.b16 %v1662, %v1660
    %v1737 = vpack.c.b16 %v1665, %v1663
    %v1738 = vpack.c.b16 %v1666, %v1664
    %v1739 = vpack.c.b16 %v1669, %v1667
    %v1740 = vpack.c.b16 %v1670, %v1668
    %v1741 = vpack.c.b16 %v1673, %v1671
    %v1742 = vpack.c.b16 %v1674, %v1672
    %v1743 = vpack.c.b16 %v1677, %v1675
    %v1744 = vpack.c.b16 %v1678, %v1676
    %v1745 = vpack.c.b16 %v1681, %v1679
    %v1746 = vpack.c.b16 %v1682, %v1680
    %v1747 = vpack.c.b16 %v1685, %v1683
    %v1748 = vpack.c.b16 %v1686, %v1684
    %v1749 = vpack.c.b16 %v1689, %v1687
    %v1750 = vpack.c.b16 %v1690, %v1688
    %v1751 = vpack.c.b16 %v1693, %v1691
    %v1752 = vpack.c.b16 %v1694, %v1692
    %v1753 = vpack.c.b16 %v1697, %v1695
    %v1754 = vpack.c.b16 %v1698, %v1696
    %v1755 = vpack.c.b16 %v1701, %v1699
    %v1756 = vpack.c.b16 %v1702, %v1700
    %v1757 = vpack.c.b16 %v1705, %v1703
    %v1758 = vpack.c.b16 %v1706, %v1704
    %v1759 = vpack.c.b16 %v1709, %v1707
    %v1760 = vpack.c.b16 %v1710, %v1708
    %v1761 = vpack.c.b16 %v1713, %v1711
    %v1762 = vpack.c.b16 %v1714, %v1712
    %v1763 = vpack.c.b16 %v1717, %v1715
    %v1764 = vpack.c.b16 %v1718, %v1716
    %v1765 = vpack.c.b16 %v1721, %v1719
    %v1766 = vpack.c.b16 %v1722, %v1720
    %v1767 = vpack.c.b16 %v1725, %v1723
    %v1768 = vpack.c.b16 %v1726, %v1724
    %v1769 = vpack.c.b16 %v1729, %v1727
    %v1770 = vpack.c.b16 %v1730, %v1728
    %v1771 = vpack.c.b16 %v1733, %v1731
    %v1772 = vpack.c.b16 %v1734, %v1732
    %v1812 = vsel %vm299, %v1578, 0
    %v1815 = vsel %vm299, %v1581, 0
    %1817 = vmatprep.subr.bf16.mxu0 %v1736
    %1818 = vmatpush1.bf16.msra.mxu0 %v1735
    %1819 = vmatprep.subr.bf16.mxu0 %v1738
    %1820 = vmatpush1.bf16.msra.mxu0 %v1737
    %1821 = vmatprep.subr.bf16.mxu0 %v1740
    %1822 = vmatpush1.bf16.msra.mxu0 %v1739
    %1823 = vmatprep.subr.bf16.mxu0 %v1742
    %1824 = vmatpush1.bf16.msra.mxu0 %v1741
    %1825 = vmatprep.subr.bf16.mxu0 %v1744
    %1826 = vmatpush1.bf16.msra.mxu0 %v1743
    %1827 = vmatprep.subr.bf16.mxu0 %v1746
    %1828 = vmatpush1.bf16.msra.mxu0 %v1745
    %1829 = vmatprep.subr.bf16.mxu0 %v1748
    %1830 = vmatpush1.bf16.msra.mxu0 %v1747
    %1831 = vmatprep.subr.bf16.mxu0 %v1750
    %1832 = vmatpush1.bf16.msra.mxu0 %v1749
    %1833 = vmatprep.subr.bf16.mxu0 %v1752
    %1834 = vmatpush1.bf16.msra.mxu0 %v1751
    %1835 = vmatprep.subr.bf16.mxu0 %v1754
    %1836 = vmatpush1.bf16.msra.mxu0 %v1753
    %1837 = vmatprep.subr.bf16.mxu0 %v1756
    %1838 = vmatpush1.bf16.msra.mxu0 %v1755
    %1839 = vmatprep.subr.bf16.mxu0 %v1758
    %1840 = vmatpush1.bf16.msra.mxu0 %v1757
    %1841 = vmatprep.subr.bf16.mxu0 %v1760
    %1842 = vmatpush1.bf16.msra.mxu0 %v1759
    %1843 = vmatprep.subr.bf16.mxu0 %v1762
    %1844 = vmatpush1.bf16.msra.mxu0 %v1761
    %1845 = vmatprep.subr.bf16.mxu0 %v1764
    %1846 = vmatpush1.bf16.msra.mxu0 %v1763
    %1847 = vmatprep.subr.bf16.mxu0 %v1766
    %1848 = vmatpush1.bf16.msra.mxu0 %v1765
    %1849 = vmatprep.mubr.bf16.mxu0 %v1577
    %1850 = vmatmul.mubr.bf16.gmra.mrb[0].mxu0 %v1576
    %v1851 = vpop.f32.mrb[0].mxu0
    %v1852 = vadd.f32 0.0, %v1851
    %v1853 = vpop.f32.mrb[0].mxu0
    %v1854 = vadd.f32 0.0, %v1853
    %v1855 = vpop.f32.mrb[0].mxu0
    %v1856 = vadd.f32 0.0, %v1855
    %v1857 = vpop.f32.mrb[0].mxu0
    %v1858 = vadd.f32 0.0, %v1857
    %1859 = vmatprep.mubr.bf16.mxu0 %v1580
    %1860 = vmatmul.mubr.bf16.gmra.mrb[0].mxu0 %v1579
    %v1861 = vpop.f32.mrb[0].mxu0
    %v1862 = vadd.f32 0.0, %v1861
    %v1863 = vpop.f32.mrb[0].mxu0
    %v1864 = vadd.f32 0.0, %v1863
    %v1865 = vpop.f32.mrb[0].mxu0
    %v1866 = vadd.f32 0.0, %v1865
    %v1867 = vpop.f32.mrb[0].mxu0
    %v1868 = vadd.f32 0.0, %v1867
    %1869 = vdwg.mxu0
    %1870 = vmatprep.subr.bf16.mxu0 %v1768
    %1871 = vmatpush1.bf16.msra.mxu0 %v1767
    %1872 = vmatprep.subr.bf16.mxu0 %v1770
    %1873 = vmatpush1.bf16.msra.mxu0 %v1769
    %1874 = vmatprep.subr.bf16.mxu0 %v1772
    %1875 = vmatpush1.bf16.msra.mxu0 %v1771
    %1876 = vmatprep.subr.bf16.mxu0 0
    %1877 = vmatpush1.bf16.msra.mxu0 0
    %1878 = vmatprep.subr.bf16.mxu0 0
    %1879 = vmatpush1.bf16.msra.mxu0 0
    %1880 = vmatprep.subr.bf16.mxu0 0
    %1881 = vmatpush1.bf16.msra.mxu0 0
    %1882 = vmatprep.subr.bf16.mxu0 0
    %1883 = vmatpush1.bf16.msra.mxu0 0
    %1884 = vmatprep.subr.bf16.mxu0 0
    %1885 = vmatpush1.bf16.msra.mxu0 0
    %1886 = vmatprep.subr.bf16.mxu0 0
    %1887 = vmatpush1.bf16.msra.mxu0 0
    %1888 = vmatprep.subr.bf16.mxu0 0
    %1889 = vmatpush1.bf16.msra.mxu0 0
    %1890 = vmatprep.subr.bf16.mxu0 0
    %1891 = vmatpush1.bf16.msra.mxu0 0
    %1892 = vmatprep.subr.bf16.mxu0 0
    %1893 = vmatpush1.bf16.msra.mxu0 0
    %1894 = vmatprep.subr.bf16.mxu0 0
    %1895 = vmatpush1.bf16.msra.mxu0 0
    %1896 = vmatprep.subr.bf16.mxu0 0
    %1897 = vmatpush1.bf16.msra.mxu0 0
    %1898 = vmatprep.subr.bf16.mxu0 0
    %1899 = vmatpush1.bf16.msra.mxu0 0
    %1900 = vmatprep.subr.bf16.mxu0 0
    %1901 = vmatpush1.bf16.msra.mxu0 0
    %1902 = vmatprep.mubr.bf16.mxu0 0
    %1903 = vmatmul.mubr.bf16.gmra.mrb[0].mxu0 %v1812
    %v1904 = vpop.f32.mrb[0].mxu0
    %v1905 = vadd.f32 %v1852, %v1904
    %v1906 = vpop.f32.mrb[0].mxu0
    %v1907 = vadd.f32 %v1854, %v1906
    %v1908 = vpop.f32.mrb[0].mxu0
    %v1909 = vadd.f32 %v1856, %v1908
    %v1910 = vpop.f32.mrb[0].mxu0
    %v1911 = vadd.f32 %v1858, %v1910
    %1912 = vmatprep.mubr.bf16.mxu0 0
    %1913 = vmatmul.mubr.bf16.gmra.mrb[0].mxu0 %v1815
    %v1914 = vpop.f32.mrb[0].mxu0
    %v1915 = vadd.f32 %v1862, %v1914
    %v1916 = vpop.f32.mrb[0].mxu0
    %v1917 = vadd.f32 %v1864, %v1916
    %v1918 = vpop.f32.mrb[0].mxu0
    %v1919 = vadd.f32 %v1866, %v1918
    %v1920 = vpop.f32.mrb[0].mxu0
    %v1921 = vadd.f32 %v1868, %v1920
    %1922 = vdwg.mxu0
    %v1961 = vunpack.c.l.b16 %v1466
    %v1962 = vunpack.c.h.b16 %v1466
    %v1963 = vunpack.c.l.b16 %v1467
    %v1964 = vunpack.c.h.b16 %v1467
    %v1965 = vunpack.c.l.b16 %v1468
    %v1966 = vunpack.c.h.b16 %v1468
    %v1967 = vunpack.c.l.b16 %v1469
    %v1968 = vunpack.c.h.b16 %v1469
    %v1969 = vunpack.c.l.b16 %v1470
    %v1970 = vunpack.c.h.b16 %v1470
    %v1971 = vunpack.c.l.b16 %v1471
    %v1972 = vunpack.c.h.b16 %v1471
    %v1973 = vunpack.c.l.b16 %v1472
    %v1974 = vunpack.c.h.b16 %v1472
    %v1975 = vunpack.c.l.b16 %v1473
    %v1976 = vunpack.c.h.b16 %v1473
    %v1977 = vunpack.c.l.b16 %v1474
    %v1978 = vunpack.c.h.b16 %v1474
    %v1979 = vunpack.c.l.b16 %v1475
    %v1980 = vunpack.c.h.b16 %v1475
    %v1981 = vunpack.c.l.b16 %v1476
    %v1982 = vunpack.c.h.b16 %v1476
    %v1983 = vunpack.c.l.b16 %v1477
    %v1984 = vunpack.c.h.b16 %v1477
    %v1985 = vunpack.c.l.b16 %v1478
    %v1986 = vunpack.c.h.b16 %v1478
    %v1987 = vunpack.c.l.b16 %v1479
    %v1988 = vunpack.c.h.b16 %v1479
    %v1989 = vunpack.c.l.b16 %v1480
    %v1990 = vunpack.c.h.b16 %v1480
    %v1991 = vunpack.c.l.b16 %v1481
    %v1992 = vunpack.c.h.b16 %v1481
    %v1993 = vunpack.c.l.b16 %v1482
    %v1994 = vunpack.c.h.b16 %v1482
    %v1995 = vunpack.c.l.b16 %v1483
    %v1996 = vunpack.c.h.b16 %v1483
    %v1997 = vunpack.c.l.b16 %v1484
    %v1998 = vunpack.c.h.b16 %v1484
    %v1999 = vunpack.c.l.b16 %v1485
    %v2000 = vunpack.c.h.b16 %v1485
    %v2001 = vunpack.c.l.b16 %v1486
    %v2002 = vunpack.c.h.b16 %v1486
    %v2003 = vunpack.c.l.b16 %v1487
    %v2004 = vunpack.c.h.b16 %v1487
    %v2005 = vunpack.c.l.b16 %v1488
    %v2006 = vunpack.c.h.b16 %v1488
    %v2007 = vunpack.c.l.b16 %v1489
    %v2008 = vunpack.c.h.b16 %v1489
    %v2009 = vunpack.c.l.b16 %v1490
    %v2010 = vunpack.c.h.b16 %v1490
    %v2011 = vunpack.c.l.b16 %v1491
    %v2012 = vunpack.c.h.b16 %v1491
    %v2013 = vunpack.c.l.b16 %v1492
    %v2014 = vunpack.c.h.b16 %v1492
    %v2015 = vunpack.c.l.b16 %v1493
    %v2016 = vunpack.c.h.b16 %v1493
    %v2017 = vunpack.c.l.b16 %v1494
    %v2018 = vunpack.c.h.b16 %v1494
    %v2019 = vunpack.c.l.b16 %v1495
    %v2020 = vunpack.c.h.b16 %v1495
    %v2021 = vunpack.c.l.b16 %v1496
    %v2022 = vunpack.c.h.b16 %v1496
    %v2023 = vunpack.c.l.b16 %v1497
    %v2024 = vunpack.c.h.b16 %v1497
    %v2025 = vunpack.c.l.b16 %v1498
    %v2026 = vunpack.c.h.b16 %v1498
    %v2027 = vunpack.c.l.b16 %v1499
    %v2028 = vunpack.c.h.b16 %v1499
    %v2029 = vunpack.c.l.b16 %v1500
    %v2030 = vunpack.c.h.b16 %v1500
    %v2031 = vunpack.c.l.b16 %v1501
    %v2032 = vunpack.c.h.b16 %v1501
    %v2033 = vunpack.c.l.b16 %v1502
    %v2034 = vunpack.c.h.b16 %v1502
    %v2035 = vunpack.c.l.b16 %v1503
    %v2036 = vunpack.c.h.b16 %v1503
    %v2037 = vpack.c.b16 %v1963, %v1961
    %v2038 = vpack.c.b16 %v1964, %v1962
    %v2039 = vpack.c.b16 %v1967, %v1965
    %v2040 = vpack.c.b16 %v1968, %v1966
    %v2041 = vpack.c.b16 %v1971, %v1969
    %v2042 = vpack.c.b16 %v1972, %v1970
    %v2043 = vpack.c.b16 %v1975, %v1973
    %v2044 = vpack.c.b16 %v1976, %v1974
    %v2045 = vpack.c.b16 %v1979, %v1977
    %v2046 = vpack.c.b16 %v1980, %v1978
    %v2047 = vpack.c.b16 %v1983, %v1981
    %v2048 = vpack.c.b16 %v1984, %v1982
    %v2049 = vpack.c.b16 %v1987, %v1985
    %v2050 = vpack.c.b16 %v1988, %v1986
    %v2051 = vpack.c.b16 %v1991, %v1989
    %v2052 = vpack.c.b16 %v1992, %v1990
    %v2053 = vpack.c.b16 %v1995, %v1993
    %v2054 = vpack.c.b16 %v1996, %v1994
    %v2055 = vpack.c.b16 %v1999, %v1997
    %v2056 = vpack.c.b16 %v2000, %v1998
    %v2057 = vpack.c.b16 %v2003, %v2001
    %v2058 = vpack.c.b16 %v2004, %v2002
    %v2059 = vpack.c.b16 %v2007, %v2005
    %v2060 = vpack.c.b16 %v2008, %v2006
    %v2061 = vpack.c.b16 %v2011, %v2009
    %v2062 = vpack.c.b16 %v2012, %v2010
    %v2063 = vpack.c.b16 %v2015, %v2013
    %v2064 = vpack.c.b16 %v2016, %v2014
    %v2065 = vpack.c.b16 %v2019, %v2017
    %v2066 = vpack.c.b16 %v2020, %v2018
    %v2067 = vpack.c.b16 %v2023, %v2021
    %v2068 = vpack.c.b16 %v2024, %v2022
    %v2069 = vpack.c.b16 %v2027, %v2025
    %v2070 = vpack.c.b16 %v2028, %v2026
    %v2071 = vpack.c.b16 %v2031, %v2029
    %v2072 = vpack.c.b16 %v2032, %v2030
    %v2073 = vpack.c.b16 %v2035, %v2033
    %v2074 = vpack.c.b16 %v2036, %v2034
    %v2114 = vsel %vm299, %v1462, 0
    %v2117 = vsel %vm299, %v1465, 0
    %2119 = vmatprep.subr.bf16.mxu0 %v2038
    %2120 = vmatpush1.bf16.msra.mxu0 %v2037
    %2121 = vmatprep.subr.bf16.mxu0 %v2040
    %2122 = vmatpush1.bf16.msra.mxu0 %v2039
    %2123 = vmatprep.subr.bf16.mxu0 %v2042
    %2124 = vmatpush1.bf16.msra.mxu0 %v2041
    %2125 = vmatprep.subr.bf16.mxu0 %v2044
    %2126 = vmatpush1.bf16.msra.mxu0 %v2043
    %2127 = vmatprep.subr.bf16.mxu0 %v2046
    %2128 = vmatpush1.bf16.msra.mxu0 %v2045
    %2129 = vmatprep.subr.bf16.mxu0 %v2048
    %2130 = vmatpush1.bf16.msra.mxu0 %v2047
    %2131 = vmatprep.subr.bf16.mxu0 %v2050
    %2132 = vmatpush1.bf16.msra.mxu0 %v2049
    %2133 = vmatprep.subr.bf16.mxu0 %v2052
    %2134 = vmatpush1.bf16.msra.mxu0 %v2051
    %2135 = vmatprep.subr.bf16.mxu0 %v2054
    %2136 = vmatpush1.bf16.msra.mxu0 %v2053
    %2137 = vmatprep.subr.bf16.mxu0 %v2056
    %2138 = vmatpush1.bf16.msra.mxu0 %v2055
    %2139 = vmatprep.subr.bf16.mxu0 %v2058
    %2140 = vmatpush1.bf16.msra.mxu0 %v2057
    %2141 = vmatprep.subr.bf16.mxu0 %v2060
    %2142 = vmatpush1.bf16.msra.mxu0 %v2059
    %2143 = vmatprep.subr.bf16.mxu0 %v2062
    %2144 = vmatpush1.bf16.msra.mxu0 %v2061
    %2145 = vmatprep.subr.bf16.mxu0 %v2064
    %2146 = vmatpush1.bf16.msra.mxu0 %v2063
    %2147 = vmatprep.subr.bf16.mxu0 %v2066
    %2148 = vmatpush1.bf16.msra.mxu0 %v2065
    %2149 = vmatprep.subr.bf16.mxu0 %v2068
    %2150 = vmatpush1.bf16.msra.mxu0 %v2067
    %2151 = vmatprep.mubr.bf16.mxu0 %v1461
    %2152 = vmatmul.mubr.bf16.gmra.mrb[0].mxu0 %v1460
    %v2153 = vpop.f32.mrb[0].mxu0
    %v2154 = vadd.f32 %v1905, %v2153
    %v2155 = vpop.f32.mrb[0].mxu0
    %v2156 = vadd.f32 %v1907, %v2155
    %v2157 = vpop.f32.mrb[0].mxu0
    %v2158 = vadd.f32 %v1909, %v2157
    %v2159 = vpop.f32.mrb[0].mxu0
    %v2160 = vadd.f32 %v1911, %v2159
    %2161 = vmatprep.mubr.bf16.mxu0 %v1464
    %2162 = vmatmul.mubr.bf16.gmra.mrb[0].mxu0 %v1463
    %v2163 = vpop.f32.mrb[0].mxu0
    %v2164 = vadd.f32 %v1915, %v2163
    %v2165 = vpop.f32.mrb[0].mxu0
    %v2166 = vadd.f32 %v1917, %v2165
    %v2167 = vpop.f32.mrb[0].mxu0
    %v2168 = vadd.f32 %v1919, %v2167
    %v2169 = vpop.f32.mrb[0].mxu0
    %v2170 = vadd.f32 %v1921, %v2169
    %2171 = vdwg.mxu0
    %2172 = vmatprep.subr.bf16.mxu0 %v2070
    %2173 = vmatpush1.bf16.msra.mxu0 %v2069
    %2174 = vmatprep.subr.bf16.mxu0 %v2072
    %2175 = vmatpush1.bf16.msra.mxu0 %v2071
    %2176 = vmatprep.subr.bf16.mxu0 %v2074
    %2177 = vmatpush1.bf16.msra.mxu0 %v2073
    %2178 = vmatprep.subr.bf16.mxu0 0
    %2179 = vmatpush1.bf16.msra.mxu0 0
    %2180 = vmatprep.subr.bf16.mxu0 0
    %2181 = vmatpush1.bf16.msra.mxu0 0
    %2182 = vmatprep.subr.bf16.mxu0 0
    %2183 = vmatpush1.bf16.msra.mxu0 0
    %2184 = vmatprep.subr.bf16.mxu0 0
    %2185 = vmatpush1.bf16.msra.mxu0 0
    %2186 = vmatprep.subr.bf16.mxu0 0
    %2187 = vmatpush1.bf16.msra.mxu0 0
    %2188 = vmatprep.subr.bf16.mxu0 0
    %2189 = vmatpush1.bf16.msra.mxu0 0
    %2190 = vmatprep.subr.bf16.mxu0 0
    %2191 = vmatpush1.bf16.msra.mxu0 0
    %2192 = vmatprep.subr.bf16.mxu0 0
    %2193 = vmatpush1.bf16.msra.mxu0 0
    %2194 = vmatprep.subr.bf16.mxu0 0
    %2195 = vmatpush1.bf16.msra.mxu0 0
    %2196 = vmatprep.subr.bf16.mxu0 0
    %2197 = vmatpush1.bf16.msra.mxu0 0
    %2198 = vmatprep.subr.bf16.mxu0 0
    %2199 = vmatpush1.bf16.msra.mxu0 0
    %2200 = vmatprep.subr.bf16.mxu0 0
    %2201 = vmatpush1.bf16.msra.mxu0 0
    %2202 = vmatprep.subr.bf16.mxu0 0
    %2203 = vmatpush1.bf16.msra.mxu0 0
    %2204 = vmatprep.mubr.bf16.mxu0 0
    %2205 = vmatmul.mubr.bf16.gmra.mrb[0].mxu0 %v2114
    %v2206 = vpop.f32.mrb[0].mxu0
    %v2207 = vadd.f32 %v2154, %v2206
    %v2208 = vpop.f32.mrb[0].mxu0
    %v2209 = vadd.f32 %v2156, %v2208
    %v2210 = vpop.f32.mrb[0].mxu0
    %v2211 = vadd.f32 %v2158, %v2210
    %v2212 = vpop.f32.mrb[0].mxu0
    %v2213 = vadd.f32 %v2160, %v2212
    %2214 = vmatprep.mubr.bf16.mxu0 0
    %2215 = vmatmul.mubr.bf16.gmra.mrb[0].mxu0 %v2117
    %v2216 = vpop.f32.mrb[0].mxu0
    %v2217 = vadd.f32 %v2164, %v2216
    %v2218 = vpop.f32.mrb[0].mxu0
    %v2219 = vadd.f32 %v2166, %v2218
    %v2220 = vpop.f32.mrb[0].mxu0
    %v2221 = vadd.f32 %v2168, %v2220
    %v2222 = vpop.f32.mrb[0].mxu0
    %v2223 = vadd.f32 %v2170, %v2222
    %2224 = vdwg.mxu0
    %v2225 = vld [vmem:[#allocation3] sm:$0xfc]
    %v2226 = vld [vmem:[#allocation3 + $0x8] sm:$0xfc]
    %v2227 = vld [vmem:[#allocation3 + $0x10] sm:$0xfc]
    %v2228 = vld [vmem:[#allocation3 + $0x30] sm:$0x3]
    %v2229 = vld [vmem:[#allocation3 + $0x38] sm:$0x3]
    %v2230 = vld [vmem:[#allocation3 + $0x40] sm:$0x3]
    %v2231 = vld [vmem:[#allocation3 + $0x48] sm:$0xfc]
    %v2232 = vld [vmem:[#allocation3 + $0x50] sm:$0xfc]
    %v2233 = vld [vmem:[#allocation3 + $0x58] sm:$0xfc]
    %v2234 = vld [vmem:[#allocation3 + $0x78] sm:$0x3]
    %v2235 = vld [vmem:[#allocation3 + $0x80] sm:$0x3]
    %v2236 = vld [vmem:[#allocation3 + $0x88] sm:$0x3]
    %v2249 = vrot.slane %v2225, 2
    %v2250 = vrot.slane %v1451, 2
    %v2251 = vsel %vm933, %v2249, %v2250
    %v2252 = vrot.slane %v2226, 2
    %v2253 = vrot.slane %v1452, 2
    %v2254 = vsel %vm933, %v2252, %v2253
    %v2255 = vrot.slane %v2227, 2
    %v2256 = vrot.slane %v1453, 2
    %v2257 = vsel %vm933, %v2255, %v2256
    %v2258 = vrot.slane %v2228, 2
    %v2259 = vsel %vm933, %v2250, %v2258
    %v2260 = vrot.slane %v2229, 2
    %v2261 = vsel %vm933, %v2253, %v2260
    %v2262 = vrot.slane %v2230, 2
    %v2263 = vsel %vm933, %v2256, %v2262
    %v2264 = vrot.slane %v2231, 2
    %v2265 = vrot.slane %v1457, 2
    %v2266 = vsel %vm933, %v2264, %v2265
    %v2267 = vrot.slane %v2232, 2
    %v2268 = vrot.slane %v1458, 2
    %v2269 = vsel %vm933, %v2267, %v2268
    %v2270 = vrot.slane %v2233, 2
    %v2271 = vrot.slane %v1459, 2
    %v2272 = vsel %vm933, %v2270, %v2271
    %v2273 = vrot.slane %v2234, 2
    %v2274 = vsel %vm933, %v2265, %v2273
    %v2275 = vrot.slane %v2235, 2
    %v2276 = vsel %vm933, %v2268, %v2275
    %v2277 = vrot.slane %v2236, 2
    %v2278 = vsel %vm933, %v2271, %v2277
    %v2291 = vpack.c.bf16 %v2259, %v2251
    %v2292 = vpack.c.bf16 %v2261, %v2254
    %v2293 = vpack.c.bf16 %v2263, %v2257
    %v2294 = vpack.c.bf16 %v2274, %v2266
    %v2295 = vpack.c.bf16 %v2276, %v2269
    %v2296 = vpack.c.bf16 %v2278, %v2272
    %s2297 = scalar_lea.vmem [#allocation9], 608
    %v2298 = vld [vmem:[%s2297] sm:$0xff]
    %v2299 = vld [vmem:[%s2297 + $0x8] sm:$0xff]
    %v2300 = vld [vmem:[%s2297 + $0x10] sm:$0xff]
    %v2301 = vld [vmem:[%s2297 + $0x18] sm:$0xff]
    %v2302 = vld [vmem:[%s2297 + $0x20] sm:$0xff]
    %v2303 = vld [vmem:[%s2297 + $0x28] sm:$0xff]
    %v2304 = vld [vmem:[%s2297 + $0x30] sm:$0xff]
    %v2305 = vld [vmem:[%s2297 + $0x38] sm:$0xff]
    %v2306 = vld [vmem:[%s2297 + $0x40] sm:$0xff]
    %v2307 = vld [vmem:[%s2297 + $0x48] sm:$0xff]
    %v2308 = vld [vmem:[%s2297 + $0x50] sm:$0xff]
    %v2309 = vld [vmem:[%s2297 + $0x58] sm:$0xff]
    %v2310 = vld [vmem:[%s2297 + $0x60] sm:$0xff]
    %v2311 = vld [vmem:[%s2297 + $0x68] sm:$0xff]
    %v2312 = vld [vmem:[%s2297 + $0x70] sm:$0xff]
    %v2313 = vld [vmem:[%s2297 + $0x78] sm:$0xff]
    %v2314 = vld [vmem:[%s2297 + $0x80] sm:$0xff]
    %v2315 = vld [vmem:[%s2297 + $0x88] sm:$0xff]
    %v2316 = vld [vmem:[%s2297 + $0x90] sm:$0xff]
    %v2317 = vld [vmem:[%s2297 + $0x98] sm:$0xff]
    %v2318 = vld [vmem:[%s2297 + $0xa0] sm:$0xff]
    %v2319 = vld [vmem:[%s2297 + $0xa8] sm:$0xff]
    %v2320 = vld [vmem:[%s2297 + $0xb0] sm:$0xff]
    %v2321 = vld [vmem:[%s2297 + $0xb8] sm:$0xff]
    %v2322 = vld [vmem:[%s2297 + $0xc0] sm:$0xff]
    %v2323 = vld [vmem:[%s2297 + $0xc8] sm:$0xff]
    %v2324 = vld [vmem:[%s2297 + $0xd0] sm:$0xff]
    %v2325 = vld [vmem:[%s2297 + $0xd8] sm:$0xff]
    %v2326 = vld [vmem:[%s2297 + $0xe0] sm:$0xff]
    %v2327 = vld [vmem:[%s2297 + $0xe8] sm:$0xff]
    %v2328 = vld [vmem:[%s2297 + $0xf0] sm:$0xff]
    %v2329 = vld [vmem:[%s2297 + $0xf8] sm:$0xff]
    %v2330 = vld [vmem:[%s2297 + $0x100] sm:$0xff]
    %v2331 = vld [vmem:[%s2297 + $0x108] sm:$0xff]
    %v2332 = vld [vmem:[%s2297 + $0x110] sm:$0xff]
    %v2333 = vld [vmem:[%s2297 + $0x118] sm:$0xff]
    %v2334 = vld [vmem:[%s2297 + $0x120] sm:$0xff]
    %v2335 = vld [vmem:[%s2297 + $0x128] sm:$0xff]
    %v2374 = vunpack.c.l.b16 %v2298
    %v2375 = vunpack.c.h.b16 %v2298
    %v2376 = vunpack.c.l.b16 %v2299
    %v2377 = vunpack.c.h.b16 %v2299
    %v2378 = vunpack.c.l.b16 %v2300
    %v2379 = vunpack.c.h.b16 %v2300
    %v2380 = vunpack.c.l.b16 %v2301
    %v2381 = vunpack.c.h.b16 %v2301
    %v2382 = vunpack.c.l.b16 %v2302
    %v2383 = vunpack.c.h.b16 %v2302
    %v2384 = vunpack.c.l.b16 %v2303
    %v2385 = vunpack.c.h.b16 %v2303
    %v2386 = vunpack.c.l.b16 %v2304
    %v2387 = vunpack.c.h.b16 %v2304
    %v2388 = vunpack.c.l.b16 %v2305
    %v2389 = vunpack.c.h.b16 %v2305
    %v2390 = vunpack.c.l.b16 %v2306
    %v2391 = vunpack.c.h.b16 %v2306
    %v2392 = vunpack.c.l.b16 %v2307
    %v2393 = vunpack.c.h.b16 %v2307
    %v2394 = vunpack.c.l.b16 %v2308
    %v2395 = vunpack.c.h.b16 %v2308
    %v2396 = vunpack.c.l.b16 %v2309
    %v2397 = vunpack.c.h.b16 %v2309
    %v2398 = vunpack.c.l.b16 %v2310
    %v2399 = vunpack.c.h.b16 %v2310
    %v2400 = vunpack.c.l.b16 %v2311
    %v2401 = vunpack.c.h.b16 %v2311
    %v2402 = vunpack.c.l.b16 %v2312
    %v2403 = vunpack.c.h.b16 %v2312
    %v2404 = vunpack.c.l.b16 %v2313
    %v2405 = vunpack.c.h.b16 %v2313
    %v2406 = vunpack.c.l.b16 %v2314
    %v2407 = vunpack.c.h.b16 %v2314
    %v2408 = vunpack.c.l.b16 %v2315
    %v2409 = vunpack.c.h.b16 %v2315
    %v2410 = vunpack.c.l.b16 %v2316
    %v2411 = vunpack.c.h.b16 %v2316
    %v2412 = vunpack.c.l.b16 %v2317
    %v2413 = vunpack.c.h.b16 %v2317
    %v2414 = vunpack.c.l.b16 %v2318
    %v2415 = vunpack.c.h.b16 %v2318
    %v2416 = vunpack.c.l.b16 %v2319
    %v2417 = vunpack.c.h.b16 %v2319
    %v2418 = vunpack.c.l.b16 %v2320
    %v2419 = vunpack.c.h.b16 %v2320
    %v2420 = vunpack.c.l.b16 %v2321
    %v2421 = vunpack.c.h.b16 %v2321
    %v2422 = vunpack.c.l.b16 %v2322
    %v2423 = vunpack.c.h.b16 %v2322
    %v2424 = vunpack.c.l.b16 %v2323
    %v2425 = vunpack.c.h.b16 %v2323
    %v2426 = vunpack.c.l.b16 %v2324
    %v2427 = vunpack.c.h.b16 %v2324
    %v2428 = vunpack.c.l.b16 %v2325
    %v2429 = vunpack.c.h.b16 %v2325
    %v2430 = vunpack.c.l.b16 %v2326
    %v2431 = vunpack.c.h.b16 %v2326
    %v2432 = vunpack.c.l.b16 %v2327
    %v2433 = vunpack.c.h.b16 %v2327
    %v2434 = vunpack.c.l.b16 %v2328
    %v2435 = vunpack.c.h.b16 %v2328
    %v2436 = vunpack.c.l.b16 %v2329
    %v2437 = vunpack.c.h.b16 %v2329
    %v2438 = vunpack.c.l.b16 %v2330
    %v2439 = vunpack.c.h.b16 %v2330
    %v2440 = vunpack.c.l.b16 %v2331
    %v2441 = vunpack.c.h.b16 %v2331
    %v2442 = vunpack.c.l.b16 %v2332
    %v2443 = vunpack.c.h.b16 %v2332
    %v2444 = vunpack.c.l.b16 %v2333
    %v2445 = vunpack.c.h.b16 %v2333
    %v2446 = vunpack.c.l.b16 %v2334
    %v2447 = vunpack.c.h.b16 %v2334
    %v2448 = vunpack.c.l.b16 %v2335
    %v2449 = vunpack.c.h.b16 %v2335
    %v2450 = vpack.c.b16 %v2376, %v2374
    %v2451 = vpack.c.b16 %v2377, %v2375
    %v2452 = vpack.c.b16 %v2380, %v2378
    %v2453 = vpack.c.b16 %v2381, %v2379
    %v2454 = vpack.c.b16 %v2384, %v2382
    %v2455 = vpack.c.b16 %v2385, %v2383
    %v2456 = vpack.c.b16 %v2388, %v2386
    %v2457 = vpack.c.b16 %v2389, %v2387
    %v2458 = vpack.c.b16 %v2392, %v2390
    %v2459 = vpack.c.b16 %v2393, %v2391
    %v2460 = vpack.c.b16 %v2396, %v2394
    %v2461 = vpack.c.b16 %v2397, %v2395
    %v2462 = vpack.c.b16 %v2400, %v2398
    %v2463 = vpack.c.b16 %v2401, %v2399
    %v2464 = vpack.c.b16 %v2404, %v2402
    %v2465 = vpack.c.b16 %v2405, %v2403
    %v2466 = vpack.c.b16 %v2408, %v2406
    %v2467 = vpack.c.b16 %v2409, %v2407
    %v2468 = vpack.c.b16 %v2412, %v2410
    %v2469 = vpack.c.b16 %v2413, %v2411
    %v2470 = vpack.c.b16 %v2416, %v2414
    %v2471 = vpack.c.b16 %v2417, %v2415
    %v2472 = vpack.c.b16 %v2420, %v2418
    %v2473 = vpack.c.b16 %v2421, %v2419
    %v2474 = vpack.c.b16 %v2424, %v2422
    %v2475 = vpack.c.b16 %v2425, %v2423
    %v2476 = vpack.c.b16 %v2428, %v2426
    %v2477 = vpack.c.b16 %v2429, %v2427
    %v2478 = vpack.c.b16 %v2432, %v2430
    %v2479 = vpack.c.b16 %v2433, %v2431
    %v2480 = vpack.c.b16 %v2436, %v2434
    %v2481 = vpack.c.b16 %v2437, %v2435
    %v2482 = vpack.c.b16 %v2440, %v2438
    %v2483 = vpack.c.b16 %v2441, %v2439
    %v2484 = vpack.c.b16 %v2444, %v2442
    %v2485 = vpack.c.b16 %v2445, %v2443
    %v2486 = vpack.c.b16 %v2448, %v2446
    %v2487 = vpack.c.b16 %v2449, %v2447
    %v2527 = vsel %vm299, %v2293, 0
    %v2530 = vsel %vm299, %v2296, 0
    %2532 = vmatprep.subr.bf16.mxu0 %v2451
    %2533 = vmatpush1.bf16.msra.mxu0 %v2450
    %2534 = vmatprep.subr.bf16.mxu0 %v2453
    %2535 = vmatpush1.bf16.msra.mxu0 %v2452
    %2536 = vmatprep.subr.bf16.mxu0 %v2455
    %2537 = vmatpush1.bf16.msra.mxu0 %v2454
    %2538 = vmatprep.subr.bf16.mxu0 %v2457
    %2539 = vmatpush1.bf16.msra.mxu0 %v2456
    %2540 = vmatprep.subr.bf16.mxu0 %v2459
    %2541 = vmatpush1.bf16.msra.mxu0 %v2458
    %2542 = vmatprep.subr.bf16.mxu0 %v2461
    %2543 = vmatpush1.bf16.msra.mxu0 %v2460
    %2544 = vmatprep.subr.bf16.mxu0 %v2463
    %2545 = vmatpush1.bf16.msra.mxu0 %v2462
    %2546 = vmatprep.subr.bf16.mxu0 %v2465
    %2547 = vmatpush1.bf16.msra.mxu0 %v2464
    %2548 = vmatprep.subr.bf16.mxu0 %v2467
    %2549 = vmatpush1.bf16.msra.mxu0 %v2466
    %2550 = vmatprep.subr.bf16.mxu0 %v2469
    %2551 = vmatpush1.bf16.msra.mxu0 %v2468
    %2552 = vmatprep.subr.bf16.mxu0 %v2471
    %2553 = vmatpush1.bf16.msra.mxu0 %v2470
    %2554 = vmatprep.subr.bf16.mxu0 %v2473
    %2555 = vmatpush1.bf16.msra.mxu0 %v2472
    %2556 = vmatprep.subr.bf16.mxu0 %v2475
    %2557 = vmatpush1.bf16.msra.mxu0 %v2474
    %2558 = vmatprep.subr.bf16.mxu0 %v2477
    %2559 = vmatpush1.bf16.msra.mxu0 %v2476
    %2560 = vmatprep.subr.bf16.mxu0 %v2479
    %2561 = vmatpush1.bf16.msra.mxu0 %v2478
    %2562 = vmatprep.subr.bf16.mxu0 %v2481
    %2563 = vmatpush1.bf16.msra.mxu0 %v2480
    %2564 = vmatprep.mubr.bf16.mxu0 %v2292
    %2565 = vmatmul.mubr.bf16.gmra.mrb[0].mxu0 %v2291
    %v2566 = vpop.f32.mrb[0].mxu0
    %v2567 = vadd.f32 0.0, %v2566
    %v2568 = vpop.f32.mrb[0].mxu0
    %v2569 = vadd.f32 0.0, %v2568
    %v2570 = vpop.f32.mrb[0].mxu0
    %v2571 = vadd.f32 0.0, %v2570
    %v2572 = vpop.f32.mrb[0].mxu0
    %v2573 = vadd.f32 0.0, %v2572
    %2574 = vmatprep.mubr.bf16.mxu0 %v2295
    %2575 = vmatmul.mubr.bf16.gmra.mrb[0].mxu0 %v2294
    %v2576 = vpop.f32.mrb[0].mxu0
    %v2577 = vadd.f32 0.0, %v2576
    %v2578 = vpop.f32.mrb[0].mxu0
    %v2579 = vadd.f32 0.0, %v2578
    %v2580 = vpop.f32.mrb[0].mxu0
    %v2581 = vadd.f32 0.0, %v2580
    %v2582 = vpop.f32.mrb[0].mxu0
    %v2583 = vadd.f32 0.0, %v2582
    %2584 = vdwg.mxu0
    %2585 = vmatprep.subr.bf16.mxu0 %v2483
    %2586 = vmatpush1.bf16.msra.mxu0 %v2482
    %2587 = vmatprep.subr.bf16.mxu0 %v2485
    %2588 = vmatpush1.bf16.msra.mxu0 %v2484
    %2589 = vmatprep.subr.bf16.mxu0 %v2487
    %2590 = vmatpush1.bf16.msra.mxu0 %v2486
    %2591 = vmatprep.subr.bf16.mxu0 0
    %2592 = vmatpush1.bf16.msra.mxu0 0
    %2593 = vmatprep.subr.bf16.mxu0 0
    %2594 = vmatpush1.bf16.msra.mxu0 0
    %2595 = vmatprep.subr.bf16.mxu0 0
    %2596 = vmatpush1.bf16.msra.mxu0 0
    %2597 = vmatprep.subr.bf16.mxu0 0
    %2598 = vmatpush1.bf16.msra.mxu0 0
    %2599 = vmatprep.subr.bf16.mxu0 0
    %2600 = vmatpush1.bf16.msra.mxu0 0
    %2601 = vmatprep.subr.bf16.mxu0 0
    %2602 = vmatpush1.bf16.msra.mxu0 0
    %2603 = vmatprep.subr.bf16.mxu0 0
    %2604 = vmatpush1.bf16.msra.mxu0 0
    %2605 = vmatprep.subr.bf16.mxu0 0
    %2606 = vmatpush1.bf16.msra.mxu0 0
    %2607 = vmatprep.subr.bf16.mxu0 0
    %2608 = vmatpush1.bf16.msra.mxu0 0
    %2609 = vmatprep.subr.bf16.mxu0 0
    %2610 = vmatpush1.bf16.msra.mxu0 0
    %2611 = vmatprep.subr.bf16.mxu0 0
    %2612 = vmatpush1.bf16.msra.mxu0 0
    %2613 = vmatprep.subr.bf16.mxu0 0
    %2614 = vmatpush1.bf16.msra.mxu0 0
    %2615 = vmatprep.subr.bf16.mxu0 0
    %2616 = vmatpush1.bf16.msra.mxu0 0
    %2617 = vmatprep.mubr.bf16.mxu0 0
    %2618 = vmatmul.mubr.bf16.gmra.mrb[0].mxu0 %v2527
    %v2619 = vpop.f32.mrb[0].mxu0
    %v2620 = vadd.f32 %v2567, %v2619
    %v2621 = vpop.f32.mrb[0].mxu0
    %v2622 = vadd.f32 %v2569, %v2621
    %v2623 = vpop.f32.mrb[0].mxu0
    %v2624 = vadd.f32 %v2571, %v2623
    %v2625 = vpop.f32.mrb[0].mxu0
    %v2626 = vadd.f32 %v2573, %v2625
    %2627 = vmatprep.mubr.bf16.mxu0 0
    %2628 = vmatmul.mubr.bf16.gmra.mrb[0].mxu0 %v2530
    %v2629 = vpop.f32.mrb[0].mxu0
    %v2630 = vadd.f32 %v2577, %v2629
    %v2631 = vpop.f32.mrb[0].mxu0
    %v2632 = vadd.f32 %v2579, %v2631
    %v2633 = vpop.f32.mrb[0].mxu0
    %v2634 = vadd.f32 %v2581, %v2633
    %v2635 = vpop.f32.mrb[0].mxu0
    %v2636 = vadd.f32 %v2583, %v2635
    %2637 = vdwg.mxu0
    %v2638 = vadd.f32 %v2207, %v2620
    %v2639 = vadd.f32 %v2209, %v2622
    %v2640 = vadd.f32 %v2211, %v2624
    %v2641 = vadd.f32 %v2213, %v2626
    %v2642 = vadd.f32 %v2217, %v2630
    %v2643 = vadd.f32 %v2219, %v2632
    %v2644 = vadd.f32 %v2221, %v2634
    %v2645 = vadd.f32 %v2223, %v2636
    %v2646 = vld [vmem:[#allocation3] sm:$0xf8]
    %v2647 = vld [vmem:[#allocation3 + $0x8] sm:$0xf8]
    %v2648 = vld [vmem:[#allocation3 + $0x10] sm:$0xf8]
    %v2649 = vld [vmem:[#allocation3 + $0x30] sm:$0x7]
    %v2650 = vld [vmem:[#allocation3 + $0x38] sm:$0x7]
    %v2651 = vld [vmem:[#allocation3 + $0x40] sm:$0x7]
    %v2652 = vld [vmem:[#allocation3 + $0x48] sm:$0xf8]
    %v2653 = vld [vmem:[#allocation3 + $0x50] sm:$0xf8]
    %v2654 = vld [vmem:[#allocation3 + $0x58] sm:$0xf8]
    %v2655 = vld [vmem:[#allocation3 + $0x78] sm:$0x7]
    %v2656 = vld [vmem:[#allocation3 + $0x80] sm:$0x7]
    %v2657 = vld [vmem:[#allocation3 + $0x88] sm:$0x7]
    %v2670 = vrot.slane %v2646, 3
    %v2671 = vrot.slane %v1451, 3
    %v2672 = vsel %vm1257, %v2670, %v2671
    %v2673 = vrot.slane %v2647, 3
    %v2674 = vrot.slane %v1452, 3
    %v2675 = vsel %vm1257, %v2673, %v2674
    %v2676 = vrot.slane %v2648, 3
    %v2677 = vrot.slane %v1453, 3
    %v2678 = vsel %vm1257, %v2676, %v2677
    %v2679 = vrot.slane %v2649, 3
    %v2680 = vsel %vm1257, %v2671, %v2679
    %v2681 = vrot.slane %v2650, 3
    %v2682 = vsel %vm1257, %v2674, %v2681
    %v2683 = vrot.slane %v2651, 3
    %v2684 = vsel %vm1257, %v2677, %v2683
    %v2685 = vrot.slane %v2652, 3
    %v2686 = vrot.slane %v1457, 3
    %v2687 = vsel %vm1257, %v2685, %v2686
    %v2688 = vrot.slane %v2653, 3
    %v2689 = vrot.slane %v1458, 3
    %v2690 = vsel %vm1257, %v2688, %v2689
    %v2691 = vrot.slane %v2654, 3
    %v2692 = vrot.slane %v1459, 3
    %v2693 = vsel %vm1257, %v2691, %v2692
    %v2694 = vrot.slane %v2655, 3
    %v2695 = vsel %vm1257, %v2686, %v2694
    %v2696 = vrot.slane %v2656, 3
    %v2697 = vsel %vm1257, %v2689, %v2696
    %v2698 = vrot.slane %v2657, 3
    %v2699 = vsel %vm1257, %v2692, %v2698
    %v2712 = vpack.c.bf16 %v2680, %v2672
    %v2713 = vpack.c.bf16 %v2682, %v2675
    %v2714 = vpack.c.bf16 %v2684, %v2678
    %v2715 = vpack.c.bf16 %v2695, %v2687
    %v2716 = vpack.c.bf16 %v2697, %v2690
    %v2717 = vpack.c.bf16 %v2699, %v2693
    %s2718 = scalar_lea.vmem [#allocation9], 912
    %v2719 = vld [vmem:[%s2718] sm:$0xff]
    %v2720 = vld [vmem:[%s2718 + $0x8] sm:$0xff]
    %v2721 = vld [vmem:[%s2718 + $0x10] sm:$0xff]
    %v2722 = vld [vmem:[%s2718 + $0x18] sm:$0xff]
    %v2723 = vld [vmem:[%s2718 + $0x20] sm:$0xff]
    %v2724 = vld [vmem:[%s2718 + $0x28] sm:$0xff]
    %v2725 = vld [vmem:[%s2718 + $0x30] sm:$0xff]
    %v2726 = vld [vmem:[%s2718 + $0x38] sm:$0xff]
    %v2727 = vld [vmem:[%s2718 + $0x40] sm:$0xff]
    %v2728 = vld [vmem:[%s2718 + $0x48] sm:$0xff]
    %v2729 = vld [vmem:[%s2718 + $0x50] sm:$0xff]
    %v2730 = vld [vmem:[%s2718 + $0x58] sm:$0xff]
    %v2731 = vld [vmem:[%s2718 + $0x60] sm:$0xff]
    %v2732 = vld [vmem:[%s2718 + $0x68] sm:$0xff]
    %v2733 = vld [vmem:[%s2718 + $0x70] sm:$0xff]
    %v2734 = vld [vmem:[%s2718 + $0x78] sm:$0xff]
    %v2735 = vld [vmem:[%s2718 + $0x80] sm:$0xff]
    %v2736 = vld [vmem:[%s2718 + $0x88] sm:$0xff]
    %v2737 = vld [vmem:[%s2718 + $0x90] sm:$0xff]
    %v2738 = vld [vmem:[%s2718 + $0x98] sm:$0xff]
    %v2739 = vld [vmem:[%s2718 + $0xa0] sm:$0xff]
    %v2740 = vld [vmem:[%s2718 + $0xa8] sm:$0xff]
    %v2741 = vld [vmem:[%s2718 + $0xb0] sm:$0xff]
    %v2742 = vld [vmem:[%s2718 + $0xb8] sm:$0xff]
    %v2743 = vld [vmem:[%s2718 + $0xc0] sm:$0xff]
    %v2744 = vld [vmem:[%s2718 + $0xc8] sm:$0xff]
    %v2745 = vld [vmem:[%s2718 + $0xd0] sm:$0xff]
    %v2746 = vld [vmem:[%s2718 + $0xd8] sm:$0xff]
    %v2747 = vld [vmem:[%s2718 + $0xe0] sm:$0xff]
    %v2748 = vld [vmem:[%s2718 + $0xe8] sm:$0xff]
    %v2749 = vld [vmem:[%s2718 + $0xf0] sm:$0xff]
    %v2750 = vld [vmem:[%s2718 + $0xf8] sm:$0xff]
    %v2751 = vld [vmem:[%s2718 + $0x100] sm:$0xff]
    %v2752 = vld [vmem:[%s2718 + $0x108] sm:$0xff]
    %v2753 = vld [vmem:[%s2718 + $0x110] sm:$0xff]
    %v2754 = vld [vmem:[%s2718 + $0x118] sm:$0xff]
    %v2755 = vld [vmem:[%s2718 + $0x120] sm:$0xff]
    %v2756 = vld [vmem:[%s2718 + $0x128] sm:$0xff]
    %v2795 = vunpack.c.l.b16 %v2719
    %v2796 = vunpack.c.h.b16 %v2719
    %v2797 = vunpack.c.l.b16 %v2720
    %v2798 = vunpack.c.h.b16 %v2720
    %v2799 = vunpack.c.l.b16 %v2721
    %v2800 = vunpack.c.h.b16 %v2721
    %v2801 = vunpack.c.l.b16 %v2722
    %v2802 = vunpack.c.h.b16 %v2722
    %v2803 = vunpack.c.l.b16 %v2723
    %v2804 = vunpack.c.h.b16 %v2723
    %v2805 = vunpack.c.l.b16 %v2724
    %v2806 = vunpack.c.h.b16 %v2724
    %v2807 = vunpack.c.l.b16 %v2725
    %v2808 = vunpack.c.h.b16 %v2725
    %v2809 = vunpack.c.l.b16 %v2726
    %v2810 = vunpack.c.h.b16 %v2726
    %v2811 = vunpack.c.l.b16 %v2727
    %v2812 = vunpack.c.h.b16 %v2727
    %v2813 = vunpack.c.l.b16 %v2728
    %v2814 = vunpack.c.h.b16 %v2728
    %v2815 = vunpack.c.l.b16 %v2729
    %v2816 = vunpack.c.h.b16 %v2729
    %v2817 = vunpack.c.l.b16 %v2730
    %v2818 = vunpack.c.h.b16 %v2730
    %v2819 = vunpack.c.l.b16 %v2731
    %v2820 = vunpack.c.h.b16 %v2731
    %v2821 = vunpack.c.l.b16 %v2732
    %v2822 = vunpack.c.h.b16 %v2732
    %v2823 = vunpack.c.l.b16 %v2733
    %v2824 = vunpack.c.h.b16 %v2733
    %v2825 = vunpack.c.l.b16 %v2734
    %v2826 = vunpack.c.h.b16 %v2734
    %v2827 = vunpack.c.l.b16 %v2735
    %v2828 = vunpack.c.h.b16 %v2735
    %v2829 = vunpack.c.l.b16 %v2736
    %v2830 = vunpack.c.h.b16 %v2736
    %v2831 = vunpack.c.l.b16 %v2737
    %v2832 = vunpack.c.h.b16 %v2737
    %v2833 = vunpack.c.l.b16 %v2738
    %v2834 = vunpack.c.h.b16 %v2738
    %v2835 = vunpack.c.l.b16 %v2739
    %v2836 = vunpack.c.h.b16 %v2739
    %v2837 = vunpack.c.l.b16 %v2740
    %v2838 = vunpack.c.h.b16 %v2740
    %v2839 = vunpack.c.l.b16 %v2741
    %v2840 = vunpack.c.h.b16 %v2741
    %v2841 = vunpack.c.l.b16 %v2742
    %v2842 = vunpack.c.h.b16 %v2742
    %v2843 = vunpack.c.l.b16 %v2743
    %v2844 = vunpack.c.h.b16 %v2743
    %v2845 = vunpack.c.l.b16 %v2744
    %v2846 = vunpack.c.h.b16 %v2744
    %v2847 = vunpack.c.l.b16 %v2745
    %v2848 = vunpack.c.h.b16 %v2745
    %v2849 = vunpack.c.l.b16 %v2746
    %v2850 = vunpack.c.h.b16 %v2746
    %v2851 = vunpack.c.l.b16 %v2747
    %v2852 = vunpack.c.h.b16 %v2747
    %v2853 = vunpack.c.l.b16 %v2748
    %v2854 = vunpack.c.h.b16 %v2748
    %v2855 = vunpack.c.l.b16 %v2749
    %v2856 = vunpack.c.h.b16 %v2749
    %v2857 = vunpack.c.l.b16 %v2750
    %v2858 = vunpack.c.h.b16 %v2750
    %v2859 = vunpack.c.l.b16 %v2751
    %v2860 = vunpack.c.h.b16 %v2751
    %v2861 = vunpack.c.l.b16 %v2752
    %v2862 = vunpack.c.h.b16 %v2752
    %v2863 = vunpack.c.l.b16 %v2753
    %v2864 = vunpack.c.h.b16 %v2753
    %v2865 = vunpack.c.l.b16 %v2754
    %v2866 = vunpack.c.h.b16 %v2754
    %v2867 = vunpack.c.l.b16 %v2755
    %v2868 = vunpack.c.h.b16 %v2755
    %v2869 = vunpack.c.l.b16 %v2756
    %v2870 = vunpack.c.h.b16 %v2756
    %v2871 = vpack.c.b16 %v2797, %v2795
    %v2872 = vpack.c.b16 %v2798, %v2796
    %v2873 = vpack.c.b16 %v2801, %v2799
    %v2874 = vpack.c.b16 %v2802, %v2800
    %v2875 = vpack.c.b16 %v2805, %v2803
    %v2876 = vpack.c.b16 %v2806, %v2804
    %v2877 = vpack.c.b16 %v2809, %v2807
    %v2878 = vpack.c.b16 %v2810, %v2808
    %v2879 = vpack.c.b16 %v2813, %v2811
    %v2880 = vpack.c.b16 %v2814, %v2812
    %v2881 = vpack.c.b16 %v2817, %v2815
    %v2882 = vpack.c.b16 %v2818, %v2816
    %v2883 = vpack.c.b16 %v2821, %v2819
    %v2884 = vpack.c.b16 %v2822, %v2820
    %v2885 = vpack.c.b16 %v2825, %v2823
    %v2886 = vpack.c.b16 %v2826, %v2824
    %v2887 = vpack.c.b16 %v2829, %v2827
    %v2888 = vpack.c.b16 %v2830, %v2828
    %v2889 = vpack.c.b16 %v2833, %v2831
    %v2890 = vpack.c.b16 %v2834, %v2832
    %v2891 = vpack.c.b16 %v2837, %v2835
    %v2892 = vpack.c.b16 %v2838, %v2836
    %v2893 = vpack.c.b16 %v2841, %v2839
    %v2894 = vpack.c.b16 %v2842, %v2840
    %v2895 = vpack.c.b16 %v2845, %v2843
    %v2896 = vpack.c.b16 %v2846, %v2844
    %v2897 = vpack.c.b16 %v2849, %v2847
    %v2898 = vpack.c.b16 %v2850, %v2848
    %v2899 = vpack.c.b16 %v2853, %v2851
    %v2900 = vpack.c.b16 %v2854, %v2852
    %v2901 = vpack.c.b16 %v2857, %v2855
    %v2902 = vpack.c.b16 %v2858, %v2856
    %v2903 = vpack.c.b16 %v2861, %v2859
    %v2904 = vpack.c.b16 %v2862, %v2860
    %v2905 = vpack.c.b16 %v2865, %v2863
    %v2906 = vpack.c.b16 %v2866, %v2864
    %v2907 = vpack.c.b16 %v2869, %v2867
    %v2908 = vpack.c.b16 %v2870, %v2868
    %v2948 = vsel %vm299, %v2714, 0
    %v2951 = vsel %vm299, %v2717, 0
    %2953 = vmatprep.subr.bf16.mxu0 %v2872
    %2954 = vmatpush1.bf16.msra.mxu0 %v2871
    %2955 = vmatprep.subr.bf16.mxu0 %v2874
    %2956 = vmatpush1.bf16.msra.mxu0 %v2873
    %2957 = vmatprep.subr.bf16.mxu0 %v2876
    %2958 = vmatpush1.bf16.msra.mxu0 %v2875
    %2959 = vmatprep.subr.bf16.mxu0 %v2878
    %2960 = vmatpush1.bf16.msra.mxu0 %v2877
    %2961 = vmatprep.subr.bf16.mxu0 %v2880
    %2962 = vmatpush1.bf16.msra.mxu0 %v2879
    %2963 = vmatprep.subr.bf16.mxu0 %v2882
    %2964 = vmatpush1.bf16.msra.mxu0 %v2881
    %2965 = vmatprep.subr.bf16.mxu0 %v2884
    %2966 = vmatpush1.bf16.msra.mxu0 %v2883
    %2967 = vmatprep.subr.bf16.mxu0 %v2886
    %2968 = vmatpush1.bf16.msra.mxu0 %v2885
    %2969 = vmatprep.subr.bf16.mxu0 %v2888
    %2970 = vmatpush1.bf16.msra.mxu0 %v2887
    %2971 = vmatprep.subr.bf16.mxu0 %v2890
    %2972 = vmatpush1.bf16.msra.mxu0 %v2889
    %2973 = vmatprep.subr.bf16.mxu0 %v2892
    %2974 = vmatpush1.bf16.msra.mxu0 %v2891
    %2975 = vmatprep.subr.bf16.mxu0 %v2894
    %2976 = vmatpush1.bf16.msra.mxu0 %v2893
    %2977 = vmatprep.subr.bf16.mxu0 %v2896
    %2978 = vmatpush1.bf16.msra.mxu0 %v2895
    %2979 = vmatprep.subr.bf16.mxu0 %v2898
    %2980 = vmatpush1.bf16.msra.mxu0 %v2897
    %2981 = vmatprep.subr.bf16.mxu0 %v2900
    %2982 = vmatpush1.bf16.msra.mxu0 %v2899
    %2983 = vmatprep.subr.bf16.mxu0 %v2902
    %2984 = vmatpush1.bf16.msra.mxu0 %v2901
    %2985 = vmatprep.mubr.bf16.mxu0 %v2713
    %2986 = vmatmul.mubr.bf16.gmra.mrb[0].mxu0 %v2712
    %v2987 = vpop.f32.mrb[0].mxu0
    %v2988 = vadd.f32 0.0, %v2987
    %v2989 = vpop.f32.mrb[0].mxu0
    %v2990 = vadd.f32 0.0, %v2989
    %v2991 = vpop.f32.mrb[0].mxu0
    %v2992 = vadd.f32 0.0, %v2991
    %v2993 = vpop.f32.mrb[0].mxu0
    %v2994 = vadd.f32 0.0, %v2993
    %2995 = vmatprep.mubr.bf16.mxu0 %v2716
    %2996 = vmatmul.mubr.bf16.gmra.mrb[0].mxu0 %v2715
    %v2997 = vpop.f32.mrb[0].mxu0
    %v2998 = vadd.f32 0.0, %v2997
    %v2999 = vpop.f32.mrb[0].mxu0
    %v3000 = vadd.f32 0.0, %v2999
    %v3001 = vpop.f32.mrb[0].mxu0
    %v3002 = vadd.f32 0.0, %v3001
    %v3003 = vpop.f32.mrb[0].mxu0
    %v3004 = vadd.f32 0.0, %v3003
    %3005 = vdwg.mxu0
    %3006 = vmatprep.subr.bf16.mxu0 %v2904
    %3007 = vmatpush1.bf16.msra.mxu0 %v2903
    %3008 = vmatprep.subr.bf16.mxu0 %v2906
    %3009 = vmatpush1.bf16.msra.mxu0 %v2905
    %3010 = vmatprep.subr.bf16.mxu0 %v2908
    %3011 = vmatpush1.bf16.msra.mxu0 %v2907
    %3012 = vmatprep.subr.bf16.mxu0 0
    %3013 = vmatpush1.bf16.msra.mxu0 0
    %3014 = vmatprep.subr.bf16.mxu0 0
    %3015 = vmatpush1.bf16.msra.mxu0 0
    %3016 = vmatprep.subr.bf16.mxu0 0
    %3017 = vmatpush1.bf16.msra.mxu0 0
    %3018 = vmatprep.subr.bf16.mxu0 0
    %3019 = vmatpush1.bf16.msra.mxu0 0
    %3020 = vmatprep.subr.bf16.mxu0 0
    %3021 = vmatpush1.bf16.msra.mxu0 0
    %3022 = vmatprep.subr.bf16.mxu0 0
    %3023 = vmatpush1.bf16.msra.mxu0 0
    %3024 = vmatprep.subr.bf16.mxu0 0
    %3025 = vmatpush1.bf16.msra.mxu0 0
    %3026 = vmatprep.subr.bf16.mxu0 0
    %3027 = vmatpush1.bf16.msra.mxu0 0
    %3028 = vmatprep.subr.bf16.mxu0 0
    %3029 = vmatpush1.bf16.msra.mxu0 0
    %3030 = vmatprep.subr.bf16.mxu0 0
    %3031 = vmatpush1.bf16.msra.mxu0 0
    %3032 = vmatprep.subr.bf16.mxu0 0
    %3033 = vmatpush1.bf16.msra.mxu0 0
    %3034 = vmatprep.subr.bf16.mxu0 0
    %3035 = vmatpush1.bf16.msra.mxu0 0
    %3036 = vmatprep.subr.bf16.mxu0 0
    %3037 = vmatpush1.bf16.msra.mxu0 0
    %3038 = vmatprep.mubr.bf16.mxu0 0
    %3039 = vmatmul.mubr.bf16.gmra.mrb[0].mxu0 %v2948
    %v3040 = vpop.f32.mrb[0].mxu0
    %v3041 = vadd.f32 %v2988, %v3040
    %v3042 = vpop.f32.mrb[0].mxu0
    %v3043 = vadd.f32 %v2990, %v3042
    %v3044 = vpop.f32.mrb[0].mxu0
    %v3045 = vadd.f32 %v2992, %v3044
    %v3046 = vpop.f32.mrb[0].mxu0
    %v3047 = vadd.f32 %v2994, %v3046
    %3048 = vmatprep.mubr.bf16.mxu0 0
    %3049 = vmatmul.mubr.bf16.gmra.mrb[0].mxu0 %v2951
    %v3050 = vpop.f32.mrb[0].mxu0
    %v3051 = vadd.f32 %v2998, %v3050
    %v3052 = vpop.f32.mrb[0].mxu0
    %v3053 = vadd.f32 %v3000, %v3052
    %v3054 = vpop.f32.mrb[0].mxu0
    %v3055 = vadd.f32 %v3002, %v3054
    %v3056 = vpop.f32.mrb[0].mxu0
    %v3057 = vadd.f32 %v3004, %v3056
    %3058 = vdwg.mxu0
    %v3059 = vadd.f32 %v2638, %v3041
    %v3060 = vadd.f32 %v2639, %v3043
    %v3061 = vadd.f32 %v2640, %v3045
    %v3062 = vadd.f32 %v2641, %v3047
    %v3063 = vadd.f32 %v2642, %v3051
    %v3064 = vadd.f32 %v2643, %v3053
    %v3065 = vadd.f32 %v2644, %v3055
    %v3066 = vadd.f32 %v2645, %v3057
    %v3067 = vmax.f32 %v3059, 0.0
    %v3068 = vmax.f32 %v3060, 0.0
    %v3069 = vmax.f32 %v3061, 0.0
    %v3070 = vmax.f32 %v3062, 0.0
    %v3071 = vmax.f32 %v3063, 0.0
    %v3072 = vmax.f32 %v3064, 0.0
    %v3073 = vmax.f32 %v3065, 0.0
    %v3074 = vmax.f32 %v3066, 0.0
    %v3075 = vpack.c.bf16 %v3069, %v3067
    %v3076 = vpack.c.bf16 %v3070, %v3068
    %v3077 = vpack.c.bf16 %v3073, %v3071
    %v3078 = vpack.c.bf16 %v3074, %v3072
    %v3083 = vunpack.c.l.b16 %v3075
    %v3084 = vunpack.c.l.b16 %v3076
    %v3085 = vunpack.c.h.b16 %v3075
    %v3086 = vunpack.c.h.b16 %v3076
    %v3087 = vunpack.c.l.b16 %v3077
    %v3088 = vunpack.c.l.b16 %v3078
    %v3089 = vunpack.c.h.b16 %v3077
    %v3090 = vunpack.c.h.b16 %v3078
    %v3091 = vpack.c.b16 %v3084, %v3083
    %v3092 = vpack.c.b16 %v3086, %v3085
    %v3093 = vpack.c.b16 %v3088, %v3087
    %v3094 = vpack.c.b16 %v3090, %v3089
    %3099 = vst [vmem:[%s3] sm:$0xff] %v3091
    %3100 = vst [vmem:[%s3 + $0x8] sm:$0xff] %v3092
    %3101 = vst [vmem:[%s3 + $0x10] sm:$0xff] %v3093
    %3102 = vst [vmem:[%s3 + $0x18] sm:$0xff] %v3094
    // Predicated region
    $region26: #{convnet_forward.2} parent=1 // pred_check
      _
    $region27: #{convnet_forward.2} parent=1 // pred_check_branch
      %3104 = sbr.rel (0) target = $region29
    $region28: #{convnet_forward.2} parent=1 // pred_region
      _
    $region29: #{convnet_forward.2} parent=1 // pred_fallthru
      _
    // Predicated region
    $region30: #{convnet_forward.2} parent=1 // pred_check
      _
    $region31: #{convnet_forward.2} parent=1 // pred_check_branch
      %3106 = sbr.rel (0) target = $region33
    $region32: #{convnet_forward.2} parent=1 // pred_region
      _
    $region33: #{convnet_forward.2} parent=1 // pred_fallthru
      _
    %3107 = vsyncpa [#allocation6], 1
    %3108 = vsyncpa [#allocation8], 1

// kernel: convnet_forward.3
$region0: #{convnet_forward.3}
  #allocation0 [shape = 'u32[]', space=smem, size = 0x4, offset = 0x4, fixed_abs, tag = 'smem constant byte address 0x4 - core index']
  #allocation1 [shape = 'u32[144,128]{1,0:T(1,128)}', space=vmem, size = 0x12000, scoped, tag = 'internal scratch']
  #allocation2 [shape = 'f32[2,512]{1,0:T(2,128)}', space=vmem, size = 0x1000, scoped, tag = 'scratch operand']
  %s0 = inlined_call_operand.vmem [shape: bf16[2,4096], index: 0, kind: input, shape index: {}]
  %s1 = inlined_call_operand.hbm [shape: bf16[4096,512], index: 1, kind: input, shape index: {}]
  %s2 = inlined_call_operand.hbm [shape: f32[1,512], index: 2, kind: input, shape index: {}]
  %s3 = inlined_call_operand.vmem [shape: f32[512,16], index: 3, kind: input, shape index: {}]
  %s4 = inlined_call_operand.hbm [shape: f32[1,16], index: 4, kind: input, shape index: {}]
  %s5 = inlined_call_operand.hbm [shape: f32[2,16], index: 5, kind: output, shape index: {}]
  %s6 = sld [smem:[#allocation0]]
  $region73: #{convnet_forward.3} parent=0
    _
  %s8 = ssub.s32 1, %s6
  %s9 = scalar_select 0, %s8, %s6
  $region1: #{convnet_forward.3} parent=0
    #allocation3 [shape = 'u8[4194304]{0}', space=vmem, size = 0x400000, scoped, tag = 'input window, operand 1']
    #allocation4 [shape = 's32[2]{0}', space=sflag, size = 0x8, scoped, tag = 'scoped memory for convnet_forward.3']
    #allocation5 [shape = 's32[2]{0}', space=sflag, size = 0x8, scoped, tag = 'scoped memory for convnet_forward.3']
    #allocation6 [shape = 'u8[2048]{0}', space=vmem, size = 0x800, scoped, tag = 'input window, operand 2, single buffered']
    #allocation7 [shape = 's32[1]{0}', space=sflag, size = 0x4, scoped, tag = 'scoped memory for convnet_forward.3']
    #allocation8 [shape = 'u8[512]{0}', space=vmem, size = 0x400, scoped, tag = 'input window, operand 4, single buffered']
    #allocation9 [shape = 'u8[1024]{0}', space=vmem, size = 0x400, scoped, tag = 'output window, operand 0, single buffered']
    %10 = vsyncpa [#allocation4], 0
    %s11 = scalar_lea.sflag [#allocation4], 1
    %12 = vsyncpa %s11, 0
    %13 = vsyncpa [#allocation7], 0
    %14 = vsyncpa [#allocation5], 0
    loop: start=0, step=1, limit=4
    $region2: #{convnet_forward.3} parent=1 // loop_pre_header
      _
    $region3: #{convnet_forward.3} parent=1 // loop_header
      %s16 = sphi 0, %s20
      %p17 = scmp.ge.s32.totalorder %s16, 4
      %s26 = sphi 0, %s28
      %s29 = sphi 0, %s26
      %s30 = sphi 0, %s29
      %s46 = sphi 0, %s30
      %s52 = sphi 0, %s54
      %s55 = sphi 0, %s52
      %s56 = sphi 0, %s55
      %s72 = sphi 0, %s56
      %s76 = sphi 0, %s76
      %s78 = sphi 0, %s76
      %s79 = sphi 0, %s78
      %s93 = sphi 0, %s79
      %s97 = sphi 0, %s97
      %s99 = sphi 0, %s97
      %s100 = sphi 0, %s99
      %s114 = sphi 0, %s100
      %s118 = sphi 0, %s118
      %s120 = sphi 0, %s118
      %s121 = sphi 0, %s120
      %s135 = sphi 0, %s121
      %s139 = sphi 0, %s139
      %s141 = sphi 0, %s139
      %s142 = sphi 0, %s141
      %s156 = sphi 0, %s142
    $region4: #{convnet_forward.3} parent=1 // loop_header_branch
      %19 = sbr.rel (%p17) target = $region8
    $region5: #{convnet_forward.3} parent=1 // loop_body
      %s21 = ssub.s32 %s16, 1
      %s22 = ssub.s32 %s16, 2
      %s23 = sadd.s32 %s16, 1
      %s24 = ssub.s32 %s16, %s23
      %p25 = scmp.eq.s32.totalorder %s24, 0
      %s27 = sadd.s32 %s26, 1
      %s28 = scalar_select %p25, %s26, %s27
      %p31 = pneg %p25
      %p32 = scmp.eq.s32.totalorder %s16, 1
      %p33 = por %p31, %p32
      %p34 = scmp.ne.s32.totalorder %s26, %s29
      %p35 = scmp.eq.s32.totalorder %s16, 0
      %p36 = por %p34, %p35
      %p37 = scmp.ne.s32.totalorder %s26, %s29
      %p38 = scmp.eq.s32.totalorder %s21, 1
      %p39 = por %p37, %p38
      %p40 = scmp.ne.s32.totalorder %s29, %s30
      %p41 = scmp.eq.s32.totalorder %s21, 0
      %p42 = por %p40, %p41
      %p43 = scmp.ne.s32.totalorder %s29, %s30
      %p44 = scmp.eq.s32.totalorder %s22, 1
      %p45 = por %p43, %p44
      %p47 = scmp.ne.s32.totalorder %s30, %s46
      %p48 = scmp.eq.s32.totalorder %s22, 0
      %p49 = por %p47, %p48
      %s50 = ssub.s32 %s16, %s23
      %p51 = scmp.eq.s32.totalorder %s50, 0
      %s53 = sadd.s32 %s52, 1
      %s54 = scalar_select %p51, %s52, %s53
      %p57 = pneg %p51
      %p58 = scmp.eq.s32.totalorder %s16, 1
      %p59 = por %p57, %p58
      %p60 = scmp.ne.s32.totalorder %s52, %s55
      %p61 = scmp.eq.s32.totalorder %s16, 0
      %p62 = por %p60, %p61
      %p63 = scmp.ne.s32.totalorder %s52, %s55
      %p64 = scmp.eq.s32.totalorder %s21, 1
      %p65 = por %p63, %p64
      %p66 = scmp.ne.s32.totalorder %s55, %s56
      %p67 = scmp.eq.s32.totalorder %s21, 0
      %p68 = por %p66, %p67
      %p69 = scmp.ne.s32.totalorder %s55, %s56
      %p70 = scmp.eq.s32.totalorder %s22, 1
      %p71 = por %p69, %p70
      %p73 = scmp.ne.s32.totalorder %s56, %s72
      %p74 = scmp.eq.s32.totalorder %s22, 0
      %p75 = por %p73, %p74
      %s77 = sadd.s32 %s76, 1
      %p80 = scmp.eq.s32.totalorder %s16, 1
      %p81 = scmp.ne.s32.totalorder %s76, %s78
      %p82 = scmp.eq.s32.totalorder %s16, 0
      %p83 = por %p81, %p82
      %p84 = scmp.ne.s32.totalorder %s76, %s78
      %p85 = scmp.eq.s32.totalorder %s21, 1
      %p86 = por %p84, %p85
      %p87 = scmp.ne.s32.totalorder %s78, %s79
      %p88 = scmp.eq.s32.totalorder %s21, 0
      %p89 = por %p87, %p88
      %p90 = scmp.ne.s32.totalorder %s78, %s79
      %p91 = scmp.eq.s32.totalorder %s22, 1
      %p92 = por %p90, %p91
      %p94 = scmp.ne.s32.totalorder %s79, %s93
      %p95 = scmp.eq.s32.totalorder %s22, 0
      %p96 = por %p94, %p95
      %s98 = sadd.s32 %s97, 1
      %p101 = scmp.eq.s32.totalorder %s16, 1
      %p102 = scmp.ne.s32.totalorder %s97, %s99
      %p103 = scmp.eq.s32.totalorder %s16, 0
      %p104 = por %p102, %p103
      %p105 = scmp.ne.s32.totalorder %s97, %s99
      %p106 = scmp.eq.s32.totalorder %s21, 1
      %p107 = por %p105, %p106
      %p108 = scmp.ne.s32.totalorder %s99, %s100
      %p109 = scmp.eq.s32.totalorder %s21, 0
      %p110 = por %p108, %p109
      %p111 = scmp.ne.s32.totalorder %s99, %s100
      %p112 = scmp.eq.s32.totalorder %s22, 1
      %p113 = por %p111, %p112
      %p115 = scmp.ne.s32.totalorder %s100, %s114
      %p116 = scmp.eq.s32.totalorder %s22, 0
      %p117 = por %p115, %p116
      %s119 = sadd.s32 %s118, 1
      %p122 = scmp.eq.s32.totalorder %s16, 1
      %p123 = scmp.ne.s32.totalorder %s118, %s120
      %p124 = scmp.eq.s32.totalorder %s16, 0
      %p125 = por %p123, %p124
      %p126 = scmp.ne.s32.totalorder %s118, %s120
      %p127 = scmp.eq.s32.totalorder %s21, 1
      %p128 = por %p126, %p127
      %p129 = scmp.ne.s32.totalorder %s120, %s121
      %p130 = scmp.eq.s32.totalorder %s21, 0
      %p131 = por %p129, %p130
      %p132 = scmp.ne.s32.totalorder %s120, %s121
      %p133 = scmp.eq.s32.totalorder %s22, 1
      %p134 = por %p132, %p133
      %p136 = scmp.ne.s32.totalorder %s121, %s135
      %p137 = scmp.eq.s32.totalorder %s22, 0
      %p138 = por %p136, %p137
      %s140 = sadd.s32 %s139, 1
      %p143 = scmp.eq.s32.totalorder %s16, 1
      %p144 = scmp.ne.s32.totalorder %s139, %s141
      %p145 = scmp.eq.s32.totalorder %s16, 0
      %p146 = por %p144, %p145
      %p147 = scmp.ne.s32.totalorder %s139, %s141
      %p148 = scmp.eq.s32.totalorder %s21, 1
      %p149 = por %p147, %p148
      %p150 = scmp.ne.s32.totalorder %s141, %s142
      %p151 = scmp.eq.s32.totalorder %s21, 0
      %p152 = por %p150, %p151
      %p153 = scmp.ne.s32.totalorder %s141, %s142
      %p154 = scmp.eq.s32.totalorder %s22, 1
      %p155 = por %p153, %p154
      %p157 = scmp.ne.s32.totalorder %s142, %s156
      %p158 = scmp.eq.s32.totalorder %s22, 0
      %p159 = por %p157, %p158
      %p160 = scmp.le.s32.totalorder 1, %s16
      %p161 = scmp.lt.s32.totalorder %s16, 3
      %p162 = pnand %p160, %p161
      %p163 = pneg %p162
      // Predicated region
      $region9: #{convnet_forward.3} parent=5 // pred_check
        _
      $region10: #{convnet_forward.3} parent=5 // pred_check_branch
        %165 = sbr.rel (%p162) target = $region12
      $region11: #{convnet_forward.3} parent=5 // pred_region
        %s166 = ssub.s32 %s16, 1
        // Predicated region
        $region13: #{convnet_forward.3} parent=11 // pred_check
          %p167 = pneg %p89
        $region14: #{convnet_forward.3} parent=11 // pred_check_branch
          %169 = sbr.rel (%p167) target = $region16
        $region15: #{convnet_forward.3} parent=11 // pred_region
          %s171 = ssub.s32 64, 64
          %172 = vsyncadd [#allocation7], %s171
          %s174 = sshll.u32 [#allocation6], 4
          %s175 = int_to_ptr.vmem [resolvable:$true] %s174
          %177 = dma.hbm_to_vmem [thread:$0]  %s2, 64, %s175, [#allocation7]
        $region16: #{convnet_forward.3} parent=11 // pred_fallthru
          _
        // Predicated region
        $region17: #{convnet_forward.3} parent=11 // pred_check
          %p178 = pneg %p110
        $region18: #{convnet_forward.3} parent=11 // pred_check_branch
          %180 = sbr.rel (%p178) target = $region20
        $region19: #{convnet_forward.3} parent=11 // pred_region
          _
        $region20: #{convnet_forward.3} parent=11 // pred_fallthru
          _
        // Predicated region
        $region21: #{convnet_forward.3} parent=11 // pred_check
          %p181 = pneg %p131
        $region22: #{convnet_forward.3} parent=11 // pred_check_branch
          %183 = sbr.rel (%p181) target = $region24
        $region23: #{convnet_forward.3} parent=11 // pred_region
          %s185 = ssub.s32 16, 16
          %186 = vsyncadd [#allocation7], %s185
          %s188 = sshll.u32 [#allocation8], 4
          %s189 = int_to_ptr.vmem [resolvable:$true] %s188
          %191 = dma.hbm_to_vmem [thread:$0]  %s4, 16, %s189, [#allocation7]
        $region24: #{convnet_forward.3} parent=11 // pred_fallthru
          _
      $region12: #{convnet_forward.3} parent=5 // pred_fallthru
        _
      %p192 = scmp.lt.s32.totalorder %s16, 2
      // Predicated region
      $region25: #{convnet_forward.3} parent=5 // pred_check
        %p193 = pneg %p192
      $region26: #{convnet_forward.3} parent=5 // pred_check_branch
        %195 = sbr.rel (%p193) target = $region28
      $region27: #{convnet_forward.3} parent=5 // pred_region
        // Predicated region
        $region29: #{convnet_forward.3} parent=27 // pred_check
          %p196 = pneg %p36
        $region30: #{convnet_forward.3} parent=27 // pred_check_branch
          %198 = sbr.rel (%p196) target = $region32
        $region31: #{convnet_forward.3} parent=27 // pred_region
          %s199 = smul.u32 16, %s16
          %p200 = scmp.lt.s32.totalorder %s199, 31
          %s201 = scalar_select %p200, %s199, 31
          %s202 = scalar_lea.vmem %s0, %s201
          %s203 = smul.u32 16, %s16
        $region32: #{convnet_forward.3} parent=27 // pred_fallthru
          _
        // Predicated region
        $region33: #{convnet_forward.3} parent=27 // pred_check
          %p204 = pneg %p62
        $region34: #{convnet_forward.3} parent=27 // pred_check_branch
          %206 = sbr.rel (%p204) target = $region36
        $region35: #{convnet_forward.3} parent=27 // pred_region
          %s207 = sand.u32 %s52, 1
          %s208 = scalar_lea.sflag [#allocation4], %s207
          %s209 = sand.u32 %s52, 1
          %s210 = smul.addr %s209, 4096
          %s211 = scalar_lea.vmem [#allocation3], %s210
          %s212 = smul.u32 256, %s16
          %s214 = ssub.s32 65536, 65536
          %215 = vsyncadd %s208, %s214
          %s216 = smul.addr %s212, 4
          %s217 = smul.addr %s216, 64
          %s218 = scalar_lea.hbm %s1, %s217
          %s219 = sshll.u32 %s211, 4
          %s220 = int_to_ptr.vmem [resolvable:$true] %s219
          %225 = dma.hbm_to_vmem [thread:$0]  %s218, 65536, %s220, %s208, 256, 256, 16
        $region36: #{convnet_forward.3} parent=27 // pred_fallthru
          _
      $region28: #{convnet_forward.3} parent=5 // pred_fallthru
        _
      %p226 = scmp.le.s32.totalorder 1, %s16
      %p227 = scmp.lt.s32.totalorder %s16, 3
      %p228 = pnand %p226, %p227
      %p229 = pneg %p228
      // Predicated region
      $region37: #{convnet_forward.3} parent=5 // pred_check
        _
      $region38: #{convnet_forward.3} parent=5 // pred_check_branch
        %231 = sbr.rel (%p228) target = $region40
      $region39: #{convnet_forward.3} parent=5 // pred_region
        %s232 = ssub.s32 %s16, 1
        %s233 = sand.u32 %s55, 1
        %s234 = scalar_lea.sflag [#allocation4], %s233
        %s235 = sand.u32 %s55, 1
        %s236 = smul.addr %s235, 4096
        %s237 = scalar_lea.vmem [#allocation3], %s236
        // Predicated region
        $region41: #{convnet_forward.3} parent=39 // pred_check
          %p238 = pneg %p68
        $region42: #{convnet_forward.3} parent=39 // pred_check_branch
          %240 = sbr.rel (%p238) target = $region44
        $region43: #{convnet_forward.3} parent=39 // pred_region
          %241 = dma.done %s234, 65536
        $region44: #{convnet_forward.3} parent=39 // pred_fallthru
          _
        // Predicated region
        $region45: #{convnet_forward.3} parent=39 // pred_check
          %p242 = pneg %p89
        $region46: #{convnet_forward.3} parent=39 // pred_check_branch
          %244 = sbr.rel (%p242) target = $region48
        $region47: #{convnet_forward.3} parent=39 // pred_region
          %245 = dma.done [#allocation7], 64
        $region48: #{convnet_forward.3} parent=39 // pred_fallthru
          _
        // Predicated region
        $region49: #{convnet_forward.3} parent=39 // pred_check
          %p246 = pneg %p131
        $region50: #{convnet_forward.3} parent=39 // pred_check_branch
          %248 = sbr.rel (%p246) target = $region52
        $region51: #{convnet_forward.3} parent=39 // pred_region
          %249 = dma.done [#allocation7], 16
        $region52: #{convnet_forward.3} parent=39 // pred_fallthru
          _
        %s250 = smul.u32 16, %s21
        %p251 = scmp.lt.s32.totalorder %s250, 31
        %s252 = scalar_select %p251, %s250, 31
        %s253 = scalar_lea.vmem %s0, %s252
        %p254 = pneg %p42
        %p255 = pneg %p39
        %s256 = sand.u32 %s55, 1
        %s257 = scalar_lea.sflag [#allocation4], %s256
        %s258 = sand.u32 %s55, 1
        %s259 = smul.addr %s258, 4096
        %s260 = scalar_lea.vmem [#allocation3], %s259
        %p261 = pneg %p68
        %p262 = pneg %p65
        %p263 = pneg %p89
        %p264 = pneg %p86
        %p265 = pneg %p110
        %p266 = pneg %p107
        %p267 = pneg %p131
        %p268 = pneg %p128
        %p269 = pneg %p152
        %p270 = pneg %p149
        %s271 = smul.u32 16, %s21
        %p272 = scmp.lt.s32.totalorder %s271, 31
        %s273 = scalar_select %p272, %s271, 31
        %s274 = scalar_lea.vmem %s0, %s273
        %s275 = smul.u32 16, %s21
        %s276 = smul.u32 256, %s21
        %p277 = scmp.eq.s32.totalorder %s21, 0
        // Predicated region
        $region53: #{convnet_forward.3} parent=39 // pred_check
          %p278 = pneg %p277
        $region54: #{convnet_forward.3} parent=39 // pred_check_branch
          %280 = sbr.rel (%p278) target = $region56
        $region55: #{convnet_forward.3} parent=39 // pred_region
          %281 = vst [vmem:[#allocation2] sm:$0xff] 0.0
        $region56: #{convnet_forward.3} parent=39 // pred_fallthru
          _
        %v282 = vld [vmem:[#allocation2] sm:$0xff]
        %v283 = vld [vmem:[%s274] sm:$0xff]
        %v284 = vld [vmem:[%s274 + $0x8] sm:$0xff]
        %v285 = vld [vmem:[%s237] sm:$0xff]
        %v286 = vld [vmem:[%s237 + $0x8] sm:$0xff]
        %v287 = vld [vmem:[%s237 + $0x10] sm:$0xff]
        %v288 = vld [vmem:[%s237 + $0x18] sm:$0xff]
        %v289 = vld [vmem:[%s237 + $0x20] sm:$0xff]
        %v290 = vld [vmem:[%s237 + $0x28] sm:$0xff]
        %v291 = vld [vmem:[%s237 + $0x30] sm:$0xff]
        %v292 = vld [vmem:[%s237 + $0x38] sm:$0xff]
        %v293 = vld [vmem:[%s237 + $0x40] sm:$0xff]
        %v294 = vld [vmem:[%s237 + $0x48] sm:$0xff]
        %v295 = vld [vmem:[%s237 + $0x50] sm:$0xff]
        %v296 = vld [vmem:[%s237 + $0x58] sm:$0xff]
        %v297 = vld [vmem:[%s237 + $0x60] sm:$0xff]
        %v298 = vld [vmem:[%s237 + $0x68] sm:$0xff]
        %v299 = vld [vmem:[%s237 + $0x70] sm:$0xff]
        %v300 = vld [vmem:[%s237 + $0x78] sm:$0xff]
        %v301 = vld [vmem:[%s237 + $0x80] sm:$0xff]
        %v302 = vld [vmem:[%s237 + $0x88] sm:$0xff]
        %v303 = vld [vmem:[%s237 + $0x90] sm:$0xff]
        %v304 = vld [vmem:[%s237 + $0x98] sm:$0xff]
        %v305 = vld [vmem:[%s237 + $0xa0] sm:$0xff]
        %v306 = vld [vmem:[%s237 + $0xa8] sm:$0xff]
        %v307 = vld [vmem:[%s237 + $0xb0] sm:$0xff]
        %v308 = vld [vmem:[%s237 + $0xb8] sm:$0xff]
        %v309 = vld [vmem:[%s237 + $0xc0] sm:$0xff]
        %v310 = vld [vmem:[%s237 + $0xc8] sm:$0xff]
        %v311 = vld [vmem:[%s237 + $0xd0] sm:$0xff]
        %v312 = vld [vmem:[%s237 + $0xd8] sm:$0xff]
        %v313 = vld [vmem:[%s237 + $0xe0] sm:$0xff]
        %v314 = vld [vmem:[%s237 + $0xe8] sm:$0xff]
        %v315 = vld [vmem:[%s237 + $0xf0] sm:$0xff]
        %v316 = vld [vmem:[%s237 + $0xf8] sm:$0xff]
        %v317 = vld [vmem:[%s237 + $0x100] sm:$0xff]
        %v318 = vld [vmem:[%s237 + $0x108] sm:$0xff]
        %v319 = vld [vmem:[%s237 + $0x110] sm:$0xff]
        %v320 = vld [vmem:[%s237 + $0x118] sm:$0xff]
        %v321 = vld [vmem:[%s237 + $0x120] sm:$0xff]
        %v322 = vld [vmem:[%s237 + $0x128] sm:$0xff]
        %v323 = vld [vmem:[%s237 + $0x130] sm:$0xff]
        %v324 = vld [vmem:[%s237 + $0x138] sm:$0xff]
        %v325 = vld [vmem:[%s237 + $0x140] sm:$0xff]
        %v326 = vld [vmem:[%s237 + $0x148] sm:$0xff]
        %v327 = vld [vmem:[%s237 + $0x150] sm:$0xff]
        %v328 = vld [vmem:[%s237 + $0x158] sm:$0xff]
        %v329 = vld [vmem:[%s237 + $0x160] sm:$0xff]
        %v330 = vld [vmem:[%s237 + $0x168] sm:$0xff]
        %v331 = vld [vmem:[%s237 + $0x170] sm:$0xff]
        %v332 = vld [vmem:[%s237 + $0x178] sm:$0xff]
        %v333 = vld [vmem:[%s237 + $0x180] sm:$0xff]
        %v334 = vld [vmem:[%s237 + $0x188] sm:$0xff]
        %v335 = vld [vmem:[%s237 + $0x190] sm:$0xff]
        %v336 = vld [vmem:[%s237 + $0x198] sm:$0xff]
        %v337 = vld [vmem:[%s237 + $0x1a0] sm:$0xff]
        %v338 = vld [vmem:[%s237 + $0x1a8] sm:$0xff]
        %v339 = vld [vmem:[%s237 + $0x1b0] sm:$0xff]
        %v340 = vld [vmem:[%s237 + $0x1b8] sm:$0xff]
        %v341 = vld [vmem:[%s237 + $0x1c0] sm:$0xff]
        %v342 = vld [vmem:[%s237 + $0x1c8] sm:$0xff]
        %v343 = vld [vmem:[%s237 + $0x1d0] sm:$0xff]
        %v344 = vld [vmem:[%s237 + $0x1d8] sm:$0xff]
        %v345 = vld [vmem:[%s237 + $0x1e0] sm:$0xff]
        %v346 = vld [vmem:[%s237 + $0x1e8] sm:$0xff]
        %v347 = vld [vmem:[%s237 + $0x1f0] sm:$0xff]
        %v348 = vld [vmem:[%s237 + $0x1f8] sm:$0xff]
        %v349 = vld [vmem:[%s237 + $0x200] sm:$0xff]
        %v350 = vld [vmem:[%s237 + $0x208] sm:$0xff]
        %v351 = vld [vmem:[%s237 + $0x210] sm:$0xff]
        %v352 = vld [vmem:[%s237 + $0x218] sm:$0xff]
        %v353 = vld [vmem:[%s237 + $0x220] sm:$0xff]
        %v354 = vld [vmem:[%s237 + $0x228] sm:$0xff]
        %v355 = vld [vmem:[%s237 + $0x230] sm:$0xff]
        %v356 = vld [vmem:[%s237 + $0x238] sm:$0xff]
        %v357 = vld [vmem:[%s237 + $0x240] sm:$0xff]
        %v358 = vld [vmem:[%s237 + $0x248] sm:$0xff]
        %v359 = vld [vmem:[%s237 + $0x250] sm:$0xff]
        %v360 = vld [vmem:[%s237 + $0x258] sm:$0xff]
        %v361 = vld [vmem:[%s237 + $0x260] sm:$0xff]
        %v362 = vld [vmem:[%s237 + $0x268] sm:$0xff]
        %v363 = vld [vmem:[%s237 + $0x270] sm:$0xff]
        %v364 = vld [vmem:[%s237 + $0x278] sm:$0xff]
        %v365 = vld [vmem:[%s237 + $0x280] sm:$0xff]
        %v366 = vld [vmem:[%s237 + $0x288] sm:$0xff]
        %v367 = vld [vmem:[%s237 + $0x290] sm:$0xff]
        %v368 = vld [vmem:[%s237 + $0x298] sm:$0xff]
        %v369 = vld [vmem:[%s237 + $0x2a0] sm:$0xff]
        %v370 = vld [vmem:[%s237 + $0x2a8] sm:$0xff]
        %v371 = vld [vmem:[%s237 + $0x2b0] sm:$0xff]
        %v372 = vld [vmem:[%s237 + $0x2b8] sm:$0xff]
        %v373 = vld [vmem:[%s237 + $0x2c0] sm:$0xff]
        %v374 = vld [vmem:[%s237 + $0x2c8] sm:$0xff]
        %v375 = vld [vmem:[%s237 + $0x2d0] sm:$0xff]
        %v376 = vld [vmem:[%s237 + $0x2d8] sm:$0xff]
        %v377 = vld [vmem:[%s237 + $0x2e0] sm:$0xff]
        %v378 = vld [vmem:[%s237 + $0x2e8] sm:$0xff]
        %v379 = vld [vmem:[%s237 + $0x2f0] sm:$0xff]
        %v380 = vld [vmem:[%s237 + $0x2f8] sm:$0xff]
        %v381 = vld [vmem:[%s237 + $0x300] sm:$0xff]
        %v382 = vld [vmem:[%s237 + $0x308] sm:$0xff]
        %v383 = vld [vmem:[%s237 + $0x310] sm:$0xff]
        %v384 = vld [vmem:[%s237 + $0x318] sm:$0xff]
        %v385 = vld [vmem:[%s237 + $0x320] sm:$0xff]
        %v386 = vld [vmem:[%s237 + $0x328] sm:$0xff]
        %v387 = vld [vmem:[%s237 + $0x330] sm:$0xff]
        %v388 = vld [vmem:[%s237 + $0x338] sm:$0xff]
        %v389 = vld [vmem:[%s237 + $0x340] sm:$0xff]
        %v390 = vld [vmem:[%s237 + $0x348] sm:$0xff]
        %v391 = vld [vmem:[%s237 + $0x350] sm:$0xff]
        %v392 = vld [vmem:[%s237 + $0x358] sm:$0xff]
        %v393 = vld [vmem:[%s237 + $0x360] sm:$0xff]
        %v394 = vld [vmem:[%s237 + $0x368] sm:$0xff]
        %v395 = vld [vmem:[%s237 + $0x370] sm:$0xff]
        %v396 = vld [vmem:[%s237 + $0x378] sm:$0xff]
        %v397 = vld [vmem:[%s237 + $0x380] sm:$0xff]
        %v398 = vld [vmem:[%s237 + $0x388] sm:$0xff]
        %v399 = vld [vmem:[%s237 + $0x390] sm:$0xff]
        %v400 = vld [vmem:[%s237 + $0x398] sm:$0xff]
        %v401 = vld [vmem:[%s237 + $0x3a0] sm:$0xff]
        %v402 = vld [vmem:[%s237 + $0x3a8] sm:$0xff]
        %v403 = vld [vmem:[%s237 + $0x3b0] sm:$0xff]
        %v404 = vld [vmem:[%s237 + $0x3b8] sm:$0xff]
        %v405 = vld [vmem:[%s237 + $0x3c0] sm:$0xff]
        %v406 = vld [vmem:[%s237 + $0x3c8] sm:$0xff]
        %v407 = vld [vmem:[%s237 + $0x3d0] sm:$0xff]
        %v408 = vld [vmem:[%s237 + $0x3d8] sm:$0xff]
        %v409 = vld [vmem:[%s237 + $0x3e0] sm:$0xff]
        %v410 = vld [vmem:[%s237 + $0x3e8] sm:$0xff]
        %v411 = vld [vmem:[%s237 + $0x3f0] sm:$0xff]
        %v412 = vld [vmem:[%s237 + $0x3f8] sm:$0xff]
        %v413 = vld [vmem:[%s237 + $0x400] sm:$0xff]
        %v414 = vld [vmem:[%s237 + $0x408] sm:$0xff]
        %v415 = vld [vmem:[%s237 + $0x410] sm:$0xff]
        %v416 = vld [vmem:[%s237 + $0x418] sm:$0xff]
        %v417 = vld [vmem:[%s237 + $0x420] sm:$0xff]
        %v418 = vld [vmem:[%s237 + $0x428] sm:$0xff]
        %v419 = vld [vmem:[%s237 + $0x430] sm:$0xff]
        %v420 = vld [vmem:[%s237 + $0x438] sm:$0xff]
        %v421 = vld [vmem:[%s237 + $0x440] sm:$0xff]
        %v422 = vld [vmem:[%s237 + $0x448] sm:$0xff]
        %v423 = vld [vmem:[%s237 + $0x450] sm:$0xff]
        %v424 = vld [vmem:[%s237 + $0x458] sm:$0xff]
        %v425 = vld [vmem:[%s237 + $0x460] sm:$0xff]
        %v426 = vld [vmem:[%s237 + $0x468] sm:$0xff]
        %v427 = vld [vmem:[%s237 + $0x470] sm:$0xff]
        %v428 = vld [vmem:[%s237 + $0x478] sm:$0xff]
        %v429 = vld [vmem:[%s237 + $0x480] sm:$0xff]
        %v430 = vld [vmem:[%s237 + $0x488] sm:$0xff]
        %v431 = vld [vmem:[%s237 + $0x490] sm:$0xff]
        %v432 = vld [vmem:[%s237 + $0x498] sm:$0xff]
        %v433 = vld [vmem:[%s237 + $0x4a0] sm:$0xff]
        %v434 = vld [vmem:[%s237 + $0x4a8] sm:$0xff]
        %v435 = vld [vmem:[%s237 + $0x4b0] sm:$0xff]
        %v436 = vld [vmem:[%s237 + $0x4b8] sm:$0xff]
        %v437 = vld [vmem:[%s237 + $0x4c0] sm:$0xff]
        %v438 = vld [vmem:[%s237 + $0x4c8] sm:$0xff]
        %v439 = vld [vmem:[%s237 + $0x4d0] sm:$0xff]
        %v440 = vld [vmem:[%s237 + $0x4d8] sm:$0xff]
        %v441 = vld [vmem:[%s237 + $0x4e0] sm:$0xff]
        %v442 = vld [vmem:[%s237 + $0x4e8] sm:$0xff]
        %v443 = vld [vmem:[%s237 + $0x4f0] sm:$0xff]
        %v444 = vld [vmem:[%s237 + $0x4f8] sm:$0xff]
        %v445 = vld [vmem:[%s237 + $0x500] sm:$0xff]
        %v446 = vld [vmem:[%s237 + $0x508] sm:$0xff]
        %v447 = vld [vmem:[%s237 + $0x510] sm:$0xff]
        %v448 = vld [vmem:[%s237 + $0x518] sm:$0xff]
        %v449 = vld [vmem:[%s237 + $0x520] sm:$0xff]
        %v450 = vld [vmem:[%s237 + $0x528] sm:$0xff]
        %v451 = vld [vmem:[%s237 + $0x530] sm:$0xff]
        %v452 = vld [vmem:[%s237 + $0x538] sm:$0xff]
        %v453 = vld [vmem:[%s237 + $0x540] sm:$0xff]
        %v454 = vld [vmem:[%s237 + $0x548] sm:$0xff]
        %v455 = vld [vmem:[%s237 + $0x550] sm:$0xff]
        %v456 = vld [vmem:[%s237 + $0x558] sm:$0xff]
        %v457 = vld [vmem:[%s237 + $0x560] sm:$0xff]
        %v458 = vld [vmem:[%s237 + $0x568] sm:$0xff]
        %v459 = vld [vmem:[%s237 + $0x570] sm:$0xff]
        %v460 = vld [vmem:[%s237 + $0x578] sm:$0xff]
        %v461 = vld [vmem:[%s237 + $0x580] sm:$0xff]
        %v462 = vld [vmem:[%s237 + $0x588] sm:$0xff]
        %v463 = vld [vmem:[%s237 + $0x590] sm:$0xff]
        %v464 = vld [vmem:[%s237 + $0x598] sm:$0xff]
        %v465 = vld [vmem:[%s237 + $0x5a0] sm:$0xff]
        %v466 = vld [vmem:[%s237 + $0x5a8] sm:$0xff]
        %v467 = vld [vmem:[%s237 + $0x5b0] sm:$0xff]
        %v468 = vld [vmem:[%s237 + $0x5b8] sm:$0xff]
        %v469 = vld [vmem:[%s237 + $0x5c0] sm:$0xff]
        %v470 = vld [vmem:[%s237 + $0x5c8] sm:$0xff]
        %v471 = vld [vmem:[%s237 + $0x5d0] sm:$0xff]
        %v472 = vld [vmem:[%s237 + $0x5d8] sm:$0xff]
        %v473 = vld [vmem:[%s237 + $0x5e0] sm:$0xff]
        %v474 = vld [vmem:[%s237 + $0x5e8] sm:$0xff]
        %v475 = vld [vmem:[%s237 + $0x5f0] sm:$0xff]
        %v476 = vld [vmem:[%s237 + $0x5f8] sm:$0xff]
        %v477 = vld [vmem:[%s237 + $0x600] sm:$0xff]
        %v478 = vld [vmem:[%s237 + $0x608] sm:$0xff]
        %v479 = vld [vmem:[%s237 + $0x610] sm:$0xff]
        %v480 = vld [vmem:[%s237 + $0x618] sm:$0xff]
        %v481 = vld [vmem:[%s237 + $0x620] sm:$0xff]
        %v482 = vld [vmem:[%s237 + $0x628] sm:$0xff]
        %v483 = vld [vmem:[%s237 + $0x630] sm:$0xff]
        %v484 = vld [vmem:[%s237 + $0x638] sm:$0xff]
        %v485 = vld [vmem:[%s237 + $0x640] sm:$0xff]
        %v486 = vld [vmem:[%s237 + $0x648] sm:$0xff]
        %v487 = vld [vmem:[%s237 + $0x650] sm:$0xff]
        %v488 = vld [vmem:[%s237 + $0x658] sm:$0xff]
        %v489 = vld [vmem:[%s237 + $0x660] sm:$0xff]
        %v490 = vld [vmem:[%s237 + $0x668] sm:$0xff]
        %v491 = vld [vmem:[%s237 + $0x670] sm:$0xff]
        %v492 = vld [vmem:[%s237 + $0x678] sm:$0xff]
        %v493 = vld [vmem:[%s237 + $0x680] sm:$0xff]
        %v494 = vld [vmem:[%s237 + $0x688] sm:$0xff]
        %v495 = vld [vmem:[%s237 + $0x690] sm:$0xff]
        %v496 = vld [vmem:[%s237 + $0x698] sm:$0xff]
        %v497 = vld [vmem:[%s237 + $0x6a0] sm:$0xff]
        %v498 = vld [vmem:[%s237 + $0x6a8] sm:$0xff]
        %v499 = vld [vmem:[%s237 + $0x6b0] sm:$0xff]
        %v500 = vld [vmem:[%s237 + $0x6b8] sm:$0xff]
        %v501 = vld [vmem:[%s237 + $0x6c0] sm:$0xff]
        %v502 = vld [vmem:[%s237 + $0x6c8] sm:$0xff]
        %v503 = vld [vmem:[%s237 + $0x6d0] sm:$0xff]
        %v504 = vld [vmem:[%s237 + $0x6d8] sm:$0xff]
        %v505 = vld [vmem:[%s237 + $0x6e0] sm:$0xff]
        %v506 = vld [vmem:[%s237 + $0x6e8] sm:$0xff]
        %v507 = vld [vmem:[%s237 + $0x6f0] sm:$0xff]
        %v508 = vld [vmem:[%s237 + $0x6f8] sm:$0xff]
        %v509 = vld [vmem:[%s237 + $0x700] sm:$0xff]
        %v510 = vld [vmem:[%s237 + $0x708] sm:$0xff]
        %v511 = vld [vmem:[%s237 + $0x710] sm:$0xff]
        %v512 = vld [vmem:[%s237 + $0x718] sm:$0xff]
        %v513 = vld [vmem:[%s237 + $0x720] sm:$0xff]
        %v514 = vld [vmem:[%s237 + $0x728] sm:$0xff]
        %v515 = vld [vmem:[%s237 + $0x730] sm:$0xff]
        %v516 = vld [vmem:[%s237 + $0x738] sm:$0xff]
        %v517 = vld [vmem:[%s237 + $0x740] sm:$0xff]
        %v518 = vld [vmem:[%s237 + $0x748] sm:$0xff]
        %v519 = vld [vmem:[%s237 + $0x750] sm:$0xff]
        %v520 = vld [vmem:[%s237 + $0x758] sm:$0xff]
        %v521 = vld [vmem:[%s237 + $0x760] sm:$0xff]
        %v522 = vld [vmem:[%s237 + $0x768] sm:$0xff]
        %v523 = vld [vmem:[%s237 + $0x770] sm:$0xff]
        %v524 = vld [vmem:[%s237 + $0x778] sm:$0xff]
        %v525 = vld [vmem:[%s237 + $0x780] sm:$0xff]
        %v526 = vld [vmem:[%s237 + $0x788] sm:$0xff]
        %v527 = vld [vmem:[%s237 + $0x790] sm:$0xff]
        %v528 = vld [vmem:[%s237 + $0x798] sm:$0xff]
        %v529 = vld [vmem:[%s237 + $0x7a0] sm:$0xff]
        %v530 = vld [vmem:[%s237 + $0x7a8] sm:$0xff]
        %v531 = vld [vmem:[%s237 + $0x7b0] sm:$0xff]
        %v532 = vld [vmem:[%s237 + $0x7b8] sm:$0xff]
        %v533 = vld [vmem:[%s237 + $0x7c0] sm:$0xff]
        %v534 = vld [vmem:[%s237 + $0x7c8] sm:$0xff]
        %v535 = vld [vmem:[%s237 + $0x7d0] sm:$0xff]
        %v536 = vld [vmem:[%s237 + $0x7d8] sm:$0xff]
        %v537 = vld [vmem:[%s237 + $0x7e0] sm:$0xff]
        %v538 = vld [vmem:[%s237 + $0x7e8] sm:$0xff]
        %v539 = vld [vmem:[%s237 + $0x7f0] sm:$0xff]
        %v540 = vld [vmem:[%s237 + $0x7f8] sm:$0xff]
        %v541 = vld [vmem:[%s237 + $0x800] sm:$0xff]
        %v542 = vld [vmem:[%s237 + $0x808] sm:$0xff]
        %v543 = vld [vmem:[%s237 + $0x810] sm:$0xff]
        %v544 = vld [vmem:[%s237 + $0x818] sm:$0xff]
        %v545 = vld [vmem:[%s237 + $0x820] sm:$0xff]
        %v546 = vld [vmem:[%s237 + $0x828] sm:$0xff]
        %v547 = vld [vmem:[%s237 + $0x830] sm:$0xff]
        %v548 = vld [vmem:[%s237 + $0x838] sm:$0xff]
        %v549 = vld [vmem:[%s237 + $0x840] sm:$0xff]
        %v550 = vld [vmem:[%s237 + $0x848] sm:$0xff]
        %v551 = vld [vmem:[%s237 + $0x850] sm:$0xff]
        %v552 = vld [vmem:[%s237 + $0x858] sm:$0xff]
        %v553 = vld [vmem:[%s237 + $0x860] sm:$0xff]
        %v554 = vld [vmem:[%s237 + $0x868] sm:$0xff]
        %v555 = vld [vmem:[%s237 + $0x870] sm:$0xff]
        %v556 = vld [vmem:[%s237 + $0x878] sm:$0xff]
        %v557 = vld [vmem:[%s237 + $0x880] sm:$0xff]
        %v558 = vld [vmem:[%s237 + $0x888] sm:$0xff]
        %v559 = vld [vmem:[%s237 + $0x890] sm:$0xff]
        %v560 = vld [vmem:[%s237 + $0x898] sm:$0xff]
        %v561 = vld [vmem:[%s237 + $0x8a0] sm:$0xff]
        %v562 = vld [vmem:[%s237 + $0x8a8] sm:$0xff]
        %v563 = vld [vmem:[%s237 + $0x8b0] sm:$0xff]
        %v564 = vld [vmem:[%s237 + $0x8b8] sm:$0xff]
        %v565 = vld [vmem:[%s237 + $0x8c0] sm:$0xff]
        %v566 = vld [vmem:[%s237 + $0x8c8] sm:$0xff]
        %v567 = vld [vmem:[%s237 + $0x8d0] sm:$0xff]
        %v568 = vld [vmem:[%s237 + $0x8d8] sm:$0xff]
        %v569 = vld [vmem:[%s237 + $0x8e0] sm:$0xff]
        %v570 = vld [vmem:[%s237 + $0x8e8] sm:$0xff]
        %v571 = vld [vmem:[%s237 + $0x8f0] sm:$0xff]
        %v572 = vld [vmem:[%s237 + $0x8f8] sm:$0xff]
        %v573 = vld [vmem:[%s237 + $0x900] sm:$0xff]
        %v574 = vld [vmem:[%s237 + $0x908] sm:$0xff]
        %v575 = vld [vmem:[%s237 + $0x910] sm:$0xff]
        %v576 = vld [vmem:[%s237 + $0x918] sm:$0xff]
        %v577 = vld [vmem:[%s237 + $0x920] sm:$0xff]
        %v578 = vld [vmem:[%s237 + $0x928] sm:$0xff]
        %v579 = vld [vmem:[%s237 + $0x930] sm:$0xff]
        %v580 = vld [vmem:[%s237 + $0x938] sm:$0xff]
        %v581 = vld [vmem:[%s237 + $0x940] sm:$0xff]
        %v582 = vld [vmem:[%s237 + $0x948] sm:$0xff]
        %v583 = vld [vmem:[%s237 + $0x950] sm:$0xff]
        %v584 = vld [vmem:[%s237 + $0x958] sm:$0xff]
        %v585 = vld [vmem:[%s237 + $0x960] sm:$0xff]
        %v586 = vld [vmem:[%s237 + $0x968] sm:$0xff]
        %v587 = vld [vmem:[%s237 + $0x970] sm:$0xff]
        %v588 = vld [vmem:[%s237 + $0x978] sm:$0xff]
        %v589 = vld [vmem:[%s237 + $0x980] sm:$0xff]
        %v590 = vld [vmem:[%s237 + $0x988] sm:$0xff]
        %v591 = vld [vmem:[%s237 + $0x990] sm:$0xff]
        %v592 = vld [vmem:[%s237 + $0x998] sm:$0xff]
        %v593 = vld [vmem:[%s237 + $0x9a0] sm:$0xff]
        %v594 = vld [vmem:[%s237 + $0x9a8] sm:$0xff]
        %v595 = vld [vmem:[%s237 + $0x9b0] sm:$0xff]
        %v596 = vld [vmem:[%s237 + $0x9b8] sm:$0xff]
        %v597 = vld [vmem:[%s237 + $0x9c0] sm:$0xff]
        %v598 = vld [vmem:[%s237 + $0x9c8] sm:$0xff]
        %v599 = vld [vmem:[%s237 + $0x9d0] sm:$0xff]
        %v600 = vld [vmem:[%s237 + $0x9d8] sm:$0xff]
        %v601 = vld [vmem:[%s237 + $0x9e0] sm:$0xff]
        %v602 = vld [vmem:[%s237 + $0x9e8] sm:$0xff]
        %v603 = vld [vmem:[%s237 + $0x9f0] sm:$0xff]
        %v604 = vld [vmem:[%s237 + $0x9f8] sm:$0xff]
        %v605 = vld [vmem:[%s237 + $0xa00] sm:$0xff]
        %v606 = vld [vmem:[%s237 + $0xa08] sm:$0xff]
        %v607 = vld [vmem:[%s237 + $0xa10] sm:$0xff]
        %v608 = vld [vmem:[%s237 + $0xa18] sm:$0xff]
        %v609 = vld [vmem:[%s237 + $0xa20] sm:$0xff]
        %v610 = vld [vmem:[%s237 + $0xa28] sm:$0xff]
        %v611 = vld [vmem:[%s237 + $0xa30] sm:$0xff]
        %v612 = vld [vmem:[%s237 + $0xa38] sm:$0xff]
        %v613 = vld [vmem:[%s237 + $0xa40] sm:$0xff]
        %v614 = vld [vmem:[%s237 + $0xa48] sm:$0xff]
        %v615 = vld [vmem:[%s237 + $0xa50] sm:$0xff]
        %v616 = vld [vmem:[%s237 + $0xa58] sm:$0xff]
        %v617 = vld [vmem:[%s237 + $0xa60] sm:$0xff]
        %v618 = vld [vmem:[%s237 + $0xa68] sm:$0xff]
        %v619 = vld [vmem:[%s237 + $0xa70] sm:$0xff]
        %v620 = vld [vmem:[%s237 + $0xa78] sm:$0xff]
        %v621 = vld [vmem:[%s237 + $0xa80] sm:$0xff]
        %v622 = vld [vmem:[%s237 + $0xa88] sm:$0xff]
        %v623 = vld [vmem:[%s237 + $0xa90] sm:$0xff]
        %v624 = vld [vmem:[%s237 + $0xa98] sm:$0xff]
        %v625 = vld [vmem:[%s237 + $0xaa0] sm:$0xff]
        %v626 = vld [vmem:[%s237 + $0xaa8] sm:$0xff]
        %v627 = vld [vmem:[%s237 + $0xab0] sm:$0xff]
        %v628 = vld [vmem:[%s237 + $0xab8] sm:$0xff]
        %v629 = vld [vmem:[%s237 + $0xac0] sm:$0xff]
        %v630 = vld [vmem:[%s237 + $0xac8] sm:$0xff]
        %v631 = vld [vmem:[%s237 + $0xad0] sm:$0xff]
        %v632 = vld [vmem:[%s237 + $0xad8] sm:$0xff]
        %v633 = vld [vmem:[%s237 + $0xae0] sm:$0xff]
        %v634 = vld [vmem:[%s237 + $0xae8] sm:$0xff]
        %v635 = vld [vmem:[%s237 + $0xaf0] sm:$0xff]
        %v636 = vld [vmem:[%s237 + $0xaf8] sm:$0xff]
        %v637 = vld [vmem:[%s237 + $0xb00] sm:$0xff]
        %v638 = vld [vmem:[%s237 + $0xb08] sm:$0xff]
        %v639 = vld [vmem:[%s237 + $0xb10] sm:$0xff]
        %v640 = vld [vmem:[%s237 + $0xb18] sm:$0xff]
        %v641 = vld [vmem:[%s237 + $0xb20] sm:$0xff]
        %v642 = vld [vmem:[%s237 + $0xb28] sm:$0xff]
        %v643 = vld [vmem:[%s237 + $0xb30] sm:$0xff]
        %v644 = vld [vmem:[%s237 + $0xb38] sm:$0xff]
        %v645 = vld [vmem:[%s237 + $0xb40] sm:$0xff]
        %v646 = vld [vmem:[%s237 + $0xb48] sm:$0xff]
        %v647 = vld [vmem:[%s237 + $0xb50] sm:$0xff]
        %v648 = vld [vmem:[%s237 + $0xb58] sm:$0xff]
        %v649 = vld [vmem:[%s237 + $0xb60] sm:$0xff]
        %v650 = vld [vmem:[%s237 + $0xb68] sm:$0xff]
        %v651 = vld [vmem:[%s237 + $0xb70] sm:$0xff]
        %v652 = vld [vmem:[%s237 + $0xb78] sm:$0xff]
        %v653 = vld [vmem:[%s237 + $0xb80] sm:$0xff]
        %v654 = vld [vmem:[%s237 + $0xb88] sm:$0xff]
        %v655 = vld [vmem:[%s237 + $0xb90] sm:$0xff]
        %v656 = vld [vmem:[%s237 + $0xb98] sm:$0xff]
        %v657 = vld [vmem:[%s237 + $0xba0] sm:$0xff]
        %v658 = vld [vmem:[%s237 + $0xba8] sm:$0xff]
        %v659 = vld [vmem:[%s237 + $0xbb0] sm:$0xff]
        %v660 = vld [vmem:[%s237 + $0xbb8] sm:$0xff]
        %v661 = vld [vmem:[%s237 + $0xbc0] sm:$0xff]
        %v662 = vld [vmem:[%s237 + $0xbc8] sm:$0xff]
        %v663 = vld [vmem:[%s237 + $0xbd0] sm:$0xff]
        %v664 = vld [vmem:[%s237 + $0xbd8] sm:$0xff]
        %v665 = vld [vmem:[%s237 + $0xbe0] sm:$0xff]
        %v666 = vld [vmem:[%s237 + $0xbe8] sm:$0xff]
        %v667 = vld [vmem:[%s237 + $0xbf0] sm:$0xff]
        %v668 = vld [vmem:[%s237 + $0xbf8] sm:$0xff]
        %v669 = vld [vmem:[%s237 + $0xc00] sm:$0xff]
        %v670 = vld [vmem:[%s237 + $0xc08] sm:$0xff]
        %v671 = vld [vmem:[%s237 + $0xc10] sm:$0xff]
        %v672 = vld [vmem:[%s237 + $0xc18] sm:$0xff]
        %v673 = vld [vmem:[%s237 + $0xc20] sm:$0xff]
        %v674 = vld [vmem:[%s237 + $0xc28] sm:$0xff]
        %v675 = vld [vmem:[%s237 + $0xc30] sm:$0xff]
        %v676 = vld [vmem:[%s237 + $0xc38] sm:$0xff]
        %v677 = vld [vmem:[%s237 + $0xc40] sm:$0xff]
        %v678 = vld [vmem:[%s237 + $0xc48] sm:$0xff]
        %v679 = vld [vmem:[%s237 + $0xc50] sm:$0xff]
        %v680 = vld [vmem:[%s237 + $0xc58] sm:$0xff]
        %v681 = vld [vmem:[%s237 + $0xc60] sm:$0xff]
        %v682 = vld [vmem:[%s237 + $0xc68] sm:$0xff]
        %v683 = vld [vmem:[%s237 + $0xc70] sm:$0xff]
        %v684 = vld [vmem:[%s237 + $0xc78] sm:$0xff]
        %v685 = vld [vmem:[%s237 + $0xc80] sm:$0xff]
        %v686 = vld [vmem:[%s237 + $0xc88] sm:$0xff]
        %v687 = vld [vmem:[%s237 + $0xc90] sm:$0xff]
        %v688 = vld [vmem:[%s237 + $0xc98] sm:$0xff]
        %v689 = vld [vmem:[%s237 + $0xca0] sm:$0xff]
        %v690 = vld [vmem:[%s237 + $0xca8] sm:$0xff]
        %v691 = vld [vmem:[%s237 + $0xcb0] sm:$0xff]
        %v692 = vld [vmem:[%s237 + $0xcb8] sm:$0xff]
        %v693 = vld [vmem:[%s237 + $0xcc0] sm:$0xff]
        %v694 = vld [vmem:[%s237 + $0xcc8] sm:$0xff]
        %v695 = vld [vmem:[%s237 + $0xcd0] sm:$0xff]
        %v696 = vld [vmem:[%s237 + $0xcd8] sm:$0xff]
        %v697 = vld [vmem:[%s237 + $0xce0] sm:$0xff]
        %v698 = vld [vmem:[%s237 + $0xce8] sm:$0xff]
        %v699 = vld [vmem:[%s237 + $0xcf0] sm:$0xff]
        %v700 = vld [vmem:[%s237 + $0xcf8] sm:$0xff]
        %v701 = vld [vmem:[%s237 + $0xd00] sm:$0xff]
        %v702 = vld [vmem:[%s237 + $0xd08] sm:$0xff]
        %v703 = vld [vmem:[%s237 + $0xd10] sm:$0xff]
        %v704 = vld [vmem:[%s237 + $0xd18] sm:$0xff]
        %v705 = vld [vmem:[%s237 + $0xd20] sm:$0xff]
        %v706 = vld [vmem:[%s237 + $0xd28] sm:$0xff]
        %v707 = vld [vmem:[%s237 + $0xd30] sm:$0xff]
        %v708 = vld [vmem:[%s237 + $0xd38] sm:$0xff]
        %v709 = vld [vmem:[%s237 + $0xd40] sm:$0xff]
        %v710 = vld [vmem:[%s237 + $0xd48] sm:$0xff]
        %v711 = vld [vmem:[%s237 + $0xd50] sm:$0xff]
        %v712 = vld [vmem:[%s237 + $0xd58] sm:$0xff]
        %v713 = vld [vmem:[%s237 + $0xd60] sm:$0xff]
        %v714 = vld [vmem:[%s237 + $0xd68] sm:$0xff]
        %v715 = vld [vmem:[%s237 + $0xd70] sm:$0xff]
        %v716 = vld [vmem:[%s237 + $0xd78] sm:$0xff]
        %v717 = vld [vmem:[%s237 + $0xd80] sm:$0xff]
        %v718 = vld [vmem:[%s237 + $0xd88] sm:$0xff]
        %v719 = vld [vmem:[%s237 + $0xd90] sm:$0xff]
        %v720 = vld [vmem:[%s237 + $0xd98] sm:$0xff]
        %v721 = vld [vmem:[%s237 + $0xda0] sm:$0xff]
        %v722 = vld [vmem:[%s237 + $0xda8] sm:$0xff]
        %v723 = vld [vmem:[%s237 + $0xdb0] sm:$0xff]
        %v724 = vld [vmem:[%s237 + $0xdb8] sm:$0xff]
        %v725 = vld [vmem:[%s237 + $0xdc0] sm:$0xff]
        %v726 = vld [vmem:[%s237 + $0xdc8] sm:$0xff]
        %v727 = vld [vmem:[%s237 + $0xdd0] sm:$0xff]
        %v728 = vld [vmem:[%s237 + $0xdd8] sm:$0xff]
        %v729 = vld [vmem:[%s237 + $0xde0] sm:$0xff]
        %v730 = vld [vmem:[%s237 + $0xde8] sm:$0xff]
        %v731 = vld [vmem:[%s237 + $0xdf0] sm:$0xff]
        %v732 = vld [vmem:[%s237 + $0xdf8] sm:$0xff]
        %v733 = vld [vmem:[%s237 + $0xe00] sm:$0xff]
        %v734 = vld [vmem:[%s237 + $0xe08] sm:$0xff]
        %v735 = vld [vmem:[%s237 + $0xe10] sm:$0xff]
        %v736 = vld [vmem:[%s237 + $0xe18] sm:$0xff]
        %v737 = vld [vmem:[%s237 + $0xe20] sm:$0xff]
        %v738 = vld [vmem:[%s237 + $0xe28] sm:$0xff]
        %v739 = vld [vmem:[%s237 + $0xe30] sm:$0xff]
        %v740 = vld [vmem:[%s237 + $0xe38] sm:$0xff]
        %v741 = vld [vmem:[%s237 + $0xe40] sm:$0xff]
        %v742 = vld [vmem:[%s237 + $0xe48] sm:$0xff]
        %v743 = vld [vmem:[%s237 + $0xe50] sm:$0xff]
        %v744 = vld [vmem:[%s237 + $0xe58] sm:$0xff]
        %v745 = vld [vmem:[%s237 + $0xe60] sm:$0xff]
        %v746 = vld [vmem:[%s237 + $0xe68] sm:$0xff]
        %v747 = vld [vmem:[%s237 + $0xe70] sm:$0xff]
        %v748 = vld [vmem:[%s237 + $0xe78] sm:$0xff]
        %v749 = vld [vmem:[%s237 + $0xe80] sm:$0xff]
        %v750 = vld [vmem:[%s237 + $0xe88] sm:$0xff]
        %v751 = vld [vmem:[%s237 + $0xe90] sm:$0xff]
        %v752 = vld [vmem:[%s237 + $0xe98] sm:$0xff]
        %v753 = vld [vmem:[%s237 + $0xea0] sm:$0xff]
        %v754 = vld [vmem:[%s237 + $0xea8] sm:$0xff]
        %v755 = vld [vmem:[%s237 + $0xeb0] sm:$0xff]
        %v756 = vld [vmem:[%s237 + $0xeb8] sm:$0xff]
        %v757 = vld [vmem:[%s237 + $0xec0] sm:$0xff]
        %v758 = vld [vmem:[%s237 + $0xec8] sm:$0xff]
        %v759 = vld [vmem:[%s237 + $0xed0] sm:$0xff]
        %v760 = vld [vmem:[%s237 + $0xed8] sm:$0xff]
        %v761 = vld [vmem:[%s237 + $0xee0] sm:$0xff]
        %v762 = vld [vmem:[%s237 + $0xee8] sm:$0xff]
        %v763 = vld [vmem:[%s237 + $0xef0] sm:$0xff]
        %v764 = vld [vmem:[%s237 + $0xef8] sm:$0xff]
        %v765 = vld [vmem:[%s237 + $0xf00] sm:$0xff]
        %v766 = vld [vmem:[%s237 + $0xf08] sm:$0xff]
        %v767 = vld [vmem:[%s237 + $0xf10] sm:$0xff]
        %v768 = vld [vmem:[%s237 + $0xf18] sm:$0xff]
        %v769 = vld [vmem:[%s237 + $0xf20] sm:$0xff]
        %v770 = vld [vmem:[%s237 + $0xf28] sm:$0xff]
        %v771 = vld [vmem:[%s237 + $0xf30] sm:$0xff]
        %v772 = vld [vmem:[%s237 + $0xf38] sm:$0xff]
        %v773 = vld [vmem:[%s237 + $0xf40] sm:$0xff]
        %v774 = vld [vmem:[%s237 + $0xf48] sm:$0xff]
        %v775 = vld [vmem:[%s237 + $0xf50] sm:$0xff]
        %v776 = vld [vmem:[%s237 + $0xf58] sm:$0xff]
        %v777 = vld [vmem:[%s237 + $0xf60] sm:$0xff]
        %v778 = vld [vmem:[%s237 + $0xf68] sm:$0xff]
        %v779 = vld [vmem:[%s237 + $0xf70] sm:$0xff]
        %v780 = vld [vmem:[%s237 + $0xf78] sm:$0xff]
        %v781 = vld [vmem:[%s237 + $0xf80] sm:$0xff]
        %v782 = vld [vmem:[%s237 + $0xf88] sm:$0xff]
        %v783 = vld [vmem:[%s237 + $0xf90] sm:$0xff]
        %v784 = vld [vmem:[%s237 + $0xf98] sm:$0xff]
        %v785 = vld [vmem:[%s237 + $0xfa0] sm:$0xff]
        %v786 = vld [vmem:[%s237 + $0xfa8] sm:$0xff]
        %v787 = vld [vmem:[%s237 + $0xfb0] sm:$0xff]
        %v788 = vld [vmem:[%s237 + $0xfb8] sm:$0xff]
        %v789 = vld [vmem:[%s237 + $0xfc0] sm:$0xff]
        %v790 = vld [vmem:[%s237 + $0xfc8] sm:$0xff]
        %v791 = vld [vmem:[%s237 + $0xfd0] sm:$0xff]
        %v792 = vld [vmem:[%s237 + $0xfd8] sm:$0xff]
        %v793 = vld [vmem:[%s237 + $0xfe0] sm:$0xff]
        %v794 = vld [vmem:[%s237 + $0xfe8] sm:$0xff]
        %v795 = vld [vmem:[%s237 + $0xff0] sm:$0xff]
        %v796 = vld [vmem:[%s237 + $0xff8] sm:$0xff]
        %v799 = vcombine.high %v283, %v283
        %v801 = vunpack.c.l.s4 1966171168
        %v802 = vunpack.c.0.s8 %v801
        %v803 = vlaneseq
        %v804 = vshrl.u32 %v803, 7
        %v805 = vsub.s32 %v802, %v804
        %v806 = vrot.slane %v283, %v805
        %v808 = vunpack.c.l.s4 1966171168
        %v809 = vunpack.c.0.s8 %v808
        %v810 = vlaneseq
        %v811 = vshrl.u32 %v810, 7
        %v812 = vsub.s32 %v809, %v811
        %v813 = vrot.slane %v799, %v812
        %v814 = vcombine.high %v806, %v806
        %v815 = vcombine.high %v813, %v813
        %v817 = vunpack.c.l.s4 1966171168
        %v818 = vunpack.c.0.s8 %v817
        %v819 = vlaneseq
        %v820 = vshrl.u32 %v819, 7
        %v821 = vsub.s32 %v818, %v820
        %v822 = vrot.slane %v806, %v821
        %v824 = vunpack.c.l.s4 1966171168
        %v825 = vunpack.c.0.s8 %v824
        %v826 = vlaneseq
        %v827 = vshrl.u32 %v826, 7
        %v828 = vsub.s32 %v825, %v827
        %v829 = vrot.slane %v813, %v828
        %v831 = vunpack.c.l.s4 1966171168
        %v832 = vunpack.c.0.s8 %v831
        %v833 = vlaneseq
        %v834 = vshrl.u32 %v833, 7
        %v835 = vsub.s32 %v832, %v834
        %v836 = vrot.slane %v814, %v835
        %v838 = vunpack.c.l.s4 1966171168
        %v839 = vunpack.c.0.s8 %v838
        %v840 = vlaneseq
        %v841 = vshrl.u32 %v840, 7
        %v842 = vsub.s32 %v839, %v841
        %v843 = vrot.slane %v815, %v842
        %v844 = vcombine.high %v822, %v822
        %v845 = vcombine.high %v829, %v829
        %v846 = vcombine.high %v836, %v836
        %v847 = vcombine.high %v843, %v843
        %v848 = vcombine.high %v284, %v284
        %v850 = vunpack.c.l.s4 1966171168
        %v851 = vunpack.c.0.s8 %v850
        %v852 = vlaneseq
        %v853 = vshrl.u32 %v852, 7
        %v854 = vsub.s32 %v851, %v853
        %v855 = vrot.slane %v284, %v854
        %v857 = vunpack.c.l.s4 1966171168
        %v858 = vunpack.c.0.s8 %v857
        %v859 = vlaneseq
        %v860 = vshrl.u32 %v859, 7
        %v861 = vsub.s32 %v858, %v860
        %v862 = vrot.slane %v848, %v861
        %v863 = vcombine.high %v855, %v855
        %v864 = vcombine.high %v862, %v862
        %v866 = vunpack.c.l.s4 1966171168
        %v867 = vunpack.c.0.s8 %v866
        %v868 = vlaneseq
        %v869 = vshrl.u32 %v868, 7
        %v870 = vsub.s32 %v867, %v869
        %v871 = vrot.slane %v855, %v870
        %v873 = vunpack.c.l.s4 1966171168
        %v874 = vunpack.c.0.s8 %v873
        %v875 = vlaneseq
        %v876 = vshrl.u32 %v875, 7
        %v877 = vsub.s32 %v874, %v876
        %v878 = vrot.slane %v862, %v877
        %v880 = vunpack.c.l.s4 1966171168
        %v881 = vunpack.c.0.s8 %v880
        %v882 = vlaneseq
        %v883 = vshrl.u32 %v882, 7
        %v884 = vsub.s32 %v881, %v883
        %v885 = vrot.slane %v863, %v884
        %v887 = vunpack.c.l.s4 1966171168
        %v888 = vunpack.c.0.s8 %v887
        %v889 = vlaneseq
        %v890 = vshrl.u32 %v889, 7
        %v891 = vsub.s32 %v888, %v890
        %v892 = vrot.slane %v864, %v891
        %v893 = vcombine.high %v871, %v871
        %v894 = vcombine.high %v878, %v878
        %v895 = vcombine.high %v885, %v885
        %v896 = vcombine.high %v892, %v892
        %v1425 = vunpack.c.l.b16 %v285
        %v1426 = vunpack.c.h.b16 %v285
        %v1427 = vunpack.c.l.b16 %v286
        %v1428 = vunpack.c.h.b16 %v286
        %v1429 = vunpack.c.l.b16 %v287
        %v1430 = vunpack.c.h.b16 %v287
        %v1431 = vunpack.c.l.b16 %v288
        %v1432 = vunpack.c.h.b16 %v288
        %v1433 = vunpack.c.l.b16 %v289
        %v1434 = vunpack.c.h.b16 %v289
        %v1435 = vunpack.c.l.b16 %v290
        %v1436 = vunpack.c.h.b16 %v290
        %v1437 = vunpack.c.l.b16 %v291
        %v1438 = vunpack.c.h.b16 %v291
        %v1439 = vunpack.c.l.b16 %v292
        %v1440 = vunpack.c.h.b16 %v292
        %v1441 = vunpack.c.l.b16 %v293
        %v1442 = vunpack.c.h.b16 %v293
        %v1443 = vunpack.c.l.b16 %v294
        %v1444 = vunpack.c.h.b16 %v294
        %v1445 = vunpack.c.l.b16 %v295
        %v1446 = vunpack.c.h.b16 %v295
        %v1447 = vunpack.c.l.b16 %v296
        %v1448 = vunpack.c.h.b16 %v296
        %v1449 = vunpack.c.l.b16 %v297
        %v1450 = vunpack.c.h.b16 %v297
        %v1451 = vunpack.c.l.b16 %v298
        %v1452 = vunpack.c.h.b16 %v298
        %v1453 = vunpack.c.l.b16 %v299
        %v1454 = vunpack.c.h.b16 %v299
        %v1455 = vunpack.c.l.b16 %v300
        %v1456 = vunpack.c.h.b16 %v300
        %v1457 = vunpack.c.l.b16 %v301
        %v1458 = vunpack.c.h.b16 %v301
        %v1459 = vunpack.c.l.b16 %v302
        %v1460 = vunpack.c.h.b16 %v302
        %v1461 = vunpack.c.l.b16 %v303
        %v1462 = vunpack.c.h.b16 %v303
        %v1463 = vunpack.c.l.b16 %v304
        %v1464 = vunpack.c.h.b16 %v304
        %v1465 = vunpack.c.l.b16 %v305
        %v1466 = vunpack.c.h.b16 %v305
        %v1467 = vunpack.c.l.b16 %v306
        %v1468 = vunpack.c.h.b16 %v306
        %v1469 = vunpack.c.l.b16 %v307
        %v1470 = vunpack.c.h.b16 %v307
        %v1471 = vunpack.c.l.b16 %v308
        %v1472 = vunpack.c.h.b16 %v308
        %v1473 = vunpack.c.l.b16 %v309
        %v1474 = vunpack.c.h.b16 %v309
        %v1475 = vunpack.c.l.b16 %v310
        %v1476 = vunpack.c.h.b16 %v310
        %v1477 = vunpack.c.l.b16 %v311
        %v1478 = vunpack.c.h.b16 %v311
        %v1479 = vunpack.c.l.b16 %v312
        %v1480 = vunpack.c.h.b16 %v312
        %v1481 = vunpack.c.l.b16 %v313
        %v1482 = vunpack.c.h.b16 %v313
        %v1483 = vunpack.c.l.b16 %v314
        %v1484 = vunpack.c.h.b16 %v314
        %v1485 = vunpack.c.l.b16 %v315
        %v1486 = vunpack.c.h.b16 %v315
        %v1487 = vunpack.c.l.b16 %v316
        %v1488 = vunpack.c.h.b16 %v316
        %v1489 = vunpack.c.l.b16 %v317
        %v1490 = vunpack.c.h.b16 %v317
        %v1491 = vunpack.c.l.b16 %v318
        %v1492 = vunpack.c.h.b16 %v318
        %v1493 = vunpack.c.l.b16 %v319
        %v1494 = vunpack.c.h.b16 %v319
        %v1495 = vunpack.c.l.b16 %v320
        %v1496 = vunpack.c.h.b16 %v320
        %v1497 = vunpack.c.l.b16 %v321
        %v1498 = vunpack.c.h.b16 %v321
        %v1499 = vunpack.c.l.b16 %v322
        %v1500 = vunpack.c.h.b16 %v322
        %v1501 = vunpack.c.l.b16 %v323
        %v1502 = vunpack.c.h.b16 %v323
        %v1503 = vunpack.c.l.b16 %v324
        %v1504 = vunpack.c.h.b16 %v324
        %v1505 = vunpack.c.l.b16 %v325
        %v1506 = vunpack.c.h.b16 %v325
        %v1507 = vunpack.c.l.b16 %v326
        %v1508 = vunpack.c.h.b16 %v326
        %v1509 = vunpack.c.l.b16 %v327
        %v1510 = vunpack.c.h.b16 %v327
        %v1511 = vunpack.c.l.b16 %v328
        %v1512 = vunpack.c.h.b16 %v328
        %v1513 = vunpack.c.l.b16 %v329
        %v1514 = vunpack.c.h.b16 %v329
        %v1515 = vunpack.c.l.b16 %v330
        %v1516 = vunpack.c.h.b16 %v330
        %v1517 = vunpack.c.l.b16 %v331
        %v1518 = vunpack.c.h.b16 %v331
        %v1519 = vunpack.c.l.b16 %v332
        %v1520 = vunpack.c.h.b16 %v332
        %v1521 = vunpack.c.l.b16 %v333
        %v1522 = vunpack.c.h.b16 %v333
        %v1523 = vunpack.c.l.b16 %v334
        %v1524 = vunpack.c.h.b16 %v334
        %v1525 = vunpack.c.l.b16 %v335
        %v1526 = vunpack.c.h.b16 %v335
        %v1527 = vunpack.c.l.b16 %v336
        %v1528 = vunpack.c.h.b16 %v336
        %v1529 = vunpack.c.l.b16 %v337
        %v1530 = vunpack.c.h.b16 %v337
        %v1531 = vunpack.c.l.b16 %v338
        %v1532 = vunpack.c.h.b16 %v338
        %v1533 = vunpack.c.l.b16 %v339
        %v1534 = vunpack.c.h.b16 %v339
        %v1535 = vunpack.c.l.b16 %v340
        %v1536 = vunpack.c.h.b16 %v340
        %v1537 = vunpack.c.l.b16 %v341
        %v1538 = vunpack.c.h.b16 %v341
        %v1539 = vunpack.c.l.b16 %v342
        %v1540 = vunpack.c.h.b16 %v342
        %v1541 = vunpack.c.l.b16 %v343
        %v1542 = vunpack.c.h.b16 %v343
        %v1543 = vunpack.c.l.b16 %v344
        %v1544 = vunpack.c.h.b16 %v344
        %v1545 = vunpack.c.l.b16 %v345
        %v1546 = vunpack.c.h.b16 %v345
        %v1547 = vunpack.c.l.b16 %v346
        %v1548 = vunpack.c.h.b16 %v346
        %v1549 = vunpack.c.l.b16 %v347
        %v1550 = vunpack.c.h.b16 %v347
        %v1551 = vunpack.c.l.b16 %v348
        %v1552 = vunpack.c.h.b16 %v348
        %v1553 = vunpack.c.l.b16 %v349
        %v1554 = vunpack.c.h.b16 %v349
        %v1555 = vunpack.c.l.b16 %v350
        %v1556 = vunpack.c.h.b16 %v350
        %v1557 = vunpack.c.l.b16 %v351
        %v1558 = vunpack.c.h.b16 %v351
        %v1559 = vunpack.c.l.b16 %v352
        %v1560 = vunpack.c.h.b16 %v352
        %v1561 = vunpack.c.l.b16 %v353
        %v1562 = vunpack.c.h.b16 %v353
        %v1563 = vunpack.c.l.b16 %v354
        %v1564 = vunpack.c.h.b16 %v354
        %v1565 = vunpack.c.l.b16 %v355
        %v1566 = vunpack.c.h.b16 %v355
        %v1567 = vunpack.c.l.b16 %v356
        %v1568 = vunpack.c.h.b16 %v356
        %v1569 = vunpack.c.l.b16 %v357
        %v1570 = vunpack.c.h.b16 %v357
        %v1571 = vunpack.c.l.b16 %v358
        %v1572 = vunpack.c.h.b16 %v358
        %v1573 = vunpack.c.l.b16 %v359
        %v1574 = vunpack.c.h.b16 %v359
        %v1575 = vunpack.c.l.b16 %v360
        %v1576 = vunpack.c.h.b16 %v360
        %v1577 = vunpack.c.l.b16 %v361
        %v1578 = vunpack.c.h.b16 %v361
        %v1579 = vunpack.c.l.b16 %v362
        %v1580 = vunpack.c.h.b16 %v362
        %v1581 = vunpack.c.l.b16 %v363
        %v1582 = vunpack.c.h.b16 %v363
        %v1583 = vunpack.c.l.b16 %v364
        %v1584 = vunpack.c.h.b16 %v364
        %v1585 = vunpack.c.l.b16 %v365
        %v1586 = vunpack.c.h.b16 %v365
        %v1587 = vunpack.c.l.b16 %v366
        %v1588 = vunpack.c.h.b16 %v366
        %v1589 = vunpack.c.l.b16 %v367
        %v1590 = vunpack.c.h.b16 %v367
        %v1591 = vunpack.c.l.b16 %v368
        %v1592 = vunpack.c.h.b16 %v368
        %v1593 = vunpack.c.l.b16 %v369
        %v1594 = vunpack.c.h.b16 %v369
        %v1595 = vunpack.c.l.b16 %v370
        %v1596 = vunpack.c.h.b16 %v370
        %v1597 = vunpack.c.l.b16 %v371
        %v1598 = vunpack.c.h.b16 %v371
        %v1599 = vunpack.c.l.b16 %v372
        %v1600 = vunpack.c.h.b16 %v372
        %v1601 = vunpack.c.l.b16 %v373
        %v1602 = vunpack.c.h.b16 %v373
        %v1603 = vunpack.c.l.b16 %v374
        %v1604 = vunpack.c.h.b16 %v374
        %v1605 = vunpack.c.l.b16 %v375
        %v1606 = vunpack.c.h.b16 %v375
        %v1607 = vunpack.c.l.b16 %v376
        %v1608 = vunpack.c.h.b16 %v376
        %v1609 = vunpack.c.l.b16 %v377
        %v1610 = vunpack.c.h.b16 %v377
        %v1611 = vunpack.c.l.b16 %v378
        %v1612 = vunpack.c.h.b16 %v378
        %v1613 = vunpack.c.l.b16 %v379
        %v1614 = vunpack.c.h.b16 %v379
        %v1615 = vunpack.c.l.b16 %v380
        %v1616 = vunpack.c.h.b16 %v380
        %v1617 = vunpack.c.l.b16 %v381
        %v1618 = vunpack.c.h.b16 %v381
        %v1619 = vunpack.c.l.b16 %v382
        %v1620 = vunpack.c.h.b16 %v382
        %v1621 = vunpack.c.l.b16 %v383
        %v1622 = vunpack.c.h.b16 %v383
        %v1623 = vunpack.c.l.b16 %v384
        %v1624 = vunpack.c.h.b16 %v384
        %v1625 = vunpack.c.l.b16 %v385
        %v1626 = vunpack.c.h.b16 %v385
        %v1627 = vunpack.c.l.b16 %v386
        %v1628 = vunpack.c.h.b16 %v386
        %v1629 = vunpack.c.l.b16 %v387
        %v1630 = vunpack.c.h.b16 %v387
        %v1631 = vunpack.c.l.b16 %v388
        %v1632 = vunpack.c.h.b16 %v388
        %v1633 = vunpack.c.l.b16 %v389
        %v1634 = vunpack.c.h.b16 %v389
        %v1635 = vunpack.c.l.b16 %v390
        %v1636 = vunpack.c.h.b16 %v390
        %v1637 = vunpack.c.l.b16 %v391
        %v1638 = vunpack.c.h.b16 %v391
        %v1639 = vunpack.c.l.b16 %v392
        %v1640 = vunpack.c.h.b16 %v392
        %v1641 = vunpack.c.l.b16 %v393
        %v1642 = vunpack.c.h.b16 %v393
        %v1643 = vunpack.c.l.b16 %v394
        %v1644 = vunpack.c.h.b16 %v394
        %v1645 = vunpack.c.l.b16 %v395
        %v1646 = vunpack.c.h.b16 %v395
        %v1647 = vunpack.c.l.b16 %v396
        %v1648 = vunpack.c.h.b16 %v396
        %v1649 = vunpack.c.l.b16 %v397
        %v1650 = vunpack.c.h.b16 %v397
        %v1651 = vunpack.c.l.b16 %v398
        %v1652 = vunpack.c.h.b16 %v398
        %v1653 = vunpack.c.l.b16 %v399
        %v1654 = vunpack.c.h.b16 %v399
        %v1655 = vunpack.c.l.b16 %v400
        %v1656 = vunpack.c.h.b16 %v400
        %v1657 = vunpack.c.l.b16 %v401
        %v1658 = vunpack.c.h.b16 %v401
        %v1659 = vunpack.c.l.b16 %v402
        %v1660 = vunpack.c.h.b16 %v402
        %v1661 = vunpack.c.l.b16 %v403
        %v1662 = vunpack.c.h.b16 %v403
        %v1663 = vunpack.c.l.b16 %v404
        %v1664 = vunpack.c.h.b16 %v404
        %v1665 = vunpack.c.l.b16 %v405
        %v1666 = vunpack.c.h.b16 %v405
        %v1667 = vunpack.c.l.b16 %v406
        %v1668 = vunpack.c.h.b16 %v406
        %v1669 = vunpack.c.l.b16 %v407
        %v1670 = vunpack.c.h.b16 %v407
        %v1671 = vunpack.c.l.b16 %v408
        %v1672 = vunpack.c.h.b16 %v408
        %v1673 = vunpack.c.l.b16 %v409
        %v1674 = vunpack.c.h.b16 %v409
        %v1675 = vunpack.c.l.b16 %v410
        %v1676 = vunpack.c.h.b16 %v410
        %v1677 = vunpack.c.l.b16 %v411
        %v1678 = vunpack.c.h.b16 %v411
        %v1679 = vunpack.c.l.b16 %v412
        %v1680 = vunpack.c.h.b16 %v412
        %v1681 = vunpack.c.l.b16 %v413
        %v1682 = vunpack.c.h.b16 %v413
        %v1683 = vunpack.c.l.b16 %v414
        %v1684 = vunpack.c.h.b16 %v414
        %v1685 = vunpack.c.l.b16 %v415
        %v1686 = vunpack.c.h.b16 %v415
        %v1687 = vunpack.c.l.b16 %v416
        %v1688 = vunpack.c.h.b16 %v416
        %v1689 = vunpack.c.l.b16 %v417
        %v1690 = vunpack.c.h.b16 %v417
        %v1691 = vunpack.c.l.b16 %v418
        %v1692 = vunpack.c.h.b16 %v418
        %v1693 = vunpack.c.l.b16 %v419
        %v1694 = vunpack.c.h.b16 %v419
        %v1695 = vunpack.c.l.b16 %v420
        %v1696 = vunpack.c.h.b16 %v420
        %v1697 = vunpack.c.l.b16 %v421
        %v1698 = vunpack.c.h.b16 %v421
        %v1699 = vunpack.c.l.b16 %v422
        %v1700 = vunpack.c.h.b16 %v422
        %v1701 = vunpack.c.l.b16 %v423
        %v1702 = vunpack.c.h.b16 %v423
        %v1703 = vunpack.c.l.b16 %v424
        %v1704 = vunpack.c.h.b16 %v424
        %v1705 = vunpack.c.l.b16 %v425
        %v1706 = vunpack.c.h.b16 %v425
        %v1707 = vunpack.c.l.b16 %v426
        %v1708 = vunpack.c.h.b16 %v426
        %v1709 = vunpack.c.l.b16 %v427
        %v1710 = vunpack.c.h.b16 %v427
        %v1711 = vunpack.c.l.b16 %v428
        %v1712 = vunpack.c.h.b16 %v428
        %v1713 = vunpack.c.l.b16 %v429
        %v1714 = vunpack.c.h.b16 %v429
        %v1715 = vunpack.c.l.b16 %v430
        %v1716 = vunpack.c.h.b16 %v430
        %v1717 = vunpack.c.l.b16 %v431
        %v1718 = vunpack.c.h.b16 %v431
        %v1719 = vunpack.c.l.b16 %v432
        %v1720 = vunpack.c.h.b16 %v432
        %v1721 = vunpack.c.l.b16 %v433
        %v1722 = vunpack.c.h.b16 %v433
        %v1723 = vunpack.c.l.b16 %v434
        %v1724 = vunpack.c.h.b16 %v434
        %v1725 = vunpack.c.l.b16 %v435
        %v1726 = vunpack.c.h.b16 %v435
        %v1727 = vunpack.c.l.b16 %v436
        %v1728 = vunpack.c.h.b16 %v436
        %v1729 = vunpack.c.l.b16 %v437
        %v1730 = vunpack.c.h.b16 %v437
        %v1731 = vunpack.c.l.b16 %v438
        %v1732 = vunpack.c.h.b16 %v438
        %v1733 = vunpack.c.l.b16 %v439
        %v1734 = vunpack.c.h.b16 %v439
        %v1735 = vunpack.c.l.b16 %v440
        %v1736 = vunpack.c.h.b16 %v440
        %v1737 = vunpack.c.l.b16 %v441
        %v1738 = vunpack.c.h.b16 %v441
        %v1739 = vunpack.c.l.b16 %v442
        %v1740 = vunpack.c.h.b16 %v442
        %v1741 = vunpack.c.l.b16 %v443
        %v1742 = vunpack.c.h.b16 %v443
        %v1743 = vunpack.c.l.b16 %v444
        %v1744 = vunpack.c.h.b16 %v444
        %v1745 = vunpack.c.l.b16 %v445
        %v1746 = vunpack.c.h.b16 %v445
        %v1747 = vunpack.c.l.b16 %v446
        %v1748 = vunpack.c.h.b16 %v446
        %v1749 = vunpack.c.l.b16 %v447
        %v1750 = vunpack.c.h.b16 %v447
        %v1751 = vunpack.c.l.b16 %v448
        %v1752 = vunpack.c.h.b16 %v448
        %v1753 = vunpack.c.l.b16 %v449
        %v1754 = vunpack.c.h.b16 %v449
        %v1755 = vunpack.c.l.b16 %v450
        %v1756 = vunpack.c.h.b16 %v450
        %v1757 = vunpack.c.l.b16 %v451
        %v1758 = vunpack.c.h.b16 %v451
        %v1759 = vunpack.c.l.b16 %v452
        %v1760 = vunpack.c.h.b16 %v452
        %v1761 = vunpack.c.l.b16 %v453
        %v1762 = vunpack.c.h.b16 %v453
        %v1763 = vunpack.c.l.b16 %v454
        %v1764 = vunpack.c.h.b16 %v454
        %v1765 = vunpack.c.l.b16 %v455
        %v1766 = vunpack.c.h.b16 %v455
        %v1767 = vunpack.c.l.b16 %v456
        %v1768 = vunpack.c.h.b16 %v456
        %v1769 = vunpack.c.l.b16 %v457
        %v1770 = vunpack.c.h.b16 %v457
        %v1771 = vunpack.c.l.b16 %v458
        %v1772 = vunpack.c.h.b16 %v458
        %v1773 = vunpack.c.l.b16 %v459
        %v1774 = vunpack.c.h.b16 %v459
        %v1775 = vunpack.c.l.b16 %v460
        %v1776 = vunpack.c.h.b16 %v460
        %v1777 = vunpack.c.l.b16 %v461
        %v1778 = vunpack.c.h.b16 %v461
        %v1779 = vunpack.c.l.b16 %v462
        %v1780 = vunpack.c.h.b16 %v462
        %v1781 = vunpack.c.l.b16 %v463
        %v1782 = vunpack.c.h.b16 %v463
        %v1783 = vunpack.c.l.b16 %v464
        %v1784 = vunpack.c.h.b16 %v464
        %v1785 = vunpack.c.l.b16 %v465
        %v1786 = vunpack.c.h.b16 %v465
        %v1787 = vunpack.c.l.b16 %v466
        %v1788 = vunpack.c.h.b16 %v466
        %v1789 = vunpack.c.l.b16 %v467
        %v1790 = vunpack.c.h.b16 %v467
        %v1791 = vunpack.c.l.b16 %v468
        %v1792 = vunpack.c.h.b16 %v468
        %v1793 = vunpack.c.l.b16 %v469
        %v1794 = vunpack.c.h.b16 %v469
        %v1795 = vunpack.c.l.b16 %v470
        %v1796 = vunpack.c.h.b16 %v470
        %v1797 = vunpack.c.l.b16 %v471
        %v1798 = vunpack.c.h.b16 %v471
        %v1799 = vunpack.c.l.b16 %v472
        %v1800 = vunpack.c.h.b16 %v472
        %v1801 = vunpack.c.l.b16 %v473
        %v1802 = vunpack.c.h.b16 %v473
        %v1803 = vunpack.c.l.b16 %v474
        %v1804 = vunpack.c.h.b16 %v474
        %v1805 = vunpack.c.l.b16 %v475
        %v1806 = vunpack.c.h.b16 %v475
        %v1807 = vunpack.c.l.b16 %v476
        %v1808 = vunpack.c.h.b16 %v476
        %v1809 = vunpack.c.l.b16 %v477
        %v1810 = vunpack.c.h.b16 %v477
        %v1811 = vunpack.c.l.b16 %v478
        %v1812 = vunpack.c.h.b16 %v478
        %v1813 = vunpack.c.l.b16 %v479
        %v1814 = vunpack.c.h.b16 %v479
        %v1815 = vunpack.c.l.b16 %v480
        %v1816 = vunpack.c.h.b16 %v480
        %v1817 = vunpack.c.l.b16 %v481
        %v1818 = vunpack.c.h.b16 %v481
        %v1819 = vunpack.c.l.b16 %v482
        %v1820 = vunpack.c.h.b16 %v482
        %v1821 = vunpack.c.l.b16 %v483
        %v1822 = vunpack.c.h.b16 %v483
        %v1823 = vunpack.c.l.b16 %v484
        %v1824 = vunpack.c.h.b16 %v484
        %v1825 = vunpack.c.l.b16 %v485
        %v1826 = vunpack.c.h.b16 %v485
        %v1827 = vunpack.c.l.b16 %v486
        %v1828 = vunpack.c.h.b16 %v486
        %v1829 = vunpack.c.l.b16 %v487
        %v1830 = vunpack.c.h.b16 %v487
        %v1831 = vunpack.c.l.b16 %v488
        %v1832 = vunpack.c.h.b16 %v488
        %v1833 = vunpack.c.l.b16 %v489
        %v1834 = vunpack.c.h.b16 %v489
        %v1835 = vunpack.c.l.b16 %v490
        %v1836 = vunpack.c.h.b16 %v490
        %v1837 = vunpack.c.l.b16 %v491
        %v1838 = vunpack.c.h.b16 %v491
        %v1839 = vunpack.c.l.b16 %v492
        %v1840 = vunpack.c.h.b16 %v492
        %v1841 = vunpack.c.l.b16 %v493
        %v1842 = vunpack.c.h.b16 %v493
        %v1843 = vunpack.c.l.b16 %v494
        %v1844 = vunpack.c.h.b16 %v494
        %v1845 = vunpack.c.l.b16 %v495
        %v1846 = vunpack.c.h.b16 %v495
        %v1847 = vunpack.c.l.b16 %v496
        %v1848 = vunpack.c.h.b16 %v496
        %v1849 = vunpack.c.l.b16 %v497
        %v1850 = vunpack.c.h.b16 %v497
        %v1851 = vunpack.c.l.b16 %v498
        %v1852 = vunpack.c.h.b16 %v498
        %v1853 = vunpack.c.l.b16 %v499
        %v1854 = vunpack.c.h.b16 %v499
        %v1855 = vunpack.c.l.b16 %v500
        %v1856 = vunpack.c.h.b16 %v500
        %v1857 = vunpack.c.l.b16 %v501
        %v1858 = vunpack.c.h.b16 %v501
        %v1859 = vunpack.c.l.b16 %v502
        %v1860 = vunpack.c.h.b16 %v502
        %v1861 = vunpack.c.l.b16 %v503
        %v1862 = vunpack.c.h.b16 %v503
        %v1863 = vunpack.c.l.b16 %v504
        %v1864 = vunpack.c.h.b16 %v504
        %v1865 = vunpack.c.l.b16 %v505
        %v1866 = vunpack.c.h.b16 %v505
        %v1867 = vunpack.c.l.b16 %v506
        %v1868 = vunpack.c.h.b16 %v506
        %v1869 = vunpack.c.l.b16 %v507
        %v1870 = vunpack.c.h.b16 %v507
        %v1871 = vunpack.c.l.b16 %v508
        %v1872 = vunpack.c.h.b16 %v508
        %v1873 = vunpack.c.l.b16 %v509
        %v1874 = vunpack.c.h.b16 %v509
        %v1875 = vunpack.c.l.b16 %v510
        %v1876 = vunpack.c.h.b16 %v510
        %v1877 = vunpack.c.l.b16 %v511
        %v1878 = vunpack.c.h.b16 %v511
        %v1879 = vunpack.c.l.b16 %v512
        %v1880 = vunpack.c.h.b16 %v512
        %v1881 = vunpack.c.l.b16 %v513
        %v1882 = vunpack.c.h.b16 %v513
        %v1883 = vunpack.c.l.b16 %v514
        %v1884 = vunpack.c.h.b16 %v514
        %v1885 = vunpack.c.l.b16 %v515
        %v1886 = vunpack.c.h.b16 %v515
        %v1887 = vunpack.c.l.b16 %v516
        %v1888 = vunpack.c.h.b16 %v516
        %v1889 = vunpack.c.l.b16 %v517
        %v1890 = vunpack.c.h.b16 %v517
        %v1891 = vunpack.c.l.b16 %v518
        %v1892 = vunpack.c.h.b16 %v518
        %v1893 = vunpack.c.l.b16 %v519
        %v1894 = vunpack.c.h.b16 %v519
        %v1895 = vunpack.c.l.b16 %v520
        %v1896 = vunpack.c.h.b16 %v520
        %v1897 = vunpack.c.l.b16 %v521
        %v1898 = vunpack.c.h.b16 %v521
        %v1899 = vunpack.c.l.b16 %v522
        %v1900 = vunpack.c.h.b16 %v522
        %v1901 = vunpack.c.l.b16 %v523
        %v1902 = vunpack.c.h.b16 %v523
        %v1903 = vunpack.c.l.b16 %v524
        %v1904 = vunpack.c.h.b16 %v524
        %v1905 = vunpack.c.l.b16 %v525
        %v1906 = vunpack.c.h.b16 %v525
        %v1907 = vunpack.c.l.b16 %v526
        %v1908 = vunpack.c.h.b16 %v526
        %v1909 = vunpack.c.l.b16 %v527
        %v1910 = vunpack.c.h.b16 %v527
        %v1911 = vunpack.c.l.b16 %v528
        %v1912 = vunpack.c.h.b16 %v528
        %v1913 = vunpack.c.l.b16 %v529
        %v1914 = vunpack.c.h.b16 %v529
        %v1915 = vunpack.c.l.b16 %v530
        %v1916 = vunpack.c.h.b16 %v530
        %v1917 = vunpack.c.l.b16 %v531
        %v1918 = vunpack.c.h.b16 %v531
        %v1919 = vunpack.c.l.b16 %v532
        %v1920 = vunpack.c.h.b16 %v532
        %v1921 = vunpack.c.l.b16 %v533
        %v1922 = vunpack.c.h.b16 %v533
        %v1923 = vunpack.c.l.b16 %v534
        %v1924 = vunpack.c.h.b16 %v534
        %v1925 = vunpack.c.l.b16 %v535
        %v1926 = vunpack.c.h.b16 %v535
        %v1927 = vunpack.c.l.b16 %v536
        %v1928 = vunpack.c.h.b16 %v536
        %v1929 = vunpack.c.l.b16 %v537
        %v1930 = vunpack.c.h.b16 %v537
        %v1931 = vunpack.c.l.b16 %v538
        %v1932 = vunpack.c.h.b16 %v538
        %v1933 = vunpack.c.l.b16 %v539
        %v1934 = vunpack.c.h.b16 %v539
        %v1935 = vunpack.c.l.b16 %v540
        %v1936 = vunpack.c.h.b16 %v540
        %v1937 = vunpack.c.l.b16 %v541
        %v1938 = vunpack.c.h.b16 %v541
        %v1939 = vunpack.c.l.b16 %v542
        %v1940 = vunpack.c.h.b16 %v542
        %v1941 = vunpack.c.l.b16 %v543
        %v1942 = vunpack.c.h.b16 %v543
        %v1943 = vunpack.c.l.b16 %v544
        %v1944 = vunpack.c.h.b16 %v544
        %v1945 = vunpack.c.l.b16 %v545
        %v1946 = vunpack.c.h.b16 %v545
        %v1947 = vunpack.c.l.b16 %v546
        %v1948 = vunpack.c.h.b16 %v546
        %v1949 = vunpack.c.l.b16 %v547
        %v1950 = vunpack.c.h.b16 %v547
        %v1951 = vunpack.c.l.b16 %v548
        %v1952 = vunpack.c.h.b16 %v548
        %v1953 = vunpack.c.l.b16 %v549
        %v1954 = vunpack.c.h.b16 %v549
        %v1955 = vunpack.c.l.b16 %v550
        %v1956 = vunpack.c.h.b16 %v550
        %v1957 = vunpack.c.l.b16 %v551
        %v1958 = vunpack.c.h.b16 %v551
        %v1959 = vunpack.c.l.b16 %v552
        %v1960 = vunpack.c.h.b16 %v552
        %v1961 = vunpack.c.l.b16 %v553
        %v1962 = vunpack.c.h.b16 %v553
        %v1963 = vunpack.c.l.b16 %v554
        %v1964 = vunpack.c.h.b16 %v554
        %v1965 = vunpack.c.l.b16 %v555
        %v1966 = vunpack.c.h.b16 %v555
        %v1967 = vunpack.c.l.b16 %v556
        %v1968 = vunpack.c.h.b16 %v556
        %v1969 = vunpack.c.l.b16 %v557
        %v1970 = vunpack.c.h.b16 %v557
        %v1971 = vunpack.c.l.b16 %v558
        %v1972 = vunpack.c.h.b16 %v558
        %v1973 = vunpack.c.l.b16 %v559
        %v1974 = vunpack.c.h.b16 %v559
        %v1975 = vunpack.c.l.b16 %v560
        %v1976 = vunpack.c.h.b16 %v560
        %v1977 = vunpack.c.l.b16 %v561
        %v1978 = vunpack.c.h.b16 %v561
        %v1979 = vunpack.c.l.b16 %v562
        %v1980 = vunpack.c.h.b16 %v562
        %v1981 = vunpack.c.l.b16 %v563
        %v1982 = vunpack.c.h.b16 %v563
        %v1983 = vunpack.c.l.b16 %v564
        %v1984 = vunpack.c.h.b16 %v564
        %v1985 = vunpack.c.l.b16 %v565
        %v1986 = vunpack.c.h.b16 %v565
        %v1987 = vunpack.c.l.b16 %v566
        %v1988 = vunpack.c.h.b16 %v566
        %v1989 = vunpack.c.l.b16 %v567
        %v1990 = vunpack.c.h.b16 %v567
        %v1991 = vunpack.c.l.b16 %v568
        %v1992 = vunpack.c.h.b16 %v568
        %v1993 = vunpack.c.l.b16 %v569
        %v1994 = vunpack.c.h.b16 %v569
        %v1995 = vunpack.c.l.b16 %v570
        %v1996 = vunpack.c.h.b16 %v570
        %v1997 = vunpack.c.l.b16 %v571
        %v1998 = vunpack.c.h.b16 %v571
        %v1999 = vunpack.c.l.b16 %v572
        %v2000 = vunpack.c.h.b16 %v572
        %v2001 = vunpack.c.l.b16 %v573
        %v2002 = vunpack.c.h.b16 %v573
        %v2003 = vunpack.c.l.b16 %v574
        %v2004 = vunpack.c.h.b16 %v574
        %v2005 = vunpack.c.l.b16 %v575
        %v2006 = vunpack.c.h.b16 %v575
        %v2007 = vunpack.c.l.b16 %v576
        %v2008 = vunpack.c.h.b16 %v576
        %v2009 = vunpack.c.l.b16 %v577
        %v2010 = vunpack.c.h.b16 %v577
        %v2011 = vunpack.c.l.b16 %v578
        %v2012 = vunpack.c.h.b16 %v578
        %v2013 = vunpack.c.l.b16 %v579
        %v2014 = vunpack.c.h.b16 %v579
        %v2015 = vunpack.c.l.b16 %v580
        %v2016 = vunpack.c.h.b16 %v580
        %v2017 = vunpack.c.l.b16 %v581
        %v2018 = vunpack.c.h.b16 %v581
        %v2019 = vunpack.c.l.b16 %v582
        %v2020 = vunpack.c.h.b16 %v582
        %v2021 = vunpack.c.l.b16 %v583
        %v2022 = vunpack.c.h.b16 %v583
        %v2023 = vunpack.c.l.b16 %v584
        %v2024 = vunpack.c.h.b16 %v584
        %v2025 = vunpack.c.l.b16 %v585
        %v2026 = vunpack.c.h.b16 %v585
        %v2027 = vunpack.c.l.b16 %v586
        %v2028 = vunpack.c.h.b16 %v586
        %v2029 = vunpack.c.l.b16 %v587
        %v2030 = vunpack.c.h.b16 %v587
        %v2031 = vunpack.c.l.b16 %v588
        %v2032 = vunpack.c.h.b16 %v588
        %v2033 = vunpack.c.l.b16 %v589
        %v2034 = vunpack.c.h.b16 %v589
        %v2035 = vunpack.c.l.b16 %v590
        %v2036 = vunpack.c.h.b16 %v590
        %v2037 = vunpack.c.l.b16 %v591
        %v2038 = vunpack.c.h.b16 %v591
        %v2039 = vunpack.c.l.b16 %v592
        %v2040 = vunpack.c.h.b16 %v592
        %v2041 = vunpack.c.l.b16 %v593
        %v2042 = vunpack.c.h.b16 %v593
        %v2043 = vunpack.c.l.b16 %v594
        %v2044 = vunpack.c.h.b16 %v594
        %v2045 = vunpack.c.l.b16 %v595
        %v2046 = vunpack.c.h.b16 %v595
        %v2047 = vunpack.c.l.b16 %v596
        %v2048 = vunpack.c.h.b16 %v596
        %v2049 = vunpack.c.l.b16 %v597
        %v2050 = vunpack.c.h.b16 %v597
        %v2051 = vunpack.c.l.b16 %v598
        %v2052 = vunpack.c.h.b16 %v598
        %v2053 = vunpack.c.l.b16 %v599
        %v2054 = vunpack.c.h.b16 %v599
        %v2055 = vunpack.c.l.b16 %v600
        %v2056 = vunpack.c.h.b16 %v600
        %v2057 = vunpack.c.l.b16 %v601
        %v2058 = vunpack.c.h.b16 %v601
        %v2059 = vunpack.c.l.b16 %v602
        %v2060 = vunpack.c.h.b16 %v602
        %v2061 = vunpack.c.l.b16 %v603
        %v2062 = vunpack.c.h.b16 %v603
        %v2063 = vunpack.c.l.b16 %v604
        %v2064 = vunpack.c.h.b16 %v604
        %v2065 = vunpack.c.l.b16 %v605
        %v2066 = vunpack.c.h.b16 %v605
        %v2067 = vunpack.c.l.b16 %v606
        %v2068 = vunpack.c.h.b16 %v606
        %v2069 = vunpack.c.l.b16 %v607
        %v2070 = vunpack.c.h.b16 %v607
        %v2071 = vunpack.c.l.b16 %v608
        %v2072 = vunpack.c.h.b16 %v608
        %v2073 = vunpack.c.l.b16 %v609
        %v2074 = vunpack.c.h.b16 %v609
        %v2075 = vunpack.c.l.b16 %v610
        %v2076 = vunpack.c.h.b16 %v610
        %v2077 = vunpack.c.l.b16 %v611
        %v2078 = vunpack.c.h.b16 %v611
        %v2079 = vunpack.c.l.b16 %v612
        %v2080 = vunpack.c.h.b16 %v612
        %v2081 = vunpack.c.l.b16 %v613
        %v2082 = vunpack.c.h.b16 %v613
        %v2083 = vunpack.c.l.b16 %v614
        %v2084 = vunpack.c.h.b16 %v614
        %v2085 = vunpack.c.l.b16 %v615
        %v2086 = vunpack.c.h.b16 %v615
        %v2087 = vunpack.c.l.b16 %v616
        %v2088 = vunpack.c.h.b16 %v616
        %v2089 = vunpack.c.l.b16 %v617
        %v2090 = vunpack.c.h.b16 %v617
        %v2091 = vunpack.c.l.b16 %v618
        %v2092 = vunpack.c.h.b16 %v618
        %v2093 = vunpack.c.l.b16 %v619
        %v2094 = vunpack.c.h.b16 %v619
        %v2095 = vunpack.c.l.b16 %v620
        %v2096 = vunpack.c.h.b16 %v620
        %v2097 = vunpack.c.l.b16 %v621
        %v2098 = vunpack.c.h.b16 %v621
        %v2099 = vunpack.c.l.b16 %v622
        %v2100 = vunpack.c.h.b16 %v622
        %v2101 = vunpack.c.l.b16 %v623
        %v2102 = vunpack.c.h.b16 %v623
        %v2103 = vunpack.c.l.b16 %v624
        %v2104 = vunpack.c.h.b16 %v624
        %v2105 = vunpack.c.l.b16 %v625
        %v2106 = vunpack.c.h.b16 %v625
        %v2107 = vunpack.c.l.b16 %v626
        %v2108 = vunpack.c.h.b16 %v626
        %v2109 = vunpack.c.l.b16 %v627
        %v2110 = vunpack.c.h.b16 %v627
        %v2111 = vunpack.c.l.b16 %v628
        %v2112 = vunpack.c.h.b16 %v628
        %v2113 = vunpack.c.l.b16 %v629
        %v2114 = vunpack.c.h.b16 %v629
        %v2115 = vunpack.c.l.b16 %v630
        %v2116 = vunpack.c.h.b16 %v630
        %v2117 = vunpack.c.l.b16 %v631
        %v2118 = vunpack.c.h.b16 %v631
        %v2119 = vunpack.c.l.b16 %v632
        %v2120 = vunpack.c.h.b16 %v632
        %v2121 = vunpack.c.l.b16 %v633
        %v2122 = vunpack.c.h.b16 %v633
        %v2123 = vunpack.c.l.b16 %v634
        %v2124 = vunpack.c.h.b16 %v634
        %v2125 = vunpack.c.l.b16 %v635
        %v2126 = vunpack.c.h.b16 %v635
        %v2127 = vunpack.c.l.b16 %v636
        %v2128 = vunpack.c.h.b16 %v636
        %v2129 = vunpack.c.l.b16 %v637
        %v2130 = vunpack.c.h.b16 %v637
        %v2131 = vunpack.c.l.b16 %v638
        %v2132 = vunpack.c.h.b16 %v638
        %v2133 = vunpack.c.l.b16 %v639
        %v2134 = vunpack.c.h.b16 %v639
        %v2135 = vunpack.c.l.b16 %v640
        %v2136 = vunpack.c.h.b16 %v640
        %v2137 = vunpack.c.l.b16 %v641
        %v2138 = vunpack.c.h.b16 %v641
        %v2139 = vunpack.c.l.b16 %v642
        %v2140 = vunpack.c.h.b16 %v642
        %v2141 = vunpack.c.l.b16 %v643
        %v2142 = vunpack.c.h.b16 %v643
        %v2143 = vunpack.c.l.b16 %v644
        %v2144 = vunpack.c.h.b16 %v644
        %v2145 = vunpack.c.l.b16 %v645
        %v2146 = vunpack.c.h.b16 %v645
        %v2147 = vunpack.c.l.b16 %v646
        %v2148 = vunpack.c.h.b16 %v646
        %v2149 = vunpack.c.l.b16 %v647
        %v2150 = vunpack.c.h.b16 %v647
        %v2151 = vunpack.c.l.b16 %v648
        %v2152 = vunpack.c.h.b16 %v648
        %v2153 = vunpack.c.l.b16 %v649
        %v2154 = vunpack.c.h.b16 %v649
        %v2155 = vunpack.c.l.b16 %v650
        %v2156 = vunpack.c.h.b16 %v650
        %v2157 = vunpack.c.l.b16 %v651
        %v2158 = vunpack.c.h.b16 %v651
        %v2159 = vunpack.c.l.b16 %v652
        %v2160 = vunpack.c.h.b16 %v652
        %v2161 = vunpack.c.l.b16 %v653
        %v2162 = vunpack.c.h.b16 %v653
        %v2163 = vunpack.c.l.b16 %v654
        %v2164 = vunpack.c.h.b16 %v654
        %v2165 = vunpack.c.l.b16 %v655
        %v2166 = vunpack.c.h.b16 %v655
        %v2167 = vunpack.c.l.b16 %v656
        %v2168 = vunpack.c.h.b16 %v656
        %v2169 = vunpack.c.l.b16 %v657
        %v2170 = vunpack.c.h.b16 %v657
        %v2171 = vunpack.c.l.b16 %v658
        %v2172 = vunpack.c.h.b16 %v658
        %v2173 = vunpack.c.l.b16 %v659
        %v2174 = vunpack.c.h.b16 %v659
        %v2175 = vunpack.c.l.b16 %v660
        %v2176 = vunpack.c.h.b16 %v660
        %v2177 = vunpack.c.l.b16 %v661
        %v2178 = vunpack.c.h.b16 %v661
        %v2179 = vunpack.c.l.b16 %v662
        %v2180 = vunpack.c.h.b16 %v662
        %v2181 = vunpack.c.l.b16 %v663
        %v2182 = vunpack.c.h.b16 %v663
        %v2183 = vunpack.c.l.b16 %v664
        %v2184 = vunpack.c.h.b16 %v664
        %v2185 = vunpack.c.l.b16 %v665
        %v2186 = vunpack.c.h.b16 %v665
        %v2187 = vunpack.c.l.b16 %v666
        %v2188 = vunpack.c.h.b16 %v666
        %v2189 = vunpack.c.l.b16 %v667
        %v2190 = vunpack.c.h.b16 %v667
        %v2191 = vunpack.c.l.b16 %v668
        %v2192 = vunpack.c.h.b16 %v668
        %v2193 = vunpack.c.l.b16 %v669
        %v2194 = vunpack.c.h.b16 %v669
        %v2195 = vunpack.c.l.b16 %v670
        %v2196 = vunpack.c.h.b16 %v670
        %v2197 = vunpack.c.l.b16 %v671
        %v2198 = vunpack.c.h.b16 %v671
        %v2199 = vunpack.c.l.b16 %v672
        %v2200 = vunpack.c.h.b16 %v672
        %v2201 = vunpack.c.l.b16 %v673
        %v2202 = vunpack.c.h.b16 %v673
        %v2203 = vunpack.c.l.b16 %v674
        %v2204 = vunpack.c.h.b16 %v674
        %v2205 = vunpack.c.l.b16 %v675
        %v2206 = vunpack.c.h.b16 %v675
        %v2207 = vunpack.c.l.b16 %v676
        %v2208 = vunpack.c.h.b16 %v676
        %v2209 = vunpack.c.l.b16 %v677
        %v2210 = vunpack.c.h.b16 %v677
        %v2211 = vunpack.c.l.b16 %v678
        %v2212 = vunpack.c.h.b16 %v678
        %v2213 = vunpack.c.l.b16 %v679
        %v2214 = vunpack.c.h.b16 %v679
        %v2215 = vunpack.c.l.b16 %v680
        %v2216 = vunpack.c.h.b16 %v680
        %v2217 = vunpack.c.l.b16 %v681
        %v2218 = vunpack.c.h.b16 %v681
        %v2219 = vunpack.c.l.b16 %v682
        %v2220 = vunpack.c.h.b16 %v682
        %v2221 = vunpack.c.l.b16 %v683
        %v2222 = vunpack.c.h.b16 %v683
        %v2223 = vunpack.c.l.b16 %v684
        %v2224 = vunpack.c.h.b16 %v684
        %v2225 = vunpack.c.l.b16 %v685
        %v2226 = vunpack.c.h.b16 %v685
        %v2227 = vunpack.c.l.b16 %v686
        %v2228 = vunpack.c.h.b16 %v686
        %v2229 = vunpack.c.l.b16 %v687
        %v2230 = vunpack.c.h.b16 %v687
        %v2231 = vunpack.c.l.b16 %v688
        %v2232 = vunpack.c.h.b16 %v688
        %v2233 = vunpack.c.l.b16 %v689
        %v2234 = vunpack.c.h.b16 %v689
        %v2235 = vunpack.c.l.b16 %v690
        %v2236 = vunpack.c.h.b16 %v690
        %v2237 = vunpack.c.l.b16 %v691
        %v2238 = vunpack.c.h.b16 %v691
        %v2239 = vunpack.c.l.b16 %v692
        %v2240 = vunpack.c.h.b16 %v692
        %v2241 = vunpack.c.l.b16 %v693
        %v2242 = vunpack.c.h.b16 %v693
        %v2243 = vunpack.c.l.b16 %v694
        %v2244 = vunpack.c.h.b16 %v694
        %v2245 = vunpack.c.l.b16 %v695
        %v2246 = vunpack.c.h.b16 %v695
        %v2247 = vunpack.c.l.b16 %v696
        %v2248 = vunpack.c.h.b16 %v696
        %v2249 = vunpack.c.l.b16 %v697
        %v2250 = vunpack.c.h.b16 %v697
        %v2251 = vunpack.c.l.b16 %v698
        %v2252 = vunpack.c.h.b16 %v698
        %v2253 = vunpack.c.l.b16 %v699
        %v2254 = vunpack.c.h.b16 %v699
        %v2255 = vunpack.c.l.b16 %v700
        %v2256 = vunpack.c.h.b16 %v700
        %v2257 = vunpack.c.l.b16 %v701
        %v2258 = vunpack.c.h.b16 %v701
        %v2259 = vunpack.c.l.b16 %v702
        %v2260 = vunpack.c.h.b16 %v702
        %v2261 = vunpack.c.l.b16 %v703
        %v2262 = vunpack.c.h.b16 %v703
        %v2263 = vunpack.c.l.b16 %v704
        %v2264 = vunpack.c.h.b16 %v704
        %v2265 = vunpack.c.l.b16 %v705
        %v2266 = vunpack.c.h.b16 %v705
        %v2267 = vunpack.c.l.b16 %v706
        %v2268 = vunpack.c.h.b16 %v706
        %v2269 = vunpack.c.l.b16 %v707
        %v2270 = vunpack.c.h.b16 %v707
        %v2271 = vunpack.c.l.b16 %v708
        %v2272 = vunpack.c.h.b16 %v708
        %v2273 = vunpack.c.l.b16 %v709
        %v2274 = vunpack.c.h.b16 %v709
        %v2275 = vunpack.c.l.b16 %v710
        %v2276 = vunpack.c.h.b16 %v710
        %v2277 = vunpack.c.l.b16 %v711
        %v2278 = vunpack.c.h.b16 %v711
        %v2279 = vunpack.c.l.b16 %v712
        %v2280 = vunpack.c.h.b16 %v712
        %v2281 = vunpack.c.l.b16 %v713
        %v2282 = vunpack.c.h.b16 %v713
        %v2283 = vunpack.c.l.b16 %v714
        %v2284 = vunpack.c.h.b16 %v714
        %v2285 = vunpack.c.l.b16 %v715
        %v2286 = vunpack.c.h.b16 %v715
        %v2287 = vunpack.c.l.b16 %v716
        %v2288 = vunpack.c.h.b16 %v716
        %v2289 = vunpack.c.l.b16 %v717
        %v2290 = vunpack.c.h.b16 %v717
        %v2291 = vunpack.c.l.b16 %v718
        %v2292 = vunpack.c.h.b16 %v718
        %v2293 = vunpack.c.l.b16 %v719
        %v2294 = vunpack.c.h.b16 %v719
        %v2295 = vunpack.c.l.b16 %v720
        %v2296 = vunpack.c.h.b16 %v720
        %v2297 = vunpack.c.l.b16 %v721
        %v2298 = vunpack.c.h.b16 %v721
        %v2299 = vunpack.c.l.b16 %v722
        %v2300 = vunpack.c.h.b16 %v722
        %v2301 = vunpack.c.l.b16 %v723
        %v2302 = vunpack.c.h.b16 %v723
        %v2303 = vunpack.c.l.b16 %v724
        %v2304 = vunpack.c.h.b16 %v724
        %v2305 = vunpack.c.l.b16 %v725
        %v2306 = vunpack.c.h.b16 %v725
        %v2307 = vunpack.c.l.b16 %v726
        %v2308 = vunpack.c.h.b16 %v726
        %v2309 = vunpack.c.l.b16 %v727
        %v2310 = vunpack.c.h.b16 %v727
        %v2311 = vunpack.c.l.b16 %v728
        %v2312 = vunpack.c.h.b16 %v728
        %v2313 = vunpack.c.l.b16 %v729
        %v2314 = vunpack.c.h.b16 %v729
        %v2315 = vunpack.c.l.b16 %v730
        %v2316 = vunpack.c.h.b16 %v730
        %v2317 = vunpack.c.l.b16 %v731
        %v2318 = vunpack.c.h.b16 %v731
        %v2319 = vunpack.c.l.b16 %v732
        %v2320 = vunpack.c.h.b16 %v732
        %v2321 = vunpack.c.l.b16 %v733
        %v2322 = vunpack.c.h.b16 %v733
        %v2323 = vunpack.c.l.b16 %v734
        %v2324 = vunpack.c.h.b16 %v734
        %v2325 = vunpack.c.l.b16 %v735
        %v2326 = vunpack.c.h.b16 %v735
        %v2327 = vunpack.c.l.b16 %v736
        %v2328 = vunpack.c.h.b16 %v736
        %v2329 = vunpack.c.l.b16 %v737
        %v2330 = vunpack.c.h.b16 %v737
        %v2331 = vunpack.c.l.b16 %v738
        %v2332 = vunpack.c.h.b16 %v738
        %v2333 = vunpack.c.l.b16 %v739
        %v2334 = vunpack.c.h.b16 %v739
        %v2335 = vunpack.c.l.b16 %v740
        %v2336 = vunpack.c.h.b16 %v740
        %v2337 = vunpack.c.l.b16 %v741
        %v2338 = vunpack.c.h.b16 %v741
        %v2339 = vunpack.c.l.b16 %v742
        %v2340 = vunpack.c.h.b16 %v742
        %v2341 = vunpack.c.l.b16 %v743
        %v2342 = vunpack.c.h.b16 %v743
        %v2343 = vunpack.c.l.b16 %v744
        %v2344 = vunpack.c.h.b16 %v744
        %v2345 = vunpack.c.l.b16 %v745
        %v2346 = vunpack.c.h.b16 %v745
        %v2347 = vunpack.c.l.b16 %v746
        %v2348 = vunpack.c.h.b16 %v746
        %v2349 = vunpack.c.l.b16 %v747
        %v2350 = vunpack.c.h.b16 %v747
        %v2351 = vunpack.c.l.b16 %v748
        %v2352 = vunpack.c.h.b16 %v748
        %v2353 = vunpack.c.l.b16 %v749
        %v2354 = vunpack.c.h.b16 %v749
        %v2355 = vunpack.c.l.b16 %v750
        %v2356 = vunpack.c.h.b16 %v750
        %v2357 = vunpack.c.l.b16 %v751
        %v2358 = vunpack.c.h.b16 %v751
        %v2359 = vunpack.c.l.b16 %v752
        %v2360 = vunpack.c.h.b16 %v752
        %v2361 = vunpack.c.l.b16 %v753
        %v2362 = vunpack.c.h.b16 %v753
        %v2363 = vunpack.c.l.b16 %v754
        %v2364 = vunpack.c.h.b16 %v754
        %v2365 = vunpack.c.l.b16 %v755
        %v2366 = vunpack.c.h.b16 %v755
        %v2367 = vunpack.c.l.b16 %v756
        %v2368 = vunpack.c.h.b16 %v756
        %v2369 = vunpack.c.l.b16 %v757
        %v2370 = vunpack.c.h.b16 %v757
        %v2371 = vunpack.c.l.b16 %v758
        %v2372 = vunpack.c.h.b16 %v758
        %v2373 = vunpack.c.l.b16 %v759
        %v2374 = vunpack.c.h.b16 %v759
        %v2375 = vunpack.c.l.b16 %v760
        %v2376 = vunpack.c.h.b16 %v760
        %v2377 = vunpack.c.l.b16 %v761
        %v2378 = vunpack.c.h.b16 %v761
        %v2379 = vunpack.c.l.b16 %v762
        %v2380 = vunpack.c.h.b16 %v762
        %v2381 = vunpack.c.l.b16 %v763
        %v2382 = vunpack.c.h.b16 %v763
        %v2383 = vunpack.c.l.b16 %v764
        %v2384 = vunpack.c.h.b16 %v764
        %v2385 = vunpack.c.l.b16 %v765
        %v2386 = vunpack.c.h.b16 %v765
        %v2387 = vunpack.c.l.b16 %v766
        %v2388 = vunpack.c.h.b16 %v766
        %v2389 = vunpack.c.l.b16 %v767
        %v2390 = vunpack.c.h.b16 %v767
        %v2391 = vunpack.c.l.b16 %v768
        %v2392 = vunpack.c.h.b16 %v768
        %v2393 = vunpack.c.l.b16 %v769
        %v2394 = vunpack.c.h.b16 %v769
        %v2395 = vunpack.c.l.b16 %v770
        %v2396 = vunpack.c.h.b16 %v770
        %v2397 = vunpack.c.l.b16 %v771
        %v2398 = vunpack.c.h.b16 %v771
        %v2399 = vunpack.c.l.b16 %v772
        %v2400 = vunpack.c.h.b16 %v772
        %v2401 = vunpack.c.l.b16 %v773
        %v2402 = vunpack.c.h.b16 %v773
        %v2403 = vunpack.c.l.b16 %v774
        %v2404 = vunpack.c.h.b16 %v774
        %v2405 = vunpack.c.l.b16 %v775
        %v2406 = vunpack.c.h.b16 %v775
        %v2407 = vunpack.c.l.b16 %v776
        %v2408 = vunpack.c.h.b16 %v776
        %v2409 = vunpack.c.l.b16 %v777
        %v2410 = vunpack.c.h.b16 %v777
        %v2411 = vunpack.c.l.b16 %v778
        %v2412 = vunpack.c.h.b16 %v778
        %v2413 = vunpack.c.l.b16 %v779
        %v2414 = vunpack.c.h.b16 %v779
        %v2415 = vunpack.c.l.b16 %v780
        %v2416 = vunpack.c.h.b16 %v780
        %v2417 = vunpack.c.l.b16 %v781
        %v2418 = vunpack.c.h.b16 %v781
        %v2419 = vunpack.c.l.b16 %v782
        %v2420 = vunpack.c.h.b16 %v782
        %v2421 = vunpack.c.l.b16 %v783
        %v2422 = vunpack.c.h.b16 %v783
        %v2423 = vunpack.c.l.b16 %v784
        %v2424 = vunpack.c.h.b16 %v784
        %v2425 = vunpack.c.l.b16 %v785
        %v2426 = vunpack.c.h.b16 %v785
        %v2427 = vunpack.c.l.b16 %v786
        %v2428 = vunpack.c.h.b16 %v786
        %v2429 = vunpack.c.l.b16 %v787
        %v2430 = vunpack.c.h.b16 %v787
        %v2431 = vunpack.c.l.b16 %v788
        %v2432 = vunpack.c.h.b16 %v788
        %v2433 = vunpack.c.l.b16 %v789
        %v2434 = vunpack.c.h.b16 %v789
        %v2435 = vunpack.c.l.b16 %v790
        %v2436 = vunpack.c.h.b16 %v790
        %v2437 = vunpack.c.l.b16 %v791
        %v2438 = vunpack.c.h.b16 %v791
        %v2439 = vunpack.c.l.b16 %v792
        %v2440 = vunpack.c.h.b16 %v792
        %v2441 = vunpack.c.l.b16 %v793
        %v2442 = vunpack.c.h.b16 %v793
        %v2443 = vunpack.c.l.b16 %v794
        %v2444 = vunpack.c.h.b16 %v794
        %v2445 = vunpack.c.l.b16 %v795
        %v2446 = vunpack.c.h.b16 %v795
        %v2447 = vunpack.c.l.b16 %v796
        %v2448 = vunpack.c.h.b16 %v796
        %v2449 = vpack.c.b16 %v1429, %v1425
        %v2450 = vpack.c.b16 %v1430, %v1426
        %v2451 = vpack.c.b16 %v1431, %v1427
        %v2452 = vpack.c.b16 %v1432, %v1428
        %v2453 = vpack.c.b16 %v1437, %v1433
        %v2454 = vpack.c.b16 %v1438, %v1434
        %v2455 = vpack.c.b16 %v1439, %v1435
        %v2456 = vpack.c.b16 %v1440, %v1436
        %v2457 = vpack.c.b16 %v1445, %v1441
        %v2458 = vpack.c.b16 %v1446, %v1442
        %v2459 = vpack.c.b16 %v1447, %v1443
        %v2460 = vpack.c.b16 %v1448, %v1444
        %v2461 = vpack.c.b16 %v1453, %v1449
        %v2462 = vpack.c.b16 %v1454, %v1450
        %v2463 = vpack.c.b16 %v1455, %v1451
        %v2464 = vpack.c.b16 %v1456, %v1452
        %v2465 = vpack.c.b16 %v1461, %v1457
        %v2466 = vpack.c.b16 %v1462, %v1458
        %v2467 = vpack.c.b16 %v1463, %v1459
        %v2468 = vpack.c.b16 %v1464, %v1460
        %v2469 = vpack.c.b16 %v1469, %v1465
        %v2470 = vpack.c.b16 %v1470, %v1466
        %v2471 = vpack.c.b16 %v1471, %v1467
        %v2472 = vpack.c.b16 %v1472, %v1468
        %v2473 = vpack.c.b16 %v1477, %v1473
        %v2474 = vpack.c.b16 %v1478, %v1474
        %v2475 = vpack.c.b16 %v1479, %v1475
        %v2476 = vpack.c.b16 %v1480, %v1476
        %v2477 = vpack.c.b16 %v1485, %v1481
        %v2478 = vpack.c.b16 %v1486, %v1482
        %v2479 = vpack.c.b16 %v1487, %v1483
        %v2480 = vpack.c.b16 %v1488, %v1484
        %v2481 = vpack.c.b16 %v1493, %v1489
        %v2482 = vpack.c.b16 %v1494, %v1490
        %v2483 = vpack.c.b16 %v1495, %v1491
        %v2484 = vpack.c.b16 %v1496, %v1492
        %v2485 = vpack.c.b16 %v1501, %v1497
        %v2486 = vpack.c.b16 %v1502, %v1498
        %v2487 = vpack.c.b16 %v1503, %v1499
        %v2488 = vpack.c.b16 %v1504, %v1500
        %v2489 = vpack.c.b16 %v1509, %v1505
        %v2490 = vpack.c.b16 %v1510, %v1506
        %v2491 = vpack.c.b16 %v1511, %v1507
        %v2492 = vpack.c.b16 %v1512, %v1508
        %v2493 = vpack.c.b16 %v1517, %v1513
        %v2494 = vpack.c.b16 %v1518, %v1514
        %v2495 = vpack.c.b16 %v1519, %v1515
        %v2496 = vpack.c.b16 %v1520, %v1516
        %v2497 = vpack.c.b16 %v1525, %v1521
        %v2498 = vpack.c.b16 %v1526, %v1522
        %v2499 = vpack.c.b16 %v1527, %v1523
        %v2500 = vpack.c.b16 %v1528, %v1524
        %v2501 = vpack.c.b16 %v1533, %v1529
        %v2502 = vpack.c.b16 %v1534, %v1530
        %v2503 = vpack.c.b16 %v1535, %v1531
        %v2504 = vpack.c.b16 %v1536, %v1532
        %v2505 = vpack.c.b16 %v1541, %v1537
        %v2506 = vpack.c.b16 %v1542, %v1538
        %v2507 = vpack.c.b16 %v1543, %v1539
        %v2508 = vpack.c.b16 %v1544, %v1540
        %v2509 = vpack.c.b16 %v1549, %v1545
        %v2510 = vpack.c.b16 %v1550, %v1546
        %v2511 = vpack.c.b16 %v1551, %v1547
        %v2512 = vpack.c.b16 %v1552, %v1548
        %v2513 = vpack.c.b16 %v1557, %v1553
        %v2514 = vpack.c.b16 %v1558, %v1554
        %v2515 = vpack.c.b16 %v1559, %v1555
        %v2516 = vpack.c.b16 %v1560, %v1556
        %v2517 = vpack.c.b16 %v1565, %v1561
        %v2518 = vpack.c.b16 %v1566, %v1562
        %v2519 = vpack.c.b16 %v1567, %v1563
        %v2520 = vpack.c.b16 %v1568, %v1564
        %v2521 = vpack.c.b16 %v1573, %v1569
        %v2522 = vpack.c.b16 %v1574, %v1570
        %v2523 = vpack.c.b16 %v1575, %v1571
        %v2524 = vpack.c.b16 %v1576, %v1572
        %v2525 = vpack.c.b16 %v1581, %v1577
        %v2526 = vpack.c.b16 %v1582, %v1578
        %v2527 = vpack.c.b16 %v1583, %v1579
        %v2528 = vpack.c.b16 %v1584, %v1580
        %v2529 = vpack.c.b16 %v1589, %v1585
        %v2530 = vpack.c.b16 %v1590, %v1586
        %v2531 = vpack.c.b16 %v1591, %v1587
        %v2532 = vpack.c.b16 %v1592, %v1588
        %v2533 = vpack.c.b16 %v1597, %v1593
        %v2534 = vpack.c.b16 %v1598, %v1594
        %v2535 = vpack.c.b16 %v1599, %v1595
        %v2536 = vpack.c.b16 %v1600, %v1596
        %v2537 = vpack.c.b16 %v1605, %v1601
        %v2538 = vpack.c.b16 %v1606, %v1602
        %v2539 = vpack.c.b16 %v1607, %v1603
        %v2540 = vpack.c.b16 %v1608, %v1604
        %v2541 = vpack.c.b16 %v1613, %v1609
        %v2542 = vpack.c.b16 %v1614, %v1610
        %v2543 = vpack.c.b16 %v1615, %v1611
        %v2544 = vpack.c.b16 %v1616, %v1612
        %v2545 = vpack.c.b16 %v1621, %v1617
        %v2546 = vpack.c.b16 %v1622, %v1618
        %v2547 = vpack.c.b16 %v1623, %v1619
        %v2548 = vpack.c.b16 %v1624, %v1620
        %v2549 = vpack.c.b16 %v1629, %v1625
        %v2550 = vpack.c.b16 %v1630, %v1626
        %v2551 = vpack.c.b16 %v1631, %v1627
        %v2552 = vpack.c.b16 %v1632, %v1628
        %v2553 = vpack.c.b16 %v1637, %v1633
        %v2554 = vpack.c.b16 %v1638, %v1634
        %v2555 = vpack.c.b16 %v1639, %v1635
        %v2556 = vpack.c.b16 %v1640, %v1636
        %v2557 = vpack.c.b16 %v1645, %v1641
        %v2558 = vpack.c.b16 %v1646, %v1642
        %v2559 = vpack.c.b16 %v1647, %v1643
        %v2560 = vpack.c.b16 %v1648, %v1644
        %v2561 = vpack.c.b16 %v1653, %v1649
        %v2562 = vpack.c.b16 %v1654, %v1650
        %v2563 = vpack.c.b16 %v1655, %v1651
        %v2564 = vpack.c.b16 %v1656, %v1652
        %v2565 = vpack.c.b16 %v1661, %v1657
        %v2566 = vpack.c.b16 %v1662, %v1658
        %v2567 = vpack.c.b16 %v1663, %v1659
        %v2568 = vpack.c.b16 %v1664, %v1660
        %v2569 = vpack.c.b16 %v1669, %v1665
        %v2570 = vpack.c.b16 %v1670, %v1666
        %v2571 = vpack.c.b16 %v1671, %v1667
        %v2572 = vpack.c.b16 %v1672, %v1668
        %v2573 = vpack.c.b16 %v1677, %v1673
        %v2574 = vpack.c.b16 %v1678, %v1674
        %v2575 = vpack.c.b16 %v1679, %v1675
        %v2576 = vpack.c.b16 %v1680, %v1676
        %v2577 = vpack.c.b16 %v1685, %v1681
        %v2578 = vpack.c.b16 %v1686, %v1682
        %v2579 = vpack.c.b16 %v1687, %v1683
        %v2580 = vpack.c.b16 %v1688, %v1684
        %v2581 = vpack.c.b16 %v1693, %v1689
        %v2582 = vpack.c.b16 %v1694, %v1690
        %v2583 = vpack.c.b16 %v1695, %v1691
        %v2584 = vpack.c.b16 %v1696, %v1692
        %v2585 = vpack.c.b16 %v1701, %v1697
        %v2586 = vpack.c.b16 %v1702, %v1698
        %v2587 = vpack.c.b16 %v1703, %v1699
        %v2588 = vpack.c.b16 %v1704, %v1700
        %v2589 = vpack.c.b16 %v1709, %v1705
        %v2590 = vpack.c.b16 %v1710, %v1706
        %v2591 = vpack.c.b16 %v1711, %v1707
        %v2592 = vpack.c.b16 %v1712, %v1708
        %v2593 = vpack.c.b16 %v1717, %v1713
        %v2594 = vpack.c.b16 %v1718, %v1714
        %v2595 = vpack.c.b16 %v1719, %v1715
        %v2596 = vpack.c.b16 %v1720, %v1716
        %v2597 = vpack.c.b16 %v1725, %v1721
        %v2598 = vpack.c.b16 %v1726, %v1722
        %v2599 = vpack.c.b16 %v1727, %v1723
        %v2600 = vpack.c.b16 %v1728, %v1724
        %v2601 = vpack.c.b16 %v1733, %v1729
        %v2602 = vpack.c.b16 %v1734, %v1730
        %v2603 = vpack.c.b16 %v1735, %v1731
        %v2604 = vpack.c.b16 %v1736, %v1732
        %v2605 = vpack.c.b16 %v1741, %v1737
        %v2606 = vpack.c.b16 %v1742, %v1738
        %v2607 = vpack.c.b16 %v1743, %v1739
        %v2608 = vpack.c.b16 %v1744, %v1740
        %v2609 = vpack.c.b16 %v1749, %v1745
        %v2610 = vpack.c.b16 %v1750, %v1746
        %v2611 = vpack.c.b16 %v1751, %v1747
        %v2612 = vpack.c.b16 %v1752, %v1748
        %v2613 = vpack.c.b16 %v1757, %v1753
        %v2614 = vpack.c.b16 %v1758, %v1754
        %v2615 = vpack.c.b16 %v1759, %v1755
        %v2616 = vpack.c.b16 %v1760, %v1756
        %v2617 = vpack.c.b16 %v1765, %v1761
        %v2618 = vpack.c.b16 %v1766, %v1762
        %v2619 = vpack.c.b16 %v1767, %v1763
        %v2620 = vpack.c.b16 %v1768, %v1764
        %v2621 = vpack.c.b16 %v1773, %v1769
        %v2622 = vpack.c.b16 %v1774, %v1770
        %v2623 = vpack.c.b16 %v1775, %v1771
        %v2624 = vpack.c.b16 %v1776, %v1772
        %v2625 = vpack.c.b16 %v1781, %v1777
        %v2626 = vpack.c.b16 %v1782, %v1778
        %v2627 = vpack.c.b16 %v1783, %v1779
        %v2628 = vpack.c.b16 %v1784, %v1780
        %v2629 = vpack.c.b16 %v1789, %v1785
        %v2630 = vpack.c.b16 %v1790, %v1786
        %v2631 = vpack.c.b16 %v1791, %v1787
        %v2632 = vpack.c.b16 %v1792, %v1788
        %v2633 = vpack.c.b16 %v1797, %v1793
        %v2634 = vpack.c.b16 %v1798, %v1794
        %v2635 = vpack.c.b16 %v1799, %v1795
        %v2636 = vpack.c.b16 %v1800, %v1796
        %v2637 = vpack.c.b16 %v1805, %v1801
        %v2638 = vpack.c.b16 %v1806, %v1802
        %v2639 = vpack.c.b16 %v1807, %v1803
        %v2640 = vpack.c.b16 %v1808, %v1804
        %v2641 = vpack.c.b16 %v1813, %v1809
        %v2642 = vpack.c.b16 %v1814, %v1810
        %v2643 = vpack.c.b16 %v1815, %v1811
        %v2644 = vpack.c.b16 %v1816, %v1812
        %v2645 = vpack.c.b16 %v1821, %v1817
        %v2646 = vpack.c.b16 %v1822, %v1818
        %v2647 = vpack.c.b16 %v1823, %v1819
        %v2648 = vpack.c.b16 %v1824, %v1820
        %v2649 = vpack.c.b16 %v1829, %v1825
        %v2650 = vpack.c.b16 %v1830, %v1826
        %v2651 = vpack.c.b16 %v1831, %v1827
        %v2652 = vpack.c.b16 %v1832, %v1828
        %v2653 = vpack.c.b16 %v1837, %v1833
        %v2654 = vpack.c.b16 %v1838, %v1834
        %v2655 = vpack.c.b16 %v1839, %v1835
        %v2656 = vpack.c.b16 %v1840, %v1836
        %v2657 = vpack.c.b16 %v1845, %v1841
        %v2658 = vpack.c.b16 %v1846, %v1842
        %v2659 = vpack.c.b16 %v1847, %v1843
        %v2660 = vpack.c.b16 %v1848, %v1844
        %v2661 = vpack.c.b16 %v1853, %v1849
        %v2662 = vpack.c.b16 %v1854, %v1850
        %v2663 = vpack.c.b16 %v1855, %v1851
        %v2664 = vpack.c.b16 %v1856, %v1852
        %v2665 = vpack.c.b16 %v1861, %v1857
        %v2666 = vpack.c.b16 %v1862, %v1858
        %v2667 = vpack.c.b16 %v1863, %v1859
        %v2668 = vpack.c.b16 %v1864, %v1860
        %v2669 = vpack.c.b16 %v1869, %v1865
        %v2670 = vpack.c.b16 %v1870, %v1866
        %v2671 = vpack.c.b16 %v1871, %v1867
        %v2672 = vpack.c.b16 %v1872, %v1868
        %v2673 = vpack.c.b16 %v1877, %v1873
        %v2674 = vpack.c.b16 %v1878, %v1874
        %v2675 = vpack.c.b16 %v1879, %v1875
        %v2676 = vpack.c.b16 %v1880, %v1876
        %v2677 = vpack.c.b16 %v1885, %v1881
        %v2678 = vpack.c.b16 %v1886, %v1882
        %v2679 = vpack.c.b16 %v1887, %v1883
        %v2680 = vpack.c.b16 %v1888, %v1884
        %v2681 = vpack.c.b16 %v1893, %v1889
        %v2682 = vpack.c.b16 %v1894, %v1890
        %v2683 = vpack.c.b16 %v1895, %v1891
        %v2684 = vpack.c.b16 %v1896, %v1892
        %v2685 = vpack.c.b16 %v1901, %v1897
        %v2686 = vpack.c.b16 %v1902, %v1898
        %v2687 = vpack.c.b16 %v1903, %v1899
        %v2688 = vpack.c.b16 %v1904, %v1900
        %v2689 = vpack.c.b16 %v1909, %v1905
        %v2690 = vpack.c.b16 %v1910, %v1906
        %v2691 = vpack.c.b16 %v1911, %v1907
        %v2692 = vpack.c.b16 %v1912, %v1908
        %v2693 = vpack.c.b16 %v1917, %v1913
        %v2694 = vpack.c.b16 %v1918, %v1914
        %v2695 = vpack.c.b16 %v1919, %v1915
        %v2696 = vpack.c.b16 %v1920, %v1916
        %v2697 = vpack.c.b16 %v1925, %v1921
        %v2698 = vpack.c.b16 %v1926, %v1922
        %v2699 = vpack.c.b16 %v1927, %v1923
        %v2700 = vpack.c.b16 %v1928, %v1924
        %v2701 = vpack.c.b16 %v1933, %v1929
        %v2702 = vpack.c.b16 %v1934, %v1930
        %v2703 = vpack.c.b16 %v1935, %v1931
        %v2704 = vpack.c.b16 %v1936, %v1932
        %v2705 = vpack.c.b16 %v1941, %v1937
        %v2706 = vpack.c.b16 %v1942, %v1938
        %v2707 = vpack.c.b16 %v1943, %v1939
        %v2708 = vpack.c.b16 %v1944, %v1940
        %v2709 = vpack.c.b16 %v1949, %v1945
        %v2710 = vpack.c.b16 %v1950, %v1946
        %v2711 = vpack.c.b16 %v1951, %v1947
        %v2712 = vpack.c.b16 %v1952, %v1948
        %v2713 = vpack.c.b16 %v1957, %v1953
        %v2714 = vpack.c.b16 %v1958, %v1954
        %v2715 = vpack.c.b16 %v1959, %v1955
        %v2716 = vpack.c.b16 %v1960, %v1956
        %v2717 = vpack.c.b16 %v1965, %v1961
        %v2718 = vpack.c.b16 %v1966, %v1962
        %v2719 = vpack.c.b16 %v1967, %v1963
        %v2720 = vpack.c.b16 %v1968, %v1964
        %v2721 = vpack.c.b16 %v1973, %v1969
        %v2722 = vpack.c.b16 %v1974, %v1970
        %v2723 = vpack.c.b16 %v1975, %v1971
        %v2724 = vpack.c.b16 %v1976, %v1972
        %v2725 = vpack.c.b16 %v1981, %v1977
        %v2726 = vpack.c.b16 %v1982, %v1978
        %v2727 = vpack.c.b16 %v1983, %v1979
        %v2728 = vpack.c.b16 %v1984, %v1980
        %v2729 = vpack.c.b16 %v1989, %v1985
        %v2730 = vpack.c.b16 %v1990, %v1986
        %v2731 = vpack.c.b16 %v1991, %v1987
        %v2732 = vpack.c.b16 %v1992, %v1988
        %v2733 = vpack.c.b16 %v1997, %v1993
        %v2734 = vpack.c.b16 %v1998, %v1994
        %v2735 = vpack.c.b16 %v1999, %v1995
        %v2736 = vpack.c.b16 %v2000, %v1996
        %v2737 = vpack.c.b16 %v2005, %v2001
        %v2738 = vpack.c.b16 %v2006, %v2002
        %v2739 = vpack.c.b16 %v2007, %v2003
        %v2740 = vpack.c.b16 %v2008, %v2004
        %v2741 = vpack.c.b16 %v2013, %v2009
        %v2742 = vpack.c.b16 %v2014, %v2010
        %v2743 = vpack.c.b16 %v2015, %v2011
        %v2744 = vpack.c.b16 %v2016, %v2012
        %v2745 = vpack.c.b16 %v2021, %v2017
        %v2746 = vpack.c.b16 %v2022, %v2018
        %v2747 = vpack.c.b16 %v2023, %v2019
        %v2748 = vpack.c.b16 %v2024, %v2020
        %v2749 = vpack.c.b16 %v2029, %v2025
        %v2750 = vpack.c.b16 %v2030, %v2026
        %v2751 = vpack.c.b16 %v2031, %v2027
        %v2752 = vpack.c.b16 %v2032, %v2028
        %v2753 = vpack.c.b16 %v2037, %v2033
        %v2754 = vpack.c.b16 %v2038, %v2034
        %v2755 = vpack.c.b16 %v2039, %v2035
        %v2756 = vpack.c.b16 %v2040, %v2036
        %v2757 = vpack.c.b16 %v2045, %v2041
        %v2758 = vpack.c.b16 %v2046, %v2042
        %v2759 = vpack.c.b16 %v2047, %v2043
        %v2760 = vpack.c.b16 %v2048, %v2044
        %v2761 = vpack.c.b16 %v2053, %v2049
        %v2762 = vpack.c.b16 %v2054, %v2050
        %v2763 = vpack.c.b16 %v2055, %v2051
        %v2764 = vpack.c.b16 %v2056, %v2052
        %v2765 = vpack.c.b16 %v2061, %v2057
        %v2766 = vpack.c.b16 %v2062, %v2058
        %v2767 = vpack.c.b16 %v2063, %v2059
        %v2768 = vpack.c.b16 %v2064, %v2060
        %v2769 = vpack.c.b16 %v2069, %v2065
        %v2770 = vpack.c.b16 %v2070, %v2066
        %v2771 = vpack.c.b16 %v2071, %v2067
        %v2772 = vpack.c.b16 %v2072, %v2068
        %v2773 = vpack.c.b16 %v2077, %v2073
        %v2774 = vpack.c.b16 %v2078, %v2074
        %v2775 = vpack.c.b16 %v2079, %v2075
        %v2776 = vpack.c.b16 %v2080, %v2076
        %v2777 = vpack.c.b16 %v2085, %v2081
        %v2778 = vpack.c.b16 %v2086, %v2082
        %v2779 = vpack.c.b16 %v2087, %v2083
        %v2780 = vpack.c.b16 %v2088, %v2084
        %v2781 = vpack.c.b16 %v2093, %v2089
        %v2782 = vpack.c.b16 %v2094, %v2090
        %v2783 = vpack.c.b16 %v2095, %v2091
        %v2784 = vpack.c.b16 %v2096, %v2092
        %v2785 = vpack.c.b16 %v2101, %v2097
        %v2786 = vpack.c.b16 %v2102, %v2098
        %v2787 = vpack.c.b16 %v2103, %v2099
        %v2788 = vpack.c.b16 %v2104, %v2100
        %v2789 = vpack.c.b16 %v2109, %v2105
        %v2790 = vpack.c.b16 %v2110, %v2106
        %v2791 = vpack.c.b16 %v2111, %v2107
        %v2792 = vpack.c.b16 %v2112, %v2108
        %v2793 = vpack.c.b16 %v2117, %v2113
        %v2794 = vpack.c.b16 %v2118, %v2114
        %v2795 = vpack.c.b16 %v2119, %v2115
        %v2796 = vpack.c.b16 %v2120, %v2116
        %v2797 = vpack.c.b16 %v2125, %v2121
        %v2798 = vpack.c.b16 %v2126, %v2122
        %v2799 = vpack.c.b16 %v2127, %v2123
        %v2800 = vpack.c.b16 %v2128, %v2124
        %v2801 = vpack.c.b16 %v2133, %v2129
        %v2802 = vpack.c.b16 %v2134, %v2130
        %v2803 = vpack.c.b16 %v2135, %v2131
        %v2804 = vpack.c.b16 %v2136, %v2132
        %v2805 = vpack.c.b16 %v2141, %v2137
        %v2806 = vpack.c.b16 %v2142, %v2138
        %v2807 = vpack.c.b16 %v2143, %v2139
        %v2808 = vpack.c.b16 %v2144, %v2140
        %v2809 = vpack.c.b16 %v2149, %v2145
        %v2810 = vpack.c.b16 %v2150, %v2146
        %v2811 = vpack.c.b16 %v2151, %v2147
        %v2812 = vpack.c.b16 %v2152, %v2148
        %v2813 = vpack.c.b16 %v2157, %v2153
        %v2814 = vpack.c.b16 %v2158, %v2154
        %v2815 = vpack.c.b16 %v2159, %v2155
        %v2816 = vpack.c.b16 %v2160, %v2156
        %v2817 = vpack.c.b16 %v2165, %v2161
        %v2818 = vpack.c.b16 %v2166, %v2162
        %v2819 = vpack.c.b16 %v2167, %v2163
        %v2820 = vpack.c.b16 %v2168, %v2164
        %v2821 = vpack.c.b16 %v2173, %v2169
        %v2822 = vpack.c.b16 %v2174, %v2170
        %v2823 = vpack.c.b16 %v2175, %v2171
        %v2824 = vpack.c.b16 %v2176, %v2172
        %v2825 = vpack.c.b16 %v2181, %v2177
        %v2826 = vpack.c.b16 %v2182, %v2178
        %v2827 = vpack.c.b16 %v2183, %v2179
        %v2828 = vpack.c.b16 %v2184, %v2180
        %v2829 = vpack.c.b16 %v2189, %v2185
        %v2830 = vpack.c.b16 %v2190, %v2186
        %v2831 = vpack.c.b16 %v2191, %v2187
        %v2832 = vpack.c.b16 %v2192, %v2188
        %v2833 = vpack.c.b16 %v2197, %v2193
        %v2834 = vpack.c.b16 %v2198, %v2194
        %v2835 = vpack.c.b16 %v2199, %v2195
        %v2836 = vpack.c.b16 %v2200, %v2196
        %v2837 = vpack.c.b16 %v2205, %v2201
        %v2838 = vpack.c.b16 %v2206, %v2202
        %v2839 = vpack.c.b16 %v2207, %v2203
        %v2840 = vpack.c.b16 %v2208, %v2204
        %v2841 = vpack.c.b16 %v2213, %v2209
        %v2842 = vpack.c.b16 %v2214, %v2210
        %v2843 = vpack.c.b16 %v2215, %v2211
        %v2844 = vpack.c.b16 %v2216, %v2212
        %v2845 = vpack.c.b16 %v2221, %v2217
        %v2846 = vpack.c.b16 %v2222, %v2218
        %v2847 = vpack.c.b16 %v2223, %v2219
        %v2848 = vpack.c.b16 %v2224, %v2220
        %v2849 = vpack.c.b16 %v2229, %v2225
        %v2850 = vpack.c.b16 %v2230, %v2226
        %v2851 = vpack.c.b16 %v2231, %v2227
        %v2852 = vpack.c.b16 %v2232, %v2228
        %v2853 = vpack.c.b16 %v2237, %v2233
        %v2854 = vpack.c.b16 %v2238, %v2234
        %v2855 = vpack.c.b16 %v2239, %v2235
        %v2856 = vpack.c.b16 %v2240, %v2236
        %v2857 = vpack.c.b16 %v2245, %v2241
        %v2858 = vpack.c.b16 %v2246, %v2242
        %v2859 = vpack.c.b16 %v2247, %v2243
        %v2860 = vpack.c.b16 %v2248, %v2244
        %v2861 = vpack.c.b16 %v2253, %v2249
        %v2862 = vpack.c.b16 %v2254, %v2250
        %v2863 = vpack.c.b16 %v2255, %v2251
        %v2864 = vpack.c.b16 %v2256, %v2252
        %v2865 = vpack.c.b16 %v2261, %v2257
        %v2866 = vpack.c.b16 %v2262, %v2258
        %v2867 = vpack.c.b16 %v2263, %v2259
        %v2868 = vpack.c.b16 %v2264, %v2260
        %v2869 = vpack.c.b16 %v2269, %v2265
        %v2870 = vpack.c.b16 %v2270, %v2266
        %v2871 = vpack.c.b16 %v2271, %v2267
        %v2872 = vpack.c.b16 %v2272, %v2268
        %v2873 = vpack.c.b16 %v2277, %v2273
        %v2874 = vpack.c.b16 %v2278, %v2274
        %v2875 = vpack.c.b16 %v2279, %v2275
        %v2876 = vpack.c.b16 %v2280, %v2276
        %v2877 = vpack.c.b16 %v2285, %v2281
        %v2878 = vpack.c.b16 %v2286, %v2282
        %v2879 = vpack.c.b16 %v2287, %v2283
        %v2880 = vpack.c.b16 %v2288, %v2284
        %v2881 = vpack.c.b16 %v2293, %v2289
        %v2882 = vpack.c.b16 %v2294, %v2290
        %v2883 = vpack.c.b16 %v2295, %v2291
        %v2884 = vpack.c.b16 %v2296, %v2292
        %v2885 = vpack.c.b16 %v2301, %v2297
        %v2886 = vpack.c.b16 %v2302, %v2298
        %v2887 = vpack.c.b16 %v2303, %v2299
        %v2888 = vpack.c.b16 %v2304, %v2300
        %v2889 = vpack.c.b16 %v2309, %v2305
        %v2890 = vpack.c.b16 %v2310, %v2306
        %v2891 = vpack.c.b16 %v2311, %v2307
        %v2892 = vpack.c.b16 %v2312, %v2308
        %v2893 = vpack.c.b16 %v2317, %v2313
        %v2894 = vpack.c.b16 %v2318, %v2314
        %v2895 = vpack.c.b16 %v2319, %v2315
        %v2896 = vpack.c.b16 %v2320, %v2316
        %v2897 = vpack.c.b16 %v2325, %v2321
        %v2898 = vpack.c.b16 %v2326, %v2322
        %v2899 = vpack.c.b16 %v2327, %v2323
        %v2900 = vpack.c.b16 %v2328, %v2324
        %v2901 = vpack.c.b16 %v2333, %v2329
        %v2902 = vpack.c.b16 %v2334, %v2330
        %v2903 = vpack.c.b16 %v2335, %v2331
        %v2904 = vpack.c.b16 %v2336, %v2332
        %v2905 = vpack.c.b16 %v2341, %v2337
        %v2906 = vpack.c.b16 %v2342, %v2338
        %v2907 = vpack.c.b16 %v2343, %v2339
        %v2908 = vpack.c.b16 %v2344, %v2340
        %v2909 = vpack.c.b16 %v2349, %v2345
        %v2910 = vpack.c.b16 %v2350, %v2346
        %v2911 = vpack.c.b16 %v2351, %v2347
        %v2912 = vpack.c.b16 %v2352, %v2348
        %v2913 = vpack.c.b16 %v2357, %v2353
        %v2914 = vpack.c.b16 %v2358, %v2354
        %v2915 = vpack.c.b16 %v2359, %v2355
        %v2916 = vpack.c.b16 %v2360, %v2356
        %v2917 = vpack.c.b16 %v2365, %v2361
        %v2918 = vpack.c.b16 %v2366, %v2362
        %v2919 = vpack.c.b16 %v2367, %v2363
        %v2920 = vpack.c.b16 %v2368, %v2364
        %v2921 = vpack.c.b16 %v2373, %v2369
        %v2922 = vpack.c.b16 %v2374, %v2370
        %v2923 = vpack.c.b16 %v2375, %v2371
        %v2924 = vpack.c.b16 %v2376, %v2372
        %v2925 = vpack.c.b16 %v2381, %v2377
        %v2926 = vpack.c.b16 %v2382, %v2378
        %v2927 = vpack.c.b16 %v2383, %v2379
        %v2928 = vpack.c.b16 %v2384, %v2380
        %v2929 = vpack.c.b16 %v2389, %v2385
        %v2930 = vpack.c.b16 %v2390, %v2386
        %v2931 = vpack.c.b16 %v2391, %v2387
        %v2932 = vpack.c.b16 %v2392, %v2388
        %v2933 = vpack.c.b16 %v2397, %v2393
        %v2934 = vpack.c.b16 %v2398, %v2394
        %v2935 = vpack.c.b16 %v2399, %v2395
        %v2936 = vpack.c.b16 %v2400, %v2396
        %v2937 = vpack.c.b16 %v2405, %v2401
        %v2938 = vpack.c.b16 %v2406, %v2402
        %v2939 = vpack.c.b16 %v2407, %v2403
        %v2940 = vpack.c.b16 %v2408, %v2404
        %v2941 = vpack.c.b16 %v2413, %v2409
        %v2942 = vpack.c.b16 %v2414, %v2410
        %v2943 = vpack.c.b16 %v2415, %v2411
        %v2944 = vpack.c.b16 %v2416, %v2412
        %v2945 = vpack.c.b16 %v2421, %v2417
        %v2946 = vpack.c.b16 %v2422, %v2418
        %v2947 = vpack.c.b16 %v2423, %v2419
        %v2948 = vpack.c.b16 %v2424, %v2420
        %v2949 = vpack.c.b16 %v2429, %v2425
        %v2950 = vpack.c.b16 %v2430, %v2426
        %v2951 = vpack.c.b16 %v2431, %v2427
        %v2952 = vpack.c.b16 %v2432, %v2428
        %v2953 = vpack.c.b16 %v2437, %v2433
        %v2954 = vpack.c.b16 %v2438, %v2434
        %v2955 = vpack.c.b16 %v2439, %v2435
        %v2956 = vpack.c.b16 %v2440, %v2436
        %v2957 = vpack.c.b16 %v2445, %v2441
        %v2958 = vpack.c.b16 %v2446, %v2442
        %v2959 = vpack.c.b16 %v2447, %v2443
        %v2960 = vpack.c.b16 %v2448, %v2444
        %3473 = vmatprep.subr.bf16.mxu0 %v2450
        %3474 = vmatpush1.bf16.msra.mxu0 %v2449
        %3475 = vmatprep.subr.bf16.mxu0 %v2454
        %3476 = vmatpush1.bf16.msra.mxu0 %v2453
        %3477 = vmatprep.subr.bf16.mxu0 %v2458
        %3478 = vmatpush1.bf16.msra.mxu0 %v2457
        %3479 = vmatprep.subr.bf16.mxu0 %v2462
        %3480 = vmatpush1.bf16.msra.mxu0 %v2461
        %3481 = vmatprep.subr.bf16.mxu0 %v2466
        %3482 = vmatpush1.bf16.msra.mxu0 %v2465
        %3483 = vmatprep.subr.bf16.mxu0 %v2470
        %3484 = vmatpush1.bf16.msra.mxu0 %v2469
        %3485 = vmatprep.subr.bf16.mxu0 %v2474
        %3486 = vmatpush1.bf16.msra.mxu0 %v2473
        %3487 = vmatprep.subr.bf16.mxu0 %v2478
        %3488 = vmatpush1.bf16.msra.mxu0 %v2477
        %3489 = vmatprep.subr.bf16.mxu0 %v2482
        %3490 = vmatpush1.bf16.msra.mxu0 %v2481
        %3491 = vmatprep.subr.bf16.mxu0 %v2486
        %3492 = vmatpush1.bf16.msra.mxu0 %v2485
        %3493 = vmatprep.subr.bf16.mxu0 %v2490
        %3494 = vmatpush1.bf16.msra.mxu0 %v2489
        %3495 = vmatprep.subr.bf16.mxu0 %v2494
        %3496 = vmatpush1.bf16.msra.mxu0 %v2493
        %3497 = vmatprep.subr.bf16.mxu0 %v2498
        %3498 = vmatpush1.bf16.msra.mxu0 %v2497
        %3499 = vmatprep.subr.bf16.mxu0 %v2502
        %3500 = vmatpush1.bf16.msra.mxu0 %v2501
        %3501 = vmatprep.subr.bf16.mxu0 %v2506
        %3502 = vmatpush1.bf16.msra.mxu0 %v2505
        %3503 = vmatprep.subr.bf16.mxu0 %v2510
        %3504 = vmatpush1.bf16.msra.mxu0 %v2509
        %3505 = vmatprep.mubr.bf16.mxu0 %v836
        %3506 = vmatmul.mubr.bf16.gmra.mrb[0].mxu0 %v822
        %v3507 = vpop.f32.mrb[0].mxu0
        %v3508 = vadd.f32 0.0, %v3507
        %v3509 = vpop.f32.mrb[0].mxu0
        %v3510 = vadd.f32 0.0, %v3509
        %v3511 = vpop.f32.mrb[0].mxu0
        %v3512 = vpop.f32.mrb[0].mxu0
        %3513 = vdwg.mxu0
        %3514 = vmatprep.subr.bf16.mxu0 %v2514
        %3515 = vmatpush1.bf16.msra.mxu0 %v2513
        %3516 = vmatprep.subr.bf16.mxu0 %v2518
        %3517 = vmatpush1.bf16.msra.mxu0 %v2517
        %3518 = vmatprep.subr.bf16.mxu0 %v2522
        %3519 = vmatpush1.bf16.msra.mxu0 %v2521
        %3520 = vmatprep.subr.bf16.mxu0 %v2526
        %3521 = vmatpush1.bf16.msra.mxu0 %v2525
        %3522 = vmatprep.subr.bf16.mxu0 %v2530
        %3523 = vmatpush1.bf16.msra.mxu0 %v2529
        %3524 = vmatprep.subr.bf16.mxu0 %v2534
        %3525 = vmatpush1.bf16.msra.mxu0 %v2533
        %3526 = vmatprep.subr.bf16.mxu0 %v2538
        %3527 = vmatpush1.bf16.msra.mxu0 %v2537
        %3528 = vmatprep.subr.bf16.mxu0 %v2542
        %3529 = vmatpush1.bf16.msra.mxu0 %v2541
        %3530 = vmatprep.subr.bf16.mxu0 %v2546
        %3531 = vmatpush1.bf16.msra.mxu0 %v2545
        %3532 = vmatprep.subr.bf16.mxu0 %v2550
        %3533 = vmatpush1.bf16.msra.mxu0 %v2549
        %3534 = vmatprep.subr.bf16.mxu0 %v2554
        %3535 = vmatpush1.bf16.msra.mxu0 %v2553
        %3536 = vmatprep.subr.bf16.mxu0 %v2558
        %3537 = vmatpush1.bf16.msra.mxu0 %v2557
        %3538 = vmatprep.subr.bf16.mxu0 %v2562
        %3539 = vmatpush1.bf16.msra.mxu0 %v2561
        %3540 = vmatprep.subr.bf16.mxu0 %v2566
        %3541 = vmatpush1.bf16.msra.mxu0 %v2565
        %3542 = vmatprep.subr.bf16.mxu0 %v2570
        %3543 = vmatpush1.bf16.msra.mxu0 %v2569
        %3544 = vmatprep.subr.bf16.mxu0 %v2574
        %3545 = vmatpush1.bf16.msra.mxu0 %v2573
        %3546 = vmatprep.mubr.bf16.mxu0 %v846
        %3547 = vmatmul.mubr.bf16.gmra.mrb[0].mxu0 %v844
        %v3548 = vpop.f32.mrb[0].mxu0
        %v3549 = vadd.f32 %v3508, %v3548
        %v3550 = vpop.f32.mrb[0].mxu0
        %v3551 = vadd.f32 %v3510, %v3550
        %v3552 = vpop.f32.mrb[0].mxu0
        %v3553 = vpop.f32.mrb[0].mxu0
        %3554 = vdwg.mxu0
        %3555 = vmatprep.subr.bf16.mxu0 %v2578
        %3556 = vmatpush1.bf16.msra.mxu0 %v2577
        %3557 = vmatprep.subr.bf16.mxu0 %v2582
        %3558 = vmatpush1.bf16.msra.mxu0 %v2581
        %3559 = vmatprep.subr.bf16.mxu0 %v2586
        %3560 = vmatpush1.bf16.msra.mxu0 %v2585
        %3561 = vmatprep.subr.bf16.mxu0 %v2590
        %3562 = vmatpush1.bf16.msra.mxu0 %v2589
        %3563 = vmatprep.subr.bf16.mxu0 %v2594
        %3564 = vmatpush1.bf16.msra.mxu0 %v2593
        %3565 = vmatprep.subr.bf16.mxu0 %v2598
        %3566 = vmatpush1.bf16.msra.mxu0 %v2597
        %3567 = vmatprep.subr.bf16.mxu0 %v2602
        %3568 = vmatpush1.bf16.msra.mxu0 %v2601
        %3569 = vmatprep.subr.bf16.mxu0 %v2606
        %3570 = vmatpush1.bf16.msra.mxu0 %v2605
        %3571 = vmatprep.subr.bf16.mxu0 %v2610
        %3572 = vmatpush1.bf16.msra.mxu0 %v2609
        %3573 = vmatprep.subr.bf16.mxu0 %v2614
        %3574 = vmatpush1.bf16.msra.mxu0 %v2613
        %3575 = vmatprep.subr.bf16.mxu0 %v2618
        %3576 = vmatpush1.bf16.msra.mxu0 %v2617
        %3577 = vmatprep.subr.bf16.mxu0 %v2622
        %3578 = vmatpush1.bf16.msra.mxu0 %v2621
        %3579 = vmatprep.subr.bf16.mxu0 %v2626
        %3580 = vmatpush1.bf16.msra.mxu0 %v2625
        %3581 = vmatprep.subr.bf16.mxu0 %v2630
        %3582 = vmatpush1.bf16.msra.mxu0 %v2629
        %3583 = vmatprep.subr.bf16.mxu0 %v2634
        %3584 = vmatpush1.bf16.msra.mxu0 %v2633
        %3585 = vmatprep.subr.bf16.mxu0 %v2638
        %3586 = vmatpush1.bf16.msra.mxu0 %v2637
        %3587 = vmatprep.mubr.bf16.mxu0 %v843
        %3588 = vmatmul.mubr.bf16.gmra.mrb[0].mxu0 %v829
        %v3589 = vpop.f32.mrb[0].mxu0
        %v3590 = vadd.f32 %v3549, %v3589
        %v3591 = vpop.f32.mrb[0].mxu0
        %v3592 = vadd.f32 %v3551, %v3591
        %v3593 = vpop.f32.mrb[0].mxu0
        %v3594 = vpop.f32.mrb[0].mxu0
        %3595 = vdwg.mxu0
        %3596 = vmatprep.subr.bf16.mxu0 %v2642
        %3597 = vmatpush1.bf16.msra.mxu0 %v2641
        %3598 = vmatprep.subr.bf16.mxu0 %v2646
        %3599 = vmatpush1.bf16.msra.mxu0 %v2645
        %3600 = vmatprep.subr.bf16.mxu0 %v2650
        %3601 = vmatpush1.bf16.msra.mxu0 %v2649
        %3602 = vmatprep.subr.bf16.mxu0 %v2654
        %3603 = vmatpush1.bf16.msra.mxu0 %v2653
        %3604 = vmatprep.subr.bf16.mxu0 %v2658
        %3605 = vmatpush1.bf16.msra.mxu0 %v2657
        %3606 = vmatprep.subr.bf16.mxu0 %v2662
        %3607 = vmatpush1.bf16.msra.mxu0 %v2661
        %3608 = vmatprep.subr.bf16.mxu0 %v2666
        %3609 = vmatpush1.bf16.msra.mxu0 %v2665
        %3610 = vmatprep.subr.bf16.mxu0 %v2670
        %3611 = vmatpush1.bf16.msra.mxu0 %v2669
        %3612 = vmatprep.subr.bf16.mxu0 %v2674
        %3613 = vmatpush1.bf16.msra.mxu0 %v2673
        %3614 = vmatprep.subr.bf16.mxu0 %v2678
        %3615 = vmatpush1.bf16.msra.mxu0 %v2677
        %3616 = vmatprep.subr.bf16.mxu0 %v2682
        %3617 = vmatpush1.bf16.msra.mxu0 %v2681
        %3618 = vmatprep.subr.bf16.mxu0 %v2686
        %3619 = vmatpush1.bf16.msra.mxu0 %v2685
        %3620 = vmatprep.subr.bf16.mxu0 %v2690
        %3621 = vmatpush1.bf16.msra.mxu0 %v2689
        %3622 = vmatprep.subr.bf16.mxu0 %v2694
        %3623 = vmatpush1.bf16.msra.mxu0 %v2693
        %3624 = vmatprep.subr.bf16.mxu0 %v2698
        %3625 = vmatpush1.bf16.msra.mxu0 %v2697
        %3626 = vmatprep.subr.bf16.mxu0 %v2702
        %3627 = vmatpush1.bf16.msra.mxu0 %v2701
        %3628 = vmatprep.mubr.bf16.mxu0 %v847
        %3629 = vmatmul.mubr.bf16.gmra.mrb[0].mxu0 %v845
        %v3630 = vpop.f32.mrb[0].mxu0
        %v3631 = vadd.f32 %v3590, %v3630
        %v3632 = vpop.f32.mrb[0].mxu0
        %v3633 = vadd.f32 %v3592, %v3632
        %v3634 = vpop.f32.mrb[0].mxu0
        %v3635 = vpop.f32.mrb[0].mxu0
        %3636 = vdwg.mxu0
        %3637 = vmatprep.subr.bf16.mxu0 %v2706
        %3638 = vmatpush1.bf16.msra.mxu0 %v2705
        %3639 = vmatprep.subr.bf16.mxu0 %v2710
        %3640 = vmatpush1.bf16.msra.mxu0 %v2709
        %3641 = vmatprep.subr.bf16.mxu0 %v2714
        %3642 = vmatpush1.bf16.msra.mxu0 %v2713
        %3643 = vmatprep.subr.bf16.mxu0 %v2718
        %3644 = vmatpush1.bf16.msra.mxu0 %v2717
        %3645 = vmatprep.subr.bf16.mxu0 %v2722
        %3646 = vmatpush1.bf16.msra.mxu0 %v2721
        %3647 = vmatprep.subr.bf16.mxu0 %v2726
        %3648 = vmatpush1.bf16.msra.mxu0 %v2725
        %3649 = vmatprep.subr.bf16.mxu0 %v2730
        %3650 = vmatpush1.bf16.msra.mxu0 %v2729
        %3651 = vmatprep.subr.bf16.mxu0 %v2734
        %3652 = vmatpush1.bf16.msra.mxu0 %v2733
        %3653 = vmatprep.subr.bf16.mxu0 %v2738
        %3654 = vmatpush1.bf16.msra.mxu0 %v2737
        %3655 = vmatprep.subr.bf16.mxu0 %v2742
        %3656 = vmatpush1.bf16.msra.mxu0 %v2741
        %3657 = vmatprep.subr.bf16.mxu0 %v2746
        %3658 = vmatpush1.bf16.msra.mxu0 %v2745
        %3659 = vmatprep.subr.bf16.mxu0 %v2750
        %3660 = vmatpush1.bf16.msra.mxu0 %v2749
        %3661 = vmatprep.subr.bf16.mxu0 %v2754
        %3662 = vmatpush1.bf16.msra.mxu0 %v2753
        %3663 = vmatprep.subr.bf16.mxu0 %v2758
        %3664 = vmatpush1.bf16.msra.mxu0 %v2757
        %3665 = vmatprep.subr.bf16.mxu0 %v2762
        %3666 = vmatpush1.bf16.msra.mxu0 %v2761
        %3667 = vmatprep.subr.bf16.mxu0 %v2766
        %3668 = vmatpush1.bf16.msra.mxu0 %v2765
        %3669 = vmatprep.mubr.bf16.mxu0 %v885
        %3670 = vmatmul.mubr.bf16.gmra.mrb[0].mxu0 %v871
        %v3671 = vpop.f32.mrb[0].mxu0
        %v3672 = vadd.f32 %v3631, %v3671
        %v3673 = vpop.f32.mrb[0].mxu0
        %v3674 = vadd.f32 %v3633, %v3673
        %v3675 = vpop.f32.mrb[0].mxu0
        %v3676 = vpop.f32.mrb[0].mxu0
        %3677 = vdwg.mxu0
        %3678 = vmatprep.subr.bf16.mxu0 %v2770
        %3679 = vmatpush1.bf16.msra.mxu0 %v2769
        %3680 = vmatprep.subr.bf16.mxu0 %v2774
        %3681 = vmatpush1.bf16.msra.mxu0 %v2773
        %3682 = vmatprep.subr.bf16.mxu0 %v2778
        %3683 = vmatpush1.bf16.msra.mxu0 %v2777
        %3684 = vmatprep.subr.bf16.mxu0 %v2782
        %3685 = vmatpush1.bf16.msra.mxu0 %v2781
        %3686 = vmatprep.subr.bf16.mxu0 %v2786
        %3687 = vmatpush1.bf16.msra.mxu0 %v2785
        %3688 = vmatprep.subr.bf16.mxu0 %v2790
        %3689 = vmatpush1.bf16.msra.mxu0 %v2789
        %3690 = vmatprep.subr.bf16.mxu0 %v2794
        %3691 = vmatpush1.bf16.msra.mxu0 %v2793
        %3692 = vmatprep.subr.bf16.mxu0 %v2798
        %3693 = vmatpush1.bf16.msra.mxu0 %v2797
        %3694 = vmatprep.subr.bf16.mxu0 %v2802
        %3695 = vmatpush1.bf16.msra.mxu0 %v2801
        %3696 = vmatprep.subr.bf16.mxu0 %v2806
        %3697 = vmatpush1.bf16.msra.mxu0 %v2805
        %3698 = vmatprep.subr.bf16.mxu0 %v2810
        %3699 = vmatpush1.bf16.msra.mxu0 %v2809
        %3700 = vmatprep.subr.bf16.mxu0 %v2814
        %3701 = vmatpush1.bf16.msra.mxu0 %v2813
        %3702 = vmatprep.subr.bf16.mxu0 %v2818
        %3703 = vmatpush1.bf16.msra.mxu0 %v2817
        %3704 = vmatprep.subr.bf16.mxu0 %v2822
        %3705 = vmatpush1.bf16.msra.mxu0 %v2821
        %3706 = vmatprep.subr.bf16.mxu0 %v2826
        %3707 = vmatpush1.bf16.msra.mxu0 %v2825
        %3708 = vmatprep.subr.bf16.mxu0 %v2830
        %3709 = vmatpush1.bf16.msra.mxu0 %v2829
        %3710 = vmatprep.mubr.bf16.mxu0 %v895
        %3711 = vmatmul.mubr.bf16.gmra.mrb[0].mxu0 %v893
        %v3712 = vpop.f32.mrb[0].mxu0
        %v3713 = vadd.f32 %v3672, %v3712
        %v3714 = vpop.f32.mrb[0].mxu0
        %v3715 = vadd.f32 %v3674, %v3714
        %v3716 = vpop.f32.mrb[0].mxu0
        %v3717 = vpop.f32.mrb[0].mxu0
        %3718 = vdwg.mxu0
        %3719 = vmatprep.subr.bf16.mxu0 %v2834
        %3720 = vmatpush1.bf16.msra.mxu0 %v2833
        %3721 = vmatprep.subr.bf16.mxu0 %v2838
        %3722 = vmatpush1.bf16.msra.mxu0 %v2837
        %3723 = vmatprep.subr.bf16.mxu0 %v2842
        %3724 = vmatpush1.bf16.msra.mxu0 %v2841
        %3725 = vmatprep.subr.bf16.mxu0 %v2846
        %3726 = vmatpush1.bf16.msra.mxu0 %v2845
        %3727 = vmatprep.subr.bf16.mxu0 %v2850
        %3728 = vmatpush1.bf16.msra.mxu0 %v2849
        %3729 = vmatprep.subr.bf16.mxu0 %v2854
        %3730 = vmatpush1.bf16.msra.mxu0 %v2853
        %3731 = vmatprep.subr.bf16.mxu0 %v2858
        %3732 = vmatpush1.bf16.msra.mxu0 %v2857
        %3733 = vmatprep.subr.bf16.mxu0 %v2862
        %3734 = vmatpush1.bf16.msra.mxu0 %v2861
        %3735 = vmatprep.subr.bf16.mxu0 %v2866
        %3736 = vmatpush1.bf16.msra.mxu0 %v2865
        %3737 = vmatprep.subr.bf16.mxu0 %v2870
        %3738 = vmatpush1.bf16.msra.mxu0 %v2869
        %3739 = vmatprep.subr.bf16.mxu0 %v2874
        %3740 = vmatpush1.bf16.msra.mxu0 %v2873
        %3741 = vmatprep.subr.bf16.mxu0 %v2878
        %3742 = vmatpush1.bf16.msra.mxu0 %v2877
        %3743 = vmatprep.subr.bf16.mxu0 %v2882
        %3744 = vmatpush1.bf16.msra.mxu0 %v2881
        %3745 = vmatprep.subr.bf16.mxu0 %v2886
        %3746 = vmatpush1.bf16.msra.mxu0 %v2885
        %3747 = vmatprep.subr.bf16.mxu0 %v2890
        %3748 = vmatpush1.bf16.msra.mxu0 %v2889
        %3749 = vmatprep.subr.bf16.mxu0 %v2894
        %3750 = vmatpush1.bf16.msra.mxu0 %v2893
        %3751 = vmatprep.mubr.bf16.mxu0 %v892
        %3752 = vmatmul.mubr.bf16.gmra.mrb[0].mxu0 %v878
        %v3753 = vpop.f32.mrb[0].mxu0
        %v3754 = vadd.f32 %v3713, %v3753
        %v3755 = vpop.f32.mrb[0].mxu0
        %v3756 = vadd.f32 %v3715, %v3755
        %v3757 = vpop.f32.mrb[0].mxu0
        %v3758 = vpop.f32.mrb[0].mxu0
        %3759 = vdwg.mxu0
        %3760 = vmatprep.subr.bf16.mxu0 %v2898
        %3761 = vmatpush1.bf16.msra.mxu0 %v2897
        %3762 = vmatprep.subr.bf16.mxu0 %v2902
        %3763 = vmatpush1.bf16.msra.mxu0 %v2901
        %3764 = vmatprep.subr.bf16.mxu0 %v2906
        %3765 = vmatpush1.bf16.msra.mxu0 %v2905
        %3766 = vmatprep.subr.bf16.mxu0 %v2910
        %3767 = vmatpush1.bf16.msra.mxu0 %v2909
        %3768 = vmatprep.subr.bf16.mxu0 %v2914
        %3769 = vmatpush1.bf16.msra.mxu0 %v2913
        %3770 = vmatprep.subr.bf16.mxu0 %v2918
        %3771 = vmatpush1.bf16.msra.mxu0 %v2917
        %3772 = vmatprep.subr.bf16.mxu0 %v2922
        %3773 = vmatpush1.bf16.msra.mxu0 %v2921
        %3774 = vmatprep.subr.bf16.mxu0 %v2926
        %3775 = vmatpush1.bf16.msra.mxu0 %v2925
        %3776 = vmatprep.subr.bf16.mxu0 %v2930
        %3777 = vmatpush1.bf16.msra.mxu0 %v2929
        %3778 = vmatprep.subr.bf16.mxu0 %v2934
        %3779 = vmatpush1.bf16.msra.mxu0 %v2933
        %3780 = vmatprep.subr.bf16.mxu0 %v2938
        %3781 = vmatpush1.bf16.msra.mxu0 %v2937
        %3782 = vmatprep.subr.bf16.mxu0 %v2942
        %3783 = vmatpush1.bf16.msra.mxu0 %v2941
        %3784 = vmatprep.subr.bf16.mxu0 %v2946
        %3785 = vmatpush1.bf16.msra.mxu0 %v2945
        %3786 = vmatprep.subr.bf16.mxu0 %v2950
        %3787 = vmatpush1.bf16.msra.mxu0 %v2949
        %3788 = vmatprep.subr.bf16.mxu0 %v2954
        %3789 = vmatpush1.bf16.msra.mxu0 %v2953
        %3790 = vmatprep.subr.bf16.mxu0 %v2958
        %3791 = vmatpush1.bf16.msra.mxu0 %v2957
        %3792 = vmatprep.mubr.bf16.mxu0 %v896
        %3793 = vmatmul.mubr.bf16.gmra.mrb[0].mxu0 %v894
        %v3794 = vpop.f32.mrb[0].mxu0
        %v3795 = vadd.f32 %v3754, %v3794
        %v3796 = vpop.f32.mrb[0].mxu0
        %v3797 = vadd.f32 %v3756, %v3796
        %v3798 = vpop.f32.mrb[0].mxu0
        %v3799 = vpop.f32.mrb[0].mxu0
        %3800 = vdwg.mxu0
        %3801 = vmatprep.subr.bf16.mxu0 %v2452
        %3802 = vmatpush1.bf16.msra.mxu0 %v2451
        %3803 = vmatprep.subr.bf16.mxu0 %v2456
        %3804 = vmatpush1.bf16.msra.mxu0 %v2455
        %3805 = vmatprep.subr.bf16.mxu0 %v2460
        %3806 = vmatpush1.bf16.msra.mxu0 %v2459
        %3807 = vmatprep.subr.bf16.mxu0 %v2464
        %3808 = vmatpush1.bf16.msra.mxu0 %v2463
        %3809 = vmatprep.subr.bf16.mxu0 %v2468
        %3810 = vmatpush1.bf16.msra.mxu0 %v2467
        %3811 = vmatprep.subr.bf16.mxu0 %v2472
        %3812 = vmatpush1.bf16.msra.mxu0 %v2471
        %3813 = vmatprep.subr.bf16.mxu0 %v2476
        %3814 = vmatpush1.bf16.msra.mxu0 %v2475
        %3815 = vmatprep.subr.bf16.mxu0 %v2480
        %3816 = vmatpush1.bf16.msra.mxu0 %v2479
        %3817 = vmatprep.subr.bf16.mxu0 %v2484
        %3818 = vmatpush1.bf16.msra.mxu0 %v2483
        %3819 = vmatprep.subr.bf16.mxu0 %v2488
        %3820 = vmatpush1.bf16.msra.mxu0 %v2487
        %3821 = vmatprep.subr.bf16.mxu0 %v2492
        %3822 = vmatpush1.bf16.msra.mxu0 %v2491
        %3823 = vmatprep.subr.bf16.mxu0 %v2496
        %3824 = vmatpush1.bf16.msra.mxu0 %v2495
        %3825 = vmatprep.subr.bf16.mxu0 %v2500
        %3826 = vmatpush1.bf16.msra.mxu0 %v2499
        %3827 = vmatprep.subr.bf16.mxu0 %v2504
        %3828 = vmatpush1.bf16.msra.mxu0 %v2503
        %3829 = vmatprep.subr.bf16.mxu0 %v2508
        %3830 = vmatpush1.bf16.msra.mxu0 %v2507
        %3831 = vmatprep.subr.bf16.mxu0 %v2512
        %3832 = vmatpush1.bf16.msra.mxu0 %v2511
        %3833 = vmatprep.mubr.bf16.mxu0 %v836
        %3834 = vmatmul.mubr.bf16.gmra.mrb[0].mxu0 %v822
        %v3835 = vpop.f32.mrb[0].mxu0
        %v3836 = vadd.f32 0.0, %v3835
        %v3837 = vpop.f32.mrb[0].mxu0
        %v3838 = vadd.f32 0.0, %v3837
        %v3839 = vpop.f32.mrb[0].mxu0
        %v3840 = vpop.f32.mrb[0].mxu0
        %3841 = vdwg.mxu0
        %3842 = vmatprep.subr.bf16.mxu0 %v2516
        %3843 = vmatpush1.bf16.msra.mxu0 %v2515
        %3844 = vmatprep.subr.bf16.mxu0 %v2520
        %3845 = vmatpush1.bf16.msra.mxu0 %v2519
        %3846 = vmatprep.subr.bf16.mxu0 %v2524
        %3847 = vmatpush1.bf16.msra.mxu0 %v2523
        %3848 = vmatprep.subr.bf16.mxu0 %v2528
        %3849 = vmatpush1.bf16.msra.mxu0 %v2527
        %3850 = vmatprep.subr.bf16.mxu0 %v2532
        %3851 = vmatpush1.bf16.msra.mxu0 %v2531
        %3852 = vmatprep.subr.bf16.mxu0 %v2536
        %3853 = vmatpush1.bf16.msra.mxu0 %v2535
        %3854 = vmatprep.subr.bf16.mxu0 %v2540
        %3855 = vmatpush1.bf16.msra.mxu0 %v2539
        %3856 = vmatprep.subr.bf16.mxu0 %v2544
        %3857 = vmatpush1.bf16.msra.mxu0 %v2543
        %3858 = vmatprep.subr.bf16.mxu0 %v2548
        %3859 = vmatpush1.bf16.msra.mxu0 %v2547
        %3860 = vmatprep.subr.bf16.mxu0 %v2552
        %3861 = vmatpush1.bf16.msra.mxu0 %v2551
        %3862 = vmatprep.subr.bf16.mxu0 %v2556
        %3863 = vmatpush1.bf16.msra.mxu0 %v2555
        %3864 = vmatprep.subr.bf16.mxu0 %v2560
        %3865 = vmatpush1.bf16.msra.mxu0 %v2559
        %3866 = vmatprep.subr.bf16.mxu0 %v2564
        %3867 = vmatpush1.bf16.msra.mxu0 %v2563
        %3868 = vmatprep.subr.bf16.mxu0 %v2568
        %3869 = vmatpush1.bf16.msra.mxu0 %v2567
        %3870 = vmatprep.subr.bf16.mxu0 %v2572
        %3871 = vmatpush1.bf16.msra.mxu0 %v2571
        %3872 = vmatprep.subr.bf16.mxu0 %v2576
        %3873 = vmatpush1.bf16.msra.mxu0 %v2575
        %3874 = vmatprep.mubr.bf16.mxu0 %v846
        %3875 = vmatmul.mubr.bf16.gmra.mrb[0].mxu0 %v844
        %v3876 = vpop.f32.mrb[0].mxu0
        %v3877 = vadd.f32 %v3836, %v3876
        %v3878 = vpop.f32.mrb[0].mxu0
        %v3879 = vadd.f32 %v3838, %v3878
        %v3880 = vpop.f32.mrb[0].mxu0
        %v3881 = vpop.f32.mrb[0].mxu0
        %3882 = vdwg.mxu0
        %3883 = vmatprep.subr.bf16.mxu0 %v2580
        %3884 = vmatpush1.bf16.msra.mxu0 %v2579
        %3885 = vmatprep.subr.bf16.mxu0 %v2584
        %3886 = vmatpush1.bf16.msra.mxu0 %v2583
        %3887 = vmatprep.subr.bf16.mxu0 %v2588
        %3888 = vmatpush1.bf16.msra.mxu0 %v2587
        %3889 = vmatprep.subr.bf16.mxu0 %v2592
        %3890 = vmatpush1.bf16.msra.mxu0 %v2591
        %3891 = vmatprep.subr.bf16.mxu0 %v2596
        %3892 = vmatpush1.bf16.msra.mxu0 %v2595
        %3893 = vmatprep.subr.bf16.mxu0 %v2600
        %3894 = vmatpush1.bf16.msra.mxu0 %v2599
        %3895 = vmatprep.subr.bf16.mxu0 %v2604
        %3896 = vmatpush1.bf16.msra.mxu0 %v2603
        %3897 = vmatprep.subr.bf16.mxu0 %v2608
        %3898 = vmatpush1.bf16.msra.mxu0 %v2607
        %3899 = vmatprep.subr.bf16.mxu0 %v2612
        %3900 = vmatpush1.bf16.msra.mxu0 %v2611
        %3901 = vmatprep.subr.bf16.mxu0 %v2616
        %3902 = vmatpush1.bf16.msra.mxu0 %v2615
        %3903 = vmatprep.subr.bf16.mxu0 %v2620
        %3904 = vmatpush1.bf16.msra.mxu0 %v2619
        %3905 = vmatprep.subr.bf16.mxu0 %v2624
        %3906 = vmatpush1.bf16.msra.mxu0 %v2623
        %3907 = vmatprep.subr.bf16.mxu0 %v2628
        %3908 = vmatpush1.bf16.msra.mxu0 %v2627
        %3909 = vmatprep.subr.bf16.mxu0 %v2632
        %3910 = vmatpush1.bf16.msra.mxu0 %v2631
        %3911 = vmatprep.subr.bf16.mxu0 %v2636
        %3912 = vmatpush1.bf16.msra.mxu0 %v2635
        %3913 = vmatprep.subr.bf16.mxu0 %v2640
        %3914 = vmatpush1.bf16.msra.mxu0 %v2639
        %3915 = vmatprep.mubr.bf16.mxu0 %v843
        %3916 = vmatmul.mubr.bf16.gmra.mrb[0].mxu0 %v829
        %v3917 = vpop.f32.mrb[0].mxu0
        %v3918 = vadd.f32 %v3877, %v3917
        %v3919 = vpop.f32.mrb[0].mxu0
        %v3920 = vadd.f32 %v3879, %v3919
        %v3921 = vpop.f32.mrb[0].mxu0
        %v3922 = vpop.f32.mrb[0].mxu0
        %3923 = vdwg.mxu0
        %3924 = vmatprep.subr.bf16.mxu0 %v2644
        %3925 = vmatpush1.bf16.msra.mxu0 %v2643
        %3926 = vmatprep.subr.bf16.mxu0 %v2648
        %3927 = vmatpush1.bf16.msra.mxu0 %v2647
        %3928 = vmatprep.subr.bf16.mxu0 %v2652
        %3929 = vmatpush1.bf16.msra.mxu0 %v2651
        %3930 = vmatprep.subr.bf16.mxu0 %v2656
        %3931 = vmatpush1.bf16.msra.mxu0 %v2655
        %3932 = vmatprep.subr.bf16.mxu0 %v2660
        %3933 = vmatpush1.bf16.msra.mxu0 %v2659
        %3934 = vmatprep.subr.bf16.mxu0 %v2664
        %3935 = vmatpush1.bf16.msra.mxu0 %v2663
        %3936 = vmatprep.subr.bf16.mxu0 %v2668
        %3937 = vmatpush1.bf16.msra.mxu0 %v2667
        %3938 = vmatprep.subr.bf16.mxu0 %v2672
        %3939 = vmatpush1.bf16.msra.mxu0 %v2671
        %3940 = vmatprep.subr.bf16.mxu0 %v2676
        %3941 = vmatpush1.bf16.msra.mxu0 %v2675
        %3942 = vmatprep.subr.bf16.mxu0 %v2680
        %3943 = vmatpush1.bf16.msra.mxu0 %v2679
        %3944 = vmatprep.subr.bf16.mxu0 %v2684
        %3945 = vmatpush1.bf16.msra.mxu0 %v2683
        %3946 = vmatprep.subr.bf16.mxu0 %v2688
        %3947 = vmatpush1.bf16.msra.mxu0 %v2687
        %3948 = vmatprep.subr.bf16.mxu0 %v2692
        %3949 = vmatpush1.bf16.msra.mxu0 %v2691
        %3950 = vmatprep.subr.bf16.mxu0 %v2696
        %3951 = vmatpush1.bf16.msra.mxu0 %v2695
        %3952 = vmatprep.subr.bf16.mxu0 %v2700
        %3953 = vmatpush1.bf16.msra.mxu0 %v2699
        %3954 = vmatprep.subr.bf16.mxu0 %v2704
        %3955 = vmatpush1.bf16.msra.mxu0 %v2703
        %3956 = vmatprep.mubr.bf16.mxu0 %v847
        %3957 = vmatmul.mubr.bf16.gmra.mrb[0].mxu0 %v845
        %v3958 = vpop.f32.mrb[0].mxu0
        %v3959 = vadd.f32 %v3918, %v3958
        %v3960 = vpop.f32.mrb[0].mxu0
        %v3961 = vadd.f32 %v3920, %v3960
        %v3962 = vpop.f32.mrb[0].mxu0
        %v3963 = vpop.f32.mrb[0].mxu0
        %3964 = vdwg.mxu0
        %3965 = vmatprep.subr.bf16.mxu0 %v2708
        %3966 = vmatpush1.bf16.msra.mxu0 %v2707
        %3967 = vmatprep.subr.bf16.mxu0 %v2712
        %3968 = vmatpush1.bf16.msra.mxu0 %v2711
        %3969 = vmatprep.subr.bf16.mxu0 %v2716
        %3970 = vmatpush1.bf16.msra.mxu0 %v2715
        %3971 = vmatprep.subr.bf16.mxu0 %v2720
        %3972 = vmatpush1.bf16.msra.mxu0 %v2719
        %3973 = vmatprep.subr.bf16.mxu0 %v2724
        %3974 = vmatpush1.bf16.msra.mxu0 %v2723
        %3975 = vmatprep.subr.bf16.mxu0 %v2728
        %3976 = vmatpush1.bf16.msra.mxu0 %v2727
        %3977 = vmatprep.subr.bf16.mxu0 %v2732
        %3978 = vmatpush1.bf16.msra.mxu0 %v2731
        %3979 = vmatprep.subr.bf16.mxu0 %v2736
        %3980 = vmatpush1.bf16.msra.mxu0 %v2735
        %3981 = vmatprep.subr.bf16.mxu0 %v2740
        %3982 = vmatpush1.bf16.msra.mxu0 %v2739
        %3983 = vmatprep.subr.bf16.mxu0 %v2744
        %3984 = vmatpush1.bf16.msra.mxu0 %v2743
        %3985 = vmatprep.subr.bf16.mxu0 %v2748
        %3986 = vmatpush1.bf16.msra.mxu0 %v2747
        %3987 = vmatprep.subr.bf16.mxu0 %v2752
        %3988 = vmatpush1.bf16.msra.mxu0 %v2751
        %3989 = vmatprep.subr.bf16.mxu0 %v2756
        %3990 = vmatpush1.bf16.msra.mxu0 %v2755
        %3991 = vmatprep.subr.bf16.mxu0 %v2760
        %3992 = vmatpush1.bf16.msra.mxu0 %v2759
        %3993 = vmatprep.subr.bf16.mxu0 %v2764
        %3994 = vmatpush1.bf16.msra.mxu0 %v2763
        %3995 = vmatprep.subr.bf16.mxu0 %v2768
        %3996 = vmatpush1.bf16.msra.mxu0 %v2767
        %3997 = vmatprep.mubr.bf16.mxu0 %v885
        %3998 = vmatmul.mubr.bf16.gmra.mrb[0].mxu0 %v871
        %v3999 = vpop.f32.mrb[0].mxu0
        %v4000 = vadd.f32 %v3959, %v3999
        %v4001 = vpop.f32.mrb[0].mxu0
        %v4002 = vadd.f32 %v3961, %v4001
        %v4003 = vpop.f32.mrb[0].mxu0
        %v4004 = vpop.f32.mrb[0].mxu0
        %4005 = vdwg.mxu0
        %4006 = vmatprep.subr.bf16.mxu0 %v2772
        %4007 = vmatpush1.bf16.msra.mxu0 %v2771
        %4008 = vmatprep.subr.bf16.mxu0 %v2776
        %4009 = vmatpush1.bf16.msra.mxu0 %v2775
        %4010 = vmatprep.subr.bf16.mxu0 %v2780
        %4011 = vmatpush1.bf16.msra.mxu0 %v2779
        %4012 = vmatprep.subr.bf16.mxu0 %v2784
        %4013 = vmatpush1.bf16.msra.mxu0 %v2783
        %4014 = vmatprep.subr.bf16.mxu0 %v2788
        %4015 = vmatpush1.bf16.msra.mxu0 %v2787
        %4016 = vmatprep.subr.bf16.mxu0 %v2792
        %4017 = vmatpush1.bf16.msra.mxu0 %v2791
        %4018 = vmatprep.subr.bf16.mxu0 %v2796
        %4019 = vmatpush1.bf16.msra.mxu0 %v2795
        %4020 = vmatprep.subr.bf16.mxu0 %v2800
        %4021 = vmatpush1.bf16.msra.mxu0 %v2799
        %4022 = vmatprep.subr.bf16.mxu0 %v2804
        %4023 = vmatpush1.bf16.msra.mxu0 %v2803
        %4024 = vmatprep.subr.bf16.mxu0 %v2808
        %4025 = vmatpush1.bf16.msra.mxu0 %v2807
        %4026 = vmatprep.subr.bf16.mxu0 %v2812
        %4027 = vmatpush1.bf16.msra.mxu0 %v2811
        %4028 = vmatprep.subr.bf16.mxu0 %v2816
        %4029 = vmatpush1.bf16.msra.mxu0 %v2815
        %4030 = vmatprep.subr.bf16.mxu0 %v2820
        %4031 = vmatpush1.bf16.msra.mxu0 %v2819
        %4032 = vmatprep.subr.bf16.mxu0 %v2824
        %4033 = vmatpush1.bf16.msra.mxu0 %v2823
        %4034 = vmatprep.subr.bf16.mxu0 %v2828
        %4035 = vmatpush1.bf16.msra.mxu0 %v2827
        %4036 = vmatprep.subr.bf16.mxu0 %v2832
        %4037 = vmatpush1.bf16.msra.mxu0 %v2831
        %4038 = vmatprep.mubr.bf16.mxu0 %v895
        %4039 = vmatmul.mubr.bf16.gmra.mrb[0].mxu0 %v893
        %v4040 = vpop.f32.mrb[0].mxu0
        %v4041 = vadd.f32 %v4000, %v4040
        %v4042 = vpop.f32.mrb[0].mxu0
        %v4043 = vadd.f32 %v4002, %v4042
        %v4044 = vpop.f32.mrb[0].mxu0
        %v4045 = vpop.f32.mrb[0].mxu0
        %4046 = vdwg.mxu0
        %4047 = vmatprep.subr.bf16.mxu0 %v2836
        %4048 = vmatpush1.bf16.msra.mxu0 %v2835
        %4049 = vmatprep.subr.bf16.mxu0 %v2840
        %4050 = vmatpush1.bf16.msra.mxu0 %v2839
        %4051 = vmatprep.subr.bf16.mxu0 %v2844
        %4052 = vmatpush1.bf16.msra.mxu0 %v2843
        %4053 = vmatprep.subr.bf16.mxu0 %v2848
        %4054 = vmatpush1.bf16.msra.mxu0 %v2847
        %4055 = vmatprep.subr.bf16.mxu0 %v2852
        %4056 = vmatpush1.bf16.msra.mxu0 %v2851
        %4057 = vmatprep.subr.bf16.mxu0 %v2856
        %4058 = vmatpush1.bf16.msra.mxu0 %v2855
        %4059 = vmatprep.subr.bf16.mxu0 %v2860
        %4060 = vmatpush1.bf16.msra.mxu0 %v2859
        %4061 = vmatprep.subr.bf16.mxu0 %v2864
        %4062 = vmatpush1.bf16.msra.mxu0 %v2863
        %4063 = vmatprep.subr.bf16.mxu0 %v2868
        %4064 = vmatpush1.bf16.msra.mxu0 %v2867
        %4065 = vmatprep.subr.bf16.mxu0 %v2872
        %4066 = vmatpush1.bf16.msra.mxu0 %v2871
        %4067 = vmatprep.subr.bf16.mxu0 %v2876
        %4068 = vmatpush1.bf16.msra.mxu0 %v2875
        %4069 = vmatprep.subr.bf16.mxu0 %v2880
        %4070 = vmatpush1.bf16.msra.mxu0 %v2879
        %4071 = vmatprep.subr.bf16.mxu0 %v2884
        %4072 = vmatpush1.bf16.msra.mxu0 %v2883
        %4073 = vmatprep.subr.bf16.mxu0 %v2888
        %4074 = vmatpush1.bf16.msra.mxu0 %v2887
        %4075 = vmatprep.subr.bf16.mxu0 %v2892
        %4076 = vmatpush1.bf16.msra.mxu0 %v2891
        %4077 = vmatprep.subr.bf16.mxu0 %v2896
        %4078 = vmatpush1.bf16.msra.mxu0 %v2895
        %4079 = vmatprep.mubr.bf16.mxu0 %v892
        %4080 = vmatmul.mubr.bf16.gmra.mrb[0].mxu0 %v878
        %v4081 = vpop.f32.mrb[0].mxu0
        %v4082 = vadd.f32 %v4041, %v4081
        %v4083 = vpop.f32.mrb[0].mxu0
        %v4084 = vadd.f32 %v4043, %v4083
        %v4085 = vpop.f32.mrb[0].mxu0
        %v4086 = vpop.f32.mrb[0].mxu0
        %4087 = vdwg.mxu0
        %4088 = vmatprep.subr.bf16.mxu0 %v2900
        %4089 = vmatpush1.bf16.msra.mxu0 %v2899
        %4090 = vmatprep.subr.bf16.mxu0 %v2904
        %4091 = vmatpush1.bf16.msra.mxu0 %v2903
        %4092 = vmatprep.subr.bf16.mxu0 %v2908
        %4093 = vmatpush1.bf16.msra.mxu0 %v2907
        %4094 = vmatprep.subr.bf16.mxu0 %v2912
        %4095 = vmatpush1.bf16.msra.mxu0 %v2911
        %4096 = vmatprep.subr.bf16.mxu0 %v2916
        %4097 = vmatpush1.bf16.msra.mxu0 %v2915
        %4098 = vmatprep.subr.bf16.mxu0 %v2920
        %4099 = vmatpush1.bf16.msra.mxu0 %v2919
        %4100 = vmatprep.subr.bf16.mxu0 %v2924
        %4101 = vmatpush1.bf16.msra.mxu0 %v2923
        %4102 = vmatprep.subr.bf16.mxu0 %v2928
        %4103 = vmatpush1.bf16.msra.mxu0 %v2927
        %4104 = vmatprep.subr.bf16.mxu0 %v2932
        %4105 = vmatpush1.bf16.msra.mxu0 %v2931
        %4106 = vmatprep.subr.bf16.mxu0 %v2936
        %4107 = vmatpush1.bf16.msra.mxu0 %v2935
        %4108 = vmatprep.subr.bf16.mxu0 %v2940
        %4109 = vmatpush1.bf16.msra.mxu0 %v2939
        %4110 = vmatprep.subr.bf16.mxu0 %v2944
        %4111 = vmatpush1.bf16.msra.mxu0 %v2943
        %4112 = vmatprep.subr.bf16.mxu0 %v2948
        %4113 = vmatpush1.bf16.msra.mxu0 %v2947
        %4114 = vmatprep.subr.bf16.mxu0 %v2952
        %4115 = vmatpush1.bf16.msra.mxu0 %v2951
        %4116 = vmatprep.subr.bf16.mxu0 %v2956
        %4117 = vmatpush1.bf16.msra.mxu0 %v2955
        %4118 = vmatprep.subr.bf16.mxu0 %v2960
        %4119 = vmatpush1.bf16.msra.mxu0 %v2959
        %4120 = vmatprep.mubr.bf16.mxu0 %v896
        %4121 = vmatmul.mubr.bf16.gmra.mrb[0].mxu0 %v894
        %v4122 = vpop.f32.mrb[0].mxu0
        %v4123 = vadd.f32 %v4082, %v4122
        %v4124 = vpop.f32.mrb[0].mxu0
        %v4125 = vadd.f32 %v4084, %v4124
        %v4126 = vpop.f32.mrb[0].mxu0
        %v4127 = vpop.f32.mrb[0].mxu0
        %4128 = vdwg.mxu0
        %v4133 = vcombine.low %v3795, %v3797
        %v4134 = vcombine.low %v4123, %v4125
        %v4136 = vunpack.c.l.s4 1983009808
        %v4137 = vunpack.c.0.s8 %v4136
        %v4138 = vlaneseq
        %v4139 = vshrl.u32 %v4138, 7
        %v4140 = vsub.s32 %v4137, %v4139
        %v4141 = vrot.slane %v4133, %v4140
        %v4143 = vunpack.c.l.s4 1983009808
        %v4144 = vunpack.c.0.s8 %v4143
        %v4145 = vlaneseq
        %v4146 = vshrl.u32 %v4145, 7
        %v4147 = vsub.s32 %v4144, %v4146
        %v4148 = vrot.slane %v4134, %v4147
        %v4149 = vcombine.low %v4141, %v4148
        %v4151 = vadd.f32 %v282, %v4149
        %4152 = vst [vmem:[#allocation2] sm:$0xff] %v4151
        %p4153 = scmp.eq.s32.totalorder %s21, 1
        // Predicated region
        $region57: #{convnet_forward.3} parent=39 // pred_check
          %p4154 = pneg %p4153
        $region58: #{convnet_forward.3} parent=39 // pred_check_branch
          %4156 = sbr.rel (%p4154) target = $region60
        $region59: #{convnet_forward.3} parent=39 // pred_region
          %v4157 = vld [vmem:[#allocation2] sm:$0xff]
          %v4158 = vld [vmem:[#allocation6] sm:$0xf]
          %v4160 = vlaneseq
          %v4161 = vshrl.u32 %v4160, 7
          %v4162 = vsub.s32 0, %v4161
          %v4163 = vrot.slane %v4158, %v4162
          %v4164 = vlaneseq
          %v4165 = vshrl.u32 %v4164, 7
          %v4166 = vsub.s32 1, %v4165
          %v4167 = vrot.slane %v4158, %v4166
          %v4168 = vlaneseq
          %v4169 = vshrl.u32 %v4168, 7
          %v4170 = vsub.s32 2, %v4169
          %v4171 = vrot.slane %v4158, %v4170
          %v4172 = vlaneseq
          %v4173 = vshrl.u32 %v4172, 7
          %v4174 = vsub.s32 3, %v4173
          %v4175 = vrot.slane %v4158, %v4174
          %v4176 = vcombine.low %v4163, %v4167
          %v4177 = vcombine.low %v4171, %v4175
          %v4179 = vunpack.c.l.s4 1983009808
          %v4180 = vunpack.c.0.s8 %v4179
          %v4181 = vlaneseq
          %v4182 = vshrl.u32 %v4181, 7
          %v4183 = vsub.s32 %v4180, %v4182
          %v4184 = vrot.slane %v4176, %v4183
          %v4186 = vunpack.c.l.s4 1983009808
          %v4187 = vunpack.c.0.s8 %v4186
          %v4188 = vlaneseq
          %v4189 = vshrl.u32 %v4188, 7
          %v4190 = vsub.s32 %v4187, %v4189
          %v4191 = vrot.slane %v4177, %v4190
          %v4192 = vcombine.low %v4184, %v4191
          %v4194 = vadd.f32 %v4157, %v4192
          %v4195 = vmax.f32 %v4194, 0.0
          %v4196 = vld [vmem:[%s3] sm:$0xff]
          %v4197 = vld [vmem:[%s3 + $0x8] sm:$0xff]
          %v4198 = vld [vmem:[%s3 + $0x10] sm:$0xff]
          %v4199 = vld [vmem:[%s3 + $0x18] sm:$0xff]
          %v4200 = vld [vmem:[%s3 + $0x20] sm:$0xff]
          %v4201 = vld [vmem:[%s3 + $0x28] sm:$0xff]
          %v4202 = vld [vmem:[%s3 + $0x30] sm:$0xff]
          %v4203 = vld [vmem:[%s3 + $0x38] sm:$0xff]
          %v4204 = vld [vmem:[%s3 + $0x40] sm:$0xff]
          %v4205 = vld [vmem:[%s3 + $0x48] sm:$0xff]
          %v4206 = vld [vmem:[%s3 + $0x50] sm:$0xff]
          %v4207 = vld [vmem:[%s3 + $0x58] sm:$0xff]
          %v4208 = vld [vmem:[%s3 + $0x60] sm:$0xff]
          %v4209 = vld [vmem:[%s3 + $0x68] sm:$0xff]
          %v4210 = vld [vmem:[%s3 + $0x70] sm:$0xff]
          %v4211 = vld [vmem:[%s3 + $0x78] sm:$0xff]
          %v4212 = vld [vmem:[%s3 + $0x80] sm:$0xff]
          %v4213 = vld [vmem:[%s3 + $0x88] sm:$0xff]
          %v4214 = vld [vmem:[%s3 + $0x90] sm:$0xff]
          %v4215 = vld [vmem:[%s3 + $0x98] sm:$0xff]
          %v4216 = vld [vmem:[%s3 + $0xa0] sm:$0xff]
          %v4217 = vld [vmem:[%s3 + $0xa8] sm:$0xff]
          %v4218 = vld [vmem:[%s3 + $0xb0] sm:$0xff]
          %v4219 = vld [vmem:[%s3 + $0xb8] sm:$0xff]
          %v4220 = vld [vmem:[%s3 + $0xc0] sm:$0xff]
          %v4221 = vld [vmem:[%s3 + $0xc8] sm:$0xff]
          %v4222 = vld [vmem:[%s3 + $0xd0] sm:$0xff]
          %v4223 = vld [vmem:[%s3 + $0xd8] sm:$0xff]
          %v4224 = vld [vmem:[%s3 + $0xe0] sm:$0xff]
          %v4225 = vld [vmem:[%s3 + $0xe8] sm:$0xff]
          %v4226 = vld [vmem:[%s3 + $0xf0] sm:$0xff]
          %v4227 = vld [vmem:[%s3 + $0xf8] sm:$0xff]
          %v4228 = vld [vmem:[%s3 + $0x100] sm:$0xff]
          %v4229 = vld [vmem:[%s3 + $0x108] sm:$0xff]
          %v4230 = vld [vmem:[%s3 + $0x110] sm:$0xff]
          %v4231 = vld [vmem:[%s3 + $0x118] sm:$0xff]
          %v4232 = vld [vmem:[%s3 + $0x120] sm:$0xff]
          %v4233 = vld [vmem:[%s3 + $0x128] sm:$0xff]
          %v4234 = vld [vmem:[%s3 + $0x130] sm:$0xff]
          %v4235 = vld [vmem:[%s3 + $0x138] sm:$0xff]
          %v4236 = vld [vmem:[%s3 + $0x140] sm:$0xff]
          %v4237 = vld [vmem:[%s3 + $0x148] sm:$0xff]
          %v4238 = vld [vmem:[%s3 + $0x150] sm:$0xff]
          %v4239 = vld [vmem:[%s3 + $0x158] sm:$0xff]
          %v4240 = vld [vmem:[%s3 + $0x160] sm:$0xff]
          %v4241 = vld [vmem:[%s3 + $0x168] sm:$0xff]
          %v4242 = vld [vmem:[%s3 + $0x170] sm:$0xff]
          %v4243 = vld [vmem:[%s3 + $0x178] sm:$0xff]
          %v4244 = vld [vmem:[%s3 + $0x180] sm:$0xff]
          %v4245 = vld [vmem:[%s3 + $0x188] sm:$0xff]
          %v4246 = vld [vmem:[%s3 + $0x190] sm:$0xff]
          %v4247 = vld [vmem:[%s3 + $0x198] sm:$0xff]
          %v4248 = vld [vmem:[%s3 + $0x1a0] sm:$0xff]
          %v4249 = vld [vmem:[%s3 + $0x1a8] sm:$0xff]
          %v4250 = vld [vmem:[%s3 + $0x1b0] sm:$0xff]
          %v4251 = vld [vmem:[%s3 + $0x1b8] sm:$0xff]
          %v4252 = vld [vmem:[%s3 + $0x1c0] sm:$0xff]
          %v4253 = vld [vmem:[%s3 + $0x1c8] sm:$0xff]
          %v4254 = vld [vmem:[%s3 + $0x1d0] sm:$0xff]
          %v4255 = vld [vmem:[%s3 + $0x1d8] sm:$0xff]
          %v4256 = vld [vmem:[%s3 + $0x1e0] sm:$0xff]
          %v4257 = vld [vmem:[%s3 + $0x1e8] sm:$0xff]
          %v4258 = vld [vmem:[%s3 + $0x1f0] sm:$0xff]
          %v4259 = vld [vmem:[%s3 + $0x1f8] sm:$0xff]
          %v4260 = vld [vmem:[#allocation8] sm:$0x1]
          %v4262 = vlaneseq
          %v4263 = vshrl.u32 %v4262, 7
          %v4264 = vsub.s32 0, %v4263
          %v4265 = vrot.slane %v4260, %v4264
          %v4268 = vcombine.high %v4195, %v4195
          %v4270 = vunpack.c.l.s4 1983009808
          %v4271 = vunpack.c.0.s8 %v4270
          %v4272 = vlaneseq
          %v4273 = vshrl.u32 %v4272, 7
          %v4274 = vsub.s32 %v4271, %v4273
          %v4275 = vrot.slane %v4195, %v4274
          %v4277 = vunpack.c.l.s4 1983009808
          %v4278 = vunpack.c.0.s8 %v4277
          %v4279 = vlaneseq
          %v4280 = vshrl.u32 %v4279, 7
          %v4281 = vsub.s32 %v4278, %v4280
          %v4282 = vrot.slane %v4268, %v4281
          %v4283 = vcombine.high %v4275, %v4275
          %v4284 = vcombine.high %v4282, %v4282
          %4289 = vmatprep.subr.mxu0 0.0
          %4290 = vmatpush1.msra.mxu0 %v4196
          %4291 = vmatprep.subr.mxu0 0.0
          %4292 = vmatpush1.msra.mxu0 %v4197
          %4293 = vmatprep.subr.mxu0 0.0
          %4294 = vmatpush1.msra.mxu0 %v4198
          %4295 = vmatprep.subr.mxu0 0.0
          %4296 = vmatpush1.msra.mxu0 %v4199
          %4297 = vmatprep.subr.mxu0 0.0
          %4298 = vmatpush1.msra.mxu0 %v4200
          %4299 = vmatprep.subr.mxu0 0.0
          %4300 = vmatpush1.msra.mxu0 %v4201
          %4301 = vmatprep.subr.mxu0 0.0
          %4302 = vmatpush1.msra.mxu0 %v4202
          %4303 = vmatprep.subr.mxu0 0.0
          %4304 = vmatpush1.msra.mxu0 %v4203
          %4305 = vmatprep.subr.mxu0 0.0
          %4306 = vmatpush1.msra.mxu0 %v4204
          %4307 = vmatprep.subr.mxu0 0.0
          %4308 = vmatpush1.msra.mxu0 %v4205
          %4309 = vmatprep.subr.mxu0 0.0
          %4310 = vmatpush1.msra.mxu0 %v4206
          %4311 = vmatprep.subr.mxu0 0.0
          %4312 = vmatpush1.msra.mxu0 %v4207
          %4313 = vmatprep.subr.mxu0 0.0
          %4314 = vmatpush1.msra.mxu0 %v4208
          %4315 = vmatprep.subr.mxu0 0.0
          %4316 = vmatpush1.msra.mxu0 %v4209
          %4317 = vmatprep.subr.mxu0 0.0
          %4318 = vmatpush1.msra.mxu0 %v4210
          %4319 = vmatprep.subr.mxu0 0.0
          %4320 = vmatpush1.msra.mxu0 %v4211
          %4321 = vmatprep.subr.mxu0 0.0
          %4322 = vmatpush1.msra.mxu0 %v4212
          %4323 = vmatprep.subr.mxu0 0.0
          %4324 = vmatpush1.msra.mxu0 %v4213
          %4325 = vmatprep.subr.mxu0 0.0
          %4326 = vmatpush1.msra.mxu0 %v4214
          %4327 = vmatprep.subr.mxu0 0.0
          %4328 = vmatpush1.msra.mxu0 %v4215
          %4329 = vmatprep.subr.mxu0 0.0
          %4330 = vmatpush1.msra.mxu0 %v4216
          %4331 = vmatprep.subr.mxu0 0.0
          %4332 = vmatpush1.msra.mxu0 %v4217
          %4333 = vmatprep.subr.mxu0 0.0
          %4334 = vmatpush1.msra.mxu0 %v4218
          %4335 = vmatprep.subr.mxu0 0.0
          %4336 = vmatpush1.msra.mxu0 %v4219
          %4337 = vmatprep.subr.mxu0 0.0
          %4338 = vmatpush1.msra.mxu0 %v4220
          %4339 = vmatprep.subr.mxu0 0.0
          %4340 = vmatpush1.msra.mxu0 %v4221
          %4341 = vmatprep.subr.mxu0 0.0
          %4342 = vmatpush1.msra.mxu0 %v4222
          %4343 = vmatprep.subr.mxu0 0.0
          %4344 = vmatpush1.msra.mxu0 %v4223
          %4345 = vmatprep.subr.mxu0 0.0
          %4346 = vmatpush1.msra.mxu0 %v4224
          %4347 = vmatprep.subr.mxu0 0.0
          %4348 = vmatpush1.msra.mxu0 %v4225
          %4349 = vmatprep.subr.mxu0 0.0
          %4350 = vmatpush1.msra.mxu0 %v4226
          %4351 = vmatprep.subr.mxu0 0.0
          %4352 = vmatpush1.msra.mxu0 %v4227
          %4353 = vmatprep.mubr.f32.mxu0 %v4283
          %4354 = vmatmul.mubr.f32.gmra.mrb[0].mxu0 %v4275
          %v4355 = vpop.f32.mrb[0].mxu0
          %v4356 = vadd.f32 %v4265, %v4355
          %v4357 = vpop.f32.mrb[0].mxu0
          %4358 = vdwg.mxu0
          %4359 = vmatprep.subr.mxu0 0.0
          %4360 = vmatpush1.msra.mxu0 %v4228
          %4361 = vmatprep.subr.mxu0 0.0
          %4362 = vmatpush1.msra.mxu0 %v4229
          %4363 = vmatprep.subr.mxu0 0.0
          %4364 = vmatpush1.msra.mxu0 %v4230
          %4365 = vmatprep.subr.mxu0 0.0
          %4366 = vmatpush1.msra.mxu0 %v4231
          %4367 = vmatprep.subr.mxu0 0.0
          %4368 = vmatpush1.msra.mxu0 %v4232
          %4369 = vmatprep.subr.mxu0 0.0
          %4370 = vmatpush1.msra.mxu0 %v4233
          %4371 = vmatprep.subr.mxu0 0.0
          %4372 = vmatpush1.msra.mxu0 %v4234
          %4373 = vmatprep.subr.mxu0 0.0
          %4374 = vmatpush1.msra.mxu0 %v4235
          %4375 = vmatprep.subr.mxu0 0.0
          %4376 = vmatpush1.msra.mxu0 %v4236
          %4377 = vmatprep.subr.mxu0 0.0
          %4378 = vmatpush1.msra.mxu0 %v4237
          %4379 = vmatprep.subr.mxu0 0.0
          %4380 = vmatpush1.msra.mxu0 %v4238
          %4381 = vmatprep.subr.mxu0 0.0
          %4382 = vmatpush1.msra.mxu0 %v4239
          %4383 = vmatprep.subr.mxu0 0.0
          %4384 = vmatpush1.msra.mxu0 %v4240
          %4385 = vmatprep.subr.mxu0 0.0
          %4386 = vmatpush1.msra.mxu0 %v4241
          %4387 = vmatprep.subr.mxu0 0.0
          %4388 = vmatpush1.msra.mxu0 %v4242
          %4389 = vmatprep.subr.mxu0 0.0
          %4390 = vmatpush1.msra.mxu0 %v4243
          %4391 = vmatprep.subr.mxu0 0.0
          %4392 = vmatpush1.msra.mxu0 %v4244
          %4393 = vmatprep.subr.mxu0 0.0
          %4394 = vmatpush1.msra.mxu0 %v4245
          %4395 = vmatprep.subr.mxu0 0.0
          %4396 = vmatpush1.msra.mxu0 %v4246
          %4397 = vmatprep.subr.mxu0 0.0
          %4398 = vmatpush1.msra.mxu0 %v4247
          %4399 = vmatprep.subr.mxu0 0.0
          %4400 = vmatpush1.msra.mxu0 %v4248
          %4401 = vmatprep.subr.mxu0 0.0
          %4402 = vmatpush1.msra.mxu0 %v4249
          %4403 = vmatprep.subr.mxu0 0.0
          %4404 = vmatpush1.msra.mxu0 %v4250
          %4405 = vmatprep.subr.mxu0 0.0
          %4406 = vmatpush1.msra.mxu0 %v4251
          %4407 = vmatprep.subr.mxu0 0.0
          %4408 = vmatpush1.msra.mxu0 %v4252
          %4409 = vmatprep.subr.mxu0 0.0
          %4410 = vmatpush1.msra.mxu0 %v4253
          %4411 = vmatprep.subr.mxu0 0.0
          %4412 = vmatpush1.msra.mxu0 %v4254
          %4413 = vmatprep.subr.mxu0 0.0
          %4414 = vmatpush1.msra.mxu0 %v4255
          %4415 = vmatprep.subr.mxu0 0.0
          %4416 = vmatpush1.msra.mxu0 %v4256
          %4417 = vmatprep.subr.mxu0 0.0
          %4418 = vmatpush1.msra.mxu0 %v4257
          %4419 = vmatprep.subr.mxu0 0.0
          %4420 = vmatpush1.msra.mxu0 %v4258
          %4421 = vmatprep.subr.mxu0 0.0
          %4422 = vmatpush1.msra.mxu0 %v4259
          %4423 = vmatprep.mubr.f32.mxu0 %v4284
          %4424 = vmatmul.mubr.f32.gmra.mrb[0].mxu0 %v4282
          %v4425 = vpop.f32.mrb[0].mxu0
          %v4426 = vadd.f32 %v4356, %v4425
          %v4427 = vpop.f32.mrb[0].mxu0
          %4428 = vdwg.mxu0
          %vm4429 = vcmask 123904
          %4430 = vst.msk [vmem:[#allocation9] sm:$0x3] %vm4429, %v4426
        $region60: #{convnet_forward.3} parent=39 // pred_fallthru
          _
        // Predicated region
        $region61: #{convnet_forward.3} parent=39 // pred_check
          %p4431 = pneg %p149
        $region62: #{convnet_forward.3} parent=39 // pred_check_branch
          %4433 = sbr.rel (%p4431) target = $region64
        $region63: #{convnet_forward.3} parent=39 // pred_region
          %s4435 = ssub.s32 32, 32
          %4436 = vsyncadd [#allocation5], %s4435
          %s4438 = sshll.u32 [#allocation9], 4
          %s4439 = int_to_ptr.vmem [resolvable:$true] %s4438
          %4441 = dma.vmem_to_hbm [thread:$0]  %s4439, 32, %s5, [#allocation5]
        $region64: #{convnet_forward.3} parent=39 // pred_fallthru
          _
        // Predicated region
        $region65: #{convnet_forward.3} parent=39 // pred_check
          %p4442 = pneg %p149
        $region66: #{convnet_forward.3} parent=39 // pred_check_branch
          %4444 = sbr.rel (%p4442) target = $region68
        $region67: #{convnet_forward.3} parent=39 // pred_region
          %4445 = dma.done [#allocation5], 32
        $region68: #{convnet_forward.3} parent=39 // pred_fallthru
          _
      $region40: #{convnet_forward.3} parent=5 // pred_fallthru
        _
      %p4446 = scmp.le.s32.totalorder 2, %s16
      // Predicated region
      $region69: #{convnet_forward.3} parent=5 // pred_check
        %p4447 = pneg %p4446
      $region70: #{convnet_forward.3} parent=5 // pred_check_branch
        %4449 = sbr.rel (%p4447) target = $region72
      $region71: #{convnet_forward.3} parent=5 // pred_region
        %s4450 = ssub.s32 %s16, 2
      $region72: #{convnet_forward.3} parent=5 // pred_fallthru
        _
    $region6: #{convnet_forward.3} parent=1 // loop_footer
      %s20 = sadd.s32 1, %s16
    $region7: #{convnet_forward.3} parent=1 // loop_footer_branch
      %15 = sbr.rel target = $region3
    $region8: #{convnet_forward.3} parent=1 // loop_exit
      _
    %4451 = vsyncpa [#allocation4], 1
    %s4452 = scalar_lea.sflag [#allocation4], 1
    %4453 = vsyncpa %s4452, 1
    %4454 = vsyncpa [#allocation7], 1
    %4455 = vsyncpa [#allocation5], 1
    %s4456 = scalar_lea.sflag [#allocation5], 1
    %4457 = vsyncpa %s4456, 1

</llo_original>
